<compile_context>
chip_gen: v6e
topology: v6e:2x2x1
jax: 0.10.0
libtpu: 0.0.40
codegen_flags: <defaults>
</compile_context>

<pallas_src>
import functools
import math

import jax
import jax.numpy as jnp
import numpy as np
from jax.experimental import pallas as pl
from jax.experimental.pallas import tpu as pltpu

# ---------------- small synthetic ViT config ----------------
IMG = 16
PATCH = 4
IN_CHANS = 3
EMBED = 128
DEPTH = 2
HEADS = 4
MLP_RATIO = 4.0
NUM_CLASSES = 16
EPS = 1e-5                                   # nn.LayerNorm default

NUM_PATCHES = (IMG // PATCH) ** 2            # 16
SEQ = NUM_PATCHES + 1                        # 17 (CLS + patches)
SEQ_PAD = 24                                 # padded to sublane multiple of 8
HEAD_DIM = EMBED // HEADS                    # 32
HIDDEN = int(EMBED * MLP_RATIO)              # 512
PATCH_DIM = IN_CHANS * PATCH * PATCH         # 48
CLS_PAD = 128                                # lane-dense padded head output width


# ---------------- in-kernel math helpers ----------------
def _erf_approx(x):
    # Abramowitz & Stegun 7.1.26, |err| < 1.5e-7.
    a1, a2, a3, a4, a5 = 0.254829592, -0.284496736, 1.421413741, -1.453152027, 1.061405429
    p = 0.3275911
    ax = jnp.abs(x)
    t = 1.0 / (1.0 + p * ax)
    poly = ((((a5 * t + a4) * t + a3) * t + a2) * t + a1) * t
    y = 1.0 - poly * jnp.exp(-ax * ax)
    return jnp.where(x >= 0, y, -y)


def _gelu(x):
    # exact (erf-based) GELU, matching nn.GELU() default (approximate='none')
    return 0.5 * x * (1.0 + _erf_approx(x * (1.0 / math.sqrt(2.0))))


def _layernorm(x, w, b):
    mu = jnp.mean(x, axis=-1, keepdims=True)
    var = jnp.mean((x - mu) ** 2, axis=-1, keepdims=True)
    return (x - mu) * jax.lax.rsqrt(var + EPS) * w + b


# ---------------- fully fused ViT forward kernel ----------------
def _vit_kernel(b_size,
                patches_ref, pe_w_ref, add_ref,
                ln1w_ref, ln1b_ref, qkvw_ref, qkvb_ref, projw_ref, projb_ref,
                ln2w_ref, ln2b_ref, fc1w_ref, fc1b_ref, fc2w_ref, fc2b_ref,
                lnw_ref, lnb_ref, headw_ref, headb_ref, o_ref):
    f32 = jnp.float32

    # ---- patch embedding + CLS/pos/bias add for ALL rows in one shot ----
    # patches_ref: (B*SEQ_PAD, PATCH_DIM) with zero rows for CLS / padding,
    # add_ref:     (B*SEQ_PAD, EMBED) = per-row (cls+pos) | (pe_b+pos) | 0.
    x = jnp.dot(patches_ref[...], pe_w_ref[...],
                preferred_element_type=f32) + add_ref[...]           # (B*SP, C)

    # Attention key mask: padded key columns get a large negative bias.
    col_ids = jax.lax.broadcasted_iota(jnp.int32, (SEQ_PAD, SEQ_PAD), 1)
    key_mask = jnp.where(col_ids < SEQ, 0.0, -1e30).astype(f32)      # (SEQ_PAD, SEQ_PAD)

    scale = HEAD_DIM ** (-0.5)

    # ---- transformer blocks (depth unrolled in Python) ----
    for d in range(DEPTH):
        ln1w, ln1b = ln1w_ref[d], ln1b_ref[d]
        qkvw, qkvb = qkvw_ref[d], qkvb_ref[d]
        projw, projb = projw_ref[d], projb_ref[d]
        ln2w, ln2b = ln2w_ref[d], ln2b_ref[d]
        fc1w, fc1b = fc1w_ref[d], fc1b_ref[d]
        fc2w, fc2b = fc2w_ref[d], fc2b_ref[d]

        # --- attention branch ---
        h = _layernorm(x, ln1w, ln1b)                                # (B*SP, C)
        qkv = jnp.dot(h, qkvw, preferred_element_type=f32) + qkvb    # (B*SP, 3C)

        attn_parts = []
        for b in range(b_size):
            base = b * SEQ_PAD                                       # sublane-aligned
            qkv_b = qkv[base:base + SEQ_PAD, :]                      # (SP, 3C)
            q = qkv_b[:, 0 * EMBED:1 * EMBED] * scale                # fold scale into q
            k = qkv_b[:, 1 * EMBED:2 * EMBED]
            v = qkv_b[:, 2 * EMBED:3 * EMBED]
            acc = jnp.zeros((SEQ_PAD, EMBED), f32)
            for hh in range(HEADS):
                sl = slice(hh * HEAD_DIM, (hh + 1) * HEAD_DIM)
                qh, kh, vh = q[:, sl], k[:, sl], v[:, sl]
                s = jax.lax.dot_general(qh, kh, (((1,), (1,)), ((), ())),
                                        preferred_element_type=f32) + key_mask
                s = s - jnp.max(s, axis=-1, keepdims=True)
                p = jnp.exp(s)
                p = p * pl.reciprocal(jnp.sum(p, axis=-1, keepdims=True), approx=False)
                ctx = jnp.dot(p, vh, preferred_element_type=f32)     # (SP, HD)
                # fuse proj into the head loop -> no lane-axis concatenate
                acc = acc + jnp.dot(ctx, projw[sl, :], preferred_element_type=f32)
            attn_parts.append(acc)
        attn_out = jnp.concatenate(attn_parts, axis=0) + projb       # (B*SP, C)
        x = x + attn_out

        # --- MLP branch ---
        h2 = _layernorm(x, ln2w, ln2b)
        m = jnp.dot(h2, fc1w, preferred_element_type=f32) + fc1b
        m = _gelu(m)
        x = x + jnp.dot(m, fc2w, preferred_element_type=f32) + fc2b

    # ---- final LN + classification head on the WHOLE slab (lane/sublane dense
    # output store); CLS rows are selected in the wrapper ----
    h_fin = _layernorm(x, lnw_ref[...], lnb_ref[...])
    o_ref[...] = jnp.dot(h_fin, headw_ref[...],
                         preferred_element_type=f32) + headb_ref[...]  # (B*SP, CLS_PAD)


# ---------------- pallas_call wrapper ----------------
def _full_spec(shape):
    nd = len(shape)
    return pl.BlockSpec(tuple(int(s) for s in shape), lambda i, _nd=nd: (0,) * _nd)


def _extract_patches(x):
    # NCHW -> (B, num_patches, C*p*p); equivalent to Conv2d(k=p, stride=p) im2col,
    # per-patch features flattened in (c, i, j) order to match the weight layout.
    B = x.shape[0]
    xp = x.reshape(B, IN_CHANS, IMG // PATCH, PATCH, IMG // PATCH, PATCH)
    xp = xp.transpose(0, 2, 4, 1, 3, 5).reshape(B, NUM_PATCHES, PATCH_DIM)
    return xp


def vit_forward(x, params):
    B = x.shape[0]

    # pre-pad patches to the (B*SEQ_PAD, PATCH_DIM) slab (row 0 = CLS slot,
    # rows SEQ.. = padding, both zero) so the kernel does a single matmul.
    patches = _extract_patches(x)                                    # (B, NP, PD)
    patches_pad = jnp.zeros((B, SEQ_PAD, PATCH_DIM), jnp.float32)
    patches_pad = patches_pad.at[:, 1:SEQ, :].set(patches)
    patches_pad = patches_pad.reshape(B * SEQ_PAD, PATCH_DIM)

    # additive slab: row 0 = cls + pos[0]; patch rows = pe_b + pos[i]; pad rows = 0
    add = jnp.zeros((SEQ_PAD, EMBED), jnp.float32)
    add = add.at[0, :].set(params["cls"][0] + params["pos"][0])
    add = add.at[1:SEQ, :].set(params["pos"][1:] + params["pe_b"])
    add_full = jnp.tile(add[None], (B, 1, 1)).reshape(B * SEQ_PAD, EMBED)

    # lane-dense head weights (pad 16 classes -> 128 lanes with zeros)
    head_w_pad = jnp.zeros((EMBED, CLS_PAD), jnp.float32).at[:, :NUM_CLASSES].set(params["head_w"])
    head_b_pad = jnp.zeros((1, CLS_PAD), jnp.float32).at[:, :NUM_CLASSES].set(params["head_b"])

    def stk(name):
        return jnp.stack([bp[name] for bp in params["blocks"]], axis=0)

    args = (patches_pad, params["pe_w"], add_full,
            stk("ln1_w"), stk("ln1_b"), stk("qkv_w"), stk("qkv_b"),
            stk("proj_w"), stk("proj_b"), stk("ln2_w"), stk("ln2_b"),
            stk("fc1_w"), stk("fc1_b"), stk("fc2_w"), stk("fc2_b"),
            params["ln_w"], params["ln_b"], head_w_pad, head_b_pad)

    out = pl.pallas_call(
        functools.partial(_vit_kernel, B),
        out_shape=jax.ShapeDtypeStruct((B * SEQ_PAD, CLS_PAD), jnp.float32),
        grid=(1,),                         # single fused step: whole model VMEM-resident
        in_specs=[_full_spec(a.shape) for a in args],
        out_specs=_full_spec((B * SEQ_PAD, CLS_PAD)),
        compiler_params=pltpu.CompilerParams(
            dimension_semantics=("arbitrary",),
            vmem_limit_bytes=64 * 1024 * 1024),
    )(*args)
    # TODO(synk): if scaled to a real ViT (EMBED>=768, DEPTH>=12), stream per-block
    # weights over a depth grid axis instead of keeping them all VMEM-resident.
    out = out.reshape(B, SEQ_PAD, CLS_PAD)
    return out[:, 0, :NUM_CLASSES]


# ---------------- deterministic synthetic parameters ----------------
def init_params(key):
    keys = jax.random.split(key, 8 + DEPTH)

    def nrm(k, shape, scale=0.02):
        return (scale * jax.random.normal(k, shape)).astype(jnp.float32)

    params = {
        "pe_w": nrm(keys[0], (PATCH_DIM, EMBED), 0.05),       # conv weight, (C*p*p, embed)
        "pe_b": nrm(keys[1], (1, EMBED)),
        "cls": nrm(keys[2], (1, EMBED)),
        "pos": nrm(keys[3], (SEQ, EMBED)),
        "ln_w": jnp.ones((1, EMBED), jnp.float32),
        "ln_b": jnp.zeros((1, EMBED), jnp.float32),
        "head_w": nrm(keys[4], (EMBED, NUM_CLASSES)),
        "head_b": jnp.zeros((1, NUM_CLASSES), jnp.float32),
        "blocks": [],
    }
    for d in range(DEPTH):
        bk = jax.random.split(keys[8 + d], 4)
        params["blocks"].append({
            "ln1_w": jnp.ones((1, EMBED), jnp.float32),
            "ln1_b": jnp.zeros((1, EMBED), jnp.float32),
            "qkv_w": nrm(bk[0], (EMBED, 3 * EMBED)),          # stored (in, out)
            "qkv_b": jnp.zeros((1, 3 * EMBED), jnp.float32),  # qkv_bias=True
            "proj_w": nrm(bk[1], (EMBED, EMBED)),
            "proj_b": jnp.zeros((1, EMBED), jnp.float32),
            "ln2_w": jnp.ones((1, EMBED), jnp.float32),
            "ln2_b": jnp.zeros((1, EMBED), jnp.float32),
            "fc1_w": nrm(bk[2], (EMBED, HIDDEN)),
            "fc1_b": jnp.zeros((1, HIDDEN), jnp.float32),
            "fc2_w": nrm(bk[3], (HIDDEN, EMBED)),
            "fc2_b": jnp.zeros((1, EMBED), jnp.float32),
        })
    return params


# ---------------- pure-JAX reference (mirrors PyTorch semantics) ----------------
def vit_reference(x, params):
    B = x.shape[0]
    xp = _extract_patches(x)
    h = xp @ params["pe_w"] + params["pe_b"]
    cls = jnp.broadcast_to(params["cls"][None], (B, 1, EMBED))
    h = jnp.concatenate([cls, h], axis=1) + params["pos"][None]

    def ln(z, w, b):
        mu = z.mean(-1, keepdims=True)
        var = ((z - mu) ** 2).mean(-1, keepdims=True)
        return (z - mu) / jnp.sqrt(var + EPS) * w + b

    for bp in params["blocks"]:
        y = ln(h, bp["ln1_w"], bp["ln1_b"])
        qkv = y @ bp["qkv_w"] + bp["qkv_b"]
        qkv = qkv.reshape(B, SEQ, 3, HEADS, HEAD_DIM).transpose(2, 0, 3, 1, 4)
        q, k, v = qkv[0], qkv[1], qkv[2]
        att = (q @ jnp.swapaxes(k, -1, -2)) * (HEAD_DIM ** (-0.5))
        att = jax.nn.softmax(att, axis=-1)
        ctx = (att @ v).transpose(0, 2, 1, 3).reshape(B, SEQ, EMBED)
        h = h + ctx @ bp["proj_w"] + bp["proj_b"]
        y = ln(h, bp["ln2_w"], bp["ln2_b"])
        m = jax.nn.gelu(y @ bp["fc1_w"] + bp["fc1_b"], approximate=False)
        h = h + m @ bp["fc2_w"] + bp["fc2_b"]
    h = ln(h, params["ln_w"], params["ln_b"])
    return h[:, 0] @ params["head_w"] + params["head_b"]


if __name__ == "__main__":
    key = jax.random.PRNGKey(0)
    pkey, xkey = jax.random.split(key)
    params = init_params(pkey)
    x = jax.random.normal(xkey, (2, IN_CHANS, IMG, IMG), dtype=jnp.float32)

    out = vit_forward(x, params)
    out = jax.block_until_ready(out)

    ref = vit_reference(x, params)
    assert out.shape == (2, NUM_CLASSES)
    np.testing.assert_allclose(np.asarray(out), np.asarray(ref), rtol=1e-4, atol=1e-4)
    print("KERNEL_OK")
</pallas_src>

<mosaic_0001>
module attributes {stable_mosaic.version = 11 : i64} {
  func.func @_vit_kernel(%arg0: i32, %arg1: memref<48x48xf32, #tpu.memory_space<vmem>>, %arg2: memref<48x128xf32, #tpu.memory_space<vmem>>, %arg3: memref<48x128xf32, #tpu.memory_space<vmem>>, %arg4: memref<2x1x128xf32, #tpu.memory_space<vmem>>, %arg5: memref<2x1x128xf32, #tpu.memory_space<vmem>>, %arg6: memref<2x128x384xf32, #tpu.memory_space<vmem>>, %arg7: memref<2x1x384xf32, #tpu.memory_space<vmem>>, %arg8: memref<2x128x128xf32, #tpu.memory_space<vmem>>, %arg9: memref<2x1x128xf32, #tpu.memory_space<vmem>>, %arg10: memref<2x1x128xf32, #tpu.memory_space<vmem>>, %arg11: memref<2x1x128xf32, #tpu.memory_space<vmem>>, %arg12: memref<2x128x512xf32, #tpu.memory_space<vmem>>, %arg13: memref<2x1x512xf32, #tpu.memory_space<vmem>>, %arg14: memref<2x512x128xf32, #tpu.memory_space<vmem>>, %arg15: memref<2x1x128xf32, #tpu.memory_space<vmem>>, %arg16: memref<1x128xf32, #tpu.memory_space<vmem>>, %arg17: memref<1x128xf32, #tpu.memory_space<vmem>>, %arg18: memref<128x128xf32, #tpu.memory_space<vmem>>, %arg19: memref<1x128xf32, #tpu.memory_space<vmem>>, %arg20: memref<48x128xf32, #tpu.memory_space<vmem>>) attributes {dimension_semantics = [#tpu.dimension_semantics<arbitrary>], iteration_bounds = array<i64: 1>, scalar_prefetch = 0 : i64, scratch_operands = 0 : i64, tpu.core_type = #tpu.core_type<tc>, window_params = [{pipeline_mode = #tpu.pipeline_mode<synchronous>, transform_indices = @transform_0, window_bounds = array<i64: 48, 48>}, {pipeline_mode = #tpu.pipeline_mode<synchronous>, transform_indices = @transform_1, window_bounds = array<i64: 48, 128>}, {pipeline_mode = #tpu.pipeline_mode<synchronous>, transform_indices = @transform_2, window_bounds = array<i64: 48, 128>}, {pipeline_mode = #tpu.pipeline_mode<synchronous>, transform_indices = @transform_3, window_bounds = array<i64: 2, 1, 128>}, {pipeline_mode = #tpu.pipeline_mode<synchronous>, transform_indices = @transform_4, window_bounds = array<i64: 2, 1, 128>}, {pipeline_mode = #tpu.pipeline_mode<synchronous>, transform_indices = @transform_5, window_bounds = array<i64: 2, 128, 384>}, {pipeline_mode = #tpu.pipeline_mode<synchronous>, transform_indices = @transform_6, window_bounds = array<i64: 2, 1, 384>}, {pipeline_mode = #tpu.pipeline_mode<synchronous>, transform_indices = @transform_7, window_bounds = array<i64: 2, 128, 128>}, {pipeline_mode = #tpu.pipeline_mode<synchronous>, transform_indices = @transform_8, window_bounds = array<i64: 2, 1, 128>}, {pipeline_mode = #tpu.pipeline_mode<synchronous>, transform_indices = @transform_9, window_bounds = array<i64: 2, 1, 128>}, {pipeline_mode = #tpu.pipeline_mode<synchronous>, transform_indices = @transform_10, window_bounds = array<i64: 2, 1, 128>}, {pipeline_mode = #tpu.pipeline_mode<synchronous>, transform_indices = @transform_11, window_bounds = array<i64: 2, 128, 512>}, {pipeline_mode = #tpu.pipeline_mode<synchronous>, transform_indices = @transform_12, window_bounds = array<i64: 2, 1, 512>}, {pipeline_mode = #tpu.pipeline_mode<synchronous>, transform_indices = @transform_13, window_bounds = array<i64: 2, 512, 128>}, {pipeline_mode = #tpu.pipeline_mode<synchronous>, transform_indices = @transform_14, window_bounds = array<i64: 2, 1, 128>}, {pipeline_mode = #tpu.pipeline_mode<synchronous>, transform_indices = @transform_15, window_bounds = array<i64: 1, 128>}, {pipeline_mode = #tpu.pipeline_mode<synchronous>, transform_indices = @transform_16, window_bounds = array<i64: 1, 128>}, {pipeline_mode = #tpu.pipeline_mode<synchronous>, transform_indices = @transform_17, window_bounds = array<i64: 128, 128>}, {pipeline_mode = #tpu.pipeline_mode<synchronous>, transform_indices = @transform_18, window_bounds = array<i64: 1, 128>}, {pipeline_mode = #tpu.pipeline_mode<synchronous>, transform_indices = @transform_19, window_bounds = array<i64: 48, 128>}]} {
    %c0 = arith.constant 0 : index
    %c0_0 = arith.constant 0 : index
    %0 = vector.load %arg1[%c0, %c0_0] : memref<48x48xf32, #tpu.memory_space<vmem>>, vector<48x48xf32>
    %c0_1 = arith.constant 0 : index
    %c0_2 = arith.constant 0 : index
    %1 = vector.load %arg2[%c0_1, %c0_2] : memref<48x128xf32, #tpu.memory_space<vmem>>, vector<48x128xf32>
    %cst = arith.constant dense<0.000000e+00> : vector<48x128xf32>
    %2 = tpu.matmul %0, %1, %cst {dimension_numbers = #tpu.dot_dimension_numbers<[1], [0], [0], [1], [0, 0, 1, 1], [], []>} : vector<48x48xf32>, vector<48x128xf32>, vector<48x128xf32> -> vector<48x128xf32>
    %c0_3 = arith.constant 0 : index
    %c0_4 = arith.constant 0 : index
    %3 = vector.load %arg3[%c0_3, %c0_4] : memref<48x128xf32, #tpu.memory_space<vmem>>, vector<48x128xf32>
    %4 = arith.addf %2, %3 : vector<48x128xf32>
    %5 = tpu.iota {dimensions = array<i32: 1>} : vector<24x24xi32>
    %c17_i32 = arith.constant 17 : i32
    %6 = vector.broadcast %c17_i32 : i32 to vector<24x24xi32>
    %7 = arith.cmpi slt, %5, %6 : vector<24x24xi32>
    %cst_5 = arith.constant 0.000000e+00 : f32
    %cst_6 = arith.constant -1.000000e+30 : f32
    %8 = vector.broadcast %cst_5 : f32 to vector<24x24xf32>
    %9 = vector.broadcast %cst_6 : f32 to vector<24x24xf32>
    %10 = arith.select %7, %8, %9 : vector<24x24xi1>, vector<24x24xf32>
    %c0_7 = arith.constant 0 : index
    %c0_8 = arith.constant 0 : index
    %c0_9 = arith.constant 0 : index
    %11 = vector.load %arg4[%c0_7, %c0_8, %c0_9] : memref<2x1x128xf32, #tpu.memory_space<vmem>>, vector<1x1x128xf32>
    %12 = vector.shape_cast %11 : vector<1x1x128xf32> to vector<1x128xf32>
    %c0_10 = arith.constant 0 : index
    %c0_11 = arith.constant 0 : index
    %c0_12 = arith.constant 0 : index
    %13 = vector.load %arg5[%c0_10, %c0_11, %c0_12] : memref<2x1x128xf32, #tpu.memory_space<vmem>>, vector<1x1x128xf32>
    %14 = vector.shape_cast %13 : vector<1x1x128xf32> to vector<1x128xf32>
    %c0_13 = arith.constant 0 : index
    %c0_14 = arith.constant 0 : index
    %c0_15 = arith.constant 0 : index
    %15 = vector.load %arg6[%c0_13, %c0_14, %c0_15] : memref<2x128x384xf32, #tpu.memory_space<vmem>>, vector<1x128x384xf32>
    %16 = vector.shape_cast %15 : vector<1x128x384xf32> to vector<128x384xf32>
    %c0_16 = arith.constant 0 : index
    %c0_17 = arith.constant 0 : index
    %c0_18 = arith.constant 0 : index
    %17 = vector.load %arg7[%c0_16, %c0_17, %c0_18] : memref<2x1x384xf32, #tpu.memory_space<vmem>>, vector<1x1x384xf32>
    %18 = vector.shape_cast %17 : vector<1x1x384xf32> to vector<1x384xf32>
    %c0_19 = arith.constant 0 : index
    %c0_20 = arith.constant 0 : index
    %c0_21 = arith.constant 0 : index
    %19 = vector.load %arg8[%c0_19, %c0_20, %c0_21] : memref<2x128x128xf32, #tpu.memory_space<vmem>>, vector<1x128x128xf32>
    %20 = vector.shape_cast %19 : vector<1x128x128xf32> to vector<128x128xf32>
    %c0_22 = arith.constant 0 : index
    %c0_23 = arith.constant 0 : index
    %c0_24 = arith.constant 0 : index
    %21 = vector.load %arg9[%c0_22, %c0_23, %c0_24] : memref<2x1x128xf32, #tpu.memory_space<vmem>>, vector<1x1x128xf32>
    %22 = vector.shape_cast %21 : vector<1x1x128xf32> to vector<1x128xf32>
    %c0_25 = arith.constant 0 : index
    %c0_26 = arith.constant 0 : index
    %c0_27 = arith.constant 0 : index
    %23 = vector.load %arg10[%c0_25, %c0_26, %c0_27] : memref<2x1x128xf32, #tpu.memory_space<vmem>>, vector<1x1x128xf32>
    %24 = vector.shape_cast %23 : vector<1x1x128xf32> to vector<1x128xf32>
    %c0_28 = arith.constant 0 : index
    %c0_29 = arith.constant 0 : index
    %c0_30 = arith.constant 0 : index
    %25 = vector.load %arg11[%c0_28, %c0_29, %c0_30] : memref<2x1x128xf32, #tpu.memory_space<vmem>>, vector<1x1x128xf32>
    %26 = vector.shape_cast %25 : vector<1x1x128xf32> to vector<1x128xf32>
    %c0_31 = arith.constant 0 : index
    %c0_32 = arith.constant 0 : index
    %c0_33 = arith.constant 0 : index
    %27 = vector.load %arg12[%c0_31, %c0_32, %c0_33] : memref<2x128x512xf32, #tpu.memory_space<vmem>>, vector<1x128x512xf32>
    %28 = vector.shape_cast %27 : vector<1x128x512xf32> to vector<128x512xf32>
    %c0_34 = arith.constant 0 : index
    %c0_35 = arith.constant 0 : index
    %c0_36 = arith.constant 0 : index
    %29 = vector.load %arg13[%c0_34, %c0_35, %c0_36] : memref<2x1x512xf32, #tpu.memory_space<vmem>>, vector<1x1x512xf32>
    %30 = vector.shape_cast %29 : vector<1x1x512xf32> to vector<1x512xf32>
    %c0_37 = arith.constant 0 : index
    %c0_38 = arith.constant 0 : index
    %c0_39 = arith.constant 0 : index
    %31 = vector.load %arg14[%c0_37, %c0_38, %c0_39] : memref<2x512x128xf32, #tpu.memory_space<vmem>>, vector<1x512x128xf32>
    %32 = vector.shape_cast %31 : vector<1x512x128xf32> to vector<512x128xf32>
    %c0_40 = arith.constant 0 : index
    %c0_41 = arith.constant 0 : index
    %c0_42 = arith.constant 0 : index
    %33 = vector.load %arg15[%c0_40, %c0_41, %c0_42] : memref<2x1x128xf32, #tpu.memory_space<vmem>>, vector<1x1x128xf32>
    %34 = vector.shape_cast %33 : vector<1x1x128xf32> to vector<1x128xf32>
    %cst_43 = arith.constant dense<0.000000e+00> : vector<48xf32>
    %35 = vector.multi_reduction <add>, %4, %cst_43 [1] : vector<48x128xf32> to vector<48xf32>
    %36 = vector.shape_cast %35 : vector<48xf32> to vector<48x1xf32>
    %cst_44 = arith.constant 1.280000e+02 : f32
    %37 = vector.broadcast %cst_44 : f32 to vector<48x1xf32>
    %38 = arith.divf %36, %37 : vector<48x1xf32>
    %39 = vector.broadcast %38 : vector<48x1xf32> to vector<48x128xf32>
    %40 = arith.subf %4, %39 : vector<48x128xf32>
    %41 = arith.mulf %40, %40 : vector<48x128xf32>
    %cst_45 = arith.constant dense<0.000000e+00> : vector<48xf32>
    %42 = vector.multi_reduction <add>, %41, %cst_45 [1] : vector<48x128xf32> to vector<48xf32>
    %43 = vector.shape_cast %42 : vector<48xf32> to vector<48x1xf32>
    %cst_46 = arith.constant 1.280000e+02 : f32
    %44 = vector.broadcast %cst_46 : f32 to vector<48x1xf32>
    %45 = arith.divf %43, %44 : vector<48x1xf32>
    %46 = vector.broadcast %38 : vector<48x1xf32> to vector<48x128xf32>
    %47 = arith.subf %4, %46 : vector<48x128xf32>
    %cst_47 = arith.constant 9.99999974E-6 : f32
    %48 = vector.broadcast %cst_47 : f32 to vector<48x1xf32>
    %49 = arith.addf %45, %48 : vector<48x1xf32>
    %50 = math.rsqrt %49 : vector<48x1xf32>
    %51 = vector.broadcast %50 : vector<48x1xf32> to vector<48x128xf32>
    %52 = arith.mulf %47, %51 : vector<48x128xf32>
    %53 = vector.broadcast %12 : vector<1x128xf32> to vector<48x128xf32>
    %54 = arith.mulf %52, %53 : vector<48x128xf32>
    %55 = vector.broadcast %14 : vector<1x128xf32> to vector<48x128xf32>
    %56 = arith.addf %54, %55 : vector<48x128xf32>
    %cst_48 = arith.constant dense<0.000000e+00> : vector<48x384xf32>
    %57 = tpu.matmul %56, %16, %cst_48 {dimension_numbers = #tpu.dot_dimension_numbers<[1], [0], [0], [1], [0, 0, 1, 1], [], []>} : vector<48x128xf32>, vector<128x384xf32>, vector<48x384xf32> -> vector<48x384xf32>
    %58 = vector.broadcast %18 : vector<1x384xf32> to vector<48x384xf32>
    %59 = arith.addf %57, %58 : vector<48x384xf32>
    %60 = vector.extract_strided_slice %59 {offsets = [0, 0], sizes = [24, 384], strides = [1, 1]} : vector<48x384xf32> to vector<24x384xf32>
    %61 = vector.extract_strided_slice %60 {offsets = [0, 0], sizes = [24, 128], strides = [1, 1]} : vector<24x384xf32> to vector<24x128xf32>
    %cst_49 = arith.constant 0.176776692 : f32
    %62 = vector.broadcast %cst_49 : f32 to vector<24x128xf32>
    %63 = arith.mulf %61, %62 : vector<24x128xf32>
    %64 = vector.extract_strided_slice %60 {offsets = [0, 128], sizes = [24, 128], strides = [1, 1]} : vector<24x384xf32> to vector<24x128xf32>
    %65 = vector.extract_strided_slice %60 {offsets = [0, 256], sizes = [24, 128], strides = [1, 1]} : vector<24x384xf32> to vector<24x128xf32>
    %cst_50 = arith.constant 0.000000e+00 : f32
    %66 = vector.broadcast %cst_50 : f32 to vector<24x128xf32>
    %67 = vector.extract_strided_slice %63 {offsets = [0, 0], sizes = [24, 32], strides = [1, 1]} : vector<24x128xf32> to vector<24x32xf32>
    %68 = vector.extract_strided_slice %64 {offsets = [0, 0], sizes = [24, 32], strides = [1, 1]} : vector<24x128xf32> to vector<24x32xf32>
    %69 = vector.extract_strided_slice %65 {offsets = [0, 0], sizes = [24, 32], strides = [1, 1]} : vector<24x128xf32> to vector<24x32xf32>
    %cst_51 = arith.constant dense<0.000000e+00> : vector<24x24xf32>
    %70 = tpu.matmul %67, %68, %cst_51 {dimension_numbers = #tpu.dot_dimension_numbers<[1], [1], [0], [0], [0, 0, 1, 0], [], []>} : vector<24x32xf32>, vector<24x32xf32>, vector<24x24xf32> -> vector<24x24xf32>
    %71 = arith.addf %70, %10 : vector<24x24xf32>
    %cst_52 = arith.constant dense<0xFF800000> : vector<24xf32>
    %72 = vector.multi_reduction <maximumf>, %71, %cst_52 [1] : vector<24x24xf32> to vector<24xf32>
    %73 = vector.shape_cast %72 : vector<24xf32> to vector<24x1xf32>
    %74 = vector.broadcast %73 : vector<24x1xf32> to vector<24x24xf32>
    %75 = arith.subf %71, %74 : vector<24x24xf32>
    %76 = math.exp %75 : vector<24x24xf32>
    %cst_53 = arith.constant dense<0.000000e+00> : vector<24xf32>
    %77 = vector.multi_reduction <add>, %76, %cst_53 [1] : vector<24x24xf32> to vector<24xf32>
    %78 = vector.shape_cast %77 : vector<24xf32> to vector<24x1xf32>
    %79 = tpu.reciprocal %78 : vector<24x1xf32> -> vector<24x1xf32>
    %80 = vector.broadcast %79 : vector<24x1xf32> to vector<24x24xf32>
    %81 = arith.mulf %76, %80 : vector<24x24xf32>
    %cst_54 = arith.constant dense<0.000000e+00> : vector<24x32xf32>
    %82 = tpu.matmul %81, %69, %cst_54 {dimension_numbers = #tpu.dot_dimension_numbers<[1], [0], [0], [1], [0, 0, 1, 1], [], []>} : vector<24x24xf32>, vector<24x32xf32>, vector<24x32xf32> -> vector<24x32xf32>
    %83 = vector.extract_strided_slice %20 {offsets = [0, 0], sizes = [32, 128], strides = [1, 1]} : vector<128x128xf32> to vector<32x128xf32>
    %cst_55 = arith.constant dense<0.000000e+00> : vector<24x128xf32>
    %84 = tpu.matmul %82, %83, %cst_55 {dimension_numbers = #tpu.dot_dimension_numbers<[1], [0], [0], [1], [0, 0, 1, 1], [], []>} : vector<24x32xf32>, vector<32x128xf32>, vector<24x128xf32> -> vector<24x128xf32>
    %85 = arith.addf %66, %84 : vector<24x128xf32>
    %86 = vector.extract_strided_slice %63 {offsets = [0, 32], sizes = [24, 32], strides = [1, 1]} : vector<24x128xf32> to vector<24x32xf32>
    %87 = vector.extract_strided_slice %64 {offsets = [0, 32], sizes = [24, 32], strides = [1, 1]} : vector<24x128xf32> to vector<24x32xf32>
    %88 = vector.extract_strided_slice %65 {offsets = [0, 32], sizes = [24, 32], strides = [1, 1]} : vector<24x128xf32> to vector<24x32xf32>
    %cst_56 = arith.constant dense<0.000000e+00> : vector<24x24xf32>
    %89 = tpu.matmul %86, %87, %cst_56 {dimension_numbers = #tpu.dot_dimension_numbers<[1], [1], [0], [0], [0, 0, 1, 0], [], []>} : vector<24x32xf32>, vector<24x32xf32>, vector<24x24xf32> -> vector<24x24xf32>
    %90 = arith.addf %89, %10 : vector<24x24xf32>
    %cst_57 = arith.constant dense<0xFF800000> : vector<24xf32>
    %91 = vector.multi_reduction <maximumf>, %90, %cst_57 [1] : vector<24x24xf32> to vector<24xf32>
    %92 = vector.shape_cast %91 : vector<24xf32> to vector<24x1xf32>
    %93 = vector.broadcast %92 : vector<24x1xf32> to vector<24x24xf32>
    %94 = arith.subf %90, %93 : vector<24x24xf32>
    %95 = math.exp %94 : vector<24x24xf32>
    %cst_58 = arith.constant dense<0.000000e+00> : vector<24xf32>
    %96 = vector.multi_reduction <add>, %95, %cst_58 [1] : vector<24x24xf32> to vector<24xf32>
    %97 = vector.shape_cast %96 : vector<24xf32> to vector<24x1xf32>
    %98 = tpu.reciprocal %97 : vector<24x1xf32> -> vector<24x1xf32>
    %99 = vector.broadcast %98 : vector<24x1xf32> to vector<24x24xf32>
    %100 = arith.mulf %95, %99 : vector<24x24xf32>
    %cst_59 = arith.constant dense<0.000000e+00> : vector<24x32xf32>
    %101 = tpu.matmul %100, %88, %cst_59 {dimension_numbers = #tpu.dot_dimension_numbers<[1], [0], [0], [1], [0, 0, 1, 1], [], []>} : vector<24x24xf32>, vector<24x32xf32>, vector<24x32xf32> -> vector<24x32xf32>
    %102 = vector.extract_strided_slice %20 {offsets = [32, 0], sizes = [32, 128], strides = [1, 1]} : vector<128x128xf32> to vector<32x128xf32>
    %cst_60 = arith.constant dense<0.000000e+00> : vector<24x128xf32>
    %103 = tpu.matmul %101, %102, %cst_60 {dimension_numbers = #tpu.dot_dimension_numbers<[1], [0], [0], [1], [0, 0, 1, 1], [], []>} : vector<24x32xf32>, vector<32x128xf32>, vector<24x128xf32> -> vector<24x128xf32>
    %104 = arith.addf %85, %103 : vector<24x128xf32>
    %105 = vector.extract_strided_slice %63 {offsets = [0, 64], sizes = [24, 32], strides = [1, 1]} : vector<24x128xf32> to vector<24x32xf32>
    %106 = vector.extract_strided_slice %64 {offsets = [0, 64], sizes = [24, 32], strides = [1, 1]} : vector<24x128xf32> to vector<24x32xf32>
    %107 = vector.extract_strided_slice %65 {offsets = [0, 64], sizes = [24, 32], strides = [1, 1]} : vector<24x128xf32> to vector<24x32xf32>
    %cst_61 = arith.constant dense<0.000000e+00> : vector<24x24xf32>
    %108 = tpu.matmul %105, %106, %cst_61 {dimension_numbers = #tpu.dot_dimension_numbers<[1], [1], [0], [0], [0, 0, 1, 0], [], []>} : vector<24x32xf32>, vector<24x32xf32>, vector<24x24xf32> -> vector<24x24xf32>
    %109 = arith.addf %108, %10 : vector<24x24xf32>
    %cst_62 = arith.constant dense<0xFF800000> : vector<24xf32>
    %110 = vector.multi_reduction <maximumf>, %109, %cst_62 [1] : vector<24x24xf32> to vector<24xf32>
    %111 = vector.shape_cast %110 : vector<24xf32> to vector<24x1xf32>
    %112 = vector.broadcast %111 : vector<24x1xf32> to vector<24x24xf32>
    %113 = arith.subf %109, %112 : vector<24x24xf32>
    %114 = math.exp %113 : vector<24x24xf32>
    %cst_63 = arith.constant dense<0.000000e+00> : vector<24xf32>
    %115 = vector.multi_reduction <add>, %114, %cst_63 [1] : vector<24x24xf32> to vector<24xf32>
    %116 = vector.shape_cast %115 : vector<24xf32> to vector<24x1xf32>
    %117 = tpu.reciprocal %116 : vector<24x1xf32> -> vector<24x1xf32>
    %118 = vector.broadcast %117 : vector<24x1xf32> to vector<24x24xf32>
    %119 = arith.mulf %114, %118 : vector<24x24xf32>
    %cst_64 = arith.constant dense<0.000000e+00> : vector<24x32xf32>
    %120 = tpu.matmul %119, %107, %cst_64 {dimension_numbers = #tpu.dot_dimension_numbers<[1], [0], [0], [1], [0, 0, 1, 1], [], []>} : vector<24x24xf32>, vector<24x32xf32>, vector<24x32xf32> -> vector<24x32xf32>
    %121 = vector.extract_strided_slice %20 {offsets = [64, 0], sizes = [32, 128], strides = [1, 1]} : vector<128x128xf32> to vector<32x128xf32>
    %cst_65 = arith.constant dense<0.000000e+00> : vector<24x128xf32>
    %122 = tpu.matmul %120, %121, %cst_65 {dimension_numbers = #tpu.dot_dimension_numbers<[1], [0], [0], [1], [0, 0, 1, 1], [], []>} : vector<24x32xf32>, vector<32x128xf32>, vector<24x128xf32> -> vector<24x128xf32>
    %123 = arith.addf %104, %122 : vector<24x128xf32>
    %124 = vector.extract_strided_slice %63 {offsets = [0, 96], sizes = [24, 32], strides = [1, 1]} : vector<24x128xf32> to vector<24x32xf32>
    %125 = vector.extract_strided_slice %64 {offsets = [0, 96], sizes = [24, 32], strides = [1, 1]} : vector<24x128xf32> to vector<24x32xf32>
    %126 = vector.extract_strided_slice %65 {offsets = [0, 96], sizes = [24, 32], strides = [1, 1]} : vector<24x128xf32> to vector<24x32xf32>
    %cst_66 = arith.constant dense<0.000000e+00> : vector<24x24xf32>
    %127 = tpu.matmul %124, %125, %cst_66 {dimension_numbers = #tpu.dot_dimension_numbers<[1], [1], [0], [0], [0, 0, 1, 0], [], []>} : vector<24x32xf32>, vector<24x32xf32>, vector<24x24xf32> -> vector<24x24xf32>
    %128 = arith.addf %127, %10 : vector<24x24xf32>
    %cst_67 = arith.constant dense<0xFF800000> : vector<24xf32>
    %129 = vector.multi_reduction <maximumf>, %128, %cst_67 [1] : vector<24x24xf32> to vector<24xf32>
    %130 = vector.shape_cast %129 : vector<24xf32> to vector<24x1xf32>
    %131 = vector.broadcast %130 : vector<24x1xf32> to vector<24x24xf32>
    %132 = arith.subf %128, %131 : vector<24x24xf32>
    %133 = math.exp %132 : vector<24x24xf32>
    %cst_68 = arith.constant dense<0.000000e+00> : vector<24xf32>
    %134 = vector.multi_reduction <add>, %133, %cst_68 [1] : vector<24x24xf32> to vector<24xf32>
    %135 = vector.shape_cast %134 : vector<24xf32> to vector<24x1xf32>
    %136 = tpu.reciprocal %135 : vector<24x1xf32> -> vector<24x1xf32>
    %137 = vector.broadcast %136 : vector<24x1xf32> to vector<24x24xf32>
    %138 = arith.mulf %133, %137 : vector<24x24xf32>
    %cst_69 = arith.constant dense<0.000000e+00> : vector<24x32xf32>
    %139 = tpu.matmul %138, %126, %cst_69 {dimension_numbers = #tpu.dot_dimension_numbers<[1], [0], [0], [1], [0, 0, 1, 1], [], []>} : vector<24x24xf32>, vector<24x32xf32>, vector<24x32xf32> -> vector<24x32xf32>
    %140 = vector.extract_strided_slice %20 {offsets = [96, 0], sizes = [32, 128], strides = [1, 1]} : vector<128x128xf32> to vector<32x128xf32>
    %cst_70 = arith.constant dense<0.000000e+00> : vector<24x128xf32>
    %141 = tpu.matmul %139, %140, %cst_70 {dimension_numbers = #tpu.dot_dimension_numbers<[1], [0], [0], [1], [0, 0, 1, 1], [], []>} : vector<24x32xf32>, vector<32x128xf32>, vector<24x128xf32> -> vector<24x128xf32>
    %142 = arith.addf %123, %141 : vector<24x128xf32>
    %143 = vector.extract_strided_slice %59 {offsets = [24, 0], sizes = [24, 384], strides = [1, 1]} : vector<48x384xf32> to vector<24x384xf32>
    %144 = vector.extract_strided_slice %143 {offsets = [0, 0], sizes = [24, 128], strides = [1, 1]} : vector<24x384xf32> to vector<24x128xf32>
    %cst_71 = arith.constant 0.176776692 : f32
    %145 = vector.broadcast %cst_71 : f32 to vector<24x128xf32>
    %146 = arith.mulf %144, %145 : vector<24x128xf32>
    %147 = vector.extract_strided_slice %143 {offsets = [0, 128], sizes = [24, 128], strides = [1, 1]} : vector<24x384xf32> to vector<24x128xf32>
    %148 = vector.extract_strided_slice %143 {offsets = [0, 256], sizes = [24, 128], strides = [1, 1]} : vector<24x384xf32> to vector<24x128xf32>
    %cst_72 = arith.constant 0.000000e+00 : f32
    %149 = vector.broadcast %cst_72 : f32 to vector<24x128xf32>
    %150 = vector.extract_strided_slice %146 {offsets = [0, 0], sizes = [24, 32], strides = [1, 1]} : vector<24x128xf32> to vector<24x32xf32>
    %151 = vector.extract_strided_slice %147 {offsets = [0, 0], sizes = [24, 32], strides = [1, 1]} : vector<24x128xf32> to vector<24x32xf32>
    %152 = vector.extract_strided_slice %148 {offsets = [0, 0], sizes = [24, 32], strides = [1, 1]} : vector<24x128xf32> to vector<24x32xf32>
    %cst_73 = arith.constant dense<0.000000e+00> : vector<24x24xf32>
    %153 = tpu.matmul %150, %151, %cst_73 {dimension_numbers = #tpu.dot_dimension_numbers<[1], [1], [0], [0], [0, 0, 1, 0], [], []>} : vector<24x32xf32>, vector<24x32xf32>, vector<24x24xf32> -> vector<24x24xf32>
    %154 = arith.addf %153, %10 : vector<24x24xf32>
    %cst_74 = arith.constant dense<0xFF800000> : vector<24xf32>
    %155 = vector.multi_reduction <maximumf>, %154, %cst_74 [1] : vector<24x24xf32> to vector<24xf32>
    %156 = vector.shape_cast %155 : vector<24xf32> to vector<24x1xf32>
    %157 = vector.broadcast %156 : vector<24x1xf32> to vector<24x24xf32>
    %158 = arith.subf %154, %157 : vector<24x24xf32>
    %159 = math.exp %158 : vector<24x24xf32>
    %cst_75 = arith.constant dense<0.000000e+00> : vector<24xf32>
    %160 = vector.multi_reduction <add>, %159, %cst_75 [1] : vector<24x24xf32> to vector<24xf32>
    %161 = vector.shape_cast %160 : vector<24xf32> to vector<24x1xf32>
    %162 = tpu.reciprocal %161 : vector<24x1xf32> -> vector<24x1xf32>
    %163 = vector.broadcast %162 : vector<24x1xf32> to vector<24x24xf32>
    %164 = arith.mulf %159, %163 : vector<24x24xf32>
    %cst_76 = arith.constant dense<0.000000e+00> : vector<24x32xf32>
    %165 = tpu.matmul %164, %152, %cst_76 {dimension_numbers = #tpu.dot_dimension_numbers<[1], [0], [0], [1], [0, 0, 1, 1], [], []>} : vector<24x24xf32>, vector<24x32xf32>, vector<24x32xf32> -> vector<24x32xf32>
    %166 = vector.extract_strided_slice %20 {offsets = [0, 0], sizes = [32, 128], strides = [1, 1]} : vector<128x128xf32> to vector<32x128xf32>
    %cst_77 = arith.constant dense<0.000000e+00> : vector<24x128xf32>
    %167 = tpu.matmul %165, %166, %cst_77 {dimension_numbers = #tpu.dot_dimension_numbers<[1], [0], [0], [1], [0, 0, 1, 1], [], []>} : vector<24x32xf32>, vector<32x128xf32>, vector<24x128xf32> -> vector<24x128xf32>
    %168 = arith.addf %149, %167 : vector<24x128xf32>
    %169 = vector.extract_strided_slice %146 {offsets = [0, 32], sizes = [24, 32], strides = [1, 1]} : vector<24x128xf32> to vector<24x32xf32>
    %170 = vector.extract_strided_slice %147 {offsets = [0, 32], sizes = [24, 32], strides = [1, 1]} : vector<24x128xf32> to vector<24x32xf32>
    %171 = vector.extract_strided_slice %148 {offsets = [0, 32], sizes = [24, 32], strides = [1, 1]} : vector<24x128xf32> to vector<24x32xf32>
    %cst_78 = arith.constant dense<0.000000e+00> : vector<24x24xf32>
    %172 = tpu.matmul %169, %170, %cst_78 {dimension_numbers = #tpu.dot_dimension_numbers<[1], [1], [0], [0], [0, 0, 1, 0], [], []>} : vector<24x32xf32>, vector<24x32xf32>, vector<24x24xf32> -> vector<24x24xf32>
    %173 = arith.addf %172, %10 : vector<24x24xf32>
    %cst_79 = arith.constant dense<0xFF800000> : vector<24xf32>
    %174 = vector.multi_reduction <maximumf>, %173, %cst_79 [1] : vector<24x24xf32> to vector<24xf32>
    %175 = vector.shape_cast %174 : vector<24xf32> to vector<24x1xf32>
    %176 = vector.broadcast %175 : vector<24x1xf32> to vector<24x24xf32>
    %177 = arith.subf %173, %176 : vector<24x24xf32>
    %178 = math.exp %177 : vector<24x24xf32>
    %cst_80 = arith.constant dense<0.000000e+00> : vector<24xf32>
    %179 = vector.multi_reduction <add>, %178, %cst_80 [1] : vector<24x24xf32> to vector<24xf32>
    %180 = vector.shape_cast %179 : vector<24xf32> to vector<24x1xf32>
    %181 = tpu.reciprocal %180 : vector<24x1xf32> -> vector<24x1xf32>
    %182 = vector.broadcast %181 : vector<24x1xf32> to vector<24x24xf32>
    %183 = arith.mulf %178, %182 : vector<24x24xf32>
    %cst_81 = arith.constant dense<0.000000e+00> : vector<24x32xf32>
    %184 = tpu.matmul %183, %171, %cst_81 {dimension_numbers = #tpu.dot_dimension_numbers<[1], [0], [0], [1], [0, 0, 1, 1], [], []>} : vector<24x24xf32>, vector<24x32xf32>, vector<24x32xf32> -> vector<24x32xf32>
    %185 = vector.extract_strided_slice %20 {offsets = [32, 0], sizes = [32, 128], strides = [1, 1]} : vector<128x128xf32> to vector<32x128xf32>
    %cst_82 = arith.constant dense<0.000000e+00> : vector<24x128xf32>
    %186 = tpu.matmul %184, %185, %cst_82 {dimension_numbers = #tpu.dot_dimension_numbers<[1], [0], [0], [1], [0, 0, 1, 1], [], []>} : vector<24x32xf32>, vector<32x128xf32>, vector<24x128xf32> -> vector<24x128xf32>
    %187 = arith.addf %168, %186 : vector<24x128xf32>
    %188 = vector.extract_strided_slice %146 {offsets = [0, 64], sizes = [24, 32], strides = [1, 1]} : vector<24x128xf32> to vector<24x32xf32>
    %189 = vector.extract_strided_slice %147 {offsets = [0, 64], sizes = [24, 32], strides = [1, 1]} : vector<24x128xf32> to vector<24x32xf32>
    %190 = vector.extract_strided_slice %148 {offsets = [0, 64], sizes = [24, 32], strides = [1, 1]} : vector<24x128xf32> to vector<24x32xf32>
    %cst_83 = arith.constant dense<0.000000e+00> : vector<24x24xf32>
    %191 = tpu.matmul %188, %189, %cst_83 {dimension_numbers = #tpu.dot_dimension_numbers<[1], [1], [0], [0], [0, 0, 1, 0], [], []>} : vector<24x32xf32>, vector<24x32xf32>, vector<24x24xf32> -> vector<24x24xf32>
    %192 = arith.addf %191, %10 : vector<24x24xf32>
    %cst_84 = arith.constant dense<0xFF800000> : vector<24xf32>
    %193 = vector.multi_reduction <maximumf>, %192, %cst_84 [1] : vector<24x24xf32> to vector<24xf32>
    %194 = vector.shape_cast %193 : vector<24xf32> to vector<24x1xf32>
    %195 = vector.broadcast %194 : vector<24x1xf32> to vector<24x24xf32>
    %196 = arith.subf %192, %195 : vector<24x24xf32>
    %197 = math.exp %196 : vector<24x24xf32>
    %cst_85 = arith.constant dense<0.000000e+00> : vector<24xf32>
    %198 = vector.multi_reduction <add>, %197, %cst_85 [1] : vector<24x24xf32> to vector<24xf32>
    %199 = vector.shape_cast %198 : vector<24xf32> to vector<24x1xf32>
    %200 = tpu.reciprocal %199 : vector<24x1xf32> -> vector<24x1xf32>
    %201 = vector.broadcast %200 : vector<24x1xf32> to vector<24x24xf32>
    %202 = arith.mulf %197, %201 : vector<24x24xf32>
    %cst_86 = arith.constant dense<0.000000e+00> : vector<24x32xf32>
    %203 = tpu.matmul %202, %190, %cst_86 {dimension_numbers = #tpu.dot_dimension_numbers<[1], [0], [0], [1], [0, 0, 1, 1], [], []>} : vector<24x24xf32>, vector<24x32xf32>, vector<24x32xf32> -> vector<24x32xf32>
    %204 = vector.extract_strided_slice %20 {offsets = [64, 0], sizes = [32, 128], strides = [1, 1]} : vector<128x128xf32> to vector<32x128xf32>
    %cst_87 = arith.constant dense<0.000000e+00> : vector<24x128xf32>
    %205 = tpu.matmul %203, %204, %cst_87 {dimension_numbers = #tpu.dot_dimension_numbers<[1], [0], [0], [1], [0, 0, 1, 1], [], []>} : vector<24x32xf32>, vector<32x128xf32>, vector<24x128xf32> -> vector<24x128xf32>
    %206 = arith.addf %187, %205 : vector<24x128xf32>
    %207 = vector.extract_strided_slice %146 {offsets = [0, 96], sizes = [24, 32], strides = [1, 1]} : vector<24x128xf32> to vector<24x32xf32>
    %208 = vector.extract_strided_slice %147 {offsets = [0, 96], sizes = [24, 32], strides = [1, 1]} : vector<24x128xf32> to vector<24x32xf32>
    %209 = vector.extract_strided_slice %148 {offsets = [0, 96], sizes = [24, 32], strides = [1, 1]} : vector<24x128xf32> to vector<24x32xf32>
    %cst_88 = arith.constant dense<0.000000e+00> : vector<24x24xf32>
    %210 = tpu.matmul %207, %208, %cst_88 {dimension_numbers = #tpu.dot_dimension_numbers<[1], [1], [0], [0], [0, 0, 1, 0], [], []>} : vector<24x32xf32>, vector<24x32xf32>, vector<24x24xf32> -> vector<24x24xf32>
    %211 = arith.addf %210, %10 : vector<24x24xf32>
    %cst_89 = arith.constant dense<0xFF800000> : vector<24xf32>
    %212 = vector.multi_reduction <maximumf>, %211, %cst_89 [1] : vector<24x24xf32> to vector<24xf32>
    %213 = vector.shape_cast %212 : vector<24xf32> to vector<24x1xf32>
    %214 = vector.broadcast %213 : vector<24x1xf32> to vector<24x24xf32>
    %215 = arith.subf %211, %214 : vector<24x24xf32>
    %216 = math.exp %215 : vector<24x24xf32>
    %cst_90 = arith.constant dense<0.000000e+00> : vector<24xf32>
    %217 = vector.multi_reduction <add>, %216, %cst_90 [1] : vector<24x24xf32> to vector<24xf32>
    %218 = vector.shape_cast %217 : vector<24xf32> to vector<24x1xf32>
    %219 = tpu.reciprocal %218 : vector<24x1xf32> -> vector<24x1xf32>
    %220 = vector.broadcast %219 : vector<24x1xf32> to vector<24x24xf32>
    %221 = arith.mulf %216, %220 : vector<24x24xf32>
    %cst_91 = arith.constant dense<0.000000e+00> : vector<24x32xf32>
    %222 = tpu.matmul %221, %209, %cst_91 {dimension_numbers = #tpu.dot_dimension_numbers<[1], [0], [0], [1], [0, 0, 1, 1], [], []>} : vector<24x24xf32>, vector<24x32xf32>, vector<24x32xf32> -> vector<24x32xf32>
    %223 = vector.extract_strided_slice %20 {offsets = [96, 0], sizes = [32, 128], strides = [1, 1]} : vector<128x128xf32> to vector<32x128xf32>
    %cst_92 = arith.constant dense<0.000000e+00> : vector<24x128xf32>
    %224 = tpu.matmul %222, %223, %cst_92 {dimension_numbers = #tpu.dot_dimension_numbers<[1], [0], [0], [1], [0, 0, 1, 1], [], []>} : vector<24x32xf32>, vector<32x128xf32>, vector<24x128xf32> -> vector<24x128xf32>
    %225 = arith.addf %206, %224 : vector<24x128xf32>
    %226 = tpu.concatenate %142, %225 in 0 : vector<24x128xf32>, vector<24x128xf32> -> vector<48x128xf32>
    %227 = vector.broadcast %22 : vector<1x128xf32> to vector<48x128xf32>
    %228 = arith.addf %226, %227 : vector<48x128xf32>
    %229 = arith.addf %4, %228 : vector<48x128xf32>
    %cst_93 = arith.constant dense<0.000000e+00> : vector<48xf32>
    %230 = vector.multi_reduction <add>, %229, %cst_93 [1] : vector<48x128xf32> to vector<48xf32>
    %231 = vector.shape_cast %230 : vector<48xf32> to vector<48x1xf32>
    %cst_94 = arith.constant 1.280000e+02 : f32
    %232 = vector.broadcast %cst_94 : f32 to vector<48x1xf32>
    %233 = arith.divf %231, %232 : vector<48x1xf32>
    %234 = vector.broadcast %233 : vector<48x1xf32> to vector<48x128xf32>
    %235 = arith.subf %229, %234 : vector<48x128xf32>
    %236 = arith.mulf %235, %235 : vector<48x128xf32>
    %cst_95 = arith.constant dense<0.000000e+00> : vector<48xf32>
    %237 = vector.multi_reduction <add>, %236, %cst_95 [1] : vector<48x128xf32> to vector<48xf32>
    %238 = vector.shape_cast %237 : vector<48xf32> to vector<48x1xf32>
    %cst_96 = arith.constant 1.280000e+02 : f32
    %239 = vector.broadcast %cst_96 : f32 to vector<48x1xf32>
    %240 = arith.divf %238, %239 : vector<48x1xf32>
    %241 = vector.broadcast %233 : vector<48x1xf32> to vector<48x128xf32>
    %242 = arith.subf %229, %241 : vector<48x128xf32>
    %cst_97 = arith.constant 9.99999974E-6 : f32
    %243 = vector.broadcast %cst_97 : f32 to vector<48x1xf32>
    %244 = arith.addf %240, %243 : vector<48x1xf32>
    %245 = math.rsqrt %244 : vector<48x1xf32>
    %246 = vector.broadcast %245 : vector<48x1xf32> to vector<48x128xf32>
    %247 = arith.mulf %242, %246 : vector<48x128xf32>
    %248 = vector.broadcast %24 : vector<1x128xf32> to vector<48x128xf32>
    %249 = arith.mulf %247, %248 : vector<48x128xf32>
    %250 = vector.broadcast %26 : vector<1x128xf32> to vector<48x128xf32>
    %251 = arith.addf %249, %250 : vector<48x128xf32>
    %cst_98 = arith.constant dense<0.000000e+00> : vector<48x512xf32>
    %252 = tpu.matmul %251, %28, %cst_98 {dimension_numbers = #tpu.dot_dimension_numbers<[1], [0], [0], [1], [0, 0, 1, 1], [], []>} : vector<48x128xf32>, vector<128x512xf32>, vector<48x512xf32> -> vector<48x512xf32>
    %253 = vector.broadcast %30 : vector<1x512xf32> to vector<48x512xf32>
    %254 = arith.addf %252, %253 : vector<48x512xf32>
    %cst_99 = arith.constant 5.000000e-01 : f32
    %255 = vector.broadcast %cst_99 : f32 to vector<48x512xf32>
    %256 = arith.mulf %255, %254 : vector<48x512xf32>
    %cst_100 = arith.constant 0.707106769 : f32
    %257 = vector.broadcast %cst_100 : f32 to vector<48x512xf32>
    %258 = arith.mulf %254, %257 : vector<48x512xf32>
    %259 = math.absf %258 : vector<48x512xf32>
    %cst_101 = arith.constant 0.327591091 : f32
    %260 = vector.broadcast %cst_101 : f32 to vector<48x512xf32>
    %261 = arith.mulf %260, %259 : vector<48x512xf32>
    %cst_102 = arith.constant 1.000000e+00 : f32
    %262 = vector.broadcast %cst_102 : f32 to vector<48x512xf32>
    %263 = arith.addf %262, %261 : vector<48x512xf32>
    %cst_103 = arith.constant 1.000000e+00 : f32
    %264 = vector.broadcast %cst_103 : f32 to vector<48x512xf32>
    %265 = arith.divf %264, %263 : vector<48x512xf32>
    %cst_104 = arith.constant 1.06140542 : f32
    %266 = vector.broadcast %cst_104 : f32 to vector<48x512xf32>
    %267 = arith.mulf %266, %265 : vector<48x512xf32>
    %cst_105 = arith.constant -1.45315206 : f32
    %268 = vector.broadcast %cst_105 : f32 to vector<48x512xf32>
    %269 = arith.addf %267, %268 : vector<48x512xf32>
    %270 = arith.mulf %269, %265 : vector<48x512xf32>
    %cst_106 = arith.constant 1.42141378 : f32
    %271 = vector.broadcast %cst_106 : f32 to vector<48x512xf32>
    %272 = arith.addf %270, %271 : vector<48x512xf32>
    %273 = arith.mulf %272, %265 : vector<48x512xf32>
    %cst_107 = arith.constant -0.284496725 : f32
    %274 = vector.broadcast %cst_107 : f32 to vector<48x512xf32>
    %275 = arith.addf %273, %274 : vector<48x512xf32>
    %276 = arith.mulf %275, %265 : vector<48x512xf32>
    %cst_108 = arith.constant 0.254829586 : f32
    %277 = vector.broadcast %cst_108 : f32 to vector<48x512xf32>
    %278 = arith.addf %276, %277 : vector<48x512xf32>
    %279 = arith.mulf %278, %265 : vector<48x512xf32>
    %cst_109 = arith.constant 0.000000e+00 : f32
    %280 = vector.broadcast %cst_109 : f32 to vector<48x512xf32>
    %281 = arith.subf %280, %259 : vector<48x512xf32>
    %282 = arith.mulf %281, %259 : vector<48x512xf32>
    %283 = math.exp %282 : vector<48x512xf32>
    %284 = arith.mulf %279, %283 : vector<48x512xf32>
    %cst_110 = arith.constant 1.000000e+00 : f32
    %285 = vector.broadcast %cst_110 : f32 to vector<48x512xf32>
    %286 = arith.subf %285, %284 : vector<48x512xf32>
    %cst_111 = arith.constant 0.000000e+00 : f32
    %287 = vector.broadcast %cst_111 : f32 to vector<48x512xf32>
    %288 = arith.cmpf oge, %258, %287 : vector<48x512xf32>
    %cst_112 = arith.constant 0.000000e+00 : f32
    %289 = vector.broadcast %cst_112 : f32 to vector<48x512xf32>
    %290 = arith.subf %289, %286 : vector<48x512xf32>
    %291 = arith.select %288, %286, %290 : vector<48x512xi1>, vector<48x512xf32>
    %cst_113 = arith.constant 1.000000e+00 : f32
    %292 = vector.broadcast %cst_113 : f32 to vector<48x512xf32>
    %293 = arith.addf %292, %291 : vector<48x512xf32>
    %294 = arith.mulf %256, %293 : vector<48x512xf32>
    %cst_114 = arith.constant dense<0.000000e+00> : vector<48x128xf32>
    %295 = tpu.matmul %294, %32, %cst_114 {dimension_numbers = #tpu.dot_dimension_numbers<[1], [0], [0], [1], [0, 0, 1, 1], [], []>} : vector<48x512xf32>, vector<512x128xf32>, vector<48x128xf32> -> vector<48x128xf32>
    %296 = arith.addf %229, %295 : vector<48x128xf32>
    %297 = vector.broadcast %34 : vector<1x128xf32> to vector<48x128xf32>
    %298 = arith.addf %296, %297 : vector<48x128xf32>
    %c1 = arith.constant 1 : index
    %c0_115 = arith.constant 0 : index
    %c0_116 = arith.constant 0 : index
    %299 = vector.load %arg4[%c1, %c0_115, %c0_116] : memref<2x1x128xf32, #tpu.memory_space<vmem>>, vector<1x1x128xf32>
    %300 = vector.shape_cast %299 : vector<1x1x128xf32> to vector<1x128xf32>
    %c1_117 = arith.constant 1 : index
    %c0_118 = arith.constant 0 : index
    %c0_119 = arith.constant 0 : index
    %301 = vector.load %arg5[%c1_117, %c0_118, %c0_119] : memref<2x1x128xf32, #tpu.memory_space<vmem>>, vector<1x1x128xf32>
    %302 = vector.shape_cast %301 : vector<1x1x128xf32> to vector<1x128xf32>
    %c1_120 = arith.constant 1 : index
    %c0_121 = arith.constant 0 : index
    %c0_122 = arith.constant 0 : index
    %303 = vector.load %arg6[%c1_120, %c0_121, %c0_122] : memref<2x128x384xf32, #tpu.memory_space<vmem>>, vector<1x128x384xf32>
    %304 = vector.shape_cast %303 : vector<1x128x384xf32> to vector<128x384xf32>
    %c1_123 = arith.constant 1 : index
    %c0_124 = arith.constant 0 : index
    %c0_125 = arith.constant 0 : index
    %305 = vector.load %arg7[%c1_123, %c0_124, %c0_125] : memref<2x1x384xf32, #tpu.memory_space<vmem>>, vector<1x1x384xf32>
    %306 = vector.shape_cast %305 : vector<1x1x384xf32> to vector<1x384xf32>
    %c1_126 = arith.constant 1 : index
    %c0_127 = arith.constant 0 : index
    %c0_128 = arith.constant 0 : index
    %307 = vector.load %arg8[%c1_126, %c0_127, %c0_128] : memref<2x128x128xf32, #tpu.memory_space<vmem>>, vector<1x128x128xf32>
    %308 = vector.shape_cast %307 : vector<1x128x128xf32> to vector<128x128xf32>
    %c1_129 = arith.constant 1 : index
    %c0_130 = arith.constant 0 : index
    %c0_131 = arith.constant 0 : index
    %309 = vector.load %arg9[%c1_129, %c0_130, %c0_131] : memref<2x1x128xf32, #tpu.memory_space<vmem>>, vector<1x1x128xf32>
    %310 = vector.shape_cast %309 : vector<1x1x128xf32> to vector<1x128xf32>
    %c1_132 = arith.constant 1 : index
    %c0_133 = arith.constant 0 : index
    %c0_134 = arith.constant 0 : index
    %311 = vector.load %arg10[%c1_132, %c0_133, %c0_134] : memref<2x1x128xf32, #tpu.memory_space<vmem>>, vector<1x1x128xf32>
    %312 = vector.shape_cast %311 : vector<1x1x128xf32> to vector<1x128xf32>
    %c1_135 = arith.constant 1 : index
    %c0_136 = arith.constant 0 : index
    %c0_137 = arith.constant 0 : index
    %313 = vector.load %arg11[%c1_135, %c0_136, %c0_137] : memref<2x1x128xf32, #tpu.memory_space<vmem>>, vector<1x1x128xf32>
    %314 = vector.shape_cast %313 : vector<1x1x128xf32> to vector<1x128xf32>
    %c1_138 = arith.constant 1 : index
    %c0_139 = arith.constant 0 : index
    %c0_140 = arith.constant 0 : index
    %315 = vector.load %arg12[%c1_138, %c0_139, %c0_140] : memref<2x128x512xf32, #tpu.memory_space<vmem>>, vector<1x128x512xf32>
    %316 = vector.shape_cast %315 : vector<1x128x512xf32> to vector<128x512xf32>
    %c1_141 = arith.constant 1 : index
    %c0_142 = arith.constant 0 : index
    %c0_143 = arith.constant 0 : index
    %317 = vector.load %arg13[%c1_141, %c0_142, %c0_143] : memref<2x1x512xf32, #tpu.memory_space<vmem>>, vector<1x1x512xf32>
    %318 = vector.shape_cast %317 : vector<1x1x512xf32> to vector<1x512xf32>
    %c1_144 = arith.constant 1 : index
    %c0_145 = arith.constant 0 : index
    %c0_146 = arith.constant 0 : index
    %319 = vector.load %arg14[%c1_144, %c0_145, %c0_146] : memref<2x512x128xf32, #tpu.memory_space<vmem>>, vector<1x512x128xf32>
    %320 = vector.shape_cast %319 : vector<1x512x128xf32> to vector<512x128xf32>
    %c1_147 = arith.constant 1 : index
    %c0_148 = arith.constant 0 : index
    %c0_149 = arith.constant 0 : index
    %321 = vector.load %arg15[%c1_147, %c0_148, %c0_149] : memref<2x1x128xf32, #tpu.memory_space<vmem>>, vector<1x1x128xf32>
    %322 = vector.shape_cast %321 : vector<1x1x128xf32> to vector<1x128xf32>
    %cst_150 = arith.constant dense<0.000000e+00> : vector<48xf32>
    %323 = vector.multi_reduction <add>, %298, %cst_150 [1] : vector<48x128xf32> to vector<48xf32>
    %324 = vector.shape_cast %323 : vector<48xf32> to vector<48x1xf32>
    %cst_151 = arith.constant 1.280000e+02 : f32
    %325 = vector.broadcast %cst_151 : f32 to vector<48x1xf32>
    %326 = arith.divf %324, %325 : vector<48x1xf32>
    %327 = vector.broadcast %326 : vector<48x1xf32> to vector<48x128xf32>
    %328 = arith.subf %298, %327 : vector<48x128xf32>
    %329 = arith.mulf %328, %328 : vector<48x128xf32>
    %cst_152 = arith.constant dense<0.000000e+00> : vector<48xf32>
    %330 = vector.multi_reduction <add>, %329, %cst_152 [1] : vector<48x128xf32> to vector<48xf32>
    %331 = vector.shape_cast %330 : vector<48xf32> to vector<48x1xf32>
    %cst_153 = arith.constant 1.280000e+02 : f32
    %332 = vector.broadcast %cst_153 : f32 to vector<48x1xf32>
    %333 = arith.divf %331, %332 : vector<48x1xf32>
    %334 = vector.broadcast %326 : vector<48x1xf32> to vector<48x128xf32>
    %335 = arith.subf %298, %334 : vector<48x128xf32>
    %cst_154 = arith.constant 9.99999974E-6 : f32
    %336 = vector.broadcast %cst_154 : f32 to vector<48x1xf32>
    %337 = arith.addf %333, %336 : vector<48x1xf32>
    %338 = math.rsqrt %337 : vector<48x1xf32>
    %339 = vector.broadcast %338 : vector<48x1xf32> to vector<48x128xf32>
    %340 = arith.mulf %335, %339 : vector<48x128xf32>
    %341 = vector.broadcast %300 : vector<1x128xf32> to vector<48x128xf32>
    %342 = arith.mulf %340, %341 : vector<48x128xf32>
    %343 = vector.broadcast %302 : vector<1x128xf32> to vector<48x128xf32>
    %344 = arith.addf %342, %343 : vector<48x128xf32>
    %cst_155 = arith.constant dense<0.000000e+00> : vector<48x384xf32>
    %345 = tpu.matmul %344, %304, %cst_155 {dimension_numbers = #tpu.dot_dimension_numbers<[1], [0], [0], [1], [0, 0, 1, 1], [], []>} : vector<48x128xf32>, vector<128x384xf32>, vector<48x384xf32> -> vector<48x384xf32>
    %346 = vector.broadcast %306 : vector<1x384xf32> to vector<48x384xf32>
    %347 = arith.addf %345, %346 : vector<48x384xf32>
    %348 = vector.extract_strided_slice %347 {offsets = [0, 0], sizes = [24, 384], strides = [1, 1]} : vector<48x384xf32> to vector<24x384xf32>
    %349 = vector.extract_strided_slice %348 {offsets = [0, 0], sizes = [24, 128], strides = [1, 1]} : vector<24x384xf32> to vector<24x128xf32>
    %cst_156 = arith.constant 0.176776692 : f32
    %350 = vector.broadcast %cst_156 : f32 to vector<24x128xf32>
    %351 = arith.mulf %349, %350 : vector<24x128xf32>
    %352 = vector.extract_strided_slice %348 {offsets = [0, 128], sizes = [24, 128], strides = [1, 1]} : vector<24x384xf32> to vector<24x128xf32>
    %353 = vector.extract_strided_slice %348 {offsets = [0, 256], sizes = [24, 128], strides = [1, 1]} : vector<24x384xf32> to vector<24x128xf32>
    %cst_157 = arith.constant 0.000000e+00 : f32
    %354 = vector.broadcast %cst_157 : f32 to vector<24x128xf32>
    %355 = vector.extract_strided_slice %351 {offsets = [0, 0], sizes = [24, 32], strides = [1, 1]} : vector<24x128xf32> to vector<24x32xf32>
    %356 = vector.extract_strided_slice %352 {offsets = [0, 0], sizes = [24, 32], strides = [1, 1]} : vector<24x128xf32> to vector<24x32xf32>
    %357 = vector.extract_strided_slice %353 {offsets = [0, 0], sizes = [24, 32], strides = [1, 1]} : vector<24x128xf32> to vector<24x32xf32>
    %cst_158 = arith.constant dense<0.000000e+00> : vector<24x24xf32>
    %358 = tpu.matmul %355, %356, %cst_158 {dimension_numbers = #tpu.dot_dimension_numbers<[1], [1], [0], [0], [0, 0, 1, 0], [], []>} : vector<24x32xf32>, vector<24x32xf32>, vector<24x24xf32> -> vector<24x24xf32>
    %359 = arith.addf %358, %10 : vector<24x24xf32>
    %cst_159 = arith.constant dense<0xFF800000> : vector<24xf32>
    %360 = vector.multi_reduction <maximumf>, %359, %cst_159 [1] : vector<24x24xf32> to vector<24xf32>
    %361 = vector.shape_cast %360 : vector<24xf32> to vector<24x1xf32>
    %362 = vector.broadcast %361 : vector<24x1xf32> to vector<24x24xf32>
    %363 = arith.subf %359, %362 : vector<24x24xf32>
    %364 = math.exp %363 : vector<24x24xf32>
    %cst_160 = arith.constant dense<0.000000e+00> : vector<24xf32>
    %365 = vector.multi_reduction <add>, %364, %cst_160 [1] : vector<24x24xf32> to vector<24xf32>
    %366 = vector.shape_cast %365 : vector<24xf32> to vector<24x1xf32>
    %367 = tpu.reciprocal %366 : vector<24x1xf32> -> vector<24x1xf32>
    %368 = vector.broadcast %367 : vector<24x1xf32> to vector<24x24xf32>
    %369 = arith.mulf %364, %368 : vector<24x24xf32>
    %cst_161 = arith.constant dense<0.000000e+00> : vector<24x32xf32>
    %370 = tpu.matmul %369, %357, %cst_161 {dimension_numbers = #tpu.dot_dimension_numbers<[1], [0], [0], [1], [0, 0, 1, 1], [], []>} : vector<24x24xf32>, vector<24x32xf32>, vector<24x32xf32> -> vector<24x32xf32>
    %371 = vector.extract_strided_slice %308 {offsets = [0, 0], sizes = [32, 128], strides = [1, 1]} : vector<128x128xf32> to vector<32x128xf32>
    %cst_162 = arith.constant dense<0.000000e+00> : vector<24x128xf32>
    %372 = tpu.matmul %370, %371, %cst_162 {dimension_numbers = #tpu.dot_dimension_numbers<[1], [0], [0], [1], [0, 0, 1, 1], [], []>} : vector<24x32xf32>, vector<32x128xf32>, vector<24x128xf32> -> vector<24x128xf32>
    %373 = arith.addf %354, %372 : vector<24x128xf32>
    %374 = vector.extract_strided_slice %351 {offsets = [0, 32], sizes = [24, 32], strides = [1, 1]} : vector<24x128xf32> to vector<24x32xf32>
    %375 = vector.extract_strided_slice %352 {offsets = [0, 32], sizes = [24, 32], strides = [1, 1]} : vector<24x128xf32> to vector<24x32xf32>
    %376 = vector.extract_strided_slice %353 {offsets = [0, 32], sizes = [24, 32], strides = [1, 1]} : vector<24x128xf32> to vector<24x32xf32>
    %cst_163 = arith.constant dense<0.000000e+00> : vector<24x24xf32>
    %377 = tpu.matmul %374, %375, %cst_163 {dimension_numbers = #tpu.dot_dimension_numbers<[1], [1], [0], [0], [0, 0, 1, 0], [], []>} : vector<24x32xf32>, vector<24x32xf32>, vector<24x24xf32> -> vector<24x24xf32>
    %378 = arith.addf %377, %10 : vector<24x24xf32>
    %cst_164 = arith.constant dense<0xFF800000> : vector<24xf32>
    %379 = vector.multi_reduction <maximumf>, %378, %cst_164 [1] : vector<24x24xf32> to vector<24xf32>
    %380 = vector.shape_cast %379 : vector<24xf32> to vector<24x1xf32>
    %381 = vector.broadcast %380 : vector<24x1xf32> to vector<24x24xf32>
    %382 = arith.subf %378, %381 : vector<24x24xf32>
    %383 = math.exp %382 : vector<24x24xf32>
    %cst_165 = arith.constant dense<0.000000e+00> : vector<24xf32>
    %384 = vector.multi_reduction <add>, %383, %cst_165 [1] : vector<24x24xf32> to vector<24xf32>
    %385 = vector.shape_cast %384 : vector<24xf32> to vector<24x1xf32>
    %386 = tpu.reciprocal %385 : vector<24x1xf32> -> vector<24x1xf32>
    %387 = vector.broadcast %386 : vector<24x1xf32> to vector<24x24xf32>
    %388 = arith.mulf %383, %387 : vector<24x24xf32>
    %cst_166 = arith.constant dense<0.000000e+00> : vector<24x32xf32>
    %389 = tpu.matmul %388, %376, %cst_166 {dimension_numbers = #tpu.dot_dimension_numbers<[1], [0], [0], [1], [0, 0, 1, 1], [], []>} : vector<24x24xf32>, vector<24x32xf32>, vector<24x32xf32> -> vector<24x32xf32>
    %390 = vector.extract_strided_slice %308 {offsets = [32, 0], sizes = [32, 128], strides = [1, 1]} : vector<128x128xf32> to vector<32x128xf32>
    %cst_167 = arith.constant dense<0.000000e+00> : vector<24x128xf32>
    %391 = tpu.matmul %389, %390, %cst_167 {dimension_numbers = #tpu.dot_dimension_numbers<[1], [0], [0], [1], [0, 0, 1, 1], [], []>} : vector<24x32xf32>, vector<32x128xf32>, vector<24x128xf32> -> vector<24x128xf32>
    %392 = arith.addf %373, %391 : vector<24x128xf32>
    %393 = vector.extract_strided_slice %351 {offsets = [0, 64], sizes = [24, 32], strides = [1, 1]} : vector<24x128xf32> to vector<24x32xf32>
    %394 = vector.extract_strided_slice %352 {offsets = [0, 64], sizes = [24, 32], strides = [1, 1]} : vector<24x128xf32> to vector<24x32xf32>
    %395 = vector.extract_strided_slice %353 {offsets = [0, 64], sizes = [24, 32], strides = [1, 1]} : vector<24x128xf32> to vector<24x32xf32>
    %cst_168 = arith.constant dense<0.000000e+00> : vector<24x24xf32>
    %396 = tpu.matmul %393, %394, %cst_168 {dimension_numbers = #tpu.dot_dimension_numbers<[1], [1], [0], [0], [0, 0, 1, 0], [], []>} : vector<24x32xf32>, vector<24x32xf32>, vector<24x24xf32> -> vector<24x24xf32>
    %397 = arith.addf %396, %10 : vector<24x24xf32>
    %cst_169 = arith.constant dense<0xFF800000> : vector<24xf32>
    %398 = vector.multi_reduction <maximumf>, %397, %cst_169 [1] : vector<24x24xf32> to vector<24xf32>
    %399 = vector.shape_cast %398 : vector<24xf32> to vector<24x1xf32>
    %400 = vector.broadcast %399 : vector<24x1xf32> to vector<24x24xf32>
    %401 = arith.subf %397, %400 : vector<24x24xf32>
    %402 = math.exp %401 : vector<24x24xf32>
    %cst_170 = arith.constant dense<0.000000e+00> : vector<24xf32>
    %403 = vector.multi_reduction <add>, %402, %cst_170 [1] : vector<24x24xf32> to vector<24xf32>
    %404 = vector.shape_cast %403 : vector<24xf32> to vector<24x1xf32>
    %405 = tpu.reciprocal %404 : vector<24x1xf32> -> vector<24x1xf32>
    %406 = vector.broadcast %405 : vector<24x1xf32> to vector<24x24xf32>
    %407 = arith.mulf %402, %406 : vector<24x24xf32>
    %cst_171 = arith.constant dense<0.000000e+00> : vector<24x32xf32>
    %408 = tpu.matmul %407, %395, %cst_171 {dimension_numbers = #tpu.dot_dimension_numbers<[1], [0], [0], [1], [0, 0, 1, 1], [], []>} : vector<24x24xf32>, vector<24x32xf32>, vector<24x32xf32> -> vector<24x32xf32>
    %409 = vector.extract_strided_slice %308 {offsets = [64, 0], sizes = [32, 128], strides = [1, 1]} : vector<128x128xf32> to vector<32x128xf32>
    %cst_172 = arith.constant dense<0.000000e+00> : vector<24x128xf32>
    %410 = tpu.matmul %408, %409, %cst_172 {dimension_numbers = #tpu.dot_dimension_numbers<[1], [0], [0], [1], [0, 0, 1, 1], [], []>} : vector<24x32xf32>, vector<32x128xf32>, vector<24x128xf32> -> vector<24x128xf32>
    %411 = arith.addf %392, %410 : vector<24x128xf32>
    %412 = vector.extract_strided_slice %351 {offsets = [0, 96], sizes = [24, 32], strides = [1, 1]} : vector<24x128xf32> to vector<24x32xf32>
    %413 = vector.extract_strided_slice %352 {offsets = [0, 96], sizes = [24, 32], strides = [1, 1]} : vector<24x128xf32> to vector<24x32xf32>
    %414 = vector.extract_strided_slice %353 {offsets = [0, 96], sizes = [24, 32], strides = [1, 1]} : vector<24x128xf32> to vector<24x32xf32>
    %cst_173 = arith.constant dense<0.000000e+00> : vector<24x24xf32>
    %415 = tpu.matmul %412, %413, %cst_173 {dimension_numbers = #tpu.dot_dimension_numbers<[1], [1], [0], [0], [0, 0, 1, 0], [], []>} : vector<24x32xf32>, vector<24x32xf32>, vector<24x24xf32> -> vector<24x24xf32>
    %416 = arith.addf %415, %10 : vector<24x24xf32>
    %cst_174 = arith.constant dense<0xFF800000> : vector<24xf32>
    %417 = vector.multi_reduction <maximumf>, %416, %cst_174 [1] : vector<24x24xf32> to vector<24xf32>
    %418 = vector.shape_cast %417 : vector<24xf32> to vector<24x1xf32>
    %419 = vector.broadcast %418 : vector<24x1xf32> to vector<24x24xf32>
    %420 = arith.subf %416, %419 : vector<24x24xf32>
    %421 = math.exp %420 : vector<24x24xf32>
    %cst_175 = arith.constant dense<0.000000e+00> : vector<24xf32>
    %422 = vector.multi_reduction <add>, %421, %cst_175 [1] : vector<24x24xf32> to vector<24xf32>
    %423 = vector.shape_cast %422 : vector<24xf32> to vector<24x1xf32>
    %424 = tpu.reciprocal %423 : vector<24x1xf32> -> vector<24x1xf32>
    %425 = vector.broadcast %424 : vector<24x1xf32> to vector<24x24xf32>
    %426 = arith.mulf %421, %425 : vector<24x24xf32>
    %cst_176 = arith.constant dense<0.000000e+00> : vector<24x32xf32>
    %427 = tpu.matmul %426, %414, %cst_176 {dimension_numbers = #tpu.dot_dimension_numbers<[1], [0], [0], [1], [0, 0, 1, 1], [], []>} : vector<24x24xf32>, vector<24x32xf32>, vector<24x32xf32> -> vector<24x32xf32>
    %428 = vector.extract_strided_slice %308 {offsets = [96, 0], sizes = [32, 128], strides = [1, 1]} : vector<128x128xf32> to vector<32x128xf32>
    %cst_177 = arith.constant dense<0.000000e+00> : vector<24x128xf32>
    %429 = tpu.matmul %427, %428, %cst_177 {dimension_numbers = #tpu.dot_dimension_numbers<[1], [0], [0], [1], [0, 0, 1, 1], [], []>} : vector<24x32xf32>, vector<32x128xf32>, vector<24x128xf32> -> vector<24x128xf32>
    %430 = arith.addf %411, %429 : vector<24x128xf32>
    %431 = vector.extract_strided_slice %347 {offsets = [24, 0], sizes = [24, 384], strides = [1, 1]} : vector<48x384xf32> to vector<24x384xf32>
    %432 = vector.extract_strided_slice %431 {offsets = [0, 0], sizes = [24, 128], strides = [1, 1]} : vector<24x384xf32> to vector<24x128xf32>
    %cst_178 = arith.constant 0.176776692 : f32
    %433 = vector.broadcast %cst_178 : f32 to vector<24x128xf32>
    %434 = arith.mulf %432, %433 : vector<24x128xf32>
    %435 = vector.extract_strided_slice %431 {offsets = [0, 128], sizes = [24, 128], strides = [1, 1]} : vector<24x384xf32> to vector<24x128xf32>
    %436 = vector.extract_strided_slice %431 {offsets = [0, 256], sizes = [24, 128], strides = [1, 1]} : vector<24x384xf32> to vector<24x128xf32>
    %cst_179 = arith.constant 0.000000e+00 : f32
    %437 = vector.broadcast %cst_179 : f32 to vector<24x128xf32>
    %438 = vector.extract_strided_slice %434 {offsets = [0, 0], sizes = [24, 32], strides = [1, 1]} : vector<24x128xf32> to vector<24x32xf32>
    %439 = vector.extract_strided_slice %435 {offsets = [0, 0], sizes = [24, 32], strides = [1, 1]} : vector<24x128xf32> to vector<24x32xf32>
    %440 = vector.extract_strided_slice %436 {offsets = [0, 0], sizes = [24, 32], strides = [1, 1]} : vector<24x128xf32> to vector<24x32xf32>
    %cst_180 = arith.constant dense<0.000000e+00> : vector<24x24xf32>
    %441 = tpu.matmul %438, %439, %cst_180 {dimension_numbers = #tpu.dot_dimension_numbers<[1], [1], [0], [0], [0, 0, 1, 0], [], []>} : vector<24x32xf32>, vector<24x32xf32>, vector<24x24xf32> -> vector<24x24xf32>
    %442 = arith.addf %441, %10 : vector<24x24xf32>
    %cst_181 = arith.constant dense<0xFF800000> : vector<24xf32>
    %443 = vector.multi_reduction <maximumf>, %442, %cst_181 [1] : vector<24x24xf32> to vector<24xf32>
    %444 = vector.shape_cast %443 : vector<24xf32> to vector<24x1xf32>
    %445 = vector.broadcast %444 : vector<24x1xf32> to vector<24x24xf32>
    %446 = arith.subf %442, %445 : vector<24x24xf32>
    %447 = math.exp %446 : vector<24x24xf32>
    %cst_182 = arith.constant dense<0.000000e+00> : vector<24xf32>
    %448 = vector.multi_reduction <add>, %447, %cst_182 [1] : vector<24x24xf32> to vector<24xf32>
    %449 = vector.shape_cast %448 : vector<24xf32> to vector<24x1xf32>
    %450 = tpu.reciprocal %449 : vector<24x1xf32> -> vector<24x1xf32>
    %451 = vector.broadcast %450 : vector<24x1xf32> to vector<24x24xf32>
    %452 = arith.mulf %447, %451 : vector<24x24xf32>
    %cst_183 = arith.constant dense<0.000000e+00> : vector<24x32xf32>
    %453 = tpu.matmul %452, %440, %cst_183 {dimension_numbers = #tpu.dot_dimension_numbers<[1], [0], [0], [1], [0, 0, 1, 1], [], []>} : vector<24x24xf32>, vector<24x32xf32>, vector<24x32xf32> -> vector<24x32xf32>
    %454 = vector.extract_strided_slice %308 {offsets = [0, 0], sizes = [32, 128], strides = [1, 1]} : vector<128x128xf32> to vector<32x128xf32>
    %cst_184 = arith.constant dense<0.000000e+00> : vector<24x128xf32>
    %455 = tpu.matmul %453, %454, %cst_184 {dimension_numbers = #tpu.dot_dimension_numbers<[1], [0], [0], [1], [0, 0, 1, 1], [], []>} : vector<24x32xf32>, vector<32x128xf32>, vector<24x128xf32> -> vector<24x128xf32>
    %456 = arith.addf %437, %455 : vector<24x128xf32>
    %457 = vector.extract_strided_slice %434 {offsets = [0, 32], sizes = [24, 32], strides = [1, 1]} : vector<24x128xf32> to vector<24x32xf32>
    %458 = vector.extract_strided_slice %435 {offsets = [0, 32], sizes = [24, 32], strides = [1, 1]} : vector<24x128xf32> to vector<24x32xf32>
    %459 = vector.extract_strided_slice %436 {offsets = [0, 32], sizes = [24, 32], strides = [1, 1]} : vector<24x128xf32> to vector<24x32xf32>
    %cst_185 = arith.constant dense<0.000000e+00> : vector<24x24xf32>
    %460 = tpu.matmul %457, %458, %cst_185 {dimension_numbers = #tpu.dot_dimension_numbers<[1], [1], [0], [0], [0, 0, 1, 0], [], []>} : vector<24x32xf32>, vector<24x32xf32>, vector<24x24xf32> -> vector<24x24xf32>
    %461 = arith.addf %460, %10 : vector<24x24xf32>
    %cst_186 = arith.constant dense<0xFF800000> : vector<24xf32>
    %462 = vector.multi_reduction <maximumf>, %461, %cst_186 [1] : vector<24x24xf32> to vector<24xf32>
    %463 = vector.shape_cast %462 : vector<24xf32> to vector<24x1xf32>
    %464 = vector.broadcast %463 : vector<24x1xf32> to vector<24x24xf32>
    %465 = arith.subf %461, %464 : vector<24x24xf32>
    %466 = math.exp %465 : vector<24x24xf32>
    %cst_187 = arith.constant dense<0.000000e+00> : vector<24xf32>
    %467 = vector.multi_reduction <add>, %466, %cst_187 [1] : vector<24x24xf32> to vector<24xf32>
    %468 = vector.shape_cast %467 : vector<24xf32> to vector<24x1xf32>
    %469 = tpu.reciprocal %468 : vector<24x1xf32> -> vector<24x1xf32>
    %470 = vector.broadcast %469 : vector<24x1xf32> to vector<24x24xf32>
    %471 = arith.mulf %466, %470 : vector<24x24xf32>
    %cst_188 = arith.constant dense<0.000000e+00> : vector<24x32xf32>
    %472 = tpu.matmul %471, %459, %cst_188 {dimension_numbers = #tpu.dot_dimension_numbers<[1], [0], [0], [1], [0, 0, 1, 1], [], []>} : vector<24x24xf32>, vector<24x32xf32>, vector<24x32xf32> -> vector<24x32xf32>
    %473 = vector.extract_strided_slice %308 {offsets = [32, 0], sizes = [32, 128], strides = [1, 1]} : vector<128x128xf32> to vector<32x128xf32>
    %cst_189 = arith.constant dense<0.000000e+00> : vector<24x128xf32>
    %474 = tpu.matmul %472, %473, %cst_189 {dimension_numbers = #tpu.dot_dimension_numbers<[1], [0], [0], [1], [0, 0, 1, 1], [], []>} : vector<24x32xf32>, vector<32x128xf32>, vector<24x128xf32> -> vector<24x128xf32>
    %475 = arith.addf %456, %474 : vector<24x128xf32>
    %476 = vector.extract_strided_slice %434 {offsets = [0, 64], sizes = [24, 32], strides = [1, 1]} : vector<24x128xf32> to vector<24x32xf32>
    %477 = vector.extract_strided_slice %435 {offsets = [0, 64], sizes = [24, 32], strides = [1, 1]} : vector<24x128xf32> to vector<24x32xf32>
    %478 = vector.extract_strided_slice %436 {offsets = [0, 64], sizes = [24, 32], strides = [1, 1]} : vector<24x128xf32> to vector<24x32xf32>
    %cst_190 = arith.constant dense<0.000000e+00> : vector<24x24xf32>
    %479 = tpu.matmul %476, %477, %cst_190 {dimension_numbers = #tpu.dot_dimension_numbers<[1], [1], [0], [0], [0, 0, 1, 0], [], []>} : vector<24x32xf32>, vector<24x32xf32>, vector<24x24xf32> -> vector<24x24xf32>
    %480 = arith.addf %479, %10 : vector<24x24xf32>
    %cst_191 = arith.constant dense<0xFF800000> : vector<24xf32>
    %481 = vector.multi_reduction <maximumf>, %480, %cst_191 [1] : vector<24x24xf32> to vector<24xf32>
    %482 = vector.shape_cast %481 : vector<24xf32> to vector<24x1xf32>
    %483 = vector.broadcast %482 : vector<24x1xf32> to vector<24x24xf32>
    %484 = arith.subf %480, %483 : vector<24x24xf32>
    %485 = math.exp %484 : vector<24x24xf32>
    %cst_192 = arith.constant dense<0.000000e+00> : vector<24xf32>
    %486 = vector.multi_reduction <add>, %485, %cst_192 [1] : vector<24x24xf32> to vector<24xf32>
    %487 = vector.shape_cast %486 : vector<24xf32> to vector<24x1xf32>
    %488 = tpu.reciprocal %487 : vector<24x1xf32> -> vector<24x1xf32>
    %489 = vector.broadcast %488 : vector<24x1xf32> to vector<24x24xf32>
    %490 = arith.mulf %485, %489 : vector<24x24xf32>
    %cst_193 = arith.constant dense<0.000000e+00> : vector<24x32xf32>
    %491 = tpu.matmul %490, %478, %cst_193 {dimension_numbers = #tpu.dot_dimension_numbers<[1], [0], [0], [1], [0, 0, 1, 1], [], []>} : vector<24x24xf32>, vector<24x32xf32>, vector<24x32xf32> -> vector<24x32xf32>
    %492 = vector.extract_strided_slice %308 {offsets = [64, 0], sizes = [32, 128], strides = [1, 1]} : vector<128x128xf32> to vector<32x128xf32>
    %cst_194 = arith.constant dense<0.000000e+00> : vector<24x128xf32>
    %493 = tpu.matmul %491, %492, %cst_194 {dimension_numbers = #tpu.dot_dimension_numbers<[1], [0], [0], [1], [0, 0, 1, 1], [], []>} : vector<24x32xf32>, vector<32x128xf32>, vector<24x128xf32> -> vector<24x128xf32>
    %494 = arith.addf %475, %493 : vector<24x128xf32>
    %495 = vector.extract_strided_slice %434 {offsets = [0, 96], sizes = [24, 32], strides = [1, 1]} : vector<24x128xf32> to vector<24x32xf32>
    %496 = vector.extract_strided_slice %435 {offsets = [0, 96], sizes = [24, 32], strides = [1, 1]} : vector<24x128xf32> to vector<24x32xf32>
    %497 = vector.extract_strided_slice %436 {offsets = [0, 96], sizes = [24, 32], strides = [1, 1]} : vector<24x128xf32> to vector<24x32xf32>
    %cst_195 = arith.constant dense<0.000000e+00> : vector<24x24xf32>
    %498 = tpu.matmul %495, %496, %cst_195 {dimension_numbers = #tpu.dot_dimension_numbers<[1], [1], [0], [0], [0, 0, 1, 0], [], []>} : vector<24x32xf32>, vector<24x32xf32>, vector<24x24xf32> -> vector<24x24xf32>
    %499 = arith.addf %498, %10 : vector<24x24xf32>
    %cst_196 = arith.constant dense<0xFF800000> : vector<24xf32>
    %500 = vector.multi_reduction <maximumf>, %499, %cst_196 [1] : vector<24x24xf32> to vector<24xf32>
    %501 = vector.shape_cast %500 : vector<24xf32> to vector<24x1xf32>
    %502 = vector.broadcast %501 : vector<24x1xf32> to vector<24x24xf32>
    %503 = arith.subf %499, %502 : vector<24x24xf32>
    %504 = math.exp %503 : vector<24x24xf32>
    %cst_197 = arith.constant dense<0.000000e+00> : vector<24xf32>
    %505 = vector.multi_reduction <add>, %504, %cst_197 [1] : vector<24x24xf32> to vector<24xf32>
    %506 = vector.shape_cast %505 : vector<24xf32> to vector<24x1xf32>
    %507 = tpu.reciprocal %506 : vector<24x1xf32> -> vector<24x1xf32>
    %508 = vector.broadcast %507 : vector<24x1xf32> to vector<24x24xf32>
    %509 = arith.mulf %504, %508 : vector<24x24xf32>
    %cst_198 = arith.constant dense<0.000000e+00> : vector<24x32xf32>
    %510 = tpu.matmul %509, %497, %cst_198 {dimension_numbers = #tpu.dot_dimension_numbers<[1], [0], [0], [1], [0, 0, 1, 1], [], []>} : vector<24x24xf32>, vector<24x32xf32>, vector<24x32xf32> -> vector<24x32xf32>
    %511 = vector.extract_strided_slice %308 {offsets = [96, 0], sizes = [32, 128], strides = [1, 1]} : vector<128x128xf32> to vector<32x128xf32>
    %cst_199 = arith.constant dense<0.000000e+00> : vector<24x128xf32>
    %512 = tpu.matmul %510, %511, %cst_199 {dimension_numbers = #tpu.dot_dimension_numbers<[1], [0], [0], [1], [0, 0, 1, 1], [], []>} : vector<24x32xf32>, vector<32x128xf32>, vector<24x128xf32> -> vector<24x128xf32>
    %513 = arith.addf %494, %512 : vector<24x128xf32>
    %514 = tpu.concatenate %430, %513 in 0 : vector<24x128xf32>, vector<24x128xf32> -> vector<48x128xf32>
    %515 = vector.broadcast %310 : vector<1x128xf32> to vector<48x128xf32>
    %516 = arith.addf %514, %515 : vector<48x128xf32>
    %517 = arith.addf %298, %516 : vector<48x128xf32>
    %cst_200 = arith.constant dense<0.000000e+00> : vector<48xf32>
    %518 = vector.multi_reduction <add>, %517, %cst_200 [1] : vector<48x128xf32> to vector<48xf32>
    %519 = vector.shape_cast %518 : vector<48xf32> to vector<48x1xf32>
    %cst_201 = arith.constant 1.280000e+02 : f32
    %520 = vector.broadcast %cst_201 : f32 to vector<48x1xf32>
    %521 = arith.divf %519, %520 : vector<48x1xf32>
    %522 = vector.broadcast %521 : vector<48x1xf32> to vector<48x128xf32>
    %523 = arith.subf %517, %522 : vector<48x128xf32>
    %524 = arith.mulf %523, %523 : vector<48x128xf32>
    %cst_202 = arith.constant dense<0.000000e+00> : vector<48xf32>
    %525 = vector.multi_reduction <add>, %524, %cst_202 [1] : vector<48x128xf32> to vector<48xf32>
    %526 = vector.shape_cast %525 : vector<48xf32> to vector<48x1xf32>
    %cst_203 = arith.constant 1.280000e+02 : f32
    %527 = vector.broadcast %cst_203 : f32 to vector<48x1xf32>
    %528 = arith.divf %526, %527 : vector<48x1xf32>
    %529 = vector.broadcast %521 : vector<48x1xf32> to vector<48x128xf32>
    %530 = arith.subf %517, %529 : vector<48x128xf32>
    %cst_204 = arith.constant 9.99999974E-6 : f32
    %531 = vector.broadcast %cst_204 : f32 to vector<48x1xf32>
    %532 = arith.addf %528, %531 : vector<48x1xf32>
    %533 = math.rsqrt %532 : vector<48x1xf32>
    %534 = vector.broadcast %533 : vector<48x1xf32> to vector<48x128xf32>
    %535 = arith.mulf %530, %534 : vector<48x128xf32>
    %536 = vector.broadcast %312 : vector<1x128xf32> to vector<48x128xf32>
    %537 = arith.mulf %535, %536 : vector<48x128xf32>
    %538 = vector.broadcast %314 : vector<1x128xf32> to vector<48x128xf32>
    %539 = arith.addf %537, %538 : vector<48x128xf32>
    %cst_205 = arith.constant dense<0.000000e+00> : vector<48x512xf32>
    %540 = tpu.matmul %539, %316, %cst_205 {dimension_numbers = #tpu.dot_dimension_numbers<[1], [0], [0], [1], [0, 0, 1, 1], [], []>} : vector<48x128xf32>, vector<128x512xf32>, vector<48x512xf32> -> vector<48x512xf32>
    %541 = vector.broadcast %318 : vector<1x512xf32> to vector<48x512xf32>
    %542 = arith.addf %540, %541 : vector<48x512xf32>
    %cst_206 = arith.constant 5.000000e-01 : f32
    %543 = vector.broadcast %cst_206 : f32 to vector<48x512xf32>
    %544 = arith.mulf %543, %542 : vector<48x512xf32>
    %cst_207 = arith.constant 0.707106769 : f32
    %545 = vector.broadcast %cst_207 : f32 to vector<48x512xf32>
    %546 = arith.mulf %542, %545 : vector<48x512xf32>
    %547 = math.absf %546 : vector<48x512xf32>
    %cst_208 = arith.constant 0.327591091 : f32
    %548 = vector.broadcast %cst_208 : f32 to vector<48x512xf32>
    %549 = arith.mulf %548, %547 : vector<48x512xf32>
    %cst_209 = arith.constant 1.000000e+00 : f32
    %550 = vector.broadcast %cst_209 : f32 to vector<48x512xf32>
    %551 = arith.addf %550, %549 : vector<48x512xf32>
    %cst_210 = arith.constant 1.000000e+00 : f32
    %552 = vector.broadcast %cst_210 : f32 to vector<48x512xf32>
    %553 = arith.divf %552, %551 : vector<48x512xf32>
    %cst_211 = arith.constant 1.06140542 : f32
    %554 = vector.broadcast %cst_211 : f32 to vector<48x512xf32>
    %555 = arith.mulf %554, %553 : vector<48x512xf32>
    %cst_212 = arith.constant -1.45315206 : f32
    %556 = vector.broadcast %cst_212 : f32 to vector<48x512xf32>
    %557 = arith.addf %555, %556 : vector<48x512xf32>
    %558 = arith.mulf %557, %553 : vector<48x512xf32>
    %cst_213 = arith.constant 1.42141378 : f32
    %559 = vector.broadcast %cst_213 : f32 to vector<48x512xf32>
    %560 = arith.addf %558, %559 : vector<48x512xf32>
    %561 = arith.mulf %560, %553 : vector<48x512xf32>
    %cst_214 = arith.constant -0.284496725 : f32
    %562 = vector.broadcast %cst_214 : f32 to vector<48x512xf32>
    %563 = arith.addf %561, %562 : vector<48x512xf32>
    %564 = arith.mulf %563, %553 : vector<48x512xf32>
    %cst_215 = arith.constant 0.254829586 : f32
    %565 = vector.broadcast %cst_215 : f32 to vector<48x512xf32>
    %566 = arith.addf %564, %565 : vector<48x512xf32>
    %567 = arith.mulf %566, %553 : vector<48x512xf32>
    %cst_216 = arith.constant 0.000000e+00 : f32
    %568 = vector.broadcast %cst_216 : f32 to vector<48x512xf32>
    %569 = arith.subf %568, %547 : vector<48x512xf32>
    %570 = arith.mulf %569, %547 : vector<48x512xf32>
    %571 = math.exp %570 : vector<48x512xf32>
    %572 = arith.mulf %567, %571 : vector<48x512xf32>
    %cst_217 = arith.constant 1.000000e+00 : f32
    %573 = vector.broadcast %cst_217 : f32 to vector<48x512xf32>
    %574 = arith.subf %573, %572 : vector<48x512xf32>
    %cst_218 = arith.constant 0.000000e+00 : f32
    %575 = vector.broadcast %cst_218 : f32 to vector<48x512xf32>
    %576 = arith.cmpf oge, %546, %575 : vector<48x512xf32>
    %cst_219 = arith.constant 0.000000e+00 : f32
    %577 = vector.broadcast %cst_219 : f32 to vector<48x512xf32>
    %578 = arith.subf %577, %574 : vector<48x512xf32>
    %579 = arith.select %576, %574, %578 : vector<48x512xi1>, vector<48x512xf32>
    %cst_220 = arith.constant 1.000000e+00 : f32
    %580 = vector.broadcast %cst_220 : f32 to vector<48x512xf32>
    %581 = arith.addf %580, %579 : vector<48x512xf32>
    %582 = arith.mulf %544, %581 : vector<48x512xf32>
    %cst_221 = arith.constant dense<0.000000e+00> : vector<48x128xf32>
    %583 = tpu.matmul %582, %320, %cst_221 {dimension_numbers = #tpu.dot_dimension_numbers<[1], [0], [0], [1], [0, 0, 1, 1], [], []>} : vector<48x512xf32>, vector<512x128xf32>, vector<48x128xf32> -> vector<48x128xf32>
    %584 = arith.addf %517, %583 : vector<48x128xf32>
    %585 = vector.broadcast %322 : vector<1x128xf32> to vector<48x128xf32>
    %586 = arith.addf %584, %585 : vector<48x128xf32>
    %c0_222 = arith.constant 0 : index
    %c0_223 = arith.constant 0 : index
    %587 = vector.load %arg16[%c0_222, %c0_223] : memref<1x128xf32, #tpu.memory_space<vmem>>, vector<1x128xf32>
    %c0_224 = arith.constant 0 : index
    %c0_225 = arith.constant 0 : index
    %588 = vector.load %arg17[%c0_224, %c0_225] : memref<1x128xf32, #tpu.memory_space<vmem>>, vector<1x128xf32>
    %cst_226 = arith.constant dense<0.000000e+00> : vector<48xf32>
    %589 = vector.multi_reduction <add>, %586, %cst_226 [1] : vector<48x128xf32> to vector<48xf32>
    %590 = vector.shape_cast %589 : vector<48xf32> to vector<48x1xf32>
    %cst_227 = arith.constant 1.280000e+02 : f32
    %591 = vector.broadcast %cst_227 : f32 to vector<48x1xf32>
    %592 = arith.divf %590, %591 : vector<48x1xf32>
    %593 = vector.broadcast %592 : vector<48x1xf32> to vector<48x128xf32>
    %594 = arith.subf %586, %593 : vector<48x128xf32>
    %595 = arith.mulf %594, %594 : vector<48x128xf32>
    %cst_228 = arith.constant dense<0.000000e+00> : vector<48xf32>
    %596 = vector.multi_reduction <add>, %595, %cst_228 [1] : vector<48x128xf32> to vector<48xf32>
    %597 = vector.shape_cast %596 : vector<48xf32> to vector<48x1xf32>
    %cst_229 = arith.constant 1.280000e+02 : f32
    %598 = vector.broadcast %cst_229 : f32 to vector<48x1xf32>
    %599 = arith.divf %597, %598 : vector<48x1xf32>
    %600 = vector.broadcast %592 : vector<48x1xf32> to vector<48x128xf32>
    %601 = arith.subf %586, %600 : vector<48x128xf32>
    %cst_230 = arith.constant 9.99999974E-6 : f32
    %602 = vector.broadcast %cst_230 : f32 to vector<48x1xf32>
    %603 = arith.addf %599, %602 : vector<48x1xf32>
    %604 = math.rsqrt %603 : vector<48x1xf32>
    %605 = vector.broadcast %604 : vector<48x1xf32> to vector<48x128xf32>
    %606 = arith.mulf %601, %605 : vector<48x128xf32>
    %607 = vector.broadcast %587 : vector<1x128xf32> to vector<48x128xf32>
    %608 = arith.mulf %606, %607 : vector<48x128xf32>
    %609 = vector.broadcast %588 : vector<1x128xf32> to vector<48x128xf32>
    %610 = arith.addf %608, %609 : vector<48x128xf32>
    %c0_231 = arith.constant 0 : index
    %c0_232 = arith.constant 0 : index
    %611 = vector.load %arg18[%c0_231, %c0_232] : memref<128x128xf32, #tpu.memory_space<vmem>>, vector<128x128xf32>
    %cst_233 = arith.constant dense<0.000000e+00> : vector<48x128xf32>
    %612 = tpu.matmul %610, %611, %cst_233 {dimension_numbers = #tpu.dot_dimension_numbers<[1], [0], [0], [1], [0, 0, 1, 1], [], []>} : vector<48x128xf32>, vector<128x128xf32>, vector<48x128xf32> -> vector<48x128xf32>
    %c0_234 = arith.constant 0 : index
    %c0_235 = arith.constant 0 : index
    %613 = vector.load %arg19[%c0_234, %c0_235] : memref<1x128xf32, #tpu.memory_space<vmem>>, vector<1x128xf32>
    %614 = vector.broadcast %613 : vector<1x128xf32> to vector<48x128xf32>
    %615 = arith.addf %612, %614 : vector<48x128xf32>
    %c0_236 = arith.constant 0 : index
    %c0_237 = arith.constant 0 : index
    %616 = vector.load %arg20[%c0_236, %c0_237] : memref<48x128xf32, #tpu.memory_space<vmem>>, vector<48x128xf32>
    tpu.vector_store %arg20[%c0_236, %c0_237], %615 {strides = array<i32>} : memref<48x128xf32, #tpu.memory_space<vmem>>, vector<48x128xf32>,
    return
  }
  func.func @transform_0(%arg0: i32) -> (i32, i32) {
    %c0_i32 = arith.constant 0 : i32
    %c0_i32_0 = arith.constant 0 : i32
    %c0_i32_1 = arith.constant 0 : i32
    return %c0_i32, %c0_i32_0 : i32, i32
  }
  func.func @transform_1(%arg0: i32) -> (i32, i32) {
    %c0_i32 = arith.constant 0 : i32
    %c0_i32_0 = arith.constant 0 : i32
    %c0_i32_1 = arith.constant 0 : i32
    return %c0_i32, %c0_i32_0 : i32, i32
  }
  func.func @transform_2(%arg0: i32) -> (i32, i32) {
    %c0_i32 = arith.constant 0 : i32
    %c0_i32_0 = arith.constant 0 : i32
    %c0_i32_1 = arith.constant 0 : i32
    return %c0_i32, %c0_i32_0 : i32, i32
  }
  func.func @transform_3(%arg0: i32) -> (i32, i32, i32) {
    %c0_i32 = arith.constant 0 : i32
    %c0_i32_0 = arith.constant 0 : i32
    %c0_i32_1 = arith.constant 0 : i32
    %c0_i32_2 = arith.constant 0 : i32
    return %c0_i32, %c0_i32_0, %c0_i32_1 : i32, i32, i32
  }
  func.func @transform_4(%arg0: i32) -> (i32, i32, i32) {
    %c0_i32 = arith.constant 0 : i32
    %c0_i32_0 = arith.constant 0 : i32
    %c0_i32_1 = arith.constant 0 : i32
    %c0_i32_2 = arith.constant 0 : i32
    return %c0_i32, %c0_i32_0, %c0_i32_1 : i32, i32, i32
  }
  func.func @transform_5(%arg0: i32) -> (i32, i32, i32) {
    %c0_i32 = arith.constant 0 : i32
    %c0_i32_0 = arith.constant 0 : i32
    %c0_i32_1 = arith.constant 0 : i32
    %c0_i32_2 = arith.constant 0 : i32
    return %c0_i32, %c0_i32_0, %c0_i32_1 : i32, i32, i32
  }
  func.func @transform_6(%arg0: i32) -> (i32, i32, i32) {
    %c0_i32 = arith.constant 0 : i32
    %c0_i32_0 = arith.constant 0 : i32
    %c0_i32_1 = arith.constant 0 : i32
    %c0_i32_2 = arith.constant 0 : i32
    return %c0_i32, %c0_i32_0, %c0_i32_1 : i32, i32, i32
  }
  func.func @transform_7(%arg0: i32) -> (i32, i32, i32) {
    %c0_i32 = arith.constant 0 : i32
    %c0_i32_0 = arith.constant 0 : i32
    %c0_i32_1 = arith.constant 0 : i32
    %c0_i32_2 = arith.constant 0 : i32
    return %c0_i32, %c0_i32_0, %c0_i32_1 : i32, i32, i32
  }
  func.func @transform_8(%arg0: i32) -> (i32, i32, i32) {
    %c0_i32 = arith.constant 0 : i32
    %c0_i32_0 = arith.constant 0 : i32
    %c0_i32_1 = arith.constant 0 : i32
    %c0_i32_2 = arith.constant 0 : i32
    return %c0_i32, %c0_i32_0, %c0_i32_1 : i32, i32, i32
  }
  func.func @transform_9(%arg0: i32) -> (i32, i32, i32) {
    %c0_i32 = arith.constant 0 : i32
    %c0_i32_0 = arith.constant 0 : i32
    %c0_i32_1 = arith.constant 0 : i32
    %c0_i32_2 = arith.constant 0 : i32
    return %c0_i32, %c0_i32_0, %c0_i32_1 : i32, i32, i32
  }
  func.func @transform_10(%arg0: i32) -> (i32, i32, i32) {
    %c0_i32 = arith.constant 0 : i32
    %c0_i32_0 = arith.constant 0 : i32
    %c0_i32_1 = arith.constant 0 : i32
    %c0_i32_2 = arith.constant 0 : i32
    return %c0_i32, %c0_i32_0, %c0_i32_1 : i32, i32, i32
  }
  func.func @transform_11(%arg0: i32) -> (i32, i32, i32) {
    %c0_i32 = arith.constant 0 : i32
    %c0_i32_0 = arith.constant 0 : i32
    %c0_i32_1 = arith.constant 0 : i32
    %c0_i32_2 = arith.constant 0 : i32
    return %c0_i32, %c0_i32_0, %c0_i32_1 : i32, i32, i32
  }
  func.func @transform_12(%arg0: i32) -> (i32, i32, i32) {
    %c0_i32 = arith.constant 0 : i32
    %c0_i32_0 = arith.constant 0 : i32
    %c0_i32_1 = arith.constant 0 : i32
    %c0_i32_2 = arith.constant 0 : i32
    return %c0_i32, %c0_i32_0, %c0_i32_1 : i32, i32, i32
  }
  func.func @transform_13(%arg0: i32) -> (i32, i32, i32) {
    %c0_i32 = arith.constant 0 : i32
    %c0_i32_0 = arith.constant 0 : i32
    %c0_i32_1 = arith.constant 0 : i32
    %c0_i32_2 = arith.constant 0 : i32
    return %c0_i32, %c0_i32_0, %c0_i32_1 : i32, i32, i32
  }
  func.func @transform_14(%arg0: i32) -> (i32, i32, i32) {
    %c0_i32 = arith.constant 0 : i32
    %c0_i32_0 = arith.constant 0 : i32
    %c0_i32_1 = arith.constant 0 : i32
    %c0_i32_2 = arith.constant 0 : i32
    return %c0_i32, %c0_i32_0, %c0_i32_1 : i32, i32, i32
  }
  func.func @transform_15(%arg0: i32) -> (i32, i32) {
    %c0_i32 = arith.constant 0 : i32
    %c0_i32_0 = arith.constant 0 : i32
    %c0_i32_1 = arith.constant 0 : i32
    return %c0_i32, %c0_i32_0 : i32, i32
  }
  func.func @transform_16(%arg0: i32) -> (i32, i32) {
    %c0_i32 = arith.constant 0 : i32
    %c0_i32_0 = arith.constant 0 : i32
    %c0_i32_1 = arith.constant 0 : i32
    return %c0_i32, %c0_i32_0 : i32, i32
  }
  func.func @transform_17(%arg0: i32) -> (i32, i32) {
    %c0_i32 = arith.constant 0 : i32
    %c0_i32_0 = arith.constant 0 : i32
    %c0_i32_1 = arith.constant 0 : i32
    return %c0_i32, %c0_i32_0 : i32, i32
  }
  func.func @transform_18(%arg0: i32) -> (i32, i32) {
    %c0_i32 = arith.constant 0 : i32
    %c0_i32_0 = arith.constant 0 : i32
    %c0_i32_1 = arith.constant 0 : i32
    return %c0_i32, %c0_i32_0 : i32, i32
  }
  func.func @transform_19(%arg0: i32) -> (i32, i32) {
    %c0_i32 = arith.constant 0 : i32
    %c0_i32_0 = arith.constant 0 : i32
    %c0_i32_1 = arith.constant 0 : i32
    return %c0_i32, %c0_i32_0 : i32, i32
  }
}

</mosaic_0001>

<llo_original>
// kernel: tpu_custom_call.1
$region0: #{tpu_custom_call.1}
  #allocation0 [shape = 'u32[]', space=smem, size = 0x4, offset = 0x4, fixed_abs, tag = 'smem constant byte address 0x4 - core index']
  #allocation1 [shape = 'u32[144,128]{1,0:T(1,128)}', space=vmem, size = 0x12000, scoped, tag = 'internal scratch']
  %s0 = inlined_call_operand.hbm [shape: f32[48,48], index: 0, kind: input, shape index: {}]
  %s1 = inlined_call_operand.hbm [shape: f32[48,128], index: 1, kind: input, shape index: {}]
  %s2 = inlined_call_operand.hbm [shape: f32[48,128], index: 2, kind: input, shape index: {}]
  %s3 = inlined_call_operand.vmem [shape: f32[2,1,128], index: 3, kind: input, shape index: {}]
  %s4 = inlined_call_operand.hbm [shape: f32[2,1,128], index: 4, kind: input, shape index: {}]
  %s5 = inlined_call_operand.hbm [shape: f32[2,128,384], index: 5, kind: input, shape index: {}]
  %s6 = inlined_call_operand.vmem [shape: f32[2,1,384], index: 6, kind: input, shape index: {}]
  %s7 = inlined_call_operand.hbm [shape: f32[2,128,128], index: 7, kind: input, shape index: {}]
  %s8 = inlined_call_operand.hbm [shape: f32[2,1,128], index: 8, kind: input, shape index: {}]
  %s9 = inlined_call_operand.hbm [shape: f32[2,1,128], index: 9, kind: input, shape index: {}]
  %s10 = inlined_call_operand.vmem [shape: f32[2,1,128], index: 10, kind: input, shape index: {}]
  %s11 = inlined_call_operand.hbm [shape: f32[2,128,512], index: 11, kind: input, shape index: {}]
  %s12 = inlined_call_operand.vmem [shape: f32[2,1,512], index: 12, kind: input, shape index: {}]
  %s13 = inlined_call_operand.hbm [shape: f32[2,512,128], index: 13, kind: input, shape index: {}]
  %s14 = inlined_call_operand.vmem [shape: f32[2,1,128], index: 14, kind: input, shape index: {}]
  %s15 = inlined_call_operand.vmem [shape: f32[1,128], index: 15, kind: input, shape index: {}]
  %s16 = inlined_call_operand.vmem [shape: f32[1,128], index: 16, kind: input, shape index: {}]
  %s17 = inlined_call_operand.hbm [shape: f32[128,128], index: 17, kind: input, shape index: {}]
  %s18 = inlined_call_operand.vmem [shape: f32[1,128], index: 18, kind: input, shape index: {}]
  %s19 = inlined_call_operand.hbm [shape: f32[48,128], index: 19, kind: output, shape index: {}]
  %s20 = sld [smem:[#allocation0]]
  $region130: #{tpu_custom_call.1} parent=0
    _
  %s22 = ssub.s32 1, %s20
  %s23 = scalar_select 0, %s22, %s20
  $region1: #{tpu_custom_call.1} parent=0
    #allocation2 [shape = 'u8[24576]{0}', space=vmem, size = 0x6000, scoped, tag = 'input window, operand 0, single buffered']
    #allocation3 [shape = 's32[1]{0}', space=sflag, size = 0x4, scoped, tag = 'scoped memory for tpu_custom_call.1']
    #allocation4 [shape = 's32[1]{0}', space=sflag, size = 0x4, scoped, tag = 'scoped memory for tpu_custom_call.1']
    #allocation5 [shape = 'u8[24576]{0}', space=vmem, size = 0x6000, scoped, tag = 'input window, operand 1, single buffered']
    #allocation6 [shape = 's32[1]{0}', space=sflag, size = 0x4, scoped, tag = 'scoped memory for tpu_custom_call.1']
    #allocation7 [shape = 'u8[24576]{0}', space=vmem, size = 0x6000, scoped, tag = 'input window, operand 2, single buffered']
    #allocation8 [shape = 'u8[1024]{0}', space=vmem, size = 0x400, scoped, tag = 'input window, operand 4, single buffered']
    #allocation9 [shape = 's32[1]{0}', space=sflag, size = 0x4, scoped, tag = 'scoped memory for tpu_custom_call.1']
    #allocation10 [shape = 'u8[393216]{0}', space=vmem, size = 0x60000, scoped, tag = 'input window, operand 5, single buffered']
    #allocation11 [shape = 'u8[131072]{0}', space=vmem, size = 0x20000, scoped, tag = 'input window, operand 7, single buffered']
    #allocation12 [shape = 's32[1]{0}', space=sflag, size = 0x4, scoped, tag = 'scoped memory for tpu_custom_call.1']
    #allocation13 [shape = 'u8[1024]{0}', space=vmem, size = 0x400, scoped, tag = 'input window, operand 8, single buffered']
    #allocation14 [shape = 'u8[1024]{0}', space=vmem, size = 0x400, scoped, tag = 'input window, operand 9, single buffered']
    #allocation15 [shape = 's32[1]{0}', space=sflag, size = 0x4, scoped, tag = 'scoped memory for tpu_custom_call.1']
    #allocation16 [shape = 'u8[524288]{0}', space=vmem, size = 0x80000, scoped, tag = 'input window, operand 11, single buffered']
    #allocation17 [shape = 'u8[524288]{0}', space=vmem, size = 0x80000, scoped, tag = 'input window, operand 13, single buffered']
    #allocation18 [shape = 's32[1]{0}', space=sflag, size = 0x4, scoped, tag = 'scoped memory for tpu_custom_call.1']
    #allocation19 [shape = 'u8[65536]{0}', space=vmem, size = 0x10000, scoped, tag = 'input window, operand 17, single buffered']
    #allocation20 [shape = 'u8[24576]{0}', space=vmem, size = 0x6000, scoped, tag = 'output window, operand 0, single buffered']
    %24 = vsyncpa [#allocation3], 0
    %25 = vsyncpa [#allocation6], 0
    %26 = vsyncpa [#allocation9], 0
    %27 = vsyncpa [#allocation12], 0
    %28 = vsyncpa [#allocation15], 0
    %29 = vsyncpa [#allocation18], 0
    %30 = vsyncpa [#allocation4], 0
    // Predicated region
    $region2: #{tpu_custom_call.1} parent=1 // pred_check
      _
    $region3: #{tpu_custom_call.1} parent=1 // pred_check_branch
      %32 = sbr.rel (0) target = $region5
    $region4: #{tpu_custom_call.1} parent=1 // pred_region
      %s34 = ssub.s32 768, 768
      %35 = vsyncadd [#allocation3], %s34
      %s36 = sshll.u32 [#allocation2], 4
      %s37 = int_to_ptr.vmem [resolvable:$true] %s36
      %42 = dma.hbm_to_vmem [thread:$0]  %s0, 768, %s37, [#allocation3], 128, 128, 8
    $region5: #{tpu_custom_call.1} parent=1 // pred_fallthru
      _
    // Predicated region
    $region6: #{tpu_custom_call.1} parent=1 // pred_check
      _
    $region7: #{tpu_custom_call.1} parent=1 // pred_check_branch
      %44 = sbr.rel (0) target = $region9
    $region8: #{tpu_custom_call.1} parent=1 // pred_region
      %s46 = ssub.s32 768, 768
      %47 = vsyncadd [#allocation6], %s46
      %s48 = sshll.u32 [#allocation5], 4
      %s49 = int_to_ptr.vmem [resolvable:$true] %s48
      %54 = dma.hbm_to_vmem [thread:$0]  %s1, 768, %s49, [#allocation6], 128, 128, 8
    $region9: #{tpu_custom_call.1} parent=1 // pred_fallthru
      _
    // Predicated region
    $region10: #{tpu_custom_call.1} parent=1 // pred_check
      _
    $region11: #{tpu_custom_call.1} parent=1 // pred_check_branch
      %56 = sbr.rel (0) target = $region13
    $region12: #{tpu_custom_call.1} parent=1 // pred_region
      %s58 = ssub.s32 768, 768
      %59 = vsyncadd [#allocation6], %s58
      %s60 = sshll.u32 [#allocation7], 4
      %s61 = int_to_ptr.vmem [resolvable:$true] %s60
      %66 = dma.hbm_to_vmem [thread:$0]  %s2, 768, %s61, [#allocation6], 128, 128, 8
    $region13: #{tpu_custom_call.1} parent=1 // pred_fallthru
      _
    // Predicated region
    $region14: #{tpu_custom_call.1} parent=1 // pred_check
      _
    $region15: #{tpu_custom_call.1} parent=1 // pred_check_branch
      %68 = sbr.rel (0) target = $region17
    $region16: #{tpu_custom_call.1} parent=1 // pred_region
      _
    $region17: #{tpu_custom_call.1} parent=1 // pred_fallthru
      _
    // Predicated region
    $region18: #{tpu_custom_call.1} parent=1 // pred_check
      _
    $region19: #{tpu_custom_call.1} parent=1 // pred_check_branch
      %70 = sbr.rel (0) target = $region21
    $region20: #{tpu_custom_call.1} parent=1 // pred_region
      %s72 = ssub.s32 32, 32
      %73 = vsyncadd [#allocation9], %s72
      %s74 = sshll.u32 [#allocation8], 4
      %s75 = int_to_ptr.vmem [resolvable:$true] %s74
      %80 = dma.hbm_to_vmem [thread:$0]  %s4, 32, %s75, [#allocation9], 16, 16, 1
    $region21: #{tpu_custom_call.1} parent=1 // pred_fallthru
      _
    // Predicated region
    $region22: #{tpu_custom_call.1} parent=1 // pred_check
      _
    $region23: #{tpu_custom_call.1} parent=1 // pred_check_branch
      %82 = sbr.rel (0) target = $region25
    $region24: #{tpu_custom_call.1} parent=1 // pred_region
      %s84 = ssub.s32 12288, 12288
      %85 = vsyncadd [#allocation9], %s84
      %s86 = sshll.u32 [#allocation10], 4
      %s87 = int_to_ptr.vmem [resolvable:$true] %s86
      %92 = dma.hbm_to_vmem [thread:$0]  %s5, 12288, %s87, [#allocation9], 384, 384, 24
    $region25: #{tpu_custom_call.1} parent=1 // pred_fallthru
      _
    // Predicated region
    $region26: #{tpu_custom_call.1} parent=1 // pred_check
      _
    $region27: #{tpu_custom_call.1} parent=1 // pred_check_branch
      %94 = sbr.rel (0) target = $region29
    $region28: #{tpu_custom_call.1} parent=1 // pred_region
      _
    $region29: #{tpu_custom_call.1} parent=1 // pred_fallthru
      _
    // Predicated region
    $region30: #{tpu_custom_call.1} parent=1 // pred_check
      _
    $region31: #{tpu_custom_call.1} parent=1 // pred_check_branch
      %96 = sbr.rel (0) target = $region33
    $region32: #{tpu_custom_call.1} parent=1 // pred_region
      %s98 = ssub.s32 4096, 4096
      %99 = vsyncadd [#allocation12], %s98
      %s100 = sshll.u32 [#allocation11], 4
      %s101 = int_to_ptr.vmem [resolvable:$true] %s100
      %106 = dma.hbm_to_vmem [thread:$0]  %s7, 4096, %s101, [#allocation12], 128, 128, 8
    $region33: #{tpu_custom_call.1} parent=1 // pred_fallthru
      _
    // Predicated region
    $region34: #{tpu_custom_call.1} parent=1 // pred_check
      _
    $region35: #{tpu_custom_call.1} parent=1 // pred_check_branch
      %108 = sbr.rel (0) target = $region37
    $region36: #{tpu_custom_call.1} parent=1 // pred_region
      %s110 = ssub.s32 32, 32
      %111 = vsyncadd [#allocation12], %s110
      %s112 = sshll.u32 [#allocation13], 4
      %s113 = int_to_ptr.vmem [resolvable:$true] %s112
      %118 = dma.hbm_to_vmem [thread:$0]  %s8, 32, %s113, [#allocation12], 16, 16, 1
    $region37: #{tpu_custom_call.1} parent=1 // pred_fallthru
      _
    // Predicated region
    $region38: #{tpu_custom_call.1} parent=1 // pred_check
      _
    $region39: #{tpu_custom_call.1} parent=1 // pred_check_branch
      %120 = sbr.rel (0) target = $region41
    $region40: #{tpu_custom_call.1} parent=1 // pred_region
      %s122 = ssub.s32 32, 32
      %123 = vsyncadd [#allocation15], %s122
      %s124 = sshll.u32 [#allocation14], 4
      %s125 = int_to_ptr.vmem [resolvable:$true] %s124
      %130 = dma.hbm_to_vmem [thread:$0]  %s9, 32, %s125, [#allocation15], 16, 16, 1
    $region41: #{tpu_custom_call.1} parent=1 // pred_fallthru
      _
    // Predicated region
    $region42: #{tpu_custom_call.1} parent=1 // pred_check
      _
    $region43: #{tpu_custom_call.1} parent=1 // pred_check_branch
      %132 = sbr.rel (0) target = $region45
    $region44: #{tpu_custom_call.1} parent=1 // pred_region
      _
    $region45: #{tpu_custom_call.1} parent=1 // pred_fallthru
      _
    // Predicated region
    $region46: #{tpu_custom_call.1} parent=1 // pred_check
      _
    $region47: #{tpu_custom_call.1} parent=1 // pred_check_branch
      %134 = sbr.rel (0) target = $region49
    $region48: #{tpu_custom_call.1} parent=1 // pred_region
      %s136 = ssub.s32 16384, 16384
      %137 = vsyncadd [#allocation15], %s136
      %s138 = sshll.u32 [#allocation16], 4
      %s139 = int_to_ptr.vmem [resolvable:$true] %s138
      %144 = dma.hbm_to_vmem [thread:$0]  %s11, 16384, %s139, [#allocation15], 512, 512, 32
    $region49: #{tpu_custom_call.1} parent=1 // pred_fallthru
      _
    // Predicated region
    $region50: #{tpu_custom_call.1} parent=1 // pred_check
      _
    $region51: #{tpu_custom_call.1} parent=1 // pred_check_branch
      %146 = sbr.rel (0) target = $region53
    $region52: #{tpu_custom_call.1} parent=1 // pred_region
      _
    $region53: #{tpu_custom_call.1} parent=1 // pred_fallthru
      _
    // Predicated region
    $region54: #{tpu_custom_call.1} parent=1 // pred_check
      _
    $region55: #{tpu_custom_call.1} parent=1 // pred_check_branch
      %148 = sbr.rel (0) target = $region57
    $region56: #{tpu_custom_call.1} parent=1 // pred_region
      %s150 = ssub.s32 16384, 16384
      %151 = vsyncadd [#allocation18], %s150
      %s152 = sshll.u32 [#allocation17], 4
      %s153 = int_to_ptr.vmem [resolvable:$true] %s152
      %158 = dma.hbm_to_vmem [thread:$0]  %s13, 16384, %s153, [#allocation18], 128, 128, 8
    $region57: #{tpu_custom_call.1} parent=1 // pred_fallthru
      _
    // Predicated region
    $region58: #{tpu_custom_call.1} parent=1 // pred_check
      _
    $region59: #{tpu_custom_call.1} parent=1 // pred_check_branch
      %160 = sbr.rel (0) target = $region61
    $region60: #{tpu_custom_call.1} parent=1 // pred_region
      _
    $region61: #{tpu_custom_call.1} parent=1 // pred_fallthru
      _
    // Predicated region
    $region62: #{tpu_custom_call.1} parent=1 // pred_check
      _
    $region63: #{tpu_custom_call.1} parent=1 // pred_check_branch
      %162 = sbr.rel (0) target = $region65
    $region64: #{tpu_custom_call.1} parent=1 // pred_region
      _
    $region65: #{tpu_custom_call.1} parent=1 // pred_fallthru
      _
    // Predicated region
    $region66: #{tpu_custom_call.1} parent=1 // pred_check
      _
    $region67: #{tpu_custom_call.1} parent=1 // pred_check_branch
      %164 = sbr.rel (0) target = $region69
    $region68: #{tpu_custom_call.1} parent=1 // pred_region
      _
    $region69: #{tpu_custom_call.1} parent=1 // pred_fallthru
      _
    // Predicated region
    $region70: #{tpu_custom_call.1} parent=1 // pred_check
      _
    $region71: #{tpu_custom_call.1} parent=1 // pred_check_branch
      %166 = sbr.rel (0) target = $region73
    $region72: #{tpu_custom_call.1} parent=1 // pred_region
      %s168 = ssub.s32 2048, 2048
      %169 = vsyncadd [#allocation18], %s168
      %s170 = sshll.u32 [#allocation19], 4
      %s171 = int_to_ptr.vmem [resolvable:$true] %s170
      %176 = dma.hbm_to_vmem [thread:$0]  %s17, 2048, %s171, [#allocation18], 128, 128, 8
    $region73: #{tpu_custom_call.1} parent=1 // pred_fallthru
      _
    // Predicated region
    $region74: #{tpu_custom_call.1} parent=1 // pred_check
      _
    $region75: #{tpu_custom_call.1} parent=1 // pred_check_branch
      %178 = sbr.rel (0) target = $region77
    $region76: #{tpu_custom_call.1} parent=1 // pred_region
      _
    $region77: #{tpu_custom_call.1} parent=1 // pred_fallthru
      _
    // Predicated region
    $region78: #{tpu_custom_call.1} parent=1 // pred_check
      _
    $region79: #{tpu_custom_call.1} parent=1 // pred_check_branch
      %180 = sbr.rel (0) target = $region81
    $region80: #{tpu_custom_call.1} parent=1 // pred_region
      %181 = dma.done [#allocation3], 768
    $region81: #{tpu_custom_call.1} parent=1 // pred_fallthru
      _
    // Predicated region
    $region82: #{tpu_custom_call.1} parent=1 // pred_check
      _
    $region83: #{tpu_custom_call.1} parent=1 // pred_check_branch
      %183 = sbr.rel (0) target = $region85
    $region84: #{tpu_custom_call.1} parent=1 // pred_region
      %184 = dma.done [#allocation6], 768
    $region85: #{tpu_custom_call.1} parent=1 // pred_fallthru
      _
    // Predicated region
    $region86: #{tpu_custom_call.1} parent=1 // pred_check
      _
    $region87: #{tpu_custom_call.1} parent=1 // pred_check_branch
      %186 = sbr.rel (0) target = $region89
    $region88: #{tpu_custom_call.1} parent=1 // pred_region
      %187 = dma.done [#allocation6], 768
    $region89: #{tpu_custom_call.1} parent=1 // pred_fallthru
      _
    // Predicated region
    $region90: #{tpu_custom_call.1} parent=1 // pred_check
      _
    $region91: #{tpu_custom_call.1} parent=1 // pred_check_branch
      %189 = sbr.rel (0) target = $region93
    $region92: #{tpu_custom_call.1} parent=1 // pred_region
      %190 = dma.done [#allocation9], 32
    $region93: #{tpu_custom_call.1} parent=1 // pred_fallthru
      _
    // Predicated region
    $region94: #{tpu_custom_call.1} parent=1 // pred_check
      _
    $region95: #{tpu_custom_call.1} parent=1 // pred_check_branch
      %192 = sbr.rel (0) target = $region97
    $region96: #{tpu_custom_call.1} parent=1 // pred_region
      %193 = dma.done [#allocation9], 12288
    $region97: #{tpu_custom_call.1} parent=1 // pred_fallthru
      _
    // Predicated region
    $region98: #{tpu_custom_call.1} parent=1 // pred_check
      _
    $region99: #{tpu_custom_call.1} parent=1 // pred_check_branch
      %195 = sbr.rel (0) target = $region101
    $region100: #{tpu_custom_call.1} parent=1 // pred_region
      %196 = dma.done [#allocation12], 4096
    $region101: #{tpu_custom_call.1} parent=1 // pred_fallthru
      _
    // Predicated region
    $region102: #{tpu_custom_call.1} parent=1 // pred_check
      _
    $region103: #{tpu_custom_call.1} parent=1 // pred_check_branch
      %198 = sbr.rel (0) target = $region105
    $region104: #{tpu_custom_call.1} parent=1 // pred_region
      %199 = dma.done [#allocation12], 32
    $region105: #{tpu_custom_call.1} parent=1 // pred_fallthru
      _
    // Predicated region
    $region106: #{tpu_custom_call.1} parent=1 // pred_check
      _
    $region107: #{tpu_custom_call.1} parent=1 // pred_check_branch
      %201 = sbr.rel (0) target = $region109
    $region108: #{tpu_custom_call.1} parent=1 // pred_region
      %202 = dma.done [#allocation15], 32
    $region109: #{tpu_custom_call.1} parent=1 // pred_fallthru
      _
    // Predicated region
    $region110: #{tpu_custom_call.1} parent=1 // pred_check
      _
    $region111: #{tpu_custom_call.1} parent=1 // pred_check_branch
      %204 = sbr.rel (0) target = $region113
    $region112: #{tpu_custom_call.1} parent=1 // pred_region
      %205 = dma.done [#allocation15], 16384
    $region113: #{tpu_custom_call.1} parent=1 // pred_fallthru
      _
    // Predicated region
    $region114: #{tpu_custom_call.1} parent=1 // pred_check
      _
    $region115: #{tpu_custom_call.1} parent=1 // pred_check_branch
      %207 = sbr.rel (0) target = $region117
    $region116: #{tpu_custom_call.1} parent=1 // pred_region
      %208 = dma.done [#allocation18], 16384
    $region117: #{tpu_custom_call.1} parent=1 // pred_fallthru
      _
    // Predicated region
    $region118: #{tpu_custom_call.1} parent=1 // pred_check
      _
    $region119: #{tpu_custom_call.1} parent=1 // pred_check_branch
      %210 = sbr.rel (0) target = $region121
    $region120: #{tpu_custom_call.1} parent=1 // pred_region
      %211 = dma.done [#allocation18], 2048
    $region121: #{tpu_custom_call.1} parent=1 // pred_fallthru
      _
    %v212 = vld [vmem:[#allocation2] sm:$0xff]
    %v213 = vld [vmem:[#allocation2 + $0x8] sm:$0xff]
    %v214 = vld [vmem:[#allocation2 + $0x10] sm:$0xff]
    %v215 = vld [vmem:[#allocation2 + $0x18] sm:$0xff]
    %v216 = vld [vmem:[#allocation2 + $0x20] sm:$0xff]
    %v217 = vld [vmem:[#allocation2 + $0x28] sm:$0xff]
    %v218 = vld [vmem:[#allocation5] sm:$0xff]
    %v219 = vld [vmem:[#allocation5 + $0x8] sm:$0xff]
    %v220 = vld [vmem:[#allocation5 + $0x10] sm:$0xff]
    %v221 = vld [vmem:[#allocation5 + $0x18] sm:$0xff]
    %v222 = vld [vmem:[#allocation5 + $0x20] sm:$0xff]
    %v223 = vld [vmem:[#allocation5 + $0x28] sm:$0xff]
    %v224 = vld [vmem:[#allocation7] sm:$0xff]
    %v225 = vld [vmem:[#allocation7 + $0x8] sm:$0xff]
    %v226 = vld [vmem:[#allocation7 + $0x10] sm:$0xff]
    %v227 = vld [vmem:[#allocation7 + $0x18] sm:$0xff]
    %v228 = vld [vmem:[#allocation7 + $0x20] sm:$0xff]
    %v229 = vld [vmem:[#allocation7 + $0x28] sm:$0xff]
    %vm230 = vcmask 392192
    %v232 = vsel %vm230, %v212, 0
    %v235 = vsel %vm230, %v213, 0
    %v238 = vsel %vm230, %v214, 0
    %v241 = vsel %vm230, %v215, 0
    %v244 = vsel %vm230, %v216, 0
    %v247 = vsel %vm230, %v217, 0
    %249 = vmatprep.subr.mxu0 0.0
    %250 = vmatpush1.msra.mxu0 0.0
    %251 = vmatprep.subr.mxu0 0.0
    %252 = vmatpush1.msra.mxu0 0.0
    %253 = vmatprep.subr.mxu0 0.0
    %254 = vmatpush1.msra.mxu0 0.0
    %255 = vmatprep.subr.mxu0 0.0
    %256 = vmatpush1.msra.mxu0 0.0
    %257 = vmatprep.subr.mxu0 0.0
    %258 = vmatpush1.msra.mxu0 0.0
    %259 = vmatprep.subr.mxu0 0.0
    %260 = vmatpush1.msra.mxu0 0.0
    %261 = vmatprep.subr.mxu0 0.0
    %262 = vmatpush1.msra.mxu0 0.0
    %263 = vmatprep.subr.mxu0 0.0
    %264 = vmatpush1.msra.mxu0 0.0
    %265 = vmatprep.subr.mxu0 0.0
    %266 = vmatpush1.msra.mxu0 0.0
    %267 = vmatprep.subr.mxu0 0.0
    %268 = vmatpush1.msra.mxu0 0.0
    %269 = vmatprep.subr.mxu0 0.0
    %270 = vmatpush1.msra.mxu0 %v223
    %271 = vmatprep.subr.mxu0 0.0
    %272 = vmatpush1.msra.mxu0 %v222
    %273 = vmatprep.subr.mxu0 0.0
    %274 = vmatpush1.msra.mxu0 %v221
    %275 = vmatprep.subr.mxu0 0.0
    %276 = vmatpush1.msra.mxu0 %v220
    %277 = vmatprep.subr.mxu0 0.0
    %278 = vmatpush1.msra.mxu0 %v219
    %279 = vmatprep.subr.mxu0 0.0
    %280 = vmatpush1.msra.mxu0 %v218
    %281 = vmatprep.subr.mxu0 0.0
    %282 = vmatpush2.msra.mxu0 0.0
    %283 = vmatprep.subr.mxu0 0.0
    %284 = vmatpush2.msra.mxu0 0.0
    %285 = vmatprep.subr.mxu0 0.0
    %286 = vmatpush2.msra.mxu0 0.0
    %287 = vmatprep.subr.mxu0 0.0
    %288 = vmatpush2.msra.mxu0 0.0
    %289 = vmatprep.subr.mxu0 0.0
    %290 = vmatpush2.msra.mxu0 0.0
    %291 = vmatprep.subr.mxu0 0.0
    %292 = vmatpush2.msra.mxu0 0.0
    %293 = vmatprep.subr.mxu0 0.0
    %294 = vmatpush2.msra.mxu0 0.0
    %295 = vmatprep.subr.mxu0 0.0
    %296 = vmatpush2.msra.mxu0 0.0
    %297 = vmatprep.subr.mxu0 0.0
    %298 = vmatpush2.msra.mxu0 0.0
    %299 = vmatprep.subr.mxu0 0.0
    %300 = vmatpush2.msra.mxu0 0.0
    %301 = vmatprep.subr.mxu0 0.0
    %302 = vmatpush2.msra.mxu0 0.0
    %303 = vmatprep.subr.mxu0 0.0
    %304 = vmatpush2.msra.mxu0 0.0
    %305 = vmatprep.subr.mxu0 0.0
    %306 = vmatpush2.msra.mxu0 0.0
    %307 = vmatprep.subr.mxu0 0.0
    %308 = vmatpush2.msra.mxu0 0.0
    %309 = vmatprep.subr.mxu0 0.0
    %310 = vmatpush2.msra.mxu0 0.0
    %311 = vmatprep.subr.mxu0 0.0
    %312 = vmatpush2.msra.mxu0 0.0
    %313 = vmatprep.mubr.f32.mxu0 0.0
    %314 = vmatmul.mubr.f32.gmra.mxu0 %v232
    %v315 = vpop.f32.mrf.mxu0
    %v316 = vadd.f32 %v224, %v315
    %v317 = vpop.f32.mrf.mxu0
    %318 = vmatprep.mubr.f32.mxu0 0.0
    %319 = vmatmul.mubr.f32.gmra.mxu0 %v235
    %v320 = vpop.f32.mrf.mxu0
    %v321 = vadd.f32 %v225, %v320
    %v322 = vpop.f32.mrf.mxu0
    %323 = vmatprep.mubr.f32.mxu0 0.0
    %324 = vmatmul.mubr.f32.gmra.mxu0 %v238
    %v325 = vpop.f32.mrf.mxu0
    %v326 = vadd.f32 %v226, %v325
    %v327 = vpop.f32.mrf.mxu0
    %328 = vmatprep.mubr.f32.mxu0 0.0
    %329 = vmatmul.mubr.f32.gmra.mxu0 %v241
    %v330 = vpop.f32.mrf.mxu0
    %v331 = vadd.f32 %v227, %v330
    %v332 = vpop.f32.mrf.mxu0
    %333 = vmatprep.mubr.f32.mxu0 0.0
    %334 = vmatmul.mubr.f32.gmra.mxu0 %v244
    %v335 = vpop.f32.mrf.mxu0
    %v336 = vadd.f32 %v228, %v335
    %v337 = vpop.f32.mrf.mxu0
    %338 = vmatprep.mubr.f32.mxu0 0.0
    %339 = vmatmul.mubr.f32.gmra.mxu0 %v247
    %v340 = vpop.f32.mrf.mxu0
    %v341 = vadd.f32 %v229, %v340
    %v342 = vpop.f32.mrf.mxu0
    %343 = vdwg.mxu0
    %v344 = vlaneseq
    %v345 = vand.u32 %v344, 127
    %vm346 = vcmp.lt.s32.totalorder %v345, 17
    %v347 = vsel %vm346, 0.0, -1e+30
    %v348 = vld [vmem:[%s3] sm:$0x1]
    %v349 = vld [vmem:[#allocation8] sm:$0x1]
    %v350 = vld [vmem:[#allocation10] sm:$0xff]
    %v351 = vld [vmem:[#allocation10 + $0x8] sm:$0xff]
    %v352 = vld [vmem:[#allocation10 + $0x10] sm:$0xff]
    %v353 = vld [vmem:[#allocation10 + $0x18] sm:$0xff]
    %v354 = vld [vmem:[#allocation10 + $0x20] sm:$0xff]
    %v355 = vld [vmem:[#allocation10 + $0x28] sm:$0xff]
    %v356 = vld [vmem:[#allocation10 + $0x30] sm:$0xff]
    %v357 = vld [vmem:[#allocation10 + $0x38] sm:$0xff]
    %v358 = vld [vmem:[#allocation10 + $0x40] sm:$0xff]
    %v359 = vld [vmem:[#allocation10 + $0x48] sm:$0xff]
    %v360 = vld [vmem:[#allocation10 + $0x50] sm:$0xff]
    %v361 = vld [vmem:[#allocation10 + $0x58] sm:$0xff]
    %v362 = vld [vmem:[#allocation10 + $0x60] sm:$0xff]
    %v363 = vld [vmem:[#allocation10 + $0x68] sm:$0xff]
    %v364 = vld [vmem:[#allocation10 + $0x70] sm:$0xff]
    %v365 = vld [vmem:[#allocation10 + $0x78] sm:$0xff]
    %v366 = vld [vmem:[#allocation10 + $0x80] sm:$0xff]
    %v367 = vld [vmem:[#allocation10 + $0x88] sm:$0xff]
    %v368 = vld [vmem:[#allocation10 + $0x90] sm:$0xff]
    %v369 = vld [vmem:[#allocation10 + $0x98] sm:$0xff]
    %v370 = vld [vmem:[#allocation10 + $0xa0] sm:$0xff]
    %v371 = vld [vmem:[#allocation10 + $0xa8] sm:$0xff]
    %v372 = vld [vmem:[#allocation10 + $0xb0] sm:$0xff]
    %v373 = vld [vmem:[#allocation10 + $0xb8] sm:$0xff]
    %v374 = vld [vmem:[#allocation10 + $0xc0] sm:$0xff]
    %v375 = vld [vmem:[#allocation10 + $0xc8] sm:$0xff]
    %v376 = vld [vmem:[#allocation10 + $0xd0] sm:$0xff]
    %v377 = vld [vmem:[#allocation10 + $0xd8] sm:$0xff]
    %v378 = vld [vmem:[#allocation10 + $0xe0] sm:$0xff]
    %v379 = vld [vmem:[#allocation10 + $0xe8] sm:$0xff]
    %v380 = vld [vmem:[#allocation10 + $0xf0] sm:$0xff]
    %v381 = vld [vmem:[#allocation10 + $0xf8] sm:$0xff]
    %v382 = vld [vmem:[#allocation10 + $0x100] sm:$0xff]
    %v383 = vld [vmem:[#allocation10 + $0x108] sm:$0xff]
    %v384 = vld [vmem:[#allocation10 + $0x110] sm:$0xff]
    %v385 = vld [vmem:[#allocation10 + $0x118] sm:$0xff]
    %v386 = vld [vmem:[#allocation10 + $0x120] sm:$0xff]
    %v387 = vld [vmem:[#allocation10 + $0x128] sm:$0xff]
    %v388 = vld [vmem:[#allocation10 + $0x130] sm:$0xff]
    %v389 = vld [vmem:[#allocation10 + $0x138] sm:$0xff]
    %v390 = vld [vmem:[#allocation10 + $0x140] sm:$0xff]
    %v391 = vld [vmem:[#allocation10 + $0x148] sm:$0xff]
    %v392 = vld [vmem:[#allocation10 + $0x150] sm:$0xff]
    %v393 = vld [vmem:[#allocation10 + $0x158] sm:$0xff]
    %v394 = vld [vmem:[#allocation10 + $0x160] sm:$0xff]
    %v395 = vld [vmem:[#allocation10 + $0x168] sm:$0xff]
    %v396 = vld [vmem:[#allocation10 + $0x170] sm:$0xff]
    %v397 = vld [vmem:[#allocation10 + $0x178] sm:$0xff]
    %v398 = vld [vmem:[%s6] sm:$0x7]
    %v399 = vld [vmem:[#allocation11] sm:$0xff]
    %v400 = vld [vmem:[#allocation11 + $0x8] sm:$0xff]
    %v401 = vld [vmem:[#allocation11 + $0x10] sm:$0xff]
    %v402 = vld [vmem:[#allocation11 + $0x18] sm:$0xff]
    %v403 = vld [vmem:[#allocation11 + $0x20] sm:$0xff]
    %v404 = vld [vmem:[#allocation11 + $0x28] sm:$0xff]
    %v405 = vld [vmem:[#allocation11 + $0x30] sm:$0xff]
    %v406 = vld [vmem:[#allocation11 + $0x38] sm:$0xff]
    %v407 = vld [vmem:[#allocation11 + $0x40] sm:$0xff]
    %v408 = vld [vmem:[#allocation11 + $0x48] sm:$0xff]
    %v409 = vld [vmem:[#allocation11 + $0x50] sm:$0xff]
    %v410 = vld [vmem:[#allocation11 + $0x58] sm:$0xff]
    %v411 = vld [vmem:[#allocation11 + $0x60] sm:$0xff]
    %v412 = vld [vmem:[#allocation11 + $0x68] sm:$0xff]
    %v413 = vld [vmem:[#allocation11 + $0x70] sm:$0xff]
    %v414 = vld [vmem:[#allocation11 + $0x78] sm:$0xff]
    %v415 = vld [vmem:[#allocation13] sm:$0x1]
    %v416 = vld [vmem:[#allocation14] sm:$0x1]
    %v417 = vld [vmem:[%s10] sm:$0x1]
    %v418 = vld [vmem:[#allocation16] sm:$0xff]
    %v419 = vld [vmem:[#allocation16 + $0x8] sm:$0xff]
    %v420 = vld [vmem:[#allocation16 + $0x10] sm:$0xff]
    %v421 = vld [vmem:[#allocation16 + $0x18] sm:$0xff]
    %v422 = vld [vmem:[#allocation16 + $0x20] sm:$0xff]
    %v423 = vld [vmem:[#allocation16 + $0x28] sm:$0xff]
    %v424 = vld [vmem:[#allocation16 + $0x30] sm:$0xff]
    %v425 = vld [vmem:[#allocation16 + $0x38] sm:$0xff]
    %v426 = vld [vmem:[#allocation16 + $0x40] sm:$0xff]
    %v427 = vld [vmem:[#allocation16 + $0x48] sm:$0xff]
    %v428 = vld [vmem:[#allocation16 + $0x50] sm:$0xff]
    %v429 = vld [vmem:[#allocation16 + $0x58] sm:$0xff]
    %v430 = vld [vmem:[#allocation16 + $0x60] sm:$0xff]
    %v431 = vld [vmem:[#allocation16 + $0x68] sm:$0xff]
    %v432 = vld [vmem:[#allocation16 + $0x70] sm:$0xff]
    %v433 = vld [vmem:[#allocation16 + $0x78] sm:$0xff]
    %v434 = vld [vmem:[#allocation16 + $0x80] sm:$0xff]
    %v435 = vld [vmem:[#allocation16 + $0x88] sm:$0xff]
    %v436 = vld [vmem:[#allocation16 + $0x90] sm:$0xff]
    %v437 = vld [vmem:[#allocation16 + $0x98] sm:$0xff]
    %v438 = vld [vmem:[#allocation16 + $0xa0] sm:$0xff]
    %v439 = vld [vmem:[#allocation16 + $0xa8] sm:$0xff]
    %v440 = vld [vmem:[#allocation16 + $0xb0] sm:$0xff]
    %v441 = vld [vmem:[#allocation16 + $0xb8] sm:$0xff]
    %v442 = vld [vmem:[#allocation16 + $0xc0] sm:$0xff]
    %v443 = vld [vmem:[#allocation16 + $0xc8] sm:$0xff]
    %v444 = vld [vmem:[#allocation16 + $0xd0] sm:$0xff]
    %v445 = vld [vmem:[#allocation16 + $0xd8] sm:$0xff]
    %v446 = vld [vmem:[#allocation16 + $0xe0] sm:$0xff]
    %v447 = vld [vmem:[#allocation16 + $0xe8] sm:$0xff]
    %v448 = vld [vmem:[#allocation16 + $0xf0] sm:$0xff]
    %v449 = vld [vmem:[#allocation16 + $0xf8] sm:$0xff]
    %v450 = vld [vmem:[#allocation16 + $0x100] sm:$0xff]
    %v451 = vld [vmem:[#allocation16 + $0x108] sm:$0xff]
    %v452 = vld [vmem:[#allocation16 + $0x110] sm:$0xff]
    %v453 = vld [vmem:[#allocation16 + $0x118] sm:$0xff]
    %v454 = vld [vmem:[#allocation16 + $0x120] sm:$0xff]
    %v455 = vld [vmem:[#allocation16 + $0x128] sm:$0xff]
    %v456 = vld [vmem:[#allocation16 + $0x130] sm:$0xff]
    %v457 = vld [vmem:[#allocation16 + $0x138] sm:$0xff]
    %v458 = vld [vmem:[#allocation16 + $0x140] sm:$0xff]
    %v459 = vld [vmem:[#allocation16 + $0x148] sm:$0xff]
    %v460 = vld [vmem:[#allocation16 + $0x150] sm:$0xff]
    %v461 = vld [vmem:[#allocation16 + $0x158] sm:$0xff]
    %v462 = vld [vmem:[#allocation16 + $0x160] sm:$0xff]
    %v463 = vld [vmem:[#allocation16 + $0x168] sm:$0xff]
    %v464 = vld [vmem:[#allocation16 + $0x170] sm:$0xff]
    %v465 = vld [vmem:[#allocation16 + $0x178] sm:$0xff]
    %v466 = vld [vmem:[#allocation16 + $0x180] sm:$0xff]
    %v467 = vld [vmem:[#allocation16 + $0x188] sm:$0xff]
    %v468 = vld [vmem:[#allocation16 + $0x190] sm:$0xff]
    %v469 = vld [vmem:[#allocation16 + $0x198] sm:$0xff]
    %v470 = vld [vmem:[#allocation16 + $0x1a0] sm:$0xff]
    %v471 = vld [vmem:[#allocation16 + $0x1a8] sm:$0xff]
    %v472 = vld [vmem:[#allocation16 + $0x1b0] sm:$0xff]
    %v473 = vld [vmem:[#allocation16 + $0x1b8] sm:$0xff]
    %v474 = vld [vmem:[#allocation16 + $0x1c0] sm:$0xff]
    %v475 = vld [vmem:[#allocation16 + $0x1c8] sm:$0xff]
    %v476 = vld [vmem:[#allocation16 + $0x1d0] sm:$0xff]
    %v477 = vld [vmem:[#allocation16 + $0x1d8] sm:$0xff]
    %v478 = vld [vmem:[#allocation16 + $0x1e0] sm:$0xff]
    %v479 = vld [vmem:[#allocation16 + $0x1e8] sm:$0xff]
    %v480 = vld [vmem:[#allocation16 + $0x1f0] sm:$0xff]
    %v481 = vld [vmem:[#allocation16 + $0x1f8] sm:$0xff]
    %v482 = vld [vmem:[%s12] sm:$0xf]
    %v483 = vld [vmem:[#allocation17] sm:$0xff]
    %v484 = vld [vmem:[#allocation17 + $0x8] sm:$0xff]
    %v485 = vld [vmem:[#allocation17 + $0x10] sm:$0xff]
    %v486 = vld [vmem:[#allocation17 + $0x18] sm:$0xff]
    %v487 = vld [vmem:[#allocation17 + $0x20] sm:$0xff]
    %v488 = vld [vmem:[#allocation17 + $0x28] sm:$0xff]
    %v489 = vld [vmem:[#allocation17 + $0x30] sm:$0xff]
    %v490 = vld [vmem:[#allocation17 + $0x38] sm:$0xff]
    %v491 = vld [vmem:[#allocation17 + $0x40] sm:$0xff]
    %v492 = vld [vmem:[#allocation17 + $0x48] sm:$0xff]
    %v493 = vld [vmem:[#allocation17 + $0x50] sm:$0xff]
    %v494 = vld [vmem:[#allocation17 + $0x58] sm:$0xff]
    %v495 = vld [vmem:[#allocation17 + $0x60] sm:$0xff]
    %v496 = vld [vmem:[#allocation17 + $0x68] sm:$0xff]
    %v497 = vld [vmem:[#allocation17 + $0x70] sm:$0xff]
    %v498 = vld [vmem:[#allocation17 + $0x78] sm:$0xff]
    %v499 = vld [vmem:[#allocation17 + $0x80] sm:$0xff]
    %v500 = vld [vmem:[#allocation17 + $0x88] sm:$0xff]
    %v501 = vld [vmem:[#allocation17 + $0x90] sm:$0xff]
    %v502 = vld [vmem:[#allocation17 + $0x98] sm:$0xff]
    %v503 = vld [vmem:[#allocation17 + $0xa0] sm:$0xff]
    %v504 = vld [vmem:[#allocation17 + $0xa8] sm:$0xff]
    %v505 = vld [vmem:[#allocation17 + $0xb0] sm:$0xff]
    %v506 = vld [vmem:[#allocation17 + $0xb8] sm:$0xff]
    %v507 = vld [vmem:[#allocation17 + $0xc0] sm:$0xff]
    %v508 = vld [vmem:[#allocation17 + $0xc8] sm:$0xff]
    %v509 = vld [vmem:[#allocation17 + $0xd0] sm:$0xff]
    %v510 = vld [vmem:[#allocation17 + $0xd8] sm:$0xff]
    %v511 = vld [vmem:[#allocation17 + $0xe0] sm:$0xff]
    %v512 = vld [vmem:[#allocation17 + $0xe8] sm:$0xff]
    %v513 = vld [vmem:[#allocation17 + $0xf0] sm:$0xff]
    %v514 = vld [vmem:[#allocation17 + $0xf8] sm:$0xff]
    %v515 = vld [vmem:[#allocation17 + $0x100] sm:$0xff]
    %v516 = vld [vmem:[#allocation17 + $0x108] sm:$0xff]
    %v517 = vld [vmem:[#allocation17 + $0x110] sm:$0xff]
    %v518 = vld [vmem:[#allocation17 + $0x118] sm:$0xff]
    %v519 = vld [vmem:[#allocation17 + $0x120] sm:$0xff]
    %v520 = vld [vmem:[#allocation17 + $0x128] sm:$0xff]
    %v521 = vld [vmem:[#allocation17 + $0x130] sm:$0xff]
    %v522 = vld [vmem:[#allocation17 + $0x138] sm:$0xff]
    %v523 = vld [vmem:[#allocation17 + $0x140] sm:$0xff]
    %v524 = vld [vmem:[#allocation17 + $0x148] sm:$0xff]
    %v525 = vld [vmem:[#allocation17 + $0x150] sm:$0xff]
    %v526 = vld [vmem:[#allocation17 + $0x158] sm:$0xff]
    %v527 = vld [vmem:[#allocation17 + $0x160] sm:$0xff]
    %v528 = vld [vmem:[#allocation17 + $0x168] sm:$0xff]
    %v529 = vld [vmem:[#allocation17 + $0x170] sm:$0xff]
    %v530 = vld [vmem:[#allocation17 + $0x178] sm:$0xff]
    %v531 = vld [vmem:[#allocation17 + $0x180] sm:$0xff]
    %v532 = vld [vmem:[#allocation17 + $0x188] sm:$0xff]
    %v533 = vld [vmem:[#allocation17 + $0x190] sm:$0xff]
    %v534 = vld [vmem:[#allocation17 + $0x198] sm:$0xff]
    %v535 = vld [vmem:[#allocation17 + $0x1a0] sm:$0xff]
    %v536 = vld [vmem:[#allocation17 + $0x1a8] sm:$0xff]
    %v537 = vld [vmem:[#allocation17 + $0x1b0] sm:$0xff]
    %v538 = vld [vmem:[#allocation17 + $0x1b8] sm:$0xff]
    %v539 = vld [vmem:[#allocation17 + $0x1c0] sm:$0xff]
    %v540 = vld [vmem:[#allocation17 + $0x1c8] sm:$0xff]
    %v541 = vld [vmem:[#allocation17 + $0x1d0] sm:$0xff]
    %v542 = vld [vmem:[#allocation17 + $0x1d8] sm:$0xff]
    %v543 = vld [vmem:[#allocation17 + $0x1e0] sm:$0xff]
    %v544 = vld [vmem:[#allocation17 + $0x1e8] sm:$0xff]
    %v545 = vld [vmem:[#allocation17 + $0x1f0] sm:$0xff]
    %v546 = vld [vmem:[#allocation17 + $0x1f8] sm:$0xff]
    %v547 = vld [vmem:[%s14] sm:$0x1]
    %548 = vadd.xlane.f32.xlu0 %v316
    %v549 = vpop.xlane.xlu0 %548
    %550 = vadd.xlane.f32.xlu0 %v321
    %v551 = vpop.xlane.xlu0 %550
    %552 = vadd.xlane.f32.xlu0 %v326
    %v553 = vpop.xlane.xlu0 %552
    %554 = vadd.xlane.f32.xlu0 %v331
    %v555 = vpop.xlane.xlu0 %554
    %556 = vadd.xlane.f32.xlu0 %v336
    %v557 = vpop.xlane.xlu0 %556
    %558 = vadd.xlane.f32.xlu0 %v341
    %v559 = vpop.xlane.xlu0 %558
    %v560 = vrcp.pop 128.0
    %v561 = vmul.f32 %v549, %v560
    %v562 = vmul.f32 %v551, %v560
    %v563 = vmul.f32 %v553, %v560
    %v564 = vmul.f32 %v555, %v560
    %v565 = vmul.f32 %v557, %v560
    %v566 = vmul.f32 %v559, %v560
    %v567 = vsub.f32 %v316, %v561
    %v568 = vsub.f32 %v321, %v562
    %v569 = vsub.f32 %v326, %v563
    %v570 = vsub.f32 %v331, %v564
    %v571 = vsub.f32 %v336, %v565
    %v572 = vsub.f32 %v341, %v566
    %v573 = vmul.f32 %v567, %v567
    %v574 = vmul.f32 %v568, %v568
    %v575 = vmul.f32 %v569, %v569
    %v576 = vmul.f32 %v570, %v570
    %v577 = vmul.f32 %v571, %v571
    %v578 = vmul.f32 %v572, %v572
    %579 = vadd.xlane.f32.xlu0 %v573
    %v580 = vpop.xlane.xlu0 %579
    %581 = vadd.xlane.f32.xlu0 %v574
    %v582 = vpop.xlane.xlu0 %581
    %583 = vadd.xlane.f32.xlu0 %v575
    %v584 = vpop.xlane.xlu0 %583
    %585 = vadd.xlane.f32.xlu0 %v576
    %v586 = vpop.xlane.xlu0 %585
    %587 = vadd.xlane.f32.xlu0 %v577
    %v588 = vpop.xlane.xlu0 %587
    %589 = vadd.xlane.f32.xlu0 %v578
    %v590 = vpop.xlane.xlu0 %589
    %v591 = vmul.f32 %v580, %v560
    %v592 = vmul.f32 %v582, %v560
    %v593 = vmul.f32 %v584, %v560
    %v594 = vmul.f32 %v586, %v560
    %v595 = vmul.f32 %v588, %v560
    %v596 = vmul.f32 %v590, %v560
    %v597 = vadd.f32 %v591, 1e-05
    %v598 = vadd.f32 %v592, 1e-05
    %v599 = vadd.f32 %v593, 1e-05
    %v600 = vadd.f32 %v594, 1e-05
    %v601 = vadd.f32 %v595, 1e-05
    %v602 = vadd.f32 %v596, 1e-05
    %v603 = vrsqrt.pop %v597
    %v604 = vrsqrt.pop %v598
    %v605 = vrsqrt.pop %v599
    %v606 = vrsqrt.pop %v600
    %v607 = vrsqrt.pop %v601
    %v608 = vrsqrt.pop %v602
    %v609 = vmul.f32 %v567, %v603
    %v610 = vmul.f32 %v568, %v604
    %v611 = vmul.f32 %v569, %v605
    %v612 = vmul.f32 %v570, %v606
    %v613 = vmul.f32 %v571, %v607
    %v614 = vmul.f32 %v572, %v608
    %v616 = vlaneseq
    %v617 = vshrl.u32 %v616, 7
    %v618 = vsub.s32 0, %v617
    %v619 = vrot.slane %v348, %v618
    %v621 = vmul.f32 %v609, %v619
    %v622 = vmul.f32 %v610, %v619
    %v623 = vmul.f32 %v611, %v619
    %v624 = vmul.f32 %v612, %v619
    %v625 = vmul.f32 %v613, %v619
    %v626 = vmul.f32 %v614, %v619
    %v628 = vlaneseq
    %v629 = vshrl.u32 %v628, 7
    %v630 = vsub.s32 0, %v629
    %v631 = vrot.slane %v349, %v630
    %v633 = vadd.f32 %v621, %v631
    %v634 = vadd.f32 %v622, %v631
    %v635 = vadd.f32 %v623, %v631
    %v636 = vadd.f32 %v624, %v631
    %v637 = vadd.f32 %v625, %v631
    %v638 = vadd.f32 %v626, %v631
    %v640 = vlaneseq
    %v641 = vshrl.u32 %v640, 7
    %v642 = vsub.s32 0, %v641
    %v643 = vrot.slane %v398, %v642
    %v644 = vlaneseq
    %v645 = vshrl.u32 %v644, 7
    %v646 = vsub.s32 1, %v645
    %v647 = vrot.slane %v398, %v646
    %v648 = vlaneseq
    %v649 = vshrl.u32 %v648, 7
    %v650 = vsub.s32 2, %v649
    %v651 = vrot.slane %v398, %v650
    %655 = vmatprep.subr.mxu0 %v396
    %656 = vmatpush1.msra.mxu0 %v395
    %657 = vmatprep.subr.mxu0 %v393
    %658 = vmatpush1.msra.mxu0 %v392
    %659 = vmatprep.subr.mxu0 %v390
    %660 = vmatpush1.msra.mxu0 %v389
    %661 = vmatprep.subr.mxu0 %v387
    %662 = vmatpush1.msra.mxu0 %v386
    %663 = vmatprep.subr.mxu0 %v384
    %664 = vmatpush1.msra.mxu0 %v383
    %665 = vmatprep.subr.mxu0 %v381
    %666 = vmatpush1.msra.mxu0 %v380
    %667 = vmatprep.subr.mxu0 %v378
    %668 = vmatpush1.msra.mxu0 %v377
    %669 = vmatprep.subr.mxu0 %v375
    %670 = vmatpush1.msra.mxu0 %v374
    %671 = vmatprep.subr.mxu0 %v372
    %672 = vmatpush1.msra.mxu0 %v371
    %673 = vmatprep.subr.mxu0 %v369
    %674 = vmatpush1.msra.mxu0 %v368
    %675 = vmatprep.subr.mxu0 %v366
    %676 = vmatpush1.msra.mxu0 %v365
    %677 = vmatprep.subr.mxu0 %v363
    %678 = vmatpush1.msra.mxu0 %v362
    %679 = vmatprep.subr.mxu0 %v360
    %680 = vmatpush1.msra.mxu0 %v359
    %681 = vmatprep.subr.mxu0 %v357
    %682 = vmatpush1.msra.mxu0 %v356
    %683 = vmatprep.subr.mxu0 %v354
    %684 = vmatpush1.msra.mxu0 %v353
    %685 = vmatprep.subr.mxu0 %v351
    %686 = vmatpush1.msra.mxu0 %v350
    %687 = vmatprep.subr.mxu0 0.0
    %688 = vmatpush2.msra.mxu0 0.0
    %689 = vmatprep.subr.mxu0 0.0
    %690 = vmatpush2.msra.mxu0 0.0
    %691 = vmatprep.subr.mxu0 0.0
    %692 = vmatpush2.msra.mxu0 0.0
    %693 = vmatprep.subr.mxu0 0.0
    %694 = vmatpush2.msra.mxu0 0.0
    %695 = vmatprep.subr.mxu0 0.0
    %696 = vmatpush2.msra.mxu0 0.0
    %697 = vmatprep.subr.mxu0 0.0
    %698 = vmatpush2.msra.mxu0 0.0
    %699 = vmatprep.subr.mxu0 0.0
    %700 = vmatpush2.msra.mxu0 0.0
    %701 = vmatprep.subr.mxu0 0.0
    %702 = vmatpush2.msra.mxu0 0.0
    %703 = vmatprep.subr.mxu0 0.0
    %704 = vmatpush2.msra.mxu0 0.0
    %705 = vmatprep.subr.mxu0 0.0
    %706 = vmatpush2.msra.mxu0 0.0
    %707 = vmatprep.subr.mxu0 0.0
    %708 = vmatpush2.msra.mxu0 0.0
    %709 = vmatprep.subr.mxu0 0.0
    %710 = vmatpush2.msra.mxu0 0.0
    %711 = vmatprep.subr.mxu0 0.0
    %712 = vmatpush2.msra.mxu0 0.0
    %713 = vmatprep.subr.mxu0 0.0
    %714 = vmatpush2.msra.mxu0 0.0
    %715 = vmatprep.subr.mxu0 0.0
    %716 = vmatpush2.msra.mxu0 0.0
    %717 = vmatprep.subr.mxu0 0.0
    %718 = vmatpush2.msra.mxu0 0.0
    %719 = vmatprep.mubr.f32.mxu0 0.0
    %720 = vmatmul.mubr.f32.gmra.mxu0 %v633
    %v721 = vpop.f32.mrf.mxu0
    %v722 = vadd.f32 %v643, %v721
    %v723 = vpop.f32.mrf.mxu0
    %v724 = vadd.f32 %v647, %v723
    %725 = vmatprep.mubr.f32.mxu0 0.0
    %726 = vmatmul.mubr.f32.gmra.mxu0 %v634
    %v727 = vpop.f32.mrf.mxu0
    %v728 = vadd.f32 %v643, %v727
    %v729 = vpop.f32.mrf.mxu0
    %v730 = vadd.f32 %v647, %v729
    %731 = vmatprep.mubr.f32.mxu0 0.0
    %732 = vmatmul.mubr.f32.gmra.mxu0 %v635
    %v733 = vpop.f32.mrf.mxu0
    %v734 = vadd.f32 %v643, %v733
    %v735 = vpop.f32.mrf.mxu0
    %v736 = vadd.f32 %v647, %v735
    %737 = vmatprep.mubr.f32.mxu0 0.0
    %738 = vmatmul.mubr.f32.gmra.mxu0 %v636
    %v739 = vpop.f32.mrf.mxu0
    %v740 = vadd.f32 %v643, %v739
    %v741 = vpop.f32.mrf.mxu0
    %v742 = vadd.f32 %v647, %v741
    %743 = vmatprep.mubr.f32.mxu0 0.0
    %744 = vmatmul.mubr.f32.gmra.mxu0 %v637
    %v745 = vpop.f32.mrf.mxu0
    %v746 = vadd.f32 %v643, %v745
    %v747 = vpop.f32.mrf.mxu0
    %v748 = vadd.f32 %v647, %v747
    %749 = vmatprep.mubr.f32.mxu0 0.0
    %750 = vmatmul.mubr.f32.gmra.mxu0 %v638
    %v751 = vpop.f32.mrf.mxu0
    %v752 = vadd.f32 %v643, %v751
    %v753 = vpop.f32.mrf.mxu0
    %v754 = vadd.f32 %v647, %v753
    %755 = vdwg.mxu0
    %756 = vmatprep.subr.mxu0 0.0
    %757 = vmatpush1.msra.mxu0 %v397
    %758 = vmatprep.subr.mxu0 0.0
    %759 = vmatpush1.msra.mxu0 %v394
    %760 = vmatprep.subr.mxu0 0.0
    %761 = vmatpush1.msra.mxu0 %v391
    %762 = vmatprep.subr.mxu0 0.0
    %763 = vmatpush1.msra.mxu0 %v388
    %764 = vmatprep.subr.mxu0 0.0
    %765 = vmatpush1.msra.mxu0 %v385
    %766 = vmatprep.subr.mxu0 0.0
    %767 = vmatpush1.msra.mxu0 %v382
    %768 = vmatprep.subr.mxu0 0.0
    %769 = vmatpush1.msra.mxu0 %v379
    %770 = vmatprep.subr.mxu0 0.0
    %771 = vmatpush1.msra.mxu0 %v376
    %772 = vmatprep.subr.mxu0 0.0
    %773 = vmatpush1.msra.mxu0 %v373
    %774 = vmatprep.subr.mxu0 0.0
    %775 = vmatpush1.msra.mxu0 %v370
    %776 = vmatprep.subr.mxu0 0.0
    %777 = vmatpush1.msra.mxu0 %v367
    %778 = vmatprep.subr.mxu0 0.0
    %779 = vmatpush1.msra.mxu0 %v364
    %780 = vmatprep.subr.mxu0 0.0
    %781 = vmatpush1.msra.mxu0 %v361
    %782 = vmatprep.subr.mxu0 0.0
    %783 = vmatpush1.msra.mxu0 %v358
    %784 = vmatprep.subr.mxu0 0.0
    %785 = vmatpush1.msra.mxu0 %v355
    %786 = vmatprep.subr.mxu0 0.0
    %787 = vmatpush1.msra.mxu0 %v352
    %788 = vmatprep.subr.mxu0 0.0
    %789 = vmatpush2.msra.mxu0 0.0
    %790 = vmatprep.subr.mxu0 0.0
    %791 = vmatpush2.msra.mxu0 0.0
    %792 = vmatprep.subr.mxu0 0.0
    %793 = vmatpush2.msra.mxu0 0.0
    %794 = vmatprep.subr.mxu0 0.0
    %795 = vmatpush2.msra.mxu0 0.0
    %796 = vmatprep.subr.mxu0 0.0
    %797 = vmatpush2.msra.mxu0 0.0
    %798 = vmatprep.subr.mxu0 0.0
    %799 = vmatpush2.msra.mxu0 0.0
    %800 = vmatprep.subr.mxu0 0.0
    %801 = vmatpush2.msra.mxu0 0.0
    %802 = vmatprep.subr.mxu0 0.0
    %803 = vmatpush2.msra.mxu0 0.0
    %804 = vmatprep.subr.mxu0 0.0
    %805 = vmatpush2.msra.mxu0 0.0
    %806 = vmatprep.subr.mxu0 0.0
    %807 = vmatpush2.msra.mxu0 0.0
    %808 = vmatprep.subr.mxu0 0.0
    %809 = vmatpush2.msra.mxu0 0.0
    %810 = vmatprep.subr.mxu0 0.0
    %811 = vmatpush2.msra.mxu0 0.0
    %812 = vmatprep.subr.mxu0 0.0
    %813 = vmatpush2.msra.mxu0 0.0
    %814 = vmatprep.subr.mxu0 0.0
    %815 = vmatpush2.msra.mxu0 0.0
    %816 = vmatprep.subr.mxu0 0.0
    %817 = vmatpush2.msra.mxu0 0.0
    %818 = vmatprep.subr.mxu0 0.0
    %819 = vmatpush2.msra.mxu0 0.0
    %820 = vmatprep.mubr.f32.mxu0 0.0
    %821 = vmatmul.mubr.f32.gmra.mxu0 %v633
    %v822 = vpop.f32.mrf.mxu0
    %v823 = vadd.f32 %v651, %v822
    %v824 = vpop.f32.mrf.mxu0
    %825 = vmatprep.mubr.f32.mxu0 0.0
    %826 = vmatmul.mubr.f32.gmra.mxu0 %v634
    %v827 = vpop.f32.mrf.mxu0
    %v828 = vadd.f32 %v651, %v827
    %v829 = vpop.f32.mrf.mxu0
    %830 = vmatprep.mubr.f32.mxu0 0.0
    %831 = vmatmul.mubr.f32.gmra.mxu0 %v635
    %v832 = vpop.f32.mrf.mxu0
    %v833 = vadd.f32 %v651, %v832
    %v834 = vpop.f32.mrf.mxu0
    %835 = vmatprep.mubr.f32.mxu0 0.0
    %836 = vmatmul.mubr.f32.gmra.mxu0 %v636
    %v837 = vpop.f32.mrf.mxu0
    %v838 = vadd.f32 %v651, %v837
    %v839 = vpop.f32.mrf.mxu0
    %840 = vmatprep.mubr.f32.mxu0 0.0
    %841 = vmatmul.mubr.f32.gmra.mxu0 %v637
    %v842 = vpop.f32.mrf.mxu0
    %v843 = vadd.f32 %v651, %v842
    %v844 = vpop.f32.mrf.mxu0
    %845 = vmatprep.mubr.f32.mxu0 0.0
    %846 = vmatmul.mubr.f32.gmra.mxu0 %v638
    %v847 = vpop.f32.mrf.mxu0
    %v848 = vadd.f32 %v651, %v847
    %v849 = vpop.f32.mrf.mxu0
    %850 = vdwg.mxu0
    %v851 = vmul.f32 %v722, 0.17677669
    %v852 = vmul.f32 %v728, 0.17677669
    %v853 = vmul.f32 %v734, 0.17677669
    %vm854 = vcmask 261120
    %v856 = vsel %vm854, %v851, 0
    %v859 = vsel %vm854, %v852, 0
    %v862 = vsel %vm854, %v853, 0
    %v865 = vsel %vm854, %v724, 0
    %v868 = vsel %vm854, %v730, 0
    %v871 = vsel %vm854, %v736, 0
    %873 = vmatprep.subr.mxu0 0.0
    %874 = vmatpush1.xpose.msra.mxu0 0.0
    %875 = vmatprep.subr.mxu0 0.0
    %876 = vmatpush1.xpose.msra.mxu0 0.0
    %877 = vmatprep.subr.mxu0 0.0
    %878 = vmatpush1.xpose.msra.mxu0 0.0
    %879 = vmatprep.subr.mxu0 0.0
    %880 = vmatpush1.xpose.msra.mxu0 0.0
    %881 = vmatprep.subr.mxu0 0.0
    %882 = vmatpush1.xpose.msra.mxu0 0.0
    %883 = vmatprep.subr.mxu0 0.0
    %884 = vmatpush1.xpose.msra.mxu0 0.0
    %885 = vmatprep.subr.mxu0 0.0
    %886 = vmatpush1.xpose.msra.mxu0 0.0
    %887 = vmatprep.subr.mxu0 0.0
    %888 = vmatpush1.xpose.msra.mxu0 0.0
    %889 = vmatprep.subr.mxu0 0.0
    %890 = vmatpush1.xpose.msra.mxu0 0.0
    %891 = vmatprep.subr.mxu0 0.0
    %892 = vmatpush1.xpose.msra.mxu0 0.0
    %893 = vmatprep.subr.mxu0 0.0
    %894 = vmatpush1.xpose.msra.mxu0 0.0
    %895 = vmatprep.subr.mxu0 0.0
    %896 = vmatpush1.xpose.msra.mxu0 0.0
    %897 = vmatprep.subr.mxu0 0.0
    %898 = vmatpush1.xpose.msra.mxu0 0.0
    %899 = vmatprep.subr.mxu0 0.0
    %900 = vmatpush1.xpose.msra.mxu0 %v871
    %901 = vmatprep.subr.mxu0 0.0
    %902 = vmatpush1.xpose.msra.mxu0 %v868
    %903 = vmatprep.subr.mxu0 0.0
    %904 = vmatpush1.xpose.msra.mxu0 %v865
    %905 = vmatprep.subr.mxu0 0.0
    %906 = vmatpush2.xpose.msra.mxu0 0.0
    %907 = vmatprep.subr.mxu0 0.0
    %908 = vmatpush2.xpose.msra.mxu0 0.0
    %909 = vmatprep.subr.mxu0 0.0
    %910 = vmatpush2.xpose.msra.mxu0 0.0
    %911 = vmatprep.subr.mxu0 0.0
    %912 = vmatpush2.xpose.msra.mxu0 0.0
    %913 = vmatprep.subr.mxu0 0.0
    %914 = vmatpush2.xpose.msra.mxu0 0.0
    %915 = vmatprep.subr.mxu0 0.0
    %916 = vmatpush2.xpose.msra.mxu0 0.0
    %917 = vmatprep.subr.mxu0 0.0
    %918 = vmatpush2.xpose.msra.mxu0 0.0
    %919 = vmatprep.subr.mxu0 0.0
    %920 = vmatpush2.xpose.msra.mxu0 0.0
    %921 = vmatprep.subr.mxu0 0.0
    %922 = vmatpush2.xpose.msra.mxu0 0.0
    %923 = vmatprep.subr.mxu0 0.0
    %924 = vmatpush2.xpose.msra.mxu0 0.0
    %925 = vmatprep.subr.mxu0 0.0
    %926 = vmatpush2.xpose.msra.mxu0 0.0
    %927 = vmatprep.subr.mxu0 0.0
    %928 = vmatpush2.xpose.msra.mxu0 0.0
    %929 = vmatprep.subr.mxu0 0.0
    %930 = vmatpush2.xpose.msra.mxu0 0.0
    %931 = vmatprep.subr.mxu0 0.0
    %932 = vmatpush2.xpose.msra.mxu0 0.0
    %933 = vmatprep.subr.mxu0 0.0
    %934 = vmatpush2.xpose.msra.mxu0 0.0
    %935 = vmatprep.subr.mxu0 0.0
    %936 = vmatpush2.xpose.msra.mxu0 0.0
    %937 = vmatprep.mubr.f32.mxu0 0.0
    %938 = vmatmul.mubr.f32.gmra.mxu0 %v856
    %v939 = vpop.f32.mrf.mxu0
    %v940 = vadd.f32 %v347, %v939
    %v941 = vpop.f32.mrf.mxu0
    %942 = vmatprep.mubr.f32.mxu0 0.0
    %943 = vmatmul.mubr.f32.gmra.mxu0 %v859
    %v944 = vpop.f32.mrf.mxu0
    %v945 = vadd.f32 %v347, %v944
    %v946 = vpop.f32.mrf.mxu0
    %947 = vmatprep.mubr.f32.mxu0 0.0
    %948 = vmatmul.mubr.f32.gmra.mxu0 %v862
    %v949 = vpop.f32.mrf.mxu0
    %v950 = vadd.f32 %v347, %v949
    %v951 = vpop.f32.mrf.mxu0
    %952 = vdwg.mxu0
    %vm953 = vcmask 195584
    %v954 = vsel %vm953, %v940, -inf
    %955 = vmax.xlane.f32.xlu0 %v954
    %v956 = vpop.xlane.xlu0 %955
    %v957 = vsel %vm953, %v945, -inf
    %958 = vmax.xlane.f32.xlu0 %v957
    %v959 = vpop.xlane.xlu0 %958
    %v960 = vsel %vm953, %v950, -inf
    %961 = vmax.xlane.f32.xlu0 %v960
    %v962 = vpop.xlane.xlu0 %961
    %v963 = vsub.f32 %v940, %v956
    %v964 = vsub.f32 %v945, %v959
    %v965 = vsub.f32 %v950, %v962
    %v966 = vmul.f32 %v963, 1.442695
    %v967 = vpow.pop %v966
    %v968 = vmul.f32 %v964, 1.442695
    %v969 = vpow.pop %v968
    %v970 = vmul.f32 %v965, 1.442695
    %v971 = vpow.pop %v970
    %v972 = vsel %vm953, %v967, 0.0
    %973 = vadd.xlane.f32.xlu0 %v972
    %v974 = vpop.xlane.xlu0 %973
    %v975 = vsel %vm953, %v969, 0.0
    %976 = vadd.xlane.f32.xlu0 %v975
    %v977 = vpop.xlane.xlu0 %976
    %v978 = vsel %vm953, %v971, 0.0
    %979 = vadd.xlane.f32.xlu0 %v978
    %v980 = vpop.xlane.xlu0 %979
    %v981 = vrcp.pop %v974
    %v982 = vrcp.pop %v977
    %v983 = vrcp.pop %v980
    %v984 = vmul.f32 %v967, %v981
    %v985 = vmul.f32 %v969, %v982
    %v986 = vmul.f32 %v971, %v983
    %v988 = vsel %vm953, %v984, 0
    %v991 = vsel %vm953, %v985, 0
    %v994 = vsel %vm953, %v986, 0
    %996 = vmatprep.subr.mxu0 0.0
    %997 = vmatpush1.msra.mxu0 0.0
    %998 = vmatprep.subr.mxu0 0.0
    %999 = vmatpush1.msra.mxu0 0.0
    %1000 = vmatprep.subr.mxu0 0.0
    %1001 = vmatpush1.msra.mxu0 0.0
    %1002 = vmatprep.subr.mxu0 0.0
    %1003 = vmatpush1.msra.mxu0 0.0
    %1004 = vmatprep.subr.mxu0 0.0
    %1005 = vmatpush1.msra.mxu0 0.0
    %1006 = vmatprep.subr.mxu0 0.0
    %1007 = vmatpush1.msra.mxu0 0.0
    %1008 = vmatprep.subr.mxu0 0.0
    %1009 = vmatpush1.msra.mxu0 0.0
    %1010 = vmatprep.subr.mxu0 0.0
    %1011 = vmatpush1.msra.mxu0 0.0
    %1012 = vmatprep.subr.mxu0 0.0
    %1013 = vmatpush1.msra.mxu0 0.0
    %1014 = vmatprep.subr.mxu0 0.0
    %1015 = vmatpush1.msra.mxu0 0.0
    %1016 = vmatprep.subr.mxu0 0.0
    %1017 = vmatpush1.msra.mxu0 0.0
    %1018 = vmatprep.subr.mxu0 0.0
    %1019 = vmatpush1.msra.mxu0 0.0
    %1020 = vmatprep.subr.mxu0 0.0
    %1021 = vmatpush1.msra.mxu0 0.0
    %1022 = vmatprep.subr.mxu0 0.0
    %1023 = vmatpush1.msra.mxu0 %v833
    %1024 = vmatprep.subr.mxu0 0.0
    %1025 = vmatpush1.msra.mxu0 %v828
    %1026 = vmatprep.subr.mxu0 0.0
    %1027 = vmatpush1.msra.mxu0 %v823
    %1028 = vmatprep.subr.mxu0 0.0
    %1029 = vmatpush2.msra.mxu0 0.0
    %1030 = vmatprep.subr.mxu0 0.0
    %1031 = vmatpush2.msra.mxu0 0.0
    %1032 = vmatprep.subr.mxu0 0.0
    %1033 = vmatpush2.msra.mxu0 0.0
    %1034 = vmatprep.subr.mxu0 0.0
    %1035 = vmatpush2.msra.mxu0 0.0
    %1036 = vmatprep.subr.mxu0 0.0
    %1037 = vmatpush2.msra.mxu0 0.0
    %1038 = vmatprep.subr.mxu0 0.0
    %1039 = vmatpush2.msra.mxu0 0.0
    %1040 = vmatprep.subr.mxu0 0.0
    %1041 = vmatpush2.msra.mxu0 0.0
    %1042 = vmatprep.subr.mxu0 0.0
    %1043 = vmatpush2.msra.mxu0 0.0
    %1044 = vmatprep.subr.mxu0 0.0
    %1045 = vmatpush2.msra.mxu0 0.0
    %1046 = vmatprep.subr.mxu0 0.0
    %1047 = vmatpush2.msra.mxu0 0.0
    %1048 = vmatprep.subr.mxu0 0.0
    %1049 = vmatpush2.msra.mxu0 0.0
    %1050 = vmatprep.subr.mxu0 0.0
    %1051 = vmatpush2.msra.mxu0 0.0
    %1052 = vmatprep.subr.mxu0 0.0
    %1053 = vmatpush2.msra.mxu0 0.0
    %1054 = vmatprep.subr.mxu0 0.0
    %1055 = vmatpush2.msra.mxu0 0.0
    %1056 = vmatprep.subr.mxu0 0.0
    %1057 = vmatpush2.msra.mxu0 0.0
    %1058 = vmatprep.subr.mxu0 0.0
    %1059 = vmatpush2.msra.mxu0 0.0
    %1060 = vmatprep.mubr.f32.mxu0 0.0
    %1061 = vmatmul.mubr.f32.gmra.mxu0 %v988
    %v1062 = vpop.f32.mrf.mxu0
    %v1063 = vadd.f32 0.0, %v1062
    %v1064 = vpop.f32.mrf.mxu0
    %1065 = vmatprep.mubr.f32.mxu0 0.0
    %1066 = vmatmul.mubr.f32.gmra.mxu0 %v991
    %v1067 = vpop.f32.mrf.mxu0
    %v1068 = vadd.f32 0.0, %v1067
    %v1069 = vpop.f32.mrf.mxu0
    %1070 = vmatprep.mubr.f32.mxu0 0.0
    %1071 = vmatmul.mubr.f32.gmra.mxu0 %v994
    %v1072 = vpop.f32.mrf.mxu0
    %v1073 = vadd.f32 0.0, %v1072
    %v1074 = vpop.f32.mrf.mxu0
    %1075 = vdwg.mxu0
    %1076 = vrot.lane.b32.xlu0 %v851, 96
    %v1077 = vpop.permute.xlu0 %1076
    %1078 = vrot.lane.b32.xlu0 %v852, 96
    %v1079 = vpop.permute.xlu0 %1078
    %1080 = vrot.lane.b32.xlu0 %v853, 96
    %v1081 = vpop.permute.xlu0 %1080
    %1082 = vrot.lane.b32.xlu0 %v724, 96
    %v1083 = vpop.permute.xlu0 %1082
    %1084 = vrot.lane.b32.xlu0 %v730, 96
    %v1085 = vpop.permute.xlu0 %1084
    %1086 = vrot.lane.b32.xlu0 %v736, 96
    %v1087 = vpop.permute.xlu0 %1086
    %v1088 = vsel %vm854, %v1077, 0
    %v1090 = vsel %vm854, %v1079, 0
    %v1092 = vsel %vm854, %v1081, 0
    %v1094 = vsel %vm854, %v1083, 0
    %v1096 = vsel %vm854, %v1085, 0
    %v1098 = vsel %vm854, %v1087, 0
    %1100 = vmatprep.subr.mxu0 0.0
    %1101 = vmatpush1.xpose.msra.mxu0 0.0
    %1102 = vmatprep.subr.mxu0 0.0
    %1103 = vmatpush1.xpose.msra.mxu0 0.0
    %1104 = vmatprep.subr.mxu0 0.0
    %1105 = vmatpush1.xpose.msra.mxu0 0.0
    %1106 = vmatprep.subr.mxu0 0.0
    %1107 = vmatpush1.xpose.msra.mxu0 0.0
    %1108 = vmatprep.subr.mxu0 0.0
    %1109 = vmatpush1.xpose.msra.mxu0 0.0
    %1110 = vmatprep.subr.mxu0 0.0
    %1111 = vmatpush1.xpose.msra.mxu0 0.0
    %1112 = vmatprep.subr.mxu0 0.0
    %1113 = vmatpush1.xpose.msra.mxu0 0.0
    %1114 = vmatprep.subr.mxu0 0.0
    %1115 = vmatpush1.xpose.msra.mxu0 0.0
    %1116 = vmatprep.subr.mxu0 0.0
    %1117 = vmatpush1.xpose.msra.mxu0 0.0
    %1118 = vmatprep.subr.mxu0 0.0
    %1119 = vmatpush1.xpose.msra.mxu0 0.0
    %1120 = vmatprep.subr.mxu0 0.0
    %1121 = vmatpush1.xpose.msra.mxu0 0.0
    %1122 = vmatprep.subr.mxu0 0.0
    %1123 = vmatpush1.xpose.msra.mxu0 0.0
    %1124 = vmatprep.subr.mxu0 0.0
    %1125 = vmatpush1.xpose.msra.mxu0 0.0
    %1126 = vmatprep.subr.mxu0 0.0
    %1127 = vmatpush1.xpose.msra.mxu0 %v1098
    %1128 = vmatprep.subr.mxu0 0.0
    %1129 = vmatpush1.xpose.msra.mxu0 %v1096
    %1130 = vmatprep.subr.mxu0 0.0
    %1131 = vmatpush1.xpose.msra.mxu0 %v1094
    %1132 = vmatprep.subr.mxu0 0.0
    %1133 = vmatpush2.xpose.msra.mxu0 0.0
    %1134 = vmatprep.subr.mxu0 0.0
    %1135 = vmatpush2.xpose.msra.mxu0 0.0
    %1136 = vmatprep.subr.mxu0 0.0
    %1137 = vmatpush2.xpose.msra.mxu0 0.0
    %1138 = vmatprep.subr.mxu0 0.0
    %1139 = vmatpush2.xpose.msra.mxu0 0.0
    %1140 = vmatprep.subr.mxu0 0.0
    %1141 = vmatpush2.xpose.msra.mxu0 0.0
    %1142 = vmatprep.subr.mxu0 0.0
    %1143 = vmatpush2.xpose.msra.mxu0 0.0
    %1144 = vmatprep.subr.mxu0 0.0
    %1145 = vmatpush2.xpose.msra.mxu0 0.0
    %1146 = vmatprep.subr.mxu0 0.0
    %1147 = vmatpush2.xpose.msra.mxu0 0.0
    %1148 = vmatprep.subr.mxu0 0.0
    %1149 = vmatpush2.xpose.msra.mxu0 0.0
    %1150 = vmatprep.subr.mxu0 0.0
    %1151 = vmatpush2.xpose.msra.mxu0 0.0
    %1152 = vmatprep.subr.mxu0 0.0
    %1153 = vmatpush2.xpose.msra.mxu0 0.0
    %1154 = vmatprep.subr.mxu0 0.0
    %1155 = vmatpush2.xpose.msra.mxu0 0.0
    %1156 = vmatprep.subr.mxu0 0.0
    %1157 = vmatpush2.xpose.msra.mxu0 0.0
    %1158 = vmatprep.subr.mxu0 0.0
    %1159 = vmatpush2.xpose.msra.mxu0 0.0
    %1160 = vmatprep.subr.mxu0 0.0
    %1161 = vmatpush2.xpose.msra.mxu0 0.0
    %1162 = vmatprep.subr.mxu0 0.0
    %1163 = vmatpush2.xpose.msra.mxu0 0.0
    %1164 = vmatprep.mubr.f32.mxu0 0.0
    %1165 = vmatmul.mubr.f32.gmra.mxu0 %v1088
    %v1166 = vpop.f32.mrf.mxu0
    %v1167 = vadd.f32 %v347, %v1166
    %v1168 = vpop.f32.mrf.mxu0
    %1169 = vmatprep.mubr.f32.mxu0 0.0
    %1170 = vmatmul.mubr.f32.gmra.mxu0 %v1090
    %v1171 = vpop.f32.mrf.mxu0
    %v1172 = vadd.f32 %v347, %v1171
    %v1173 = vpop.f32.mrf.mxu0
    %1174 = vmatprep.mubr.f32.mxu0 0.0
    %1175 = vmatmul.mubr.f32.gmra.mxu0 %v1092
    %v1176 = vpop.f32.mrf.mxu0
    %v1177 = vadd.f32 %v347, %v1176
    %v1178 = vpop.f32.mrf.mxu0
    %1179 = vdwg.mxu0
    %v1180 = vsel %vm953, %v1167, -inf
    %1181 = vmax.xlane.f32.xlu0 %v1180
    %v1182 = vpop.xlane.xlu0 %1181
    %v1183 = vsel %vm953, %v1172, -inf
    %1184 = vmax.xlane.f32.xlu0 %v1183
    %v1185 = vpop.xlane.xlu0 %1184
    %v1186 = vsel %vm953, %v1177, -inf
    %1187 = vmax.xlane.f32.xlu0 %v1186
    %v1188 = vpop.xlane.xlu0 %1187
    %v1189 = vsub.f32 %v1167, %v1182
    %v1190 = vsub.f32 %v1172, %v1185
    %v1191 = vsub.f32 %v1177, %v1188
    %v1192 = vmul.f32 %v1189, 1.442695
    %v1193 = vpow.pop %v1192
    %v1194 = vmul.f32 %v1190, 1.442695
    %v1195 = vpow.pop %v1194
    %v1196 = vmul.f32 %v1191, 1.442695
    %v1197 = vpow.pop %v1196
    %v1198 = vsel %vm953, %v1193, 0.0
    %1199 = vadd.xlane.f32.xlu0 %v1198
    %v1200 = vpop.xlane.xlu0 %1199
    %v1201 = vsel %vm953, %v1195, 0.0
    %1202 = vadd.xlane.f32.xlu0 %v1201
    %v1203 = vpop.xlane.xlu0 %1202
    %v1204 = vsel %vm953, %v1197, 0.0
    %1205 = vadd.xlane.f32.xlu0 %v1204
    %v1206 = vpop.xlane.xlu0 %1205
    %v1207 = vrcp.pop %v1200
    %v1208 = vrcp.pop %v1203
    %v1209 = vrcp.pop %v1206
    %v1210 = vmul.f32 %v1193, %v1207
    %v1211 = vmul.f32 %v1195, %v1208
    %v1212 = vmul.f32 %v1197, %v1209
    %1216 = vrot.lane.b32.xlu0 %v823, 96
    %v1217 = vpop.permute.xlu0 %1216
    %1218 = vrot.lane.b32.xlu0 %v828, 96
    %v1219 = vpop.permute.xlu0 %1218
    %1220 = vrot.lane.b32.xlu0 %v833, 96
    %v1221 = vpop.permute.xlu0 %1220
    %v1226 = vsel %vm953, %v1210, 0
    %v1229 = vsel %vm953, %v1211, 0
    %v1232 = vsel %vm953, %v1212, 0
    %1234 = vmatprep.subr.mxu0 0.0
    %1235 = vmatpush1.msra.mxu0 0.0
    %1236 = vmatprep.subr.mxu0 0.0
    %1237 = vmatpush1.msra.mxu0 0.0
    %1238 = vmatprep.subr.mxu0 0.0
    %1239 = vmatpush1.msra.mxu0 0.0
    %1240 = vmatprep.subr.mxu0 0.0
    %1241 = vmatpush1.msra.mxu0 0.0
    %1242 = vmatprep.subr.mxu0 0.0
    %1243 = vmatpush1.msra.mxu0 0.0
    %1244 = vmatprep.subr.mxu0 0.0
    %1245 = vmatpush1.msra.mxu0 0.0
    %1246 = vmatprep.subr.mxu0 0.0
    %1247 = vmatpush1.msra.mxu0 0.0
    %1248 = vmatprep.subr.mxu0 0.0
    %1249 = vmatpush1.msra.mxu0 0.0
    %1250 = vmatprep.subr.mxu0 0.0
    %1251 = vmatpush1.msra.mxu0 0.0
    %1252 = vmatprep.subr.mxu0 0.0
    %1253 = vmatpush1.msra.mxu0 0.0
    %1254 = vmatprep.subr.mxu0 0.0
    %1255 = vmatpush1.msra.mxu0 0.0
    %1256 = vmatprep.subr.mxu0 0.0
    %1257 = vmatpush1.msra.mxu0 0.0
    %1258 = vmatprep.subr.mxu0 0.0
    %1259 = vmatpush1.msra.mxu0 0.0
    %1260 = vmatprep.subr.mxu0 0.0
    %1261 = vmatpush1.msra.mxu0 %v1221
    %1262 = vmatprep.subr.mxu0 0.0
    %1263 = vmatpush1.msra.mxu0 %v1219
    %1264 = vmatprep.subr.mxu0 0.0
    %1265 = vmatpush1.msra.mxu0 %v1217
    %1266 = vmatprep.subr.mxu0 0.0
    %1267 = vmatpush2.msra.mxu0 0.0
    %1268 = vmatprep.subr.mxu0 0.0
    %1269 = vmatpush2.msra.mxu0 0.0
    %1270 = vmatprep.subr.mxu0 0.0
    %1271 = vmatpush2.msra.mxu0 0.0
    %1272 = vmatprep.subr.mxu0 0.0
    %1273 = vmatpush2.msra.mxu0 0.0
    %1274 = vmatprep.subr.mxu0 0.0
    %1275 = vmatpush2.msra.mxu0 0.0
    %1276 = vmatprep.subr.mxu0 0.0
    %1277 = vmatpush2.msra.mxu0 0.0
    %1278 = vmatprep.subr.mxu0 0.0
    %1279 = vmatpush2.msra.mxu0 0.0
    %1280 = vmatprep.subr.mxu0 0.0
    %1281 = vmatpush2.msra.mxu0 0.0
    %1282 = vmatprep.subr.mxu0 0.0
    %1283 = vmatpush2.msra.mxu0 0.0
    %1284 = vmatprep.subr.mxu0 0.0
    %1285 = vmatpush2.msra.mxu0 0.0
    %1286 = vmatprep.subr.mxu0 0.0
    %1287 = vmatpush2.msra.mxu0 0.0
    %1288 = vmatprep.subr.mxu0 0.0
    %1289 = vmatpush2.msra.mxu0 0.0
    %1290 = vmatprep.subr.mxu0 0.0
    %1291 = vmatpush2.msra.mxu0 0.0
    %1292 = vmatprep.subr.mxu0 0.0
    %1293 = vmatpush2.msra.mxu0 0.0
    %1294 = vmatprep.subr.mxu0 0.0
    %1295 = vmatpush2.msra.mxu0 0.0
    %1296 = vmatprep.subr.mxu0 0.0
    %1297 = vmatpush2.msra.mxu0 0.0
    %1298 = vmatprep.mubr.f32.mxu0 0.0
    %1299 = vmatmul.mubr.f32.gmra.mxu0 %v1226
    %v1300 = vpop.f32.mrf.mxu0
    %v1301 = vadd.f32 0.0, %v1300
    %v1302 = vpop.f32.mrf.mxu0
    %1303 = vmatprep.mubr.f32.mxu0 0.0
    %1304 = vmatmul.mubr.f32.gmra.mxu0 %v1229
    %v1305 = vpop.f32.mrf.mxu0
    %v1306 = vadd.f32 0.0, %v1305
    %v1307 = vpop.f32.mrf.mxu0
    %1308 = vmatprep.mubr.f32.mxu0 0.0
    %1309 = vmatmul.mubr.f32.gmra.mxu0 %v1232
    %v1310 = vpop.f32.mrf.mxu0
    %v1311 = vadd.f32 0.0, %v1310
    %v1312 = vpop.f32.mrf.mxu0
    %1313 = vdwg.mxu0
    %v1315 = vsel %vm854, %v1301, 0
    %v1318 = vsel %vm854, %v1306, 0
    %v1321 = vsel %vm854, %v1311, 0
    %1323 = vmatprep.subr.mxu0 0.0
    %1324 = vmatpush1.msra.mxu0 0.0
    %1325 = vmatprep.subr.mxu0 0.0
    %1326 = vmatpush1.msra.mxu0 0.0
    %1327 = vmatprep.subr.mxu0 0.0
    %1328 = vmatpush1.msra.mxu0 0.0
    %1329 = vmatprep.subr.mxu0 0.0
    %1330 = vmatpush1.msra.mxu0 0.0
    %1331 = vmatprep.subr.mxu0 0.0
    %1332 = vmatpush1.msra.mxu0 0.0
    %1333 = vmatprep.subr.mxu0 0.0
    %1334 = vmatpush1.msra.mxu0 0.0
    %1335 = vmatprep.subr.mxu0 0.0
    %1336 = vmatpush1.msra.mxu0 0.0
    %1337 = vmatprep.subr.mxu0 0.0
    %1338 = vmatpush1.msra.mxu0 0.0
    %1339 = vmatprep.subr.mxu0 0.0
    %1340 = vmatpush1.msra.mxu0 0.0
    %1341 = vmatprep.subr.mxu0 0.0
    %1342 = vmatpush1.msra.mxu0 0.0
    %1343 = vmatprep.subr.mxu0 0.0
    %1344 = vmatpush1.msra.mxu0 0.0
    %1345 = vmatprep.subr.mxu0 0.0
    %1346 = vmatpush1.msra.mxu0 0.0
    %1347 = vmatprep.subr.mxu0 0.0
    %1348 = vmatpush1.msra.mxu0 %v406
    %1349 = vmatprep.subr.mxu0 0.0
    %1350 = vmatpush1.msra.mxu0 %v405
    %1351 = vmatprep.subr.mxu0 0.0
    %1352 = vmatpush1.msra.mxu0 %v404
    %1353 = vmatprep.subr.mxu0 0.0
    %1354 = vmatpush1.msra.mxu0 %v403
    %1355 = vmatprep.subr.mxu0 0.0
    %1356 = vmatpush2.msra.mxu0 0.0
    %1357 = vmatprep.subr.mxu0 0.0
    %1358 = vmatpush2.msra.mxu0 0.0
    %1359 = vmatprep.subr.mxu0 0.0
    %1360 = vmatpush2.msra.mxu0 0.0
    %1361 = vmatprep.subr.mxu0 0.0
    %1362 = vmatpush2.msra.mxu0 0.0
    %1363 = vmatprep.subr.mxu0 0.0
    %1364 = vmatpush2.msra.mxu0 0.0
    %1365 = vmatprep.subr.mxu0 0.0
    %1366 = vmatpush2.msra.mxu0 0.0
    %1367 = vmatprep.subr.mxu0 0.0
    %1368 = vmatpush2.msra.mxu0 0.0
    %1369 = vmatprep.subr.mxu0 0.0
    %1370 = vmatpush2.msra.mxu0 0.0
    %1371 = vmatprep.subr.mxu0 0.0
    %1372 = vmatpush2.msra.mxu0 0.0
    %1373 = vmatprep.subr.mxu0 0.0
    %1374 = vmatpush2.msra.mxu0 0.0
    %1375 = vmatprep.subr.mxu0 0.0
    %1376 = vmatpush2.msra.mxu0 0.0
    %1377 = vmatprep.subr.mxu0 0.0
    %1378 = vmatpush2.msra.mxu0 0.0
    %1379 = vmatprep.subr.mxu0 0.0
    %1380 = vmatpush2.msra.mxu0 0.0
    %1381 = vmatprep.subr.mxu0 0.0
    %1382 = vmatpush2.msra.mxu0 0.0
    %1383 = vmatprep.subr.mxu0 0.0
    %1384 = vmatpush2.msra.mxu0 0.0
    %1385 = vmatprep.subr.mxu0 0.0
    %1386 = vmatpush2.msra.mxu0 0.0
    %1387 = vmatprep.mubr.f32.mxu0 0.0
    %1388 = vmatmul.mubr.f32.gmra.mxu0 %v1315
    %v1389 = vpop.f32.mrf.mxu0
    %v1390 = vadd.f32 0.0, %v1389
    %v1391 = vpop.f32.mrf.mxu0
    %1392 = vmatprep.mubr.f32.mxu0 0.0
    %1393 = vmatmul.mubr.f32.gmra.mxu0 %v1318
    %v1394 = vpop.f32.mrf.mxu0
    %v1395 = vadd.f32 0.0, %v1394
    %v1396 = vpop.f32.mrf.mxu0
    %1397 = vmatprep.mubr.f32.mxu0 0.0
    %1398 = vmatmul.mubr.f32.gmra.mxu0 %v1321
    %v1399 = vpop.f32.mrf.mxu0
    %v1400 = vadd.f32 0.0, %v1399
    %v1401 = vpop.f32.mrf.mxu0
    %1402 = vdwg.mxu0
    %v1404 = vsel %vm854, %v1063, 0
    %v1407 = vsel %vm854, %v1068, 0
    %v1410 = vsel %vm854, %v1073, 0
    %1412 = vmatprep.subr.mxu0 0.0
    %1413 = vmatpush1.msra.mxu0 0.0
    %1414 = vmatprep.subr.mxu0 0.0
    %1415 = vmatpush1.msra.mxu0 0.0
    %1416 = vmatprep.subr.mxu0 0.0
    %1417 = vmatpush1.msra.mxu0 0.0
    %1418 = vmatprep.subr.mxu0 0.0
    %1419 = vmatpush1.msra.mxu0 0.0
    %1420 = vmatprep.subr.mxu0 0.0
    %1421 = vmatpush1.msra.mxu0 0.0
    %1422 = vmatprep.subr.mxu0 0.0
    %1423 = vmatpush1.msra.mxu0 0.0
    %1424 = vmatprep.subr.mxu0 0.0
    %1425 = vmatpush1.msra.mxu0 0.0
    %1426 = vmatprep.subr.mxu0 0.0
    %1427 = vmatpush1.msra.mxu0 0.0
    %1428 = vmatprep.subr.mxu0 0.0
    %1429 = vmatpush1.msra.mxu0 0.0
    %1430 = vmatprep.subr.mxu0 0.0
    %1431 = vmatpush1.msra.mxu0 0.0
    %1432 = vmatprep.subr.mxu0 0.0
    %1433 = vmatpush1.msra.mxu0 0.0
    %1434 = vmatprep.subr.mxu0 0.0
    %1435 = vmatpush1.msra.mxu0 0.0
    %1436 = vmatprep.subr.mxu0 0.0
    %1437 = vmatpush1.msra.mxu0 %v402
    %1438 = vmatprep.subr.mxu0 0.0
    %1439 = vmatpush1.msra.mxu0 %v401
    %1440 = vmatprep.subr.mxu0 0.0
    %1441 = vmatpush1.msra.mxu0 %v400
    %1442 = vmatprep.subr.mxu0 0.0
    %1443 = vmatpush1.msra.mxu0 %v399
    %1444 = vmatprep.subr.mxu0 0.0
    %1445 = vmatpush2.msra.mxu0 0.0
    %1446 = vmatprep.subr.mxu0 0.0
    %1447 = vmatpush2.msra.mxu0 0.0
    %1448 = vmatprep.subr.mxu0 0.0
    %1449 = vmatpush2.msra.mxu0 0.0
    %1450 = vmatprep.subr.mxu0 0.0
    %1451 = vmatpush2.msra.mxu0 0.0
    %1452 = vmatprep.subr.mxu0 0.0
    %1453 = vmatpush2.msra.mxu0 0.0
    %1454 = vmatprep.subr.mxu0 0.0
    %1455 = vmatpush2.msra.mxu0 0.0
    %1456 = vmatprep.subr.mxu0 0.0
    %1457 = vmatpush2.msra.mxu0 0.0
    %1458 = vmatprep.subr.mxu0 0.0
    %1459 = vmatpush2.msra.mxu0 0.0
    %1460 = vmatprep.subr.mxu0 0.0
    %1461 = vmatpush2.msra.mxu0 0.0
    %1462 = vmatprep.subr.mxu0 0.0
    %1463 = vmatpush2.msra.mxu0 0.0
    %1464 = vmatprep.subr.mxu0 0.0
    %1465 = vmatpush2.msra.mxu0 0.0
    %1466 = vmatprep.subr.mxu0 0.0
    %1467 = vmatpush2.msra.mxu0 0.0
    %1468 = vmatprep.subr.mxu0 0.0
    %1469 = vmatpush2.msra.mxu0 0.0
    %1470 = vmatprep.subr.mxu0 0.0
    %1471 = vmatpush2.msra.mxu0 0.0
    %1472 = vmatprep.subr.mxu0 0.0
    %1473 = vmatpush2.msra.mxu0 0.0
    %1474 = vmatprep.subr.mxu0 0.0
    %1475 = vmatpush2.msra.mxu0 0.0
    %1476 = vmatprep.mubr.f32.mxu0 0.0
    %1477 = vmatmul.mubr.f32.gmra.mxu0 %v1404
    %v1478 = vpop.f32.mrf.mxu0
    %v1479 = vadd.f32 %v1390, %v1478
    %v1480 = vpop.f32.mrf.mxu0
    %1481 = vmatprep.mubr.f32.mxu0 0.0
    %1482 = vmatmul.mubr.f32.gmra.mxu0 %v1407
    %v1483 = vpop.f32.mrf.mxu0
    %v1484 = vadd.f32 %v1395, %v1483
    %v1485 = vpop.f32.mrf.mxu0
    %1486 = vmatprep.mubr.f32.mxu0 0.0
    %1487 = vmatmul.mubr.f32.gmra.mxu0 %v1410
    %v1488 = vpop.f32.mrf.mxu0
    %v1489 = vadd.f32 %v1400, %v1488
    %v1490 = vpop.f32.mrf.mxu0
    %1491 = vdwg.mxu0
    %1492 = vrot.lane.b32.xlu0 %v851, 64
    %v1493 = vpop.permute.xlu0 %1492
    %1494 = vrot.lane.b32.xlu0 %v852, 64
    %v1495 = vpop.permute.xlu0 %1494
    %1496 = vrot.lane.b32.xlu0 %v853, 64
    %v1497 = vpop.permute.xlu0 %1496
    %1498 = vrot.lane.b32.xlu0 %v724, 64
    %v1499 = vpop.permute.xlu0 %1498
    %1500 = vrot.lane.b32.xlu0 %v730, 64
    %v1501 = vpop.permute.xlu0 %1500
    %1502 = vrot.lane.b32.xlu0 %v736, 64
    %v1503 = vpop.permute.xlu0 %1502
    %v1504 = vsel %vm854, %v1493, 0
    %v1506 = vsel %vm854, %v1495, 0
    %v1508 = vsel %vm854, %v1497, 0
    %v1510 = vsel %vm854, %v1499, 0
    %v1512 = vsel %vm854, %v1501, 0
    %v1514 = vsel %vm854, %v1503, 0
    %1516 = vmatprep.subr.mxu0 0.0
    %1517 = vmatpush1.xpose.msra.mxu0 0.0
    %1518 = vmatprep.subr.mxu0 0.0
    %1519 = vmatpush1.xpose.msra.mxu0 0.0
    %1520 = vmatprep.subr.mxu0 0.0
    %1521 = vmatpush1.xpose.msra.mxu0 0.0
    %1522 = vmatprep.subr.mxu0 0.0
    %1523 = vmatpush1.xpose.msra.mxu0 0.0
    %1524 = vmatprep.subr.mxu0 0.0
    %1525 = vmatpush1.xpose.msra.mxu0 0.0
    %1526 = vmatprep.subr.mxu0 0.0
    %1527 = vmatpush1.xpose.msra.mxu0 0.0
    %1528 = vmatprep.subr.mxu0 0.0
    %1529 = vmatpush1.xpose.msra.mxu0 0.0
    %1530 = vmatprep.subr.mxu0 0.0
    %1531 = vmatpush1.xpose.msra.mxu0 0.0
    %1532 = vmatprep.subr.mxu0 0.0
    %1533 = vmatpush1.xpose.msra.mxu0 0.0
    %1534 = vmatprep.subr.mxu0 0.0
    %1535 = vmatpush1.xpose.msra.mxu0 0.0
    %1536 = vmatprep.subr.mxu0 0.0
    %1537 = vmatpush1.xpose.msra.mxu0 0.0
    %1538 = vmatprep.subr.mxu0 0.0
    %1539 = vmatpush1.xpose.msra.mxu0 0.0
    %1540 = vmatprep.subr.mxu0 0.0
    %1541 = vmatpush1.xpose.msra.mxu0 0.0
    %1542 = vmatprep.subr.mxu0 0.0
    %1543 = vmatpush1.xpose.msra.mxu0 %v1514
    %1544 = vmatprep.subr.mxu0 0.0
    %1545 = vmatpush1.xpose.msra.mxu0 %v1512
    %1546 = vmatprep.subr.mxu0 0.0
    %1547 = vmatpush1.xpose.msra.mxu0 %v1510
    %1548 = vmatprep.subr.mxu0 0.0
    %1549 = vmatpush2.xpose.msra.mxu0 0.0
    %1550 = vmatprep.subr.mxu0 0.0
    %1551 = vmatpush2.xpose.msra.mxu0 0.0
    %1552 = vmatprep.subr.mxu0 0.0
    %1553 = vmatpush2.xpose.msra.mxu0 0.0
    %1554 = vmatprep.subr.mxu0 0.0
    %1555 = vmatpush2.xpose.msra.mxu0 0.0
    %1556 = vmatprep.subr.mxu0 0.0
    %1557 = vmatpush2.xpose.msra.mxu0 0.0
    %1558 = vmatprep.subr.mxu0 0.0
    %1559 = vmatpush2.xpose.msra.mxu0 0.0
    %1560 = vmatprep.subr.mxu0 0.0
    %1561 = vmatpush2.xpose.msra.mxu0 0.0
    %1562 = vmatprep.subr.mxu0 0.0
    %1563 = vmatpush2.xpose.msra.mxu0 0.0
    %1564 = vmatprep.subr.mxu0 0.0
    %1565 = vmatpush2.xpose.msra.mxu0 0.0
    %1566 = vmatprep.subr.mxu0 0.0
    %1567 = vmatpush2.xpose.msra.mxu0 0.0
    %1568 = vmatprep.subr.mxu0 0.0
    %1569 = vmatpush2.xpose.msra.mxu0 0.0
    %1570 = vmatprep.subr.mxu0 0.0
    %1571 = vmatpush2.xpose.msra.mxu0 0.0
    %1572 = vmatprep.subr.mxu0 0.0
    %1573 = vmatpush2.xpose.msra.mxu0 0.0
    %1574 = vmatprep.subr.mxu0 0.0
    %1575 = vmatpush2.xpose.msra.mxu0 0.0
    %1576 = vmatprep.subr.mxu0 0.0
    %1577 = vmatpush2.xpose.msra.mxu0 0.0
    %1578 = vmatprep.subr.mxu0 0.0
    %1579 = vmatpush2.xpose.msra.mxu0 0.0
    %1580 = vmatprep.mubr.f32.mxu0 0.0
    %1581 = vmatmul.mubr.f32.gmra.mxu0 %v1504
    %v1582 = vpop.f32.mrf.mxu0
    %v1583 = vadd.f32 %v347, %v1582
    %v1584 = vpop.f32.mrf.mxu0
    %1585 = vmatprep.mubr.f32.mxu0 0.0
    %1586 = vmatmul.mubr.f32.gmra.mxu0 %v1506
    %v1587 = vpop.f32.mrf.mxu0
    %v1588 = vadd.f32 %v347, %v1587
    %v1589 = vpop.f32.mrf.mxu0
    %1590 = vmatprep.mubr.f32.mxu0 0.0
    %1591 = vmatmul.mubr.f32.gmra.mxu0 %v1508
    %v1592 = vpop.f32.mrf.mxu0
    %v1593 = vadd.f32 %v347, %v1592
    %v1594 = vpop.f32.mrf.mxu0
    %1595 = vdwg.mxu0
    %v1596 = vsel %vm953, %v1583, -inf
    %1597 = vmax.xlane.f32.xlu0 %v1596
    %v1598 = vpop.xlane.xlu0 %1597
    %v1599 = vsel %vm953, %v1588, -inf
    %1600 = vmax.xlane.f32.xlu0 %v1599
    %v1601 = vpop.xlane.xlu0 %1600
    %v1602 = vsel %vm953, %v1593, -inf
    %1603 = vmax.xlane.f32.xlu0 %v1602
    %v1604 = vpop.xlane.xlu0 %1603
    %v1605 = vsub.f32 %v1583, %v1598
    %v1606 = vsub.f32 %v1588, %v1601
    %v1607 = vsub.f32 %v1593, %v1604
    %v1608 = vmul.f32 %v1605, 1.442695
    %v1609 = vpow.pop %v1608
    %v1610 = vmul.f32 %v1606, 1.442695
    %v1611 = vpow.pop %v1610
    %v1612 = vmul.f32 %v1607, 1.442695
    %v1613 = vpow.pop %v1612
    %v1614 = vsel %vm953, %v1609, 0.0
    %1615 = vadd.xlane.f32.xlu0 %v1614
    %v1616 = vpop.xlane.xlu0 %1615
    %v1617 = vsel %vm953, %v1611, 0.0
    %1618 = vadd.xlane.f32.xlu0 %v1617
    %v1619 = vpop.xlane.xlu0 %1618
    %v1620 = vsel %vm953, %v1613, 0.0
    %1621 = vadd.xlane.f32.xlu0 %v1620
    %v1622 = vpop.xlane.xlu0 %1621
    %v1623 = vrcp.pop %v1616
    %v1624 = vrcp.pop %v1619
    %v1625 = vrcp.pop %v1622
    %v1626 = vmul.f32 %v1609, %v1623
    %v1627 = vmul.f32 %v1611, %v1624
    %v1628 = vmul.f32 %v1613, %v1625
    %1629 = vrot.lane.b32.xlu0 %v823, 64
    %v1630 = vpop.permute.xlu0 %1629
    %1631 = vrot.lane.b32.xlu0 %v828, 64
    %v1632 = vpop.permute.xlu0 %1631
    %1633 = vrot.lane.b32.xlu0 %v833, 64
    %v1634 = vpop.permute.xlu0 %1633
    %v1639 = vsel %vm953, %v1626, 0
    %v1642 = vsel %vm953, %v1627, 0
    %v1645 = vsel %vm953, %v1628, 0
    %1647 = vmatprep.subr.mxu0 0.0
    %1648 = vmatpush1.msra.mxu0 0.0
    %1649 = vmatprep.subr.mxu0 0.0
    %1650 = vmatpush1.msra.mxu0 0.0
    %1651 = vmatprep.subr.mxu0 0.0
    %1652 = vmatpush1.msra.mxu0 0.0
    %1653 = vmatprep.subr.mxu0 0.0
    %1654 = vmatpush1.msra.mxu0 0.0
    %1655 = vmatprep.subr.mxu0 0.0
    %1656 = vmatpush1.msra.mxu0 0.0
    %1657 = vmatprep.subr.mxu0 0.0
    %1658 = vmatpush1.msra.mxu0 0.0
    %1659 = vmatprep.subr.mxu0 0.0
    %1660 = vmatpush1.msra.mxu0 0.0
    %1661 = vmatprep.subr.mxu0 0.0
    %1662 = vmatpush1.msra.mxu0 0.0
    %1663 = vmatprep.subr.mxu0 0.0
    %1664 = vmatpush1.msra.mxu0 0.0
    %1665 = vmatprep.subr.mxu0 0.0
    %1666 = vmatpush1.msra.mxu0 0.0
    %1667 = vmatprep.subr.mxu0 0.0
    %1668 = vmatpush1.msra.mxu0 0.0
    %1669 = vmatprep.subr.mxu0 0.0
    %1670 = vmatpush1.msra.mxu0 0.0
    %1671 = vmatprep.subr.mxu0 0.0
    %1672 = vmatpush1.msra.mxu0 0.0
    %1673 = vmatprep.subr.mxu0 0.0
    %1674 = vmatpush1.msra.mxu0 %v1634
    %1675 = vmatprep.subr.mxu0 0.0
    %1676 = vmatpush1.msra.mxu0 %v1632
    %1677 = vmatprep.subr.mxu0 0.0
    %1678 = vmatpush1.msra.mxu0 %v1630
    %1679 = vmatprep.subr.mxu0 0.0
    %1680 = vmatpush2.msra.mxu0 0.0
    %1681 = vmatprep.subr.mxu0 0.0
    %1682 = vmatpush2.msra.mxu0 0.0
    %1683 = vmatprep.subr.mxu0 0.0
    %1684 = vmatpush2.msra.mxu0 0.0
    %1685 = vmatprep.subr.mxu0 0.0
    %1686 = vmatpush2.msra.mxu0 0.0
    %1687 = vmatprep.subr.mxu0 0.0
    %1688 = vmatpush2.msra.mxu0 0.0
    %1689 = vmatprep.subr.mxu0 0.0
    %1690 = vmatpush2.msra.mxu0 0.0
    %1691 = vmatprep.subr.mxu0 0.0
    %1692 = vmatpush2.msra.mxu0 0.0
    %1693 = vmatprep.subr.mxu0 0.0
    %1694 = vmatpush2.msra.mxu0 0.0
    %1695 = vmatprep.subr.mxu0 0.0
    %1696 = vmatpush2.msra.mxu0 0.0
    %1697 = vmatprep.subr.mxu0 0.0
    %1698 = vmatpush2.msra.mxu0 0.0
    %1699 = vmatprep.subr.mxu0 0.0
    %1700 = vmatpush2.msra.mxu0 0.0
    %1701 = vmatprep.subr.mxu0 0.0
    %1702 = vmatpush2.msra.mxu0 0.0
    %1703 = vmatprep.subr.mxu0 0.0
    %1704 = vmatpush2.msra.mxu0 0.0
    %1705 = vmatprep.subr.mxu0 0.0
    %1706 = vmatpush2.msra.mxu0 0.0
    %1707 = vmatprep.subr.mxu0 0.0
    %1708 = vmatpush2.msra.mxu0 0.0
    %1709 = vmatprep.subr.mxu0 0.0
    %1710 = vmatpush2.msra.mxu0 0.0
    %1711 = vmatprep.mubr.f32.mxu0 0.0
    %1712 = vmatmul.mubr.f32.gmra.mxu0 %v1639
    %v1713 = vpop.f32.mrf.mxu0
    %v1714 = vadd.f32 0.0, %v1713
    %v1715 = vpop.f32.mrf.mxu0
    %1716 = vmatprep.mubr.f32.mxu0 0.0
    %1717 = vmatmul.mubr.f32.gmra.mxu0 %v1642
    %v1718 = vpop.f32.mrf.mxu0
    %v1719 = vadd.f32 0.0, %v1718
    %v1720 = vpop.f32.mrf.mxu0
    %1721 = vmatprep.mubr.f32.mxu0 0.0
    %1722 = vmatmul.mubr.f32.gmra.mxu0 %v1645
    %v1723 = vpop.f32.mrf.mxu0
    %v1724 = vadd.f32 0.0, %v1723
    %v1725 = vpop.f32.mrf.mxu0
    %1726 = vdwg.mxu0
    %v1728 = vsel %vm854, %v1714, 0
    %v1731 = vsel %vm854, %v1719, 0
    %v1734 = vsel %vm854, %v1724, 0
    %1736 = vmatprep.subr.mxu0 0.0
    %1737 = vmatpush1.msra.mxu0 0.0
    %1738 = vmatprep.subr.mxu0 0.0
    %1739 = vmatpush1.msra.mxu0 0.0
    %1740 = vmatprep.subr.mxu0 0.0
    %1741 = vmatpush1.msra.mxu0 0.0
    %1742 = vmatprep.subr.mxu0 0.0
    %1743 = vmatpush1.msra.mxu0 0.0
    %1744 = vmatprep.subr.mxu0 0.0
    %1745 = vmatpush1.msra.mxu0 0.0
    %1746 = vmatprep.subr.mxu0 0.0
    %1747 = vmatpush1.msra.mxu0 0.0
    %1748 = vmatprep.subr.mxu0 0.0
    %1749 = vmatpush1.msra.mxu0 0.0
    %1750 = vmatprep.subr.mxu0 0.0
    %1751 = vmatpush1.msra.mxu0 0.0
    %1752 = vmatprep.subr.mxu0 0.0
    %1753 = vmatpush1.msra.mxu0 0.0
    %1754 = vmatprep.subr.mxu0 0.0
    %1755 = vmatpush1.msra.mxu0 0.0
    %1756 = vmatprep.subr.mxu0 0.0
    %1757 = vmatpush1.msra.mxu0 0.0
    %1758 = vmatprep.subr.mxu0 0.0
    %1759 = vmatpush1.msra.mxu0 0.0
    %1760 = vmatprep.subr.mxu0 0.0
    %1761 = vmatpush1.msra.mxu0 %v410
    %1762 = vmatprep.subr.mxu0 0.0
    %1763 = vmatpush1.msra.mxu0 %v409
    %1764 = vmatprep.subr.mxu0 0.0
    %1765 = vmatpush1.msra.mxu0 %v408
    %1766 = vmatprep.subr.mxu0 0.0
    %1767 = vmatpush1.msra.mxu0 %v407
    %1768 = vmatprep.subr.mxu0 0.0
    %1769 = vmatpush2.msra.mxu0 0.0
    %1770 = vmatprep.subr.mxu0 0.0
    %1771 = vmatpush2.msra.mxu0 0.0
    %1772 = vmatprep.subr.mxu0 0.0
    %1773 = vmatpush2.msra.mxu0 0.0
    %1774 = vmatprep.subr.mxu0 0.0
    %1775 = vmatpush2.msra.mxu0 0.0
    %1776 = vmatprep.subr.mxu0 0.0
    %1777 = vmatpush2.msra.mxu0 0.0
    %1778 = vmatprep.subr.mxu0 0.0
    %1779 = vmatpush2.msra.mxu0 0.0
    %1780 = vmatprep.subr.mxu0 0.0
    %1781 = vmatpush2.msra.mxu0 0.0
    %1782 = vmatprep.subr.mxu0 0.0
    %1783 = vmatpush2.msra.mxu0 0.0
    %1784 = vmatprep.subr.mxu0 0.0
    %1785 = vmatpush2.msra.mxu0 0.0
    %1786 = vmatprep.subr.mxu0 0.0
    %1787 = vmatpush2.msra.mxu0 0.0
    %1788 = vmatprep.subr.mxu0 0.0
    %1789 = vmatpush2.msra.mxu0 0.0
    %1790 = vmatprep.subr.mxu0 0.0
    %1791 = vmatpush2.msra.mxu0 0.0
    %1792 = vmatprep.subr.mxu0 0.0
    %1793 = vmatpush2.msra.mxu0 0.0
    %1794 = vmatprep.subr.mxu0 0.0
    %1795 = vmatpush2.msra.mxu0 0.0
    %1796 = vmatprep.subr.mxu0 0.0
    %1797 = vmatpush2.msra.mxu0 0.0
    %1798 = vmatprep.subr.mxu0 0.0
    %1799 = vmatpush2.msra.mxu0 0.0
    %1800 = vmatprep.mubr.f32.mxu0 0.0
    %1801 = vmatmul.mubr.f32.gmra.mxu0 %v1728
    %v1802 = vpop.f32.mrf.mxu0
    %v1803 = vadd.f32 0.0, %v1802
    %v1804 = vpop.f32.mrf.mxu0
    %1805 = vmatprep.mubr.f32.mxu0 0.0
    %1806 = vmatmul.mubr.f32.gmra.mxu0 %v1731
    %v1807 = vpop.f32.mrf.mxu0
    %v1808 = vadd.f32 0.0, %v1807
    %v1809 = vpop.f32.mrf.mxu0
    %1810 = vmatprep.mubr.f32.mxu0 0.0
    %1811 = vmatmul.mubr.f32.gmra.mxu0 %v1734
    %v1812 = vpop.f32.mrf.mxu0
    %v1813 = vadd.f32 0.0, %v1812
    %v1814 = vpop.f32.mrf.mxu0
    %1815 = vdwg.mxu0
    %v1816 = vadd.f32 %v1479, %v1803
    %v1817 = vadd.f32 %v1484, %v1808
    %v1818 = vadd.f32 %v1489, %v1813
    %1819 = vrot.lane.b32.xlu0 %v851, 32
    %v1820 = vpop.permute.xlu0 %1819
    %1821 = vrot.lane.b32.xlu0 %v852, 32
    %v1822 = vpop.permute.xlu0 %1821
    %1823 = vrot.lane.b32.xlu0 %v853, 32
    %v1824 = vpop.permute.xlu0 %1823
    %1825 = vrot.lane.b32.xlu0 %v724, 32
    %v1826 = vpop.permute.xlu0 %1825
    %1827 = vrot.lane.b32.xlu0 %v730, 32
    %v1828 = vpop.permute.xlu0 %1827
    %1829 = vrot.lane.b32.xlu0 %v736, 32
    %v1830 = vpop.permute.xlu0 %1829
    %v1831 = vsel %vm854, %v1820, 0
    %v1833 = vsel %vm854, %v1822, 0
    %v1835 = vsel %vm854, %v1824, 0
    %v1837 = vsel %vm854, %v1826, 0
    %v1839 = vsel %vm854, %v1828, 0
    %v1841 = vsel %vm854, %v1830, 0
    %1843 = vmatprep.subr.mxu0 0.0
    %1844 = vmatpush1.xpose.msra.mxu0 0.0
    %1845 = vmatprep.subr.mxu0 0.0
    %1846 = vmatpush1.xpose.msra.mxu0 0.0
    %1847 = vmatprep.subr.mxu0 0.0
    %1848 = vmatpush1.xpose.msra.mxu0 0.0
    %1849 = vmatprep.subr.mxu0 0.0
    %1850 = vmatpush1.xpose.msra.mxu0 0.0
    %1851 = vmatprep.subr.mxu0 0.0
    %1852 = vmatpush1.xpose.msra.mxu0 0.0
    %1853 = vmatprep.subr.mxu0 0.0
    %1854 = vmatpush1.xpose.msra.mxu0 0.0
    %1855 = vmatprep.subr.mxu0 0.0
    %1856 = vmatpush1.xpose.msra.mxu0 0.0
    %1857 = vmatprep.subr.mxu0 0.0
    %1858 = vmatpush1.xpose.msra.mxu0 0.0
    %1859 = vmatprep.subr.mxu0 0.0
    %1860 = vmatpush1.xpose.msra.mxu0 0.0
    %1861 = vmatprep.subr.mxu0 0.0
    %1862 = vmatpush1.xpose.msra.mxu0 0.0
    %1863 = vmatprep.subr.mxu0 0.0
    %1864 = vmatpush1.xpose.msra.mxu0 0.0
    %1865 = vmatprep.subr.mxu0 0.0
    %1866 = vmatpush1.xpose.msra.mxu0 0.0
    %1867 = vmatprep.subr.mxu0 0.0
    %1868 = vmatpush1.xpose.msra.mxu0 0.0
    %1869 = vmatprep.subr.mxu0 0.0
    %1870 = vmatpush1.xpose.msra.mxu0 %v1841
    %1871 = vmatprep.subr.mxu0 0.0
    %1872 = vmatpush1.xpose.msra.mxu0 %v1839
    %1873 = vmatprep.subr.mxu0 0.0
    %1874 = vmatpush1.xpose.msra.mxu0 %v1837
    %1875 = vmatprep.subr.mxu0 0.0
    %1876 = vmatpush2.xpose.msra.mxu0 0.0
    %1877 = vmatprep.subr.mxu0 0.0
    %1878 = vmatpush2.xpose.msra.mxu0 0.0
    %1879 = vmatprep.subr.mxu0 0.0
    %1880 = vmatpush2.xpose.msra.mxu0 0.0
    %1881 = vmatprep.subr.mxu0 0.0
    %1882 = vmatpush2.xpose.msra.mxu0 0.0
    %1883 = vmatprep.subr.mxu0 0.0
    %1884 = vmatpush2.xpose.msra.mxu0 0.0
    %1885 = vmatprep.subr.mxu0 0.0
    %1886 = vmatpush2.xpose.msra.mxu0 0.0
    %1887 = vmatprep.subr.mxu0 0.0
    %1888 = vmatpush2.xpose.msra.mxu0 0.0
    %1889 = vmatprep.subr.mxu0 0.0
    %1890 = vmatpush2.xpose.msra.mxu0 0.0
    %1891 = vmatprep.subr.mxu0 0.0
    %1892 = vmatpush2.xpose.msra.mxu0 0.0
    %1893 = vmatprep.subr.mxu0 0.0
    %1894 = vmatpush2.xpose.msra.mxu0 0.0
    %1895 = vmatprep.subr.mxu0 0.0
    %1896 = vmatpush2.xpose.msra.mxu0 0.0
    %1897 = vmatprep.subr.mxu0 0.0
    %1898 = vmatpush2.xpose.msra.mxu0 0.0
    %1899 = vmatprep.subr.mxu0 0.0
    %1900 = vmatpush2.xpose.msra.mxu0 0.0
    %1901 = vmatprep.subr.mxu0 0.0
    %1902 = vmatpush2.xpose.msra.mxu0 0.0
    %1903 = vmatprep.subr.mxu0 0.0
    %1904 = vmatpush2.xpose.msra.mxu0 0.0
    %1905 = vmatprep.subr.mxu0 0.0
    %1906 = vmatpush2.xpose.msra.mxu0 0.0
    %1907 = vmatprep.mubr.f32.mxu0 0.0
    %1908 = vmatmul.mubr.f32.gmra.mxu0 %v1831
    %v1909 = vpop.f32.mrf.mxu0
    %v1910 = vadd.f32 %v347, %v1909
    %v1911 = vpop.f32.mrf.mxu0
    %1912 = vmatprep.mubr.f32.mxu0 0.0
    %1913 = vmatmul.mubr.f32.gmra.mxu0 %v1833
    %v1914 = vpop.f32.mrf.mxu0
    %v1915 = vadd.f32 %v347, %v1914
    %v1916 = vpop.f32.mrf.mxu0
    %1917 = vmatprep.mubr.f32.mxu0 0.0
    %1918 = vmatmul.mubr.f32.gmra.mxu0 %v1835
    %v1919 = vpop.f32.mrf.mxu0
    %v1920 = vadd.f32 %v347, %v1919
    %v1921 = vpop.f32.mrf.mxu0
    %1922 = vdwg.mxu0
    %v1923 = vsel %vm953, %v1910, -inf
    %1924 = vmax.xlane.f32.xlu0 %v1923
    %v1925 = vpop.xlane.xlu0 %1924
    %v1926 = vsel %vm953, %v1915, -inf
    %1927 = vmax.xlane.f32.xlu0 %v1926
    %v1928 = vpop.xlane.xlu0 %1927
    %v1929 = vsel %vm953, %v1920, -inf
    %1930 = vmax.xlane.f32.xlu0 %v1929
    %v1931 = vpop.xlane.xlu0 %1930
    %v1932 = vsub.f32 %v1910, %v1925
    %v1933 = vsub.f32 %v1915, %v1928
    %v1934 = vsub.f32 %v1920, %v1931
    %v1935 = vmul.f32 %v1932, 1.442695
    %v1936 = vpow.pop %v1935
    %v1937 = vmul.f32 %v1933, 1.442695
    %v1938 = vpow.pop %v1937
    %v1939 = vmul.f32 %v1934, 1.442695
    %v1940 = vpow.pop %v1939
    %v1941 = vsel %vm953, %v1936, 0.0
    %1942 = vadd.xlane.f32.xlu0 %v1941
    %v1943 = vpop.xlane.xlu0 %1942
    %v1944 = vsel %vm953, %v1938, 0.0
    %1945 = vadd.xlane.f32.xlu0 %v1944
    %v1946 = vpop.xlane.xlu0 %1945
    %v1947 = vsel %vm953, %v1940, 0.0
    %1948 = vadd.xlane.f32.xlu0 %v1947
    %v1949 = vpop.xlane.xlu0 %1948
    %v1950 = vrcp.pop %v1943
    %v1951 = vrcp.pop %v1946
    %v1952 = vrcp.pop %v1949
    %v1953 = vmul.f32 %v1936, %v1950
    %v1954 = vmul.f32 %v1938, %v1951
    %v1955 = vmul.f32 %v1940, %v1952
    %1956 = vrot.lane.b32.xlu0 %v823, 32
    %v1957 = vpop.permute.xlu0 %1956
    %1958 = vrot.lane.b32.xlu0 %v828, 32
    %v1959 = vpop.permute.xlu0 %1958
    %1960 = vrot.lane.b32.xlu0 %v833, 32
    %v1961 = vpop.permute.xlu0 %1960
    %v1966 = vsel %vm953, %v1953, 0
    %v1969 = vsel %vm953, %v1954, 0
    %v1972 = vsel %vm953, %v1955, 0
    %1974 = vmatprep.subr.mxu0 0.0
    %1975 = vmatpush1.msra.mxu0 0.0
    %1976 = vmatprep.subr.mxu0 0.0
    %1977 = vmatpush1.msra.mxu0 0.0
    %1978 = vmatprep.subr.mxu0 0.0
    %1979 = vmatpush1.msra.mxu0 0.0
    %1980 = vmatprep.subr.mxu0 0.0
    %1981 = vmatpush1.msra.mxu0 0.0
    %1982 = vmatprep.subr.mxu0 0.0
    %1983 = vmatpush1.msra.mxu0 0.0
    %1984 = vmatprep.subr.mxu0 0.0
    %1985 = vmatpush1.msra.mxu0 0.0
    %1986 = vmatprep.subr.mxu0 0.0
    %1987 = vmatpush1.msra.mxu0 0.0
    %1988 = vmatprep.subr.mxu0 0.0
    %1989 = vmatpush1.msra.mxu0 0.0
    %1990 = vmatprep.subr.mxu0 0.0
    %1991 = vmatpush1.msra.mxu0 0.0
    %1992 = vmatprep.subr.mxu0 0.0
    %1993 = vmatpush1.msra.mxu0 0.0
    %1994 = vmatprep.subr.mxu0 0.0
    %1995 = vmatpush1.msra.mxu0 0.0
    %1996 = vmatprep.subr.mxu0 0.0
    %1997 = vmatpush1.msra.mxu0 0.0
    %1998 = vmatprep.subr.mxu0 0.0
    %1999 = vmatpush1.msra.mxu0 0.0
    %2000 = vmatprep.subr.mxu0 0.0
    %2001 = vmatpush1.msra.mxu0 %v1961
    %2002 = vmatprep.subr.mxu0 0.0
    %2003 = vmatpush1.msra.mxu0 %v1959
    %2004 = vmatprep.subr.mxu0 0.0
    %2005 = vmatpush1.msra.mxu0 %v1957
    %2006 = vmatprep.subr.mxu0 0.0
    %2007 = vmatpush2.msra.mxu0 0.0
    %2008 = vmatprep.subr.mxu0 0.0
    %2009 = vmatpush2.msra.mxu0 0.0
    %2010 = vmatprep.subr.mxu0 0.0
    %2011 = vmatpush2.msra.mxu0 0.0
    %2012 = vmatprep.subr.mxu0 0.0
    %2013 = vmatpush2.msra.mxu0 0.0
    %2014 = vmatprep.subr.mxu0 0.0
    %2015 = vmatpush2.msra.mxu0 0.0
    %2016 = vmatprep.subr.mxu0 0.0
    %2017 = vmatpush2.msra.mxu0 0.0
    %2018 = vmatprep.subr.mxu0 0.0
    %2019 = vmatpush2.msra.mxu0 0.0
    %2020 = vmatprep.subr.mxu0 0.0
    %2021 = vmatpush2.msra.mxu0 0.0
    %2022 = vmatprep.subr.mxu0 0.0
    %2023 = vmatpush2.msra.mxu0 0.0
    %2024 = vmatprep.subr.mxu0 0.0
    %2025 = vmatpush2.msra.mxu0 0.0
    %2026 = vmatprep.subr.mxu0 0.0
    %2027 = vmatpush2.msra.mxu0 0.0
    %2028 = vmatprep.subr.mxu0 0.0
    %2029 = vmatpush2.msra.mxu0 0.0
    %2030 = vmatprep.subr.mxu0 0.0
    %2031 = vmatpush2.msra.mxu0 0.0
    %2032 = vmatprep.subr.mxu0 0.0
    %2033 = vmatpush2.msra.mxu0 0.0
    %2034 = vmatprep.subr.mxu0 0.0
    %2035 = vmatpush2.msra.mxu0 0.0
    %2036 = vmatprep.subr.mxu0 0.0
    %2037 = vmatpush2.msra.mxu0 0.0
    %2038 = vmatprep.mubr.f32.mxu0 0.0
    %2039 = vmatmul.mubr.f32.gmra.mxu0 %v1966
    %v2040 = vpop.f32.mrf.mxu0
    %v2041 = vadd.f32 0.0, %v2040
    %v2042 = vpop.f32.mrf.mxu0
    %2043 = vmatprep.mubr.f32.mxu0 0.0
    %2044 = vmatmul.mubr.f32.gmra.mxu0 %v1969
    %v2045 = vpop.f32.mrf.mxu0
    %v2046 = vadd.f32 0.0, %v2045
    %v2047 = vpop.f32.mrf.mxu0
    %2048 = vmatprep.mubr.f32.mxu0 0.0
    %2049 = vmatmul.mubr.f32.gmra.mxu0 %v1972
    %v2050 = vpop.f32.mrf.mxu0
    %v2051 = vadd.f32 0.0, %v2050
    %v2052 = vpop.f32.mrf.mxu0
    %2053 = vdwg.mxu0
    %v2055 = vsel %vm854, %v2041, 0
    %v2058 = vsel %vm854, %v2046, 0
    %v2061 = vsel %vm854, %v2051, 0
    %2063 = vmatprep.subr.mxu0 0.0
    %2064 = vmatpush1.msra.mxu0 0.0
    %2065 = vmatprep.subr.mxu0 0.0
    %2066 = vmatpush1.msra.mxu0 0.0
    %2067 = vmatprep.subr.mxu0 0.0
    %2068 = vmatpush1.msra.mxu0 0.0
    %2069 = vmatprep.subr.mxu0 0.0
    %2070 = vmatpush1.msra.mxu0 0.0
    %2071 = vmatprep.subr.mxu0 0.0
    %2072 = vmatpush1.msra.mxu0 0.0
    %2073 = vmatprep.subr.mxu0 0.0
    %2074 = vmatpush1.msra.mxu0 0.0
    %2075 = vmatprep.subr.mxu0 0.0
    %2076 = vmatpush1.msra.mxu0 0.0
    %2077 = vmatprep.subr.mxu0 0.0
    %2078 = vmatpush1.msra.mxu0 0.0
    %2079 = vmatprep.subr.mxu0 0.0
    %2080 = vmatpush1.msra.mxu0 0.0
    %2081 = vmatprep.subr.mxu0 0.0
    %2082 = vmatpush1.msra.mxu0 0.0
    %2083 = vmatprep.subr.mxu0 0.0
    %2084 = vmatpush1.msra.mxu0 0.0
    %2085 = vmatprep.subr.mxu0 0.0
    %2086 = vmatpush1.msra.mxu0 0.0
    %2087 = vmatprep.subr.mxu0 0.0
    %2088 = vmatpush1.msra.mxu0 %v414
    %2089 = vmatprep.subr.mxu0 0.0
    %2090 = vmatpush1.msra.mxu0 %v413
    %2091 = vmatprep.subr.mxu0 0.0
    %2092 = vmatpush1.msra.mxu0 %v412
    %2093 = vmatprep.subr.mxu0 0.0
    %2094 = vmatpush1.msra.mxu0 %v411
    %2095 = vmatprep.subr.mxu0 0.0
    %2096 = vmatpush2.msra.mxu0 0.0
    %2097 = vmatprep.subr.mxu0 0.0
    %2098 = vmatpush2.msra.mxu0 0.0
    %2099 = vmatprep.subr.mxu0 0.0
    %2100 = vmatpush2.msra.mxu0 0.0
    %2101 = vmatprep.subr.mxu0 0.0
    %2102 = vmatpush2.msra.mxu0 0.0
    %2103 = vmatprep.subr.mxu0 0.0
    %2104 = vmatpush2.msra.mxu0 0.0
    %2105 = vmatprep.subr.mxu0 0.0
    %2106 = vmatpush2.msra.mxu0 0.0
    %2107 = vmatprep.subr.mxu0 0.0
    %2108 = vmatpush2.msra.mxu0 0.0
    %2109 = vmatprep.subr.mxu0 0.0
    %2110 = vmatpush2.msra.mxu0 0.0
    %2111 = vmatprep.subr.mxu0 0.0
    %2112 = vmatpush2.msra.mxu0 0.0
    %2113 = vmatprep.subr.mxu0 0.0
    %2114 = vmatpush2.msra.mxu0 0.0
    %2115 = vmatprep.subr.mxu0 0.0
    %2116 = vmatpush2.msra.mxu0 0.0
    %2117 = vmatprep.subr.mxu0 0.0
    %2118 = vmatpush2.msra.mxu0 0.0
    %2119 = vmatprep.subr.mxu0 0.0
    %2120 = vmatpush2.msra.mxu0 0.0
    %2121 = vmatprep.subr.mxu0 0.0
    %2122 = vmatpush2.msra.mxu0 0.0
    %2123 = vmatprep.subr.mxu0 0.0
    %2124 = vmatpush2.msra.mxu0 0.0
    %2125 = vmatprep.subr.mxu0 0.0
    %2126 = vmatpush2.msra.mxu0 0.0
    %2127 = vmatprep.mubr.f32.mxu0 0.0
    %2128 = vmatmul.mubr.f32.gmra.mxu0 %v2055
    %v2129 = vpop.f32.mrf.mxu0
    %v2130 = vadd.f32 0.0, %v2129
    %v2131 = vpop.f32.mrf.mxu0
    %2132 = vmatprep.mubr.f32.mxu0 0.0
    %2133 = vmatmul.mubr.f32.gmra.mxu0 %v2058
    %v2134 = vpop.f32.mrf.mxu0
    %v2135 = vadd.f32 0.0, %v2134
    %v2136 = vpop.f32.mrf.mxu0
    %2137 = vmatprep.mubr.f32.mxu0 0.0
    %2138 = vmatmul.mubr.f32.gmra.mxu0 %v2061
    %v2139 = vpop.f32.mrf.mxu0
    %v2140 = vadd.f32 0.0, %v2139
    %v2141 = vpop.f32.mrf.mxu0
    %2142 = vdwg.mxu0
    %v2143 = vadd.f32 %v1816, %v2130
    %v2144 = vadd.f32 %v1817, %v2135
    %v2145 = vadd.f32 %v1818, %v2140
    %v2146 = vmul.f32 %v740, 0.17677669
    %v2147 = vmul.f32 %v746, 0.17677669
    %v2148 = vmul.f32 %v752, 0.17677669
    %v2150 = vsel %vm854, %v2146, 0
    %v2153 = vsel %vm854, %v2147, 0
    %v2156 = vsel %vm854, %v2148, 0
    %v2159 = vsel %vm854, %v742, 0
    %v2162 = vsel %vm854, %v748, 0
    %v2165 = vsel %vm854, %v754, 0
    %2167 = vmatprep.subr.mxu0 0.0
    %2168 = vmatpush1.xpose.msra.mxu0 0.0
    %2169 = vmatprep.subr.mxu0 0.0
    %2170 = vmatpush1.xpose.msra.mxu0 0.0
    %2171 = vmatprep.subr.mxu0 0.0
    %2172 = vmatpush1.xpose.msra.mxu0 0.0
    %2173 = vmatprep.subr.mxu0 0.0
    %2174 = vmatpush1.xpose.msra.mxu0 0.0
    %2175 = vmatprep.subr.mxu0 0.0
    %2176 = vmatpush1.xpose.msra.mxu0 0.0
    %2177 = vmatprep.subr.mxu0 0.0
    %2178 = vmatpush1.xpose.msra.mxu0 0.0
    %2179 = vmatprep.subr.mxu0 0.0
    %2180 = vmatpush1.xpose.msra.mxu0 0.0
    %2181 = vmatprep.subr.mxu0 0.0
    %2182 = vmatpush1.xpose.msra.mxu0 0.0
    %2183 = vmatprep.subr.mxu0 0.0
    %2184 = vmatpush1.xpose.msra.mxu0 0.0
    %2185 = vmatprep.subr.mxu0 0.0
    %2186 = vmatpush1.xpose.msra.mxu0 0.0
    %2187 = vmatprep.subr.mxu0 0.0
    %2188 = vmatpush1.xpose.msra.mxu0 0.0
    %2189 = vmatprep.subr.mxu0 0.0
    %2190 = vmatpush1.xpose.msra.mxu0 0.0
    %2191 = vmatprep.subr.mxu0 0.0
    %2192 = vmatpush1.xpose.msra.mxu0 0.0
    %2193 = vmatprep.subr.mxu0 0.0
    %2194 = vmatpush1.xpose.msra.mxu0 %v2165
    %2195 = vmatprep.subr.mxu0 0.0
    %2196 = vmatpush1.xpose.msra.mxu0 %v2162
    %2197 = vmatprep.subr.mxu0 0.0
    %2198 = vmatpush1.xpose.msra.mxu0 %v2159
    %2199 = vmatprep.subr.mxu0 0.0
    %2200 = vmatpush2.xpose.msra.mxu0 0.0
    %2201 = vmatprep.subr.mxu0 0.0
    %2202 = vmatpush2.xpose.msra.mxu0 0.0
    %2203 = vmatprep.subr.mxu0 0.0
    %2204 = vmatpush2.xpose.msra.mxu0 0.0
    %2205 = vmatprep.subr.mxu0 0.0
    %2206 = vmatpush2.xpose.msra.mxu0 0.0
    %2207 = vmatprep.subr.mxu0 0.0
    %2208 = vmatpush2.xpose.msra.mxu0 0.0
    %2209 = vmatprep.subr.mxu0 0.0
    %2210 = vmatpush2.xpose.msra.mxu0 0.0
    %2211 = vmatprep.subr.mxu0 0.0
    %2212 = vmatpush2.xpose.msra.mxu0 0.0
    %2213 = vmatprep.subr.mxu0 0.0
    %2214 = vmatpush2.xpose.msra.mxu0 0.0
    %2215 = vmatprep.subr.mxu0 0.0
    %2216 = vmatpush2.xpose.msra.mxu0 0.0
    %2217 = vmatprep.subr.mxu0 0.0
    %2218 = vmatpush2.xpose.msra.mxu0 0.0
    %2219 = vmatprep.subr.mxu0 0.0
    %2220 = vmatpush2.xpose.msra.mxu0 0.0
    %2221 = vmatprep.subr.mxu0 0.0
    %2222 = vmatpush2.xpose.msra.mxu0 0.0
    %2223 = vmatprep.subr.mxu0 0.0
    %2224 = vmatpush2.xpose.msra.mxu0 0.0
    %2225 = vmatprep.subr.mxu0 0.0
    %2226 = vmatpush2.xpose.msra.mxu0 0.0
    %2227 = vmatprep.subr.mxu0 0.0
    %2228 = vmatpush2.xpose.msra.mxu0 0.0
    %2229 = vmatprep.subr.mxu0 0.0
    %2230 = vmatpush2.xpose.msra.mxu0 0.0
    %2231 = vmatprep.mubr.f32.mxu0 0.0
    %2232 = vmatmul.mubr.f32.gmra.mxu0 %v2150
    %v2233 = vpop.f32.mrf.mxu0
    %v2234 = vadd.f32 %v347, %v2233
    %v2235 = vpop.f32.mrf.mxu0
    %2236 = vmatprep.mubr.f32.mxu0 0.0
    %2237 = vmatmul.mubr.f32.gmra.mxu0 %v2153
    %v2238 = vpop.f32.mrf.mxu0
    %v2239 = vadd.f32 %v347, %v2238
    %v2240 = vpop.f32.mrf.mxu0
    %2241 = vmatprep.mubr.f32.mxu0 0.0
    %2242 = vmatmul.mubr.f32.gmra.mxu0 %v2156
    %v2243 = vpop.f32.mrf.mxu0
    %v2244 = vadd.f32 %v347, %v2243
    %v2245 = vpop.f32.mrf.mxu0
    %2246 = vdwg.mxu0
    %v2247 = vsel %vm953, %v2234, -inf
    %2248 = vmax.xlane.f32.xlu0 %v2247
    %v2249 = vpop.xlane.xlu0 %2248
    %v2250 = vsel %vm953, %v2239, -inf
    %2251 = vmax.xlane.f32.xlu0 %v2250
    %v2252 = vpop.xlane.xlu0 %2251
    %v2253 = vsel %vm953, %v2244, -inf
    %2254 = vmax.xlane.f32.xlu0 %v2253
    %v2255 = vpop.xlane.xlu0 %2254
    %v2256 = vsub.f32 %v2234, %v2249
    %v2257 = vsub.f32 %v2239, %v2252
    %v2258 = vsub.f32 %v2244, %v2255
    %v2259 = vmul.f32 %v2256, 1.442695
    %v2260 = vpow.pop %v2259
    %v2261 = vmul.f32 %v2257, 1.442695
    %v2262 = vpow.pop %v2261
    %v2263 = vmul.f32 %v2258, 1.442695
    %v2264 = vpow.pop %v2263
    %v2265 = vsel %vm953, %v2260, 0.0
    %2266 = vadd.xlane.f32.xlu0 %v2265
    %v2267 = vpop.xlane.xlu0 %2266
    %v2268 = vsel %vm953, %v2262, 0.0
    %2269 = vadd.xlane.f32.xlu0 %v2268
    %v2270 = vpop.xlane.xlu0 %2269
    %v2271 = vsel %vm953, %v2264, 0.0
    %2272 = vadd.xlane.f32.xlu0 %v2271
    %v2273 = vpop.xlane.xlu0 %2272
    %v2274 = vrcp.pop %v2267
    %v2275 = vrcp.pop %v2270
    %v2276 = vrcp.pop %v2273
    %v2277 = vmul.f32 %v2260, %v2274
    %v2278 = vmul.f32 %v2262, %v2275
    %v2279 = vmul.f32 %v2264, %v2276
    %v2281 = vsel %vm953, %v2277, 0
    %v2284 = vsel %vm953, %v2278, 0
    %v2287 = vsel %vm953, %v2279, 0
    %2289 = vmatprep.subr.mxu0 0.0
    %2290 = vmatpush1.msra.mxu0 0.0
    %2291 = vmatprep.subr.mxu0 0.0
    %2292 = vmatpush1.msra.mxu0 0.0
    %2293 = vmatprep.subr.mxu0 0.0
    %2294 = vmatpush1.msra.mxu0 0.0
    %2295 = vmatprep.subr.mxu0 0.0
    %2296 = vmatpush1.msra.mxu0 0.0
    %2297 = vmatprep.subr.mxu0 0.0
    %2298 = vmatpush1.msra.mxu0 0.0
    %2299 = vmatprep.subr.mxu0 0.0
    %2300 = vmatpush1.msra.mxu0 0.0
    %2301 = vmatprep.subr.mxu0 0.0
    %2302 = vmatpush1.msra.mxu0 0.0
    %2303 = vmatprep.subr.mxu0 0.0
    %2304 = vmatpush1.msra.mxu0 0.0
    %2305 = vmatprep.subr.mxu0 0.0
    %2306 = vmatpush1.msra.mxu0 0.0
    %2307 = vmatprep.subr.mxu0 0.0
    %2308 = vmatpush1.msra.mxu0 0.0
    %2309 = vmatprep.subr.mxu0 0.0
    %2310 = vmatpush1.msra.mxu0 0.0
    %2311 = vmatprep.subr.mxu0 0.0
    %2312 = vmatpush1.msra.mxu0 0.0
    %2313 = vmatprep.subr.mxu0 0.0
    %2314 = vmatpush1.msra.mxu0 0.0
    %2315 = vmatprep.subr.mxu0 0.0
    %2316 = vmatpush1.msra.mxu0 %v848
    %2317 = vmatprep.subr.mxu0 0.0
    %2318 = vmatpush1.msra.mxu0 %v843
    %2319 = vmatprep.subr.mxu0 0.0
    %2320 = vmatpush1.msra.mxu0 %v838
    %2321 = vmatprep.subr.mxu0 0.0
    %2322 = vmatpush2.msra.mxu0 0.0
    %2323 = vmatprep.subr.mxu0 0.0
    %2324 = vmatpush2.msra.mxu0 0.0
    %2325 = vmatprep.subr.mxu0 0.0
    %2326 = vmatpush2.msra.mxu0 0.0
    %2327 = vmatprep.subr.mxu0 0.0
    %2328 = vmatpush2.msra.mxu0 0.0
    %2329 = vmatprep.subr.mxu0 0.0
    %2330 = vmatpush2.msra.mxu0 0.0
    %2331 = vmatprep.subr.mxu0 0.0
    %2332 = vmatpush2.msra.mxu0 0.0
    %2333 = vmatprep.subr.mxu0 0.0
    %2334 = vmatpush2.msra.mxu0 0.0
    %2335 = vmatprep.subr.mxu0 0.0
    %2336 = vmatpush2.msra.mxu0 0.0
    %2337 = vmatprep.subr.mxu0 0.0
    %2338 = vmatpush2.msra.mxu0 0.0
    %2339 = vmatprep.subr.mxu0 0.0
    %2340 = vmatpush2.msra.mxu0 0.0
    %2341 = vmatprep.subr.mxu0 0.0
    %2342 = vmatpush2.msra.mxu0 0.0
    %2343 = vmatprep.subr.mxu0 0.0
    %2344 = vmatpush2.msra.mxu0 0.0
    %2345 = vmatprep.subr.mxu0 0.0
    %2346 = vmatpush2.msra.mxu0 0.0
    %2347 = vmatprep.subr.mxu0 0.0
    %2348 = vmatpush2.msra.mxu0 0.0
    %2349 = vmatprep.subr.mxu0 0.0
    %2350 = vmatpush2.msra.mxu0 0.0
    %2351 = vmatprep.subr.mxu0 0.0
    %2352 = vmatpush2.msra.mxu0 0.0
    %2353 = vmatprep.mubr.f32.mxu0 0.0
    %2354 = vmatmul.mubr.f32.gmra.mxu0 %v2281
    %v2355 = vpop.f32.mrf.mxu0
    %v2356 = vadd.f32 0.0, %v2355
    %v2357 = vpop.f32.mrf.mxu0
    %2358 = vmatprep.mubr.f32.mxu0 0.0
    %2359 = vmatmul.mubr.f32.gmra.mxu0 %v2284
    %v2360 = vpop.f32.mrf.mxu0
    %v2361 = vadd.f32 0.0, %v2360
    %v2362 = vpop.f32.mrf.mxu0
    %2363 = vmatprep.mubr.f32.mxu0 0.0
    %2364 = vmatmul.mubr.f32.gmra.mxu0 %v2287
    %v2365 = vpop.f32.mrf.mxu0
    %v2366 = vadd.f32 0.0, %v2365
    %v2367 = vpop.f32.mrf.mxu0
    %2368 = vdwg.mxu0
    %2369 = vrot.lane.b32.xlu0 %v2146, 96
    %v2370 = vpop.permute.xlu0 %2369
    %2371 = vrot.lane.b32.xlu0 %v2147, 96
    %v2372 = vpop.permute.xlu0 %2371
    %2373 = vrot.lane.b32.xlu0 %v2148, 96
    %v2374 = vpop.permute.xlu0 %2373
    %2375 = vrot.lane.b32.xlu0 %v742, 96
    %v2376 = vpop.permute.xlu0 %2375
    %2377 = vrot.lane.b32.xlu0 %v748, 96
    %v2378 = vpop.permute.xlu0 %2377
    %2379 = vrot.lane.b32.xlu0 %v754, 96
    %v2380 = vpop.permute.xlu0 %2379
    %v2381 = vsel %vm854, %v2370, 0
    %v2383 = vsel %vm854, %v2372, 0
    %v2385 = vsel %vm854, %v2374, 0
    %v2387 = vsel %vm854, %v2376, 0
    %v2389 = vsel %vm854, %v2378, 0
    %v2391 = vsel %vm854, %v2380, 0
    %2393 = vmatprep.subr.mxu0 0.0
    %2394 = vmatpush1.xpose.msra.mxu0 0.0
    %2395 = vmatprep.subr.mxu0 0.0
    %2396 = vmatpush1.xpose.msra.mxu0 0.0
    %2397 = vmatprep.subr.mxu0 0.0
    %2398 = vmatpush1.xpose.msra.mxu0 0.0
    %2399 = vmatprep.subr.mxu0 0.0
    %2400 = vmatpush1.xpose.msra.mxu0 0.0
    %2401 = vmatprep.subr.mxu0 0.0
    %2402 = vmatpush1.xpose.msra.mxu0 0.0
    %2403 = vmatprep.subr.mxu0 0.0
    %2404 = vmatpush1.xpose.msra.mxu0 0.0
    %2405 = vmatprep.subr.mxu0 0.0
    %2406 = vmatpush1.xpose.msra.mxu0 0.0
    %2407 = vmatprep.subr.mxu0 0.0
    %2408 = vmatpush1.xpose.msra.mxu0 0.0
    %2409 = vmatprep.subr.mxu0 0.0
    %2410 = vmatpush1.xpose.msra.mxu0 0.0
    %2411 = vmatprep.subr.mxu0 0.0
    %2412 = vmatpush1.xpose.msra.mxu0 0.0
    %2413 = vmatprep.subr.mxu0 0.0
    %2414 = vmatpush1.xpose.msra.mxu0 0.0
    %2415 = vmatprep.subr.mxu0 0.0
    %2416 = vmatpush1.xpose.msra.mxu0 0.0
    %2417 = vmatprep.subr.mxu0 0.0
    %2418 = vmatpush1.xpose.msra.mxu0 0.0
    %2419 = vmatprep.subr.mxu0 0.0
    %2420 = vmatpush1.xpose.msra.mxu0 %v2391
    %2421 = vmatprep.subr.mxu0 0.0
    %2422 = vmatpush1.xpose.msra.mxu0 %v2389
    %2423 = vmatprep.subr.mxu0 0.0
    %2424 = vmatpush1.xpose.msra.mxu0 %v2387
    %2425 = vmatprep.subr.mxu0 0.0
    %2426 = vmatpush2.xpose.msra.mxu0 0.0
    %2427 = vmatprep.subr.mxu0 0.0
    %2428 = vmatpush2.xpose.msra.mxu0 0.0
    %2429 = vmatprep.subr.mxu0 0.0
    %2430 = vmatpush2.xpose.msra.mxu0 0.0
    %2431 = vmatprep.subr.mxu0 0.0
    %2432 = vmatpush2.xpose.msra.mxu0 0.0
    %2433 = vmatprep.subr.mxu0 0.0
    %2434 = vmatpush2.xpose.msra.mxu0 0.0
    %2435 = vmatprep.subr.mxu0 0.0
    %2436 = vmatpush2.xpose.msra.mxu0 0.0
    %2437 = vmatprep.subr.mxu0 0.0
    %2438 = vmatpush2.xpose.msra.mxu0 0.0
    %2439 = vmatprep.subr.mxu0 0.0
    %2440 = vmatpush2.xpose.msra.mxu0 0.0
    %2441 = vmatprep.subr.mxu0 0.0
    %2442 = vmatpush2.xpose.msra.mxu0 0.0
    %2443 = vmatprep.subr.mxu0 0.0
    %2444 = vmatpush2.xpose.msra.mxu0 0.0
    %2445 = vmatprep.subr.mxu0 0.0
    %2446 = vmatpush2.xpose.msra.mxu0 0.0
    %2447 = vmatprep.subr.mxu0 0.0
    %2448 = vmatpush2.xpose.msra.mxu0 0.0
    %2449 = vmatprep.subr.mxu0 0.0
    %2450 = vmatpush2.xpose.msra.mxu0 0.0
    %2451 = vmatprep.subr.mxu0 0.0
    %2452 = vmatpush2.xpose.msra.mxu0 0.0
    %2453 = vmatprep.subr.mxu0 0.0
    %2454 = vmatpush2.xpose.msra.mxu0 0.0
    %2455 = vmatprep.subr.mxu0 0.0
    %2456 = vmatpush2.xpose.msra.mxu0 0.0
    %2457 = vmatprep.mubr.f32.mxu0 0.0
    %2458 = vmatmul.mubr.f32.gmra.mxu0 %v2381
    %v2459 = vpop.f32.mrf.mxu0
    %v2460 = vadd.f32 %v347, %v2459
    %v2461 = vpop.f32.mrf.mxu0
    %2462 = vmatprep.mubr.f32.mxu0 0.0
    %2463 = vmatmul.mubr.f32.gmra.mxu0 %v2383
    %v2464 = vpop.f32.mrf.mxu0
    %v2465 = vadd.f32 %v347, %v2464
    %v2466 = vpop.f32.mrf.mxu0
    %2467 = vmatprep.mubr.f32.mxu0 0.0
    %2468 = vmatmul.mubr.f32.gmra.mxu0 %v2385
    %v2469 = vpop.f32.mrf.mxu0
    %v2470 = vadd.f32 %v347, %v2469
    %v2471 = vpop.f32.mrf.mxu0
    %2472 = vdwg.mxu0
    %v2473 = vsel %vm953, %v2460, -inf
    %2474 = vmax.xlane.f32.xlu0 %v2473
    %v2475 = vpop.xlane.xlu0 %2474
    %v2476 = vsel %vm953, %v2465, -inf
    %2477 = vmax.xlane.f32.xlu0 %v2476
    %v2478 = vpop.xlane.xlu0 %2477
    %v2479 = vsel %vm953, %v2470, -inf
    %2480 = vmax.xlane.f32.xlu0 %v2479
    %v2481 = vpop.xlane.xlu0 %2480
    %v2482 = vsub.f32 %v2460, %v2475
    %v2483 = vsub.f32 %v2465, %v2478
    %v2484 = vsub.f32 %v2470, %v2481
    %v2485 = vmul.f32 %v2482, 1.442695
    %v2486 = vpow.pop %v2485
    %v2487 = vmul.f32 %v2483, 1.442695
    %v2488 = vpow.pop %v2487
    %v2489 = vmul.f32 %v2484, 1.442695
    %v2490 = vpow.pop %v2489
    %v2491 = vsel %vm953, %v2486, 0.0
    %2492 = vadd.xlane.f32.xlu0 %v2491
    %v2493 = vpop.xlane.xlu0 %2492
    %v2494 = vsel %vm953, %v2488, 0.0
    %2495 = vadd.xlane.f32.xlu0 %v2494
    %v2496 = vpop.xlane.xlu0 %2495
    %v2497 = vsel %vm953, %v2490, 0.0
    %2498 = vadd.xlane.f32.xlu0 %v2497
    %v2499 = vpop.xlane.xlu0 %2498
    %v2500 = vrcp.pop %v2493
    %v2501 = vrcp.pop %v2496
    %v2502 = vrcp.pop %v2499
    %v2503 = vmul.f32 %v2486, %v2500
    %v2504 = vmul.f32 %v2488, %v2501
    %v2505 = vmul.f32 %v2490, %v2502
    %2509 = vrot.lane.b32.xlu0 %v838, 96
    %v2510 = vpop.permute.xlu0 %2509
    %2511 = vrot.lane.b32.xlu0 %v843, 96
    %v2512 = vpop.permute.xlu0 %2511
    %2513 = vrot.lane.b32.xlu0 %v848, 96
    %v2514 = vpop.permute.xlu0 %2513
    %v2519 = vsel %vm953, %v2503, 0
    %v2522 = vsel %vm953, %v2504, 0
    %v2525 = vsel %vm953, %v2505, 0
    %2527 = vmatprep.subr.mxu0 0.0
    %2528 = vmatpush1.msra.mxu0 0.0
    %2529 = vmatprep.subr.mxu0 0.0
    %2530 = vmatpush1.msra.mxu0 0.0
    %2531 = vmatprep.subr.mxu0 0.0
    %2532 = vmatpush1.msra.mxu0 0.0
    %2533 = vmatprep.subr.mxu0 0.0
    %2534 = vmatpush1.msra.mxu0 0.0
    %2535 = vmatprep.subr.mxu0 0.0
    %2536 = vmatpush1.msra.mxu0 0.0
    %2537 = vmatprep.subr.mxu0 0.0
    %2538 = vmatpush1.msra.mxu0 0.0
    %2539 = vmatprep.subr.mxu0 0.0
    %2540 = vmatpush1.msra.mxu0 0.0
    %2541 = vmatprep.subr.mxu0 0.0
    %2542 = vmatpush1.msra.mxu0 0.0
    %2543 = vmatprep.subr.mxu0 0.0
    %2544 = vmatpush1.msra.mxu0 0.0
    %2545 = vmatprep.subr.mxu0 0.0
    %2546 = vmatpush1.msra.mxu0 0.0
    %2547 = vmatprep.subr.mxu0 0.0
    %2548 = vmatpush1.msra.mxu0 0.0
    %2549 = vmatprep.subr.mxu0 0.0
    %2550 = vmatpush1.msra.mxu0 0.0
    %2551 = vmatprep.subr.mxu0 0.0
    %2552 = vmatpush1.msra.mxu0 0.0
    %2553 = vmatprep.subr.mxu0 0.0
    %2554 = vmatpush1.msra.mxu0 %v2514
    %2555 = vmatprep.subr.mxu0 0.0
    %2556 = vmatpush1.msra.mxu0 %v2512
    %2557 = vmatprep.subr.mxu0 0.0
    %2558 = vmatpush1.msra.mxu0 %v2510
    %2559 = vmatprep.subr.mxu0 0.0
    %2560 = vmatpush2.msra.mxu0 0.0
    %2561 = vmatprep.subr.mxu0 0.0
    %2562 = vmatpush2.msra.mxu0 0.0
    %2563 = vmatprep.subr.mxu0 0.0
    %2564 = vmatpush2.msra.mxu0 0.0
    %2565 = vmatprep.subr.mxu0 0.0
    %2566 = vmatpush2.msra.mxu0 0.0
    %2567 = vmatprep.subr.mxu0 0.0
    %2568 = vmatpush2.msra.mxu0 0.0
    %2569 = vmatprep.subr.mxu0 0.0
    %2570 = vmatpush2.msra.mxu0 0.0
    %2571 = vmatprep.subr.mxu0 0.0
    %2572 = vmatpush2.msra.mxu0 0.0
    %2573 = vmatprep.subr.mxu0 0.0
    %2574 = vmatpush2.msra.mxu0 0.0
    %2575 = vmatprep.subr.mxu0 0.0
    %2576 = vmatpush2.msra.mxu0 0.0
    %2577 = vmatprep.subr.mxu0 0.0
    %2578 = vmatpush2.msra.mxu0 0.0
    %2579 = vmatprep.subr.mxu0 0.0
    %2580 = vmatpush2.msra.mxu0 0.0
    %2581 = vmatprep.subr.mxu0 0.0
    %2582 = vmatpush2.msra.mxu0 0.0
    %2583 = vmatprep.subr.mxu0 0.0
    %2584 = vmatpush2.msra.mxu0 0.0
    %2585 = vmatprep.subr.mxu0 0.0
    %2586 = vmatpush2.msra.mxu0 0.0
    %2587 = vmatprep.subr.mxu0 0.0
    %2588 = vmatpush2.msra.mxu0 0.0
    %2589 = vmatprep.subr.mxu0 0.0
    %2590 = vmatpush2.msra.mxu0 0.0
    %2591 = vmatprep.mubr.f32.mxu0 0.0
    %2592 = vmatmul.mubr.f32.gmra.mxu0 %v2519
    %v2593 = vpop.f32.mrf.mxu0
    %v2594 = vadd.f32 0.0, %v2593
    %v2595 = vpop.f32.mrf.mxu0
    %2596 = vmatprep.mubr.f32.mxu0 0.0
    %2597 = vmatmul.mubr.f32.gmra.mxu0 %v2522
    %v2598 = vpop.f32.mrf.mxu0
    %v2599 = vadd.f32 0.0, %v2598
    %v2600 = vpop.f32.mrf.mxu0
    %2601 = vmatprep.mubr.f32.mxu0 0.0
    %2602 = vmatmul.mubr.f32.gmra.mxu0 %v2525
    %v2603 = vpop.f32.mrf.mxu0
    %v2604 = vadd.f32 0.0, %v2603
    %v2605 = vpop.f32.mrf.mxu0
    %2606 = vdwg.mxu0
    %v2608 = vsel %vm854, %v2594, 0
    %v2611 = vsel %vm854, %v2599, 0
    %v2614 = vsel %vm854, %v2604, 0
    %2616 = vmatprep.subr.mxu0 0.0
    %2617 = vmatpush1.msra.mxu0 0.0
    %2618 = vmatprep.subr.mxu0 0.0
    %2619 = vmatpush1.msra.mxu0 0.0
    %2620 = vmatprep.subr.mxu0 0.0
    %2621 = vmatpush1.msra.mxu0 0.0
    %2622 = vmatprep.subr.mxu0 0.0
    %2623 = vmatpush1.msra.mxu0 0.0
    %2624 = vmatprep.subr.mxu0 0.0
    %2625 = vmatpush1.msra.mxu0 0.0
    %2626 = vmatprep.subr.mxu0 0.0
    %2627 = vmatpush1.msra.mxu0 0.0
    %2628 = vmatprep.subr.mxu0 0.0
    %2629 = vmatpush1.msra.mxu0 0.0
    %2630 = vmatprep.subr.mxu0 0.0
    %2631 = vmatpush1.msra.mxu0 0.0
    %2632 = vmatprep.subr.mxu0 0.0
    %2633 = vmatpush1.msra.mxu0 0.0
    %2634 = vmatprep.subr.mxu0 0.0
    %2635 = vmatpush1.msra.mxu0 0.0
    %2636 = vmatprep.subr.mxu0 0.0
    %2637 = vmatpush1.msra.mxu0 0.0
    %2638 = vmatprep.subr.mxu0 0.0
    %2639 = vmatpush1.msra.mxu0 0.0
    %2640 = vmatprep.subr.mxu0 0.0
    %2641 = vmatpush1.msra.mxu0 %v406
    %2642 = vmatprep.subr.mxu0 0.0
    %2643 = vmatpush1.msra.mxu0 %v405
    %2644 = vmatprep.subr.mxu0 0.0
    %2645 = vmatpush1.msra.mxu0 %v404
    %2646 = vmatprep.subr.mxu0 0.0
    %2647 = vmatpush1.msra.mxu0 %v403
    %2648 = vmatprep.subr.mxu0 0.0
    %2649 = vmatpush2.msra.mxu0 0.0
    %2650 = vmatprep.subr.mxu0 0.0
    %2651 = vmatpush2.msra.mxu0 0.0
    %2652 = vmatprep.subr.mxu0 0.0
    %2653 = vmatpush2.msra.mxu0 0.0
    %2654 = vmatprep.subr.mxu0 0.0
    %2655 = vmatpush2.msra.mxu0 0.0
    %2656 = vmatprep.subr.mxu0 0.0
    %2657 = vmatpush2.msra.mxu0 0.0
    %2658 = vmatprep.subr.mxu0 0.0
    %2659 = vmatpush2.msra.mxu0 0.0
    %2660 = vmatprep.subr.mxu0 0.0
    %2661 = vmatpush2.msra.mxu0 0.0
    %2662 = vmatprep.subr.mxu0 0.0
    %2663 = vmatpush2.msra.mxu0 0.0
    %2664 = vmatprep.subr.mxu0 0.0
    %2665 = vmatpush2.msra.mxu0 0.0
    %2666 = vmatprep.subr.mxu0 0.0
    %2667 = vmatpush2.msra.mxu0 0.0
    %2668 = vmatprep.subr.mxu0 0.0
    %2669 = vmatpush2.msra.mxu0 0.0
    %2670 = vmatprep.subr.mxu0 0.0
    %2671 = vmatpush2.msra.mxu0 0.0
    %2672 = vmatprep.subr.mxu0 0.0
    %2673 = vmatpush2.msra.mxu0 0.0
    %2674 = vmatprep.subr.mxu0 0.0
    %2675 = vmatpush2.msra.mxu0 0.0
    %2676 = vmatprep.subr.mxu0 0.0
    %2677 = vmatpush2.msra.mxu0 0.0
    %2678 = vmatprep.subr.mxu0 0.0
    %2679 = vmatpush2.msra.mxu0 0.0
    %2680 = vmatprep.mubr.f32.mxu0 0.0
    %2681 = vmatmul.mubr.f32.gmra.mxu0 %v2608
    %v2682 = vpop.f32.mrf.mxu0
    %v2683 = vadd.f32 0.0, %v2682
    %v2684 = vpop.f32.mrf.mxu0
    %2685 = vmatprep.mubr.f32.mxu0 0.0
    %2686 = vmatmul.mubr.f32.gmra.mxu0 %v2611
    %v2687 = vpop.f32.mrf.mxu0
    %v2688 = vadd.f32 0.0, %v2687
    %v2689 = vpop.f32.mrf.mxu0
    %2690 = vmatprep.mubr.f32.mxu0 0.0
    %2691 = vmatmul.mubr.f32.gmra.mxu0 %v2614
    %v2692 = vpop.f32.mrf.mxu0
    %v2693 = vadd.f32 0.0, %v2692
    %v2694 = vpop.f32.mrf.mxu0
    %2695 = vdwg.mxu0
    %v2697 = vsel %vm854, %v2356, 0
    %v2700 = vsel %vm854, %v2361, 0
    %v2703 = vsel %vm854, %v2366, 0
    %2705 = vmatprep.subr.mxu0 0.0
    %2706 = vmatpush1.msra.mxu0 0.0
    %2707 = vmatprep.subr.mxu0 0.0
    %2708 = vmatpush1.msra.mxu0 0.0
    %2709 = vmatprep.subr.mxu0 0.0
    %2710 = vmatpush1.msra.mxu0 0.0
    %2711 = vmatprep.subr.mxu0 0.0
    %2712 = vmatpush1.msra.mxu0 0.0
    %2713 = vmatprep.subr.mxu0 0.0
    %2714 = vmatpush1.msra.mxu0 0.0
    %2715 = vmatprep.subr.mxu0 0.0
    %2716 = vmatpush1.msra.mxu0 0.0
    %2717 = vmatprep.subr.mxu0 0.0
    %2718 = vmatpush1.msra.mxu0 0.0
    %2719 = vmatprep.subr.mxu0 0.0
    %2720 = vmatpush1.msra.mxu0 0.0
    %2721 = vmatprep.subr.mxu0 0.0
    %2722 = vmatpush1.msra.mxu0 0.0
    %2723 = vmatprep.subr.mxu0 0.0
    %2724 = vmatpush1.msra.mxu0 0.0
    %2725 = vmatprep.subr.mxu0 0.0
    %2726 = vmatpush1.msra.mxu0 0.0
    %2727 = vmatprep.subr.mxu0 0.0
    %2728 = vmatpush1.msra.mxu0 0.0
    %2729 = vmatprep.subr.mxu0 0.0
    %2730 = vmatpush1.msra.mxu0 %v402
    %2731 = vmatprep.subr.mxu0 0.0
    %2732 = vmatpush1.msra.mxu0 %v401
    %2733 = vmatprep.subr.mxu0 0.0
    %2734 = vmatpush1.msra.mxu0 %v400
    %2735 = vmatprep.subr.mxu0 0.0
    %2736 = vmatpush1.msra.mxu0 %v399
    %2737 = vmatprep.subr.mxu0 0.0
    %2738 = vmatpush2.msra.mxu0 0.0
    %2739 = vmatprep.subr.mxu0 0.0
    %2740 = vmatpush2.msra.mxu0 0.0
    %2741 = vmatprep.subr.mxu0 0.0
    %2742 = vmatpush2.msra.mxu0 0.0
    %2743 = vmatprep.subr.mxu0 0.0
    %2744 = vmatpush2.msra.mxu0 0.0
    %2745 = vmatprep.subr.mxu0 0.0
    %2746 = vmatpush2.msra.mxu0 0.0
    %2747 = vmatprep.subr.mxu0 0.0
    %2748 = vmatpush2.msra.mxu0 0.0
    %2749 = vmatprep.subr.mxu0 0.0
    %2750 = vmatpush2.msra.mxu0 0.0
    %2751 = vmatprep.subr.mxu0 0.0
    %2752 = vmatpush2.msra.mxu0 0.0
    %2753 = vmatprep.subr.mxu0 0.0
    %2754 = vmatpush2.msra.mxu0 0.0
    %2755 = vmatprep.subr.mxu0 0.0
    %2756 = vmatpush2.msra.mxu0 0.0
    %2757 = vmatprep.subr.mxu0 0.0
    %2758 = vmatpush2.msra.mxu0 0.0
    %2759 = vmatprep.subr.mxu0 0.0
    %2760 = vmatpush2.msra.mxu0 0.0
    %2761 = vmatprep.subr.mxu0 0.0
    %2762 = vmatpush2.msra.mxu0 0.0
    %2763 = vmatprep.subr.mxu0 0.0
    %2764 = vmatpush2.msra.mxu0 0.0
    %2765 = vmatprep.subr.mxu0 0.0
    %2766 = vmatpush2.msra.mxu0 0.0
    %2767 = vmatprep.subr.mxu0 0.0
    %2768 = vmatpush2.msra.mxu0 0.0
    %2769 = vmatprep.mubr.f32.mxu0 0.0
    %2770 = vmatmul.mubr.f32.gmra.mxu0 %v2697
    %v2771 = vpop.f32.mrf.mxu0
    %v2772 = vadd.f32 %v2683, %v2771
    %v2773 = vpop.f32.mrf.mxu0
    %2774 = vmatprep.mubr.f32.mxu0 0.0
    %2775 = vmatmul.mubr.f32.gmra.mxu0 %v2700
    %v2776 = vpop.f32.mrf.mxu0
    %v2777 = vadd.f32 %v2688, %v2776
    %v2778 = vpop.f32.mrf.mxu0
    %2779 = vmatprep.mubr.f32.mxu0 0.0
    %2780 = vmatmul.mubr.f32.gmra.mxu0 %v2703
    %v2781 = vpop.f32.mrf.mxu0
    %v2782 = vadd.f32 %v2693, %v2781
    %v2783 = vpop.f32.mrf.mxu0
    %2784 = vdwg.mxu0
    %2785 = vrot.lane.b32.xlu0 %v2146, 64
    %v2786 = vpop.permute.xlu0 %2785
    %2787 = vrot.lane.b32.xlu0 %v2147, 64
    %v2788 = vpop.permute.xlu0 %2787
    %2789 = vrot.lane.b32.xlu0 %v2148, 64
    %v2790 = vpop.permute.xlu0 %2789
    %2791 = vrot.lane.b32.xlu0 %v742, 64
    %v2792 = vpop.permute.xlu0 %2791
    %2793 = vrot.lane.b32.xlu0 %v748, 64
    %v2794 = vpop.permute.xlu0 %2793
    %2795 = vrot.lane.b32.xlu0 %v754, 64
    %v2796 = vpop.permute.xlu0 %2795
    %v2797 = vsel %vm854, %v2786, 0
    %v2799 = vsel %vm854, %v2788, 0
    %v2801 = vsel %vm854, %v2790, 0
    %v2803 = vsel %vm854, %v2792, 0
    %v2805 = vsel %vm854, %v2794, 0
    %v2807 = vsel %vm854, %v2796, 0
    %2809 = vmatprep.subr.mxu0 0.0
    %2810 = vmatpush1.xpose.msra.mxu0 0.0
    %2811 = vmatprep.subr.mxu0 0.0
    %2812 = vmatpush1.xpose.msra.mxu0 0.0
    %2813 = vmatprep.subr.mxu0 0.0
    %2814 = vmatpush1.xpose.msra.mxu0 0.0
    %2815 = vmatprep.subr.mxu0 0.0
    %2816 = vmatpush1.xpose.msra.mxu0 0.0
    %2817 = vmatprep.subr.mxu0 0.0
    %2818 = vmatpush1.xpose.msra.mxu0 0.0
    %2819 = vmatprep.subr.mxu0 0.0
    %2820 = vmatpush1.xpose.msra.mxu0 0.0
    %2821 = vmatprep.subr.mxu0 0.0
    %2822 = vmatpush1.xpose.msra.mxu0 0.0
    %2823 = vmatprep.subr.mxu0 0.0
    %2824 = vmatpush1.xpose.msra.mxu0 0.0
    %2825 = vmatprep.subr.mxu0 0.0
    %2826 = vmatpush1.xpose.msra.mxu0 0.0
    %2827 = vmatprep.subr.mxu0 0.0
    %2828 = vmatpush1.xpose.msra.mxu0 0.0
    %2829 = vmatprep.subr.mxu0 0.0
    %2830 = vmatpush1.xpose.msra.mxu0 0.0
    %2831 = vmatprep.subr.mxu0 0.0
    %2832 = vmatpush1.xpose.msra.mxu0 0.0
    %2833 = vmatprep.subr.mxu0 0.0
    %2834 = vmatpush1.xpose.msra.mxu0 0.0
    %2835 = vmatprep.subr.mxu0 0.0
    %2836 = vmatpush1.xpose.msra.mxu0 %v2807
    %2837 = vmatprep.subr.mxu0 0.0
    %2838 = vmatpush1.xpose.msra.mxu0 %v2805
    %2839 = vmatprep.subr.mxu0 0.0
    %2840 = vmatpush1.xpose.msra.mxu0 %v2803
    %2841 = vmatprep.subr.mxu0 0.0
    %2842 = vmatpush2.xpose.msra.mxu0 0.0
    %2843 = vmatprep.subr.mxu0 0.0
    %2844 = vmatpush2.xpose.msra.mxu0 0.0
    %2845 = vmatprep.subr.mxu0 0.0
    %2846 = vmatpush2.xpose.msra.mxu0 0.0
    %2847 = vmatprep.subr.mxu0 0.0
    %2848 = vmatpush2.xpose.msra.mxu0 0.0
    %2849 = vmatprep.subr.mxu0 0.0
    %2850 = vmatpush2.xpose.msra.mxu0 0.0
    %2851 = vmatprep.subr.mxu0 0.0
    %2852 = vmatpush2.xpose.msra.mxu0 0.0
    %2853 = vmatprep.subr.mxu0 0.0
    %2854 = vmatpush2.xpose.msra.mxu0 0.0
    %2855 = vmatprep.subr.mxu0 0.0
    %2856 = vmatpush2.xpose.msra.mxu0 0.0
    %2857 = vmatprep.subr.mxu0 0.0
    %2858 = vmatpush2.xpose.msra.mxu0 0.0
    %2859 = vmatprep.subr.mxu0 0.0
    %2860 = vmatpush2.xpose.msra.mxu0 0.0
    %2861 = vmatprep.subr.mxu0 0.0
    %2862 = vmatpush2.xpose.msra.mxu0 0.0
    %2863 = vmatprep.subr.mxu0 0.0
    %2864 = vmatpush2.xpose.msra.mxu0 0.0
    %2865 = vmatprep.subr.mxu0 0.0
    %2866 = vmatpush2.xpose.msra.mxu0 0.0
    %2867 = vmatprep.subr.mxu0 0.0
    %2868 = vmatpush2.xpose.msra.mxu0 0.0
    %2869 = vmatprep.subr.mxu0 0.0
    %2870 = vmatpush2.xpose.msra.mxu0 0.0
    %2871 = vmatprep.subr.mxu0 0.0
    %2872 = vmatpush2.xpose.msra.mxu0 0.0
    %2873 = vmatprep.mubr.f32.mxu0 0.0
    %2874 = vmatmul.mubr.f32.gmra.mxu0 %v2797
    %v2875 = vpop.f32.mrf.mxu0
    %v2876 = vadd.f32 %v347, %v2875
    %v2877 = vpop.f32.mrf.mxu0
    %2878 = vmatprep.mubr.f32.mxu0 0.0
    %2879 = vmatmul.mubr.f32.gmra.mxu0 %v2799
    %v2880 = vpop.f32.mrf.mxu0
    %v2881 = vadd.f32 %v347, %v2880
    %v2882 = vpop.f32.mrf.mxu0
    %2883 = vmatprep.mubr.f32.mxu0 0.0
    %2884 = vmatmul.mubr.f32.gmra.mxu0 %v2801
    %v2885 = vpop.f32.mrf.mxu0
    %v2886 = vadd.f32 %v347, %v2885
    %v2887 = vpop.f32.mrf.mxu0
    %2888 = vdwg.mxu0
    %v2889 = vsel %vm953, %v2876, -inf
    %2890 = vmax.xlane.f32.xlu0 %v2889
    %v2891 = vpop.xlane.xlu0 %2890
    %v2892 = vsel %vm953, %v2881, -inf
    %2893 = vmax.xlane.f32.xlu0 %v2892
    %v2894 = vpop.xlane.xlu0 %2893
    %v2895 = vsel %vm953, %v2886, -inf
    %2896 = vmax.xlane.f32.xlu0 %v2895
    %v2897 = vpop.xlane.xlu0 %2896
    %v2898 = vsub.f32 %v2876, %v2891
    %v2899 = vsub.f32 %v2881, %v2894
    %v2900 = vsub.f32 %v2886, %v2897
    %v2901 = vmul.f32 %v2898, 1.442695
    %v2902 = vpow.pop %v2901
    %v2903 = vmul.f32 %v2899, 1.442695
    %v2904 = vpow.pop %v2903
    %v2905 = vmul.f32 %v2900, 1.442695
    %v2906 = vpow.pop %v2905
    %v2907 = vsel %vm953, %v2902, 0.0
    %2908 = vadd.xlane.f32.xlu0 %v2907
    %v2909 = vpop.xlane.xlu0 %2908
    %v2910 = vsel %vm953, %v2904, 0.0
    %2911 = vadd.xlane.f32.xlu0 %v2910
    %v2912 = vpop.xlane.xlu0 %2911
    %v2913 = vsel %vm953, %v2906, 0.0
    %2914 = vadd.xlane.f32.xlu0 %v2913
    %v2915 = vpop.xlane.xlu0 %2914
    %v2916 = vrcp.pop %v2909
    %v2917 = vrcp.pop %v2912
    %v2918 = vrcp.pop %v2915
    %v2919 = vmul.f32 %v2902, %v2916
    %v2920 = vmul.f32 %v2904, %v2917
    %v2921 = vmul.f32 %v2906, %v2918
    %2922 = vrot.lane.b32.xlu0 %v838, 64
    %v2923 = vpop.permute.xlu0 %2922
    %2924 = vrot.lane.b32.xlu0 %v843, 64
    %v2925 = vpop.permute.xlu0 %2924
    %2926 = vrot.lane.b32.xlu0 %v848, 64
    %v2927 = vpop.permute.xlu0 %2926
    %v2932 = vsel %vm953, %v2919, 0
    %v2935 = vsel %vm953, %v2920, 0
    %v2938 = vsel %vm953, %v2921, 0
    %2940 = vmatprep.subr.mxu0 0.0
    %2941 = vmatpush1.msra.mxu0 0.0
    %2942 = vmatprep.subr.mxu0 0.0
    %2943 = vmatpush1.msra.mxu0 0.0
    %2944 = vmatprep.subr.mxu0 0.0
    %2945 = vmatpush1.msra.mxu0 0.0
    %2946 = vmatprep.subr.mxu0 0.0
    %2947 = vmatpush1.msra.mxu0 0.0
    %2948 = vmatprep.subr.mxu0 0.0
    %2949 = vmatpush1.msra.mxu0 0.0
    %2950 = vmatprep.subr.mxu0 0.0
    %2951 = vmatpush1.msra.mxu0 0.0
    %2952 = vmatprep.subr.mxu0 0.0
    %2953 = vmatpush1.msra.mxu0 0.0
    %2954 = vmatprep.subr.mxu0 0.0
    %2955 = vmatpush1.msra.mxu0 0.0
    %2956 = vmatprep.subr.mxu0 0.0
    %2957 = vmatpush1.msra.mxu0 0.0
    %2958 = vmatprep.subr.mxu0 0.0
    %2959 = vmatpush1.msra.mxu0 0.0
    %2960 = vmatprep.subr.mxu0 0.0
    %2961 = vmatpush1.msra.mxu0 0.0
    %2962 = vmatprep.subr.mxu0 0.0
    %2963 = vmatpush1.msra.mxu0 0.0
    %2964 = vmatprep.subr.mxu0 0.0
    %2965 = vmatpush1.msra.mxu0 0.0
    %2966 = vmatprep.subr.mxu0 0.0
    %2967 = vmatpush1.msra.mxu0 %v2927
    %2968 = vmatprep.subr.mxu0 0.0
    %2969 = vmatpush1.msra.mxu0 %v2925
    %2970 = vmatprep.subr.mxu0 0.0
    %2971 = vmatpush1.msra.mxu0 %v2923
    %2972 = vmatprep.subr.mxu0 0.0
    %2973 = vmatpush2.msra.mxu0 0.0
    %2974 = vmatprep.subr.mxu0 0.0
    %2975 = vmatpush2.msra.mxu0 0.0
    %2976 = vmatprep.subr.mxu0 0.0
    %2977 = vmatpush2.msra.mxu0 0.0
    %2978 = vmatprep.subr.mxu0 0.0
    %2979 = vmatpush2.msra.mxu0 0.0
    %2980 = vmatprep.subr.mxu0 0.0
    %2981 = vmatpush2.msra.mxu0 0.0
    %2982 = vmatprep.subr.mxu0 0.0
    %2983 = vmatpush2.msra.mxu0 0.0
    %2984 = vmatprep.subr.mxu0 0.0
    %2985 = vmatpush2.msra.mxu0 0.0
    %2986 = vmatprep.subr.mxu0 0.0
    %2987 = vmatpush2.msra.mxu0 0.0
    %2988 = vmatprep.subr.mxu0 0.0
    %2989 = vmatpush2.msra.mxu0 0.0
    %2990 = vmatprep.subr.mxu0 0.0
    %2991 = vmatpush2.msra.mxu0 0.0
    %2992 = vmatprep.subr.mxu0 0.0
    %2993 = vmatpush2.msra.mxu0 0.0
    %2994 = vmatprep.subr.mxu0 0.0
    %2995 = vmatpush2.msra.mxu0 0.0
    %2996 = vmatprep.subr.mxu0 0.0
    %2997 = vmatpush2.msra.mxu0 0.0
    %2998 = vmatprep.subr.mxu0 0.0
    %2999 = vmatpush2.msra.mxu0 0.0
    %3000 = vmatprep.subr.mxu0 0.0
    %3001 = vmatpush2.msra.mxu0 0.0
    %3002 = vmatprep.subr.mxu0 0.0
    %3003 = vmatpush2.msra.mxu0 0.0
    %3004 = vmatprep.mubr.f32.mxu0 0.0
    %3005 = vmatmul.mubr.f32.gmra.mxu0 %v2932
    %v3006 = vpop.f32.mrf.mxu0
    %v3007 = vadd.f32 0.0, %v3006
    %v3008 = vpop.f32.mrf.mxu0
    %3009 = vmatprep.mubr.f32.mxu0 0.0
    %3010 = vmatmul.mubr.f32.gmra.mxu0 %v2935
    %v3011 = vpop.f32.mrf.mxu0
    %v3012 = vadd.f32 0.0, %v3011
    %v3013 = vpop.f32.mrf.mxu0
    %3014 = vmatprep.mubr.f32.mxu0 0.0
    %3015 = vmatmul.mubr.f32.gmra.mxu0 %v2938
    %v3016 = vpop.f32.mrf.mxu0
    %v3017 = vadd.f32 0.0, %v3016
    %v3018 = vpop.f32.mrf.mxu0
    %3019 = vdwg.mxu0
    %v3021 = vsel %vm854, %v3007, 0
    %v3024 = vsel %vm854, %v3012, 0
    %v3027 = vsel %vm854, %v3017, 0
    %3029 = vmatprep.subr.mxu0 0.0
    %3030 = vmatpush1.msra.mxu0 0.0
    %3031 = vmatprep.subr.mxu0 0.0
    %3032 = vmatpush1.msra.mxu0 0.0
    %3033 = vmatprep.subr.mxu0 0.0
    %3034 = vmatpush1.msra.mxu0 0.0
    %3035 = vmatprep.subr.mxu0 0.0
    %3036 = vmatpush1.msra.mxu0 0.0
    %3037 = vmatprep.subr.mxu0 0.0
    %3038 = vmatpush1.msra.mxu0 0.0
    %3039 = vmatprep.subr.mxu0 0.0
    %3040 = vmatpush1.msra.mxu0 0.0
    %3041 = vmatprep.subr.mxu0 0.0
    %3042 = vmatpush1.msra.mxu0 0.0
    %3043 = vmatprep.subr.mxu0 0.0
    %3044 = vmatpush1.msra.mxu0 0.0
    %3045 = vmatprep.subr.mxu0 0.0
    %3046 = vmatpush1.msra.mxu0 0.0
    %3047 = vmatprep.subr.mxu0 0.0
    %3048 = vmatpush1.msra.mxu0 0.0
    %3049 = vmatprep.subr.mxu0 0.0
    %3050 = vmatpush1.msra.mxu0 0.0
    %3051 = vmatprep.subr.mxu0 0.0
    %3052 = vmatpush1.msra.mxu0 0.0
    %3053 = vmatprep.subr.mxu0 0.0
    %3054 = vmatpush1.msra.mxu0 %v410
    %3055 = vmatprep.subr.mxu0 0.0
    %3056 = vmatpush1.msra.mxu0 %v409
    %3057 = vmatprep.subr.mxu0 0.0
    %3058 = vmatpush1.msra.mxu0 %v408
    %3059 = vmatprep.subr.mxu0 0.0
    %3060 = vmatpush1.msra.mxu0 %v407
    %3061 = vmatprep.subr.mxu0 0.0
    %3062 = vmatpush2.msra.mxu0 0.0
    %3063 = vmatprep.subr.mxu0 0.0
    %3064 = vmatpush2.msra.mxu0 0.0
    %3065 = vmatprep.subr.mxu0 0.0
    %3066 = vmatpush2.msra.mxu0 0.0
    %3067 = vmatprep.subr.mxu0 0.0
    %3068 = vmatpush2.msra.mxu0 0.0
    %3069 = vmatprep.subr.mxu0 0.0
    %3070 = vmatpush2.msra.mxu0 0.0
    %3071 = vmatprep.subr.mxu0 0.0
    %3072 = vmatpush2.msra.mxu0 0.0
    %3073 = vmatprep.subr.mxu0 0.0
    %3074 = vmatpush2.msra.mxu0 0.0
    %3075 = vmatprep.subr.mxu0 0.0
    %3076 = vmatpush2.msra.mxu0 0.0
    %3077 = vmatprep.subr.mxu0 0.0
    %3078 = vmatpush2.msra.mxu0 0.0
    %3079 = vmatprep.subr.mxu0 0.0
    %3080 = vmatpush2.msra.mxu0 0.0
    %3081 = vmatprep.subr.mxu0 0.0
    %3082 = vmatpush2.msra.mxu0 0.0
    %3083 = vmatprep.subr.mxu0 0.0
    %3084 = vmatpush2.msra.mxu0 0.0
    %3085 = vmatprep.subr.mxu0 0.0
    %3086 = vmatpush2.msra.mxu0 0.0
    %3087 = vmatprep.subr.mxu0 0.0
    %3088 = vmatpush2.msra.mxu0 0.0
    %3089 = vmatprep.subr.mxu0 0.0
    %3090 = vmatpush2.msra.mxu0 0.0
    %3091 = vmatprep.subr.mxu0 0.0
    %3092 = vmatpush2.msra.mxu0 0.0
    %3093 = vmatprep.mubr.f32.mxu0 0.0
    %3094 = vmatmul.mubr.f32.gmra.mxu0 %v3021
    %v3095 = vpop.f32.mrf.mxu0
    %v3096 = vadd.f32 0.0, %v3095
    %v3097 = vpop.f32.mrf.mxu0
    %3098 = vmatprep.mubr.f32.mxu0 0.0
    %3099 = vmatmul.mubr.f32.gmra.mxu0 %v3024
    %v3100 = vpop.f32.mrf.mxu0
    %v3101 = vadd.f32 0.0, %v3100
    %v3102 = vpop.f32.mrf.mxu0
    %3103 = vmatprep.mubr.f32.mxu0 0.0
    %3104 = vmatmul.mubr.f32.gmra.mxu0 %v3027
    %v3105 = vpop.f32.mrf.mxu0
    %v3106 = vadd.f32 0.0, %v3105
    %v3107 = vpop.f32.mrf.mxu0
    %3108 = vdwg.mxu0
    %v3109 = vadd.f32 %v2772, %v3096
    %v3110 = vadd.f32 %v2777, %v3101
    %v3111 = vadd.f32 %v2782, %v3106
    %3112 = vrot.lane.b32.xlu0 %v2146, 32
    %v3113 = vpop.permute.xlu0 %3112
    %3114 = vrot.lane.b32.xlu0 %v2147, 32
    %v3115 = vpop.permute.xlu0 %3114
    %3116 = vrot.lane.b32.xlu0 %v2148, 32
    %v3117 = vpop.permute.xlu0 %3116
    %3118 = vrot.lane.b32.xlu0 %v742, 32
    %v3119 = vpop.permute.xlu0 %3118
    %3120 = vrot.lane.b32.xlu0 %v748, 32
    %v3121 = vpop.permute.xlu0 %3120
    %3122 = vrot.lane.b32.xlu0 %v754, 32
    %v3123 = vpop.permute.xlu0 %3122
    %v3124 = vsel %vm854, %v3113, 0
    %v3126 = vsel %vm854, %v3115, 0
    %v3128 = vsel %vm854, %v3117, 0
    %v3130 = vsel %vm854, %v3119, 0
    %v3132 = vsel %vm854, %v3121, 0
    %v3134 = vsel %vm854, %v3123, 0
    %3136 = vmatprep.subr.mxu0 0.0
    %3137 = vmatpush1.xpose.msra.mxu0 0.0
    %3138 = vmatprep.subr.mxu0 0.0
    %3139 = vmatpush1.xpose.msra.mxu0 0.0
    %3140 = vmatprep.subr.mxu0 0.0
    %3141 = vmatpush1.xpose.msra.mxu0 0.0
    %3142 = vmatprep.subr.mxu0 0.0
    %3143 = vmatpush1.xpose.msra.mxu0 0.0
    %3144 = vmatprep.subr.mxu0 0.0
    %3145 = vmatpush1.xpose.msra.mxu0 0.0
    %3146 = vmatprep.subr.mxu0 0.0
    %3147 = vmatpush1.xpose.msra.mxu0 0.0
    %3148 = vmatprep.subr.mxu0 0.0
    %3149 = vmatpush1.xpose.msra.mxu0 0.0
    %3150 = vmatprep.subr.mxu0 0.0
    %3151 = vmatpush1.xpose.msra.mxu0 0.0
    %3152 = vmatprep.subr.mxu0 0.0
    %3153 = vmatpush1.xpose.msra.mxu0 0.0
    %3154 = vmatprep.subr.mxu0 0.0
    %3155 = vmatpush1.xpose.msra.mxu0 0.0
    %3156 = vmatprep.subr.mxu0 0.0
    %3157 = vmatpush1.xpose.msra.mxu0 0.0
    %3158 = vmatprep.subr.mxu0 0.0
    %3159 = vmatpush1.xpose.msra.mxu0 0.0
    %3160 = vmatprep.subr.mxu0 0.0
    %3161 = vmatpush1.xpose.msra.mxu0 0.0
    %3162 = vmatprep.subr.mxu0 0.0
    %3163 = vmatpush1.xpose.msra.mxu0 %v3134
    %3164 = vmatprep.subr.mxu0 0.0
    %3165 = vmatpush1.xpose.msra.mxu0 %v3132
    %3166 = vmatprep.subr.mxu0 0.0
    %3167 = vmatpush1.xpose.msra.mxu0 %v3130
    %3168 = vmatprep.subr.mxu0 0.0
    %3169 = vmatpush2.xpose.msra.mxu0 0.0
    %3170 = vmatprep.subr.mxu0 0.0
    %3171 = vmatpush2.xpose.msra.mxu0 0.0
    %3172 = vmatprep.subr.mxu0 0.0
    %3173 = vmatpush2.xpose.msra.mxu0 0.0
    %3174 = vmatprep.subr.mxu0 0.0
    %3175 = vmatpush2.xpose.msra.mxu0 0.0
    %3176 = vmatprep.subr.mxu0 0.0
    %3177 = vmatpush2.xpose.msra.mxu0 0.0
    %3178 = vmatprep.subr.mxu0 0.0
    %3179 = vmatpush2.xpose.msra.mxu0 0.0
    %3180 = vmatprep.subr.mxu0 0.0
    %3181 = vmatpush2.xpose.msra.mxu0 0.0
    %3182 = vmatprep.subr.mxu0 0.0
    %3183 = vmatpush2.xpose.msra.mxu0 0.0
    %3184 = vmatprep.subr.mxu0 0.0
    %3185 = vmatpush2.xpose.msra.mxu0 0.0
    %3186 = vmatprep.subr.mxu0 0.0
    %3187 = vmatpush2.xpose.msra.mxu0 0.0
    %3188 = vmatprep.subr.mxu0 0.0
    %3189 = vmatpush2.xpose.msra.mxu0 0.0
    %3190 = vmatprep.subr.mxu0 0.0
    %3191 = vmatpush2.xpose.msra.mxu0 0.0
    %3192 = vmatprep.subr.mxu0 0.0
    %3193 = vmatpush2.xpose.msra.mxu0 0.0
    %3194 = vmatprep.subr.mxu0 0.0
    %3195 = vmatpush2.xpose.msra.mxu0 0.0
    %3196 = vmatprep.subr.mxu0 0.0
    %3197 = vmatpush2.xpose.msra.mxu0 0.0
    %3198 = vmatprep.subr.mxu0 0.0
    %3199 = vmatpush2.xpose.msra.mxu0 0.0
    %3200 = vmatprep.mubr.f32.mxu0 0.0
    %3201 = vmatmul.mubr.f32.gmra.mxu0 %v3124
    %v3202 = vpop.f32.mrf.mxu0
    %v3203 = vadd.f32 %v347, %v3202
    %v3204 = vpop.f32.mrf.mxu0
    %3205 = vmatprep.mubr.f32.mxu0 0.0
    %3206 = vmatmul.mubr.f32.gmra.mxu0 %v3126
    %v3207 = vpop.f32.mrf.mxu0
    %v3208 = vadd.f32 %v347, %v3207
    %v3209 = vpop.f32.mrf.mxu0
    %3210 = vmatprep.mubr.f32.mxu0 0.0
    %3211 = vmatmul.mubr.f32.gmra.mxu0 %v3128
    %v3212 = vpop.f32.mrf.mxu0
    %v3213 = vadd.f32 %v347, %v3212
    %v3214 = vpop.f32.mrf.mxu0
    %3215 = vdwg.mxu0
    %v3216 = vsel %vm953, %v3203, -inf
    %3217 = vmax.xlane.f32.xlu0 %v3216
    %v3218 = vpop.xlane.xlu0 %3217
    %v3219 = vsel %vm953, %v3208, -inf
    %3220 = vmax.xlane.f32.xlu0 %v3219
    %v3221 = vpop.xlane.xlu0 %3220
    %v3222 = vsel %vm953, %v3213, -inf
    %3223 = vmax.xlane.f32.xlu0 %v3222
    %v3224 = vpop.xlane.xlu0 %3223
    %v3225 = vsub.f32 %v3203, %v3218
    %v3226 = vsub.f32 %v3208, %v3221
    %v3227 = vsub.f32 %v3213, %v3224
    %v3228 = vmul.f32 %v3225, 1.442695
    %v3229 = vpow.pop %v3228
    %v3230 = vmul.f32 %v3226, 1.442695
    %v3231 = vpow.pop %v3230
    %v3232 = vmul.f32 %v3227, 1.442695
    %v3233 = vpow.pop %v3232
    %v3234 = vsel %vm953, %v3229, 0.0
    %3235 = vadd.xlane.f32.xlu0 %v3234
    %v3236 = vpop.xlane.xlu0 %3235
    %v3237 = vsel %vm953, %v3231, 0.0
    %3238 = vadd.xlane.f32.xlu0 %v3237
    %v3239 = vpop.xlane.xlu0 %3238
    %v3240 = vsel %vm953, %v3233, 0.0
    %3241 = vadd.xlane.f32.xlu0 %v3240
    %v3242 = vpop.xlane.xlu0 %3241
    %v3243 = vrcp.pop %v3236
    %v3244 = vrcp.pop %v3239
    %v3245 = vrcp.pop %v3242
    %v3246 = vmul.f32 %v3229, %v3243
    %v3247 = vmul.f32 %v3231, %v3244
    %v3248 = vmul.f32 %v3233, %v3245
    %3249 = vrot.lane.b32.xlu0 %v838, 32
    %v3250 = vpop.permute.xlu0 %3249
    %3251 = vrot.lane.b32.xlu0 %v843, 32
    %v3252 = vpop.permute.xlu0 %3251
    %3253 = vrot.lane.b32.xlu0 %v848, 32
    %v3254 = vpop.permute.xlu0 %3253
    %v3259 = vsel %vm953, %v3246, 0
    %v3262 = vsel %vm953, %v3247, 0
    %v3265 = vsel %vm953, %v3248, 0
    %3267 = vmatprep.subr.mxu0 0.0
    %3268 = vmatpush1.msra.mxu0 0.0
    %3269 = vmatprep.subr.mxu0 0.0
    %3270 = vmatpush1.msra.mxu0 0.0
    %3271 = vmatprep.subr.mxu0 0.0
    %3272 = vmatpush1.msra.mxu0 0.0
    %3273 = vmatprep.subr.mxu0 0.0
    %3274 = vmatpush1.msra.mxu0 0.0
    %3275 = vmatprep.subr.mxu0 0.0
    %3276 = vmatpush1.msra.mxu0 0.0
    %3277 = vmatprep.subr.mxu0 0.0
    %3278 = vmatpush1.msra.mxu0 0.0
    %3279 = vmatprep.subr.mxu0 0.0
    %3280 = vmatpush1.msra.mxu0 0.0
    %3281 = vmatprep.subr.mxu0 0.0
    %3282 = vmatpush1.msra.mxu0 0.0
    %3283 = vmatprep.subr.mxu0 0.0
    %3284 = vmatpush1.msra.mxu0 0.0
    %3285 = vmatprep.subr.mxu0 0.0
    %3286 = vmatpush1.msra.mxu0 0.0
    %3287 = vmatprep.subr.mxu0 0.0
    %3288 = vmatpush1.msra.mxu0 0.0
    %3289 = vmatprep.subr.mxu0 0.0
    %3290 = vmatpush1.msra.mxu0 0.0
    %3291 = vmatprep.subr.mxu0 0.0
    %3292 = vmatpush1.msra.mxu0 0.0
    %3293 = vmatprep.subr.mxu0 0.0
    %3294 = vmatpush1.msra.mxu0 %v3254
    %3295 = vmatprep.subr.mxu0 0.0
    %3296 = vmatpush1.msra.mxu0 %v3252
    %3297 = vmatprep.subr.mxu0 0.0
    %3298 = vmatpush1.msra.mxu0 %v3250
    %3299 = vmatprep.subr.mxu0 0.0
    %3300 = vmatpush2.msra.mxu0 0.0
    %3301 = vmatprep.subr.mxu0 0.0
    %3302 = vmatpush2.msra.mxu0 0.0
    %3303 = vmatprep.subr.mxu0 0.0
    %3304 = vmatpush2.msra.mxu0 0.0
    %3305 = vmatprep.subr.mxu0 0.0
    %3306 = vmatpush2.msra.mxu0 0.0
    %3307 = vmatprep.subr.mxu0 0.0
    %3308 = vmatpush2.msra.mxu0 0.0
    %3309 = vmatprep.subr.mxu0 0.0
    %3310 = vmatpush2.msra.mxu0 0.0
    %3311 = vmatprep.subr.mxu0 0.0
    %3312 = vmatpush2.msra.mxu0 0.0
    %3313 = vmatprep.subr.mxu0 0.0
    %3314 = vmatpush2.msra.mxu0 0.0
    %3315 = vmatprep.subr.mxu0 0.0
    %3316 = vmatpush2.msra.mxu0 0.0
    %3317 = vmatprep.subr.mxu0 0.0
    %3318 = vmatpush2.msra.mxu0 0.0
    %3319 = vmatprep.subr.mxu0 0.0
    %3320 = vmatpush2.msra.mxu0 0.0
    %3321 = vmatprep.subr.mxu0 0.0
    %3322 = vmatpush2.msra.mxu0 0.0
    %3323 = vmatprep.subr.mxu0 0.0
    %3324 = vmatpush2.msra.mxu0 0.0
    %3325 = vmatprep.subr.mxu0 0.0
    %3326 = vmatpush2.msra.mxu0 0.0
    %3327 = vmatprep.subr.mxu0 0.0
    %3328 = vmatpush2.msra.mxu0 0.0
    %3329 = vmatprep.subr.mxu0 0.0
    %3330 = vmatpush2.msra.mxu0 0.0
    %3331 = vmatprep.mubr.f32.mxu0 0.0
    %3332 = vmatmul.mubr.f32.gmra.mxu0 %v3259
    %v3333 = vpop.f32.mrf.mxu0
    %v3334 = vadd.f32 0.0, %v3333
    %v3335 = vpop.f32.mrf.mxu0
    %3336 = vmatprep.mubr.f32.mxu0 0.0
    %3337 = vmatmul.mubr.f32.gmra.mxu0 %v3262
    %v3338 = vpop.f32.mrf.mxu0
    %v3339 = vadd.f32 0.0, %v3338
    %v3340 = vpop.f32.mrf.mxu0
    %3341 = vmatprep.mubr.f32.mxu0 0.0
    %3342 = vmatmul.mubr.f32.gmra.mxu0 %v3265
    %v3343 = vpop.f32.mrf.mxu0
    %v3344 = vadd.f32 0.0, %v3343
    %v3345 = vpop.f32.mrf.mxu0
    %3346 = vdwg.mxu0
    %v3348 = vsel %vm854, %v3334, 0
    %v3351 = vsel %vm854, %v3339, 0
    %v3354 = vsel %vm854, %v3344, 0
    %3356 = vmatprep.subr.mxu0 0.0
    %3357 = vmatpush1.msra.mxu0 0.0
    %3358 = vmatprep.subr.mxu0 0.0
    %3359 = vmatpush1.msra.mxu0 0.0
    %3360 = vmatprep.subr.mxu0 0.0
    %3361 = vmatpush1.msra.mxu0 0.0
    %3362 = vmatprep.subr.mxu0 0.0
    %3363 = vmatpush1.msra.mxu0 0.0
    %3364 = vmatprep.subr.mxu0 0.0
    %3365 = vmatpush1.msra.mxu0 0.0
    %3366 = vmatprep.subr.mxu0 0.0
    %3367 = vmatpush1.msra.mxu0 0.0
    %3368 = vmatprep.subr.mxu0 0.0
    %3369 = vmatpush1.msra.mxu0 0.0
    %3370 = vmatprep.subr.mxu0 0.0
    %3371 = vmatpush1.msra.mxu0 0.0
    %3372 = vmatprep.subr.mxu0 0.0
    %3373 = vmatpush1.msra.mxu0 0.0
    %3374 = vmatprep.subr.mxu0 0.0
    %3375 = vmatpush1.msra.mxu0 0.0
    %3376 = vmatprep.subr.mxu0 0.0
    %3377 = vmatpush1.msra.mxu0 0.0
    %3378 = vmatprep.subr.mxu0 0.0
    %3379 = vmatpush1.msra.mxu0 0.0
    %3380 = vmatprep.subr.mxu0 0.0
    %3381 = vmatpush1.msra.mxu0 %v414
    %3382 = vmatprep.subr.mxu0 0.0
    %3383 = vmatpush1.msra.mxu0 %v413
    %3384 = vmatprep.subr.mxu0 0.0
    %3385 = vmatpush1.msra.mxu0 %v412
    %3386 = vmatprep.subr.mxu0 0.0
    %3387 = vmatpush1.msra.mxu0 %v411
    %3388 = vmatprep.subr.mxu0 0.0
    %3389 = vmatpush2.msra.mxu0 0.0
    %3390 = vmatprep.subr.mxu0 0.0
    %3391 = vmatpush2.msra.mxu0 0.0
    %3392 = vmatprep.subr.mxu0 0.0
    %3393 = vmatpush2.msra.mxu0 0.0
    %3394 = vmatprep.subr.mxu0 0.0
    %3395 = vmatpush2.msra.mxu0 0.0
    %3396 = vmatprep.subr.mxu0 0.0
    %3397 = vmatpush2.msra.mxu0 0.0
    %3398 = vmatprep.subr.mxu0 0.0
    %3399 = vmatpush2.msra.mxu0 0.0
    %3400 = vmatprep.subr.mxu0 0.0
    %3401 = vmatpush2.msra.mxu0 0.0
    %3402 = vmatprep.subr.mxu0 0.0
    %3403 = vmatpush2.msra.mxu0 0.0
    %3404 = vmatprep.subr.mxu0 0.0
    %3405 = vmatpush2.msra.mxu0 0.0
    %3406 = vmatprep.subr.mxu0 0.0
    %3407 = vmatpush2.msra.mxu0 0.0
    %3408 = vmatprep.subr.mxu0 0.0
    %3409 = vmatpush2.msra.mxu0 0.0
    %3410 = vmatprep.subr.mxu0 0.0
    %3411 = vmatpush2.msra.mxu0 0.0
    %3412 = vmatprep.subr.mxu0 0.0
    %3413 = vmatpush2.msra.mxu0 0.0
    %3414 = vmatprep.subr.mxu0 0.0
    %3415 = vmatpush2.msra.mxu0 0.0
    %3416 = vmatprep.subr.mxu0 0.0
    %3417 = vmatpush2.msra.mxu0 0.0
    %3418 = vmatprep.subr.mxu0 0.0
    %3419 = vmatpush2.msra.mxu0 0.0
    %3420 = vmatprep.mubr.f32.mxu0 0.0
    %3421 = vmatmul.mubr.f32.gmra.mxu0 %v3348
    %v3422 = vpop.f32.mrf.mxu0
    %v3423 = vadd.f32 0.0, %v3422
    %v3424 = vpop.f32.mrf.mxu0
    %3425 = vmatprep.mubr.f32.mxu0 0.0
    %3426 = vmatmul.mubr.f32.gmra.mxu0 %v3351
    %v3427 = vpop.f32.mrf.mxu0
    %v3428 = vadd.f32 0.0, %v3427
    %v3429 = vpop.f32.mrf.mxu0
    %3430 = vmatprep.mubr.f32.mxu0 0.0
    %3431 = vmatmul.mubr.f32.gmra.mxu0 %v3354
    %v3432 = vpop.f32.mrf.mxu0
    %v3433 = vadd.f32 0.0, %v3432
    %v3434 = vpop.f32.mrf.mxu0
    %3435 = vdwg.mxu0
    %v3436 = vadd.f32 %v3109, %v3423
    %v3437 = vadd.f32 %v3110, %v3428
    %v3438 = vadd.f32 %v3111, %v3433
    %v3440 = vlaneseq
    %v3441 = vshrl.u32 %v3440, 7
    %v3442 = vsub.s32 0, %v3441
    %v3443 = vrot.slane %v415, %v3442
    %v3445 = vadd.f32 %v2143, %v3443
    %v3446 = vadd.f32 %v2144, %v3443
    %v3447 = vadd.f32 %v2145, %v3443
    %v3448 = vadd.f32 %v3436, %v3443
    %v3449 = vadd.f32 %v3437, %v3443
    %v3450 = vadd.f32 %v3438, %v3443
    %v3451 = vadd.f32 %v316, %v3445
    %v3452 = vadd.f32 %v321, %v3446
    %v3453 = vadd.f32 %v326, %v3447
    %v3454 = vadd.f32 %v331, %v3448
    %v3455 = vadd.f32 %v336, %v3449
    %v3456 = vadd.f32 %v341, %v3450
    %3457 = vadd.xlane.f32.xlu0 %v3451
    %v3458 = vpop.xlane.xlu0 %3457
    %3459 = vadd.xlane.f32.xlu0 %v3452
    %v3460 = vpop.xlane.xlu0 %3459
    %3461 = vadd.xlane.f32.xlu0 %v3453
    %v3462 = vpop.xlane.xlu0 %3461
    %3463 = vadd.xlane.f32.xlu0 %v3454
    %v3464 = vpop.xlane.xlu0 %3463
    %3465 = vadd.xlane.f32.xlu0 %v3455
    %v3466 = vpop.xlane.xlu0 %3465
    %3467 = vadd.xlane.f32.xlu0 %v3456
    %v3468 = vpop.xlane.xlu0 %3467
    %v3469 = vmul.f32 %v3458, %v560
    %v3470 = vmul.f32 %v3460, %v560
    %v3471 = vmul.f32 %v3462, %v560
    %v3472 = vmul.f32 %v3464, %v560
    %v3473 = vmul.f32 %v3466, %v560
    %v3474 = vmul.f32 %v3468, %v560
    %v3475 = vsub.f32 %v3451, %v3469
    %v3476 = vsub.f32 %v3452, %v3470
    %v3477 = vsub.f32 %v3453, %v3471
    %v3478 = vsub.f32 %v3454, %v3472
    %v3479 = vsub.f32 %v3455, %v3473
    %v3480 = vsub.f32 %v3456, %v3474
    %v3481 = vmul.f32 %v3475, %v3475
    %v3482 = vmul.f32 %v3476, %v3476
    %v3483 = vmul.f32 %v3477, %v3477
    %v3484 = vmul.f32 %v3478, %v3478
    %v3485 = vmul.f32 %v3479, %v3479
    %v3486 = vmul.f32 %v3480, %v3480
    %3487 = vadd.xlane.f32.xlu0 %v3481
    %v3488 = vpop.xlane.xlu0 %3487
    %3489 = vadd.xlane.f32.xlu0 %v3482
    %v3490 = vpop.xlane.xlu0 %3489
    %3491 = vadd.xlane.f32.xlu0 %v3483
    %v3492 = vpop.xlane.xlu0 %3491
    %3493 = vadd.xlane.f32.xlu0 %v3484
    %v3494 = vpop.xlane.xlu0 %3493
    %3495 = vadd.xlane.f32.xlu0 %v3485
    %v3496 = vpop.xlane.xlu0 %3495
    %3497 = vadd.xlane.f32.xlu0 %v3486
    %v3498 = vpop.xlane.xlu0 %3497
    %v3499 = vmul.f32 %v3488, %v560
    %v3500 = vmul.f32 %v3490, %v560
    %v3501 = vmul.f32 %v3492, %v560
    %v3502 = vmul.f32 %v3494, %v560
    %v3503 = vmul.f32 %v3496, %v560
    %v3504 = vmul.f32 %v3498, %v560
    %v3505 = vadd.f32 %v3499, 1e-05
    %v3506 = vadd.f32 %v3500, 1e-05
    %v3507 = vadd.f32 %v3501, 1e-05
    %v3508 = vadd.f32 %v3502, 1e-05
    %v3509 = vadd.f32 %v3503, 1e-05
    %v3510 = vadd.f32 %v3504, 1e-05
    %v3511 = vrsqrt.pop %v3505
    %v3512 = vrsqrt.pop %v3506
    %v3513 = vrsqrt.pop %v3507
    %v3514 = vrsqrt.pop %v3508
    %v3515 = vrsqrt.pop %v3509
    %v3516 = vrsqrt.pop %v3510
    %v3517 = vmul.f32 %v3475, %v3511
    %v3518 = vmul.f32 %v3476, %v3512
    %v3519 = vmul.f32 %v3477, %v3513
    %v3520 = vmul.f32 %v3478, %v3514
    %v3521 = vmul.f32 %v3479, %v3515
    %v3522 = vmul.f32 %v3480, %v3516
    %v3524 = vlaneseq
    %v3525 = vshrl.u32 %v3524, 7
    %v3526 = vsub.s32 0, %v3525
    %v3527 = vrot.slane %v416, %v3526
    %v3529 = vmul.f32 %v3517, %v3527
    %v3530 = vmul.f32 %v3518, %v3527
    %v3531 = vmul.f32 %v3519, %v3527
    %v3532 = vmul.f32 %v3520, %v3527
    %v3533 = vmul.f32 %v3521, %v3527
    %v3534 = vmul.f32 %v3522, %v3527
    %v3536 = vlaneseq
    %v3537 = vshrl.u32 %v3536, 7
    %v3538 = vsub.s32 0, %v3537
    %v3539 = vrot.slane %v417, %v3538
    %v3541 = vadd.f32 %v3529, %v3539
    %v3542 = vadd.f32 %v3530, %v3539
    %v3543 = vadd.f32 %v3531, %v3539
    %v3544 = vadd.f32 %v3532, %v3539
    %v3545 = vadd.f32 %v3533, %v3539
    %v3546 = vadd.f32 %v3534, %v3539
    %v3548 = vlaneseq
    %v3549 = vshrl.u32 %v3548, 7
    %v3550 = vsub.s32 0, %v3549
    %v3551 = vrot.slane %v482, %v3550
    %v3552 = vlaneseq
    %v3553 = vshrl.u32 %v3552, 7
    %v3554 = vsub.s32 1, %v3553
    %v3555 = vrot.slane %v482, %v3554
    %v3556 = vlaneseq
    %v3557 = vshrl.u32 %v3556, 7
    %v3558 = vsub.s32 2, %v3557
    %v3559 = vrot.slane %v482, %v3558
    %v3560 = vlaneseq
    %v3561 = vshrl.u32 %v3560, 7
    %v3562 = vsub.s32 3, %v3561
    %v3563 = vrot.slane %v482, %v3562
    %3568 = vmatprep.subr.mxu0 %v479
    %3569 = vmatpush1.msra.mxu0 %v478
    %3570 = vmatprep.subr.mxu0 %v475
    %3571 = vmatpush1.msra.mxu0 %v474
    %3572 = vmatprep.subr.mxu0 %v471
    %3573 = vmatpush1.msra.mxu0 %v470
    %3574 = vmatprep.subr.mxu0 %v467
    %3575 = vmatpush1.msra.mxu0 %v466
    %3576 = vmatprep.subr.mxu0 %v463
    %3577 = vmatpush1.msra.mxu0 %v462
    %3578 = vmatprep.subr.mxu0 %v459
    %3579 = vmatpush1.msra.mxu0 %v458
    %3580 = vmatprep.subr.mxu0 %v455
    %3581 = vmatpush1.msra.mxu0 %v454
    %3582 = vmatprep.subr.mxu0 %v451
    %3583 = vmatpush1.msra.mxu0 %v450
    %3584 = vmatprep.subr.mxu0 %v447
    %3585 = vmatpush1.msra.mxu0 %v446
    %3586 = vmatprep.subr.mxu0 %v443
    %3587 = vmatpush1.msra.mxu0 %v442
    %3588 = vmatprep.subr.mxu0 %v439
    %3589 = vmatpush1.msra.mxu0 %v438
    %3590 = vmatprep.subr.mxu0 %v435
    %3591 = vmatpush1.msra.mxu0 %v434
    %3592 = vmatprep.subr.mxu0 %v431
    %3593 = vmatpush1.msra.mxu0 %v430
    %3594 = vmatprep.subr.mxu0 %v427
    %3595 = vmatpush1.msra.mxu0 %v426
    %3596 = vmatprep.subr.mxu0 %v423
    %3597 = vmatpush1.msra.mxu0 %v422
    %3598 = vmatprep.subr.mxu0 %v419
    %3599 = vmatpush1.msra.mxu0 %v418
    %3600 = vmatprep.subr.mxu0 0.0
    %3601 = vmatpush2.msra.mxu0 0.0
    %3602 = vmatprep.subr.mxu0 0.0
    %3603 = vmatpush2.msra.mxu0 0.0
    %3604 = vmatprep.subr.mxu0 0.0
    %3605 = vmatpush2.msra.mxu0 0.0
    %3606 = vmatprep.subr.mxu0 0.0
    %3607 = vmatpush2.msra.mxu0 0.0
    %3608 = vmatprep.subr.mxu0 0.0
    %3609 = vmatpush2.msra.mxu0 0.0
    %3610 = vmatprep.subr.mxu0 0.0
    %3611 = vmatpush2.msra.mxu0 0.0
    %3612 = vmatprep.subr.mxu0 0.0
    %3613 = vmatpush2.msra.mxu0 0.0
    %3614 = vmatprep.subr.mxu0 0.0
    %3615 = vmatpush2.msra.mxu0 0.0
    %3616 = vmatprep.subr.mxu0 0.0
    %3617 = vmatpush2.msra.mxu0 0.0
    %3618 = vmatprep.subr.mxu0 0.0
    %3619 = vmatpush2.msra.mxu0 0.0
    %3620 = vmatprep.subr.mxu0 0.0
    %3621 = vmatpush2.msra.mxu0 0.0
    %3622 = vmatprep.subr.mxu0 0.0
    %3623 = vmatpush2.msra.mxu0 0.0
    %3624 = vmatprep.subr.mxu0 0.0
    %3625 = vmatpush2.msra.mxu0 0.0
    %3626 = vmatprep.subr.mxu0 0.0
    %3627 = vmatpush2.msra.mxu0 0.0
    %3628 = vmatprep.subr.mxu0 0.0
    %3629 = vmatpush2.msra.mxu0 0.0
    %3630 = vmatprep.subr.mxu0 0.0
    %3631 = vmatpush2.msra.mxu0 0.0
    %3632 = vmatprep.mubr.f32.mxu0 0.0
    %3633 = vmatmul.mubr.f32.gmra.mxu0 %v3541
    %v3634 = vpop.f32.mrf.mxu0
    %v3635 = vadd.f32 %v3551, %v3634
    %v3636 = vpop.f32.mrf.mxu0
    %v3637 = vadd.f32 %v3555, %v3636
    %3638 = vmatprep.mubr.f32.mxu0 0.0
    %3639 = vmatmul.mubr.f32.gmra.mxu0 %v3542
    %v3640 = vpop.f32.mrf.mxu0
    %v3641 = vadd.f32 %v3551, %v3640
    %v3642 = vpop.f32.mrf.mxu0
    %v3643 = vadd.f32 %v3555, %v3642
    %3644 = vmatprep.mubr.f32.mxu0 0.0
    %3645 = vmatmul.mubr.f32.gmra.mxu0 %v3543
    %v3646 = vpop.f32.mrf.mxu0
    %v3647 = vadd.f32 %v3551, %v3646
    %v3648 = vpop.f32.mrf.mxu0
    %v3649 = vadd.f32 %v3555, %v3648
    %3650 = vmatprep.mubr.f32.mxu0 0.0
    %3651 = vmatmul.mubr.f32.gmra.mxu0 %v3544
    %v3652 = vpop.f32.mrf.mxu0
    %v3653 = vadd.f32 %v3551, %v3652
    %v3654 = vpop.f32.mrf.mxu0
    %v3655 = vadd.f32 %v3555, %v3654
    %3656 = vmatprep.mubr.f32.mxu0 0.0
    %3657 = vmatmul.mubr.f32.gmra.mxu0 %v3545
    %v3658 = vpop.f32.mrf.mxu0
    %v3659 = vadd.f32 %v3551, %v3658
    %v3660 = vpop.f32.mrf.mxu0
    %v3661 = vadd.f32 %v3555, %v3660
    %3662 = vmatprep.mubr.f32.mxu0 0.0
    %3663 = vmatmul.mubr.f32.gmra.mxu0 %v3546
    %v3664 = vpop.f32.mrf.mxu0
    %v3665 = vadd.f32 %v3551, %v3664
    %v3666 = vpop.f32.mrf.mxu0
    %v3667 = vadd.f32 %v3555, %v3666
    %3668 = vdwg.mxu0
    %3669 = vmatprep.subr.mxu0 %v481
    %3670 = vmatpush1.msra.mxu0 %v480
    %3671 = vmatprep.subr.mxu0 %v477
    %3672 = vmatpush1.msra.mxu0 %v476
    %3673 = vmatprep.subr.mxu0 %v473
    %3674 = vmatpush1.msra.mxu0 %v472
    %3675 = vmatprep.subr.mxu0 %v469
    %3676 = vmatpush1.msra.mxu0 %v468
    %3677 = vmatprep.subr.mxu0 %v465
    %3678 = vmatpush1.msra.mxu0 %v464
    %3679 = vmatprep.subr.mxu0 %v461
    %3680 = vmatpush1.msra.mxu0 %v460
    %3681 = vmatprep.subr.mxu0 %v457
    %3682 = vmatpush1.msra.mxu0 %v456
    %3683 = vmatprep.subr.mxu0 %v453
    %3684 = vmatpush1.msra.mxu0 %v452
    %3685 = vmatprep.subr.mxu0 %v449
    %3686 = vmatpush1.msra.mxu0 %v448
    %3687 = vmatprep.subr.mxu0 %v445
    %3688 = vmatpush1.msra.mxu0 %v444
    %3689 = vmatprep.subr.mxu0 %v441
    %3690 = vmatpush1.msra.mxu0 %v440
    %3691 = vmatprep.subr.mxu0 %v437
    %3692 = vmatpush1.msra.mxu0 %v436
    %3693 = vmatprep.subr.mxu0 %v433
    %3694 = vmatpush1.msra.mxu0 %v432
    %3695 = vmatprep.subr.mxu0 %v429
    %3696 = vmatpush1.msra.mxu0 %v428
    %3697 = vmatprep.subr.mxu0 %v425
    %3698 = vmatpush1.msra.mxu0 %v424
    %3699 = vmatprep.subr.mxu0 %v421
    %3700 = vmatpush1.msra.mxu0 %v420
    %3701 = vmatprep.subr.mxu0 0.0
    %3702 = vmatpush2.msra.mxu0 0.0
    %3703 = vmatprep.subr.mxu0 0.0
    %3704 = vmatpush2.msra.mxu0 0.0
    %3705 = vmatprep.subr.mxu0 0.0
    %3706 = vmatpush2.msra.mxu0 0.0
    %3707 = vmatprep.subr.mxu0 0.0
    %3708 = vmatpush2.msra.mxu0 0.0
    %3709 = vmatprep.subr.mxu0 0.0
    %3710 = vmatpush2.msra.mxu0 0.0
    %3711 = vmatprep.subr.mxu0 0.0
    %3712 = vmatpush2.msra.mxu0 0.0
    %3713 = vmatprep.subr.mxu0 0.0
    %3714 = vmatpush2.msra.mxu0 0.0
    %3715 = vmatprep.subr.mxu0 0.0
    %3716 = vmatpush2.msra.mxu0 0.0
    %3717 = vmatprep.subr.mxu0 0.0
    %3718 = vmatpush2.msra.mxu0 0.0
    %3719 = vmatprep.subr.mxu0 0.0
    %3720 = vmatpush2.msra.mxu0 0.0
    %3721 = vmatprep.subr.mxu0 0.0
    %3722 = vmatpush2.msra.mxu0 0.0
    %3723 = vmatprep.subr.mxu0 0.0
    %3724 = vmatpush2.msra.mxu0 0.0
    %3725 = vmatprep.subr.mxu0 0.0
    %3726 = vmatpush2.msra.mxu0 0.0
    %3727 = vmatprep.subr.mxu0 0.0
    %3728 = vmatpush2.msra.mxu0 0.0
    %3729 = vmatprep.subr.mxu0 0.0
    %3730 = vmatpush2.msra.mxu0 0.0
    %3731 = vmatprep.subr.mxu0 0.0
    %3732 = vmatpush2.msra.mxu0 0.0
    %3733 = vmatprep.mubr.f32.mxu0 0.0
    %3734 = vmatmul.mubr.f32.gmra.mxu0 %v3541
    %v3735 = vpop.f32.mrf.mxu0
    %v3736 = vadd.f32 %v3559, %v3735
    %v3737 = vpop.f32.mrf.mxu0
    %v3738 = vadd.f32 %v3563, %v3737
    %3739 = vmatprep.mubr.f32.mxu0 0.0
    %3740 = vmatmul.mubr.f32.gmra.mxu0 %v3542
    %v3741 = vpop.f32.mrf.mxu0
    %v3742 = vadd.f32 %v3559, %v3741
    %v3743 = vpop.f32.mrf.mxu0
    %v3744 = vadd.f32 %v3563, %v3743
    %3745 = vmatprep.mubr.f32.mxu0 0.0
    %3746 = vmatmul.mubr.f32.gmra.mxu0 %v3543
    %v3747 = vpop.f32.mrf.mxu0
    %v3748 = vadd.f32 %v3559, %v3747
    %v3749 = vpop.f32.mrf.mxu0
    %v3750 = vadd.f32 %v3563, %v3749
    %3751 = vmatprep.mubr.f32.mxu0 0.0
    %3752 = vmatmul.mubr.f32.gmra.mxu0 %v3544
    %v3753 = vpop.f32.mrf.mxu0
    %v3754 = vadd.f32 %v3559, %v3753
    %v3755 = vpop.f32.mrf.mxu0
    %v3756 = vadd.f32 %v3563, %v3755
    %3757 = vmatprep.mubr.f32.mxu0 0.0
    %3758 = vmatmul.mubr.f32.gmra.mxu0 %v3545
    %v3759 = vpop.f32.mrf.mxu0
    %v3760 = vadd.f32 %v3559, %v3759
    %v3761 = vpop.f32.mrf.mxu0
    %v3762 = vadd.f32 %v3563, %v3761
    %3763 = vmatprep.mubr.f32.mxu0 0.0
    %3764 = vmatmul.mubr.f32.gmra.mxu0 %v3546
    %v3765 = vpop.f32.mrf.mxu0
    %v3766 = vadd.f32 %v3559, %v3765
    %v3767 = vpop.f32.mrf.mxu0
    %v3768 = vadd.f32 %v3563, %v3767
    %3769 = vdwg.mxu0
    %v3770 = vmul.f32 %v3635, 0.5
    %v3771 = vmul.f32 %v3637, 0.5
    %v3772 = vmul.f32 %v3736, 0.5
    %v3773 = vmul.f32 %v3738, 0.5
    %v3774 = vmul.f32 %v3641, 0.5
    %v3775 = vmul.f32 %v3643, 0.5
    %v3776 = vmul.f32 %v3742, 0.5
    %v3777 = vmul.f32 %v3744, 0.5
    %v3778 = vmul.f32 %v3647, 0.5
    %v3779 = vmul.f32 %v3649, 0.5
    %v3780 = vmul.f32 %v3748, 0.5
    %v3781 = vmul.f32 %v3750, 0.5
    %v3782 = vmul.f32 %v3653, 0.5
    %v3783 = vmul.f32 %v3655, 0.5
    %v3784 = vmul.f32 %v3754, 0.5
    %v3785 = vmul.f32 %v3756, 0.5
    %v3786 = vmul.f32 %v3659, 0.5
    %v3787 = vmul.f32 %v3661, 0.5
    %v3788 = vmul.f32 %v3760, 0.5
    %v3789 = vmul.f32 %v3762, 0.5
    %v3790 = vmul.f32 %v3665, 0.5
    %v3791 = vmul.f32 %v3667, 0.5
    %v3792 = vmul.f32 %v3766, 0.5
    %v3793 = vmul.f32 %v3768, 0.5
    %v3794 = vmul.f32 %v3635, 0.70710677
    %v3795 = vmul.f32 %v3637, 0.70710677
    %v3796 = vmul.f32 %v3736, 0.70710677
    %v3797 = vmul.f32 %v3738, 0.70710677
    %v3798 = vmul.f32 %v3641, 0.70710677
    %v3799 = vmul.f32 %v3643, 0.70710677
    %v3800 = vmul.f32 %v3742, 0.70710677
    %v3801 = vmul.f32 %v3744, 0.70710677
    %v3802 = vmul.f32 %v3647, 0.70710677
    %v3803 = vmul.f32 %v3649, 0.70710677
    %v3804 = vmul.f32 %v3748, 0.70710677
    %v3805 = vmul.f32 %v3750, 0.70710677
    %v3806 = vmul.f32 %v3653, 0.70710677
    %v3807 = vmul.f32 %v3655, 0.70710677
    %v3808 = vmul.f32 %v3754, 0.70710677
    %v3809 = vmul.f32 %v3756, 0.70710677
    %v3810 = vmul.f32 %v3659, 0.70710677
    %v3811 = vmul.f32 %v3661, 0.70710677
    %v3812 = vmul.f32 %v3760, 0.70710677
    %v3813 = vmul.f32 %v3762, 0.70710677
    %v3814 = vmul.f32 %v3665, 0.70710677
    %v3815 = vmul.f32 %v3667, 0.70710677
    %v3816 = vmul.f32 %v3766, 0.70710677
    %v3817 = vmul.f32 %v3768, 0.70710677
    %v3818 = vand.u32 2147483647, %v3794
    %v3819 = vand.u32 2147483647, %v3795
    %v3820 = vand.u32 2147483647, %v3796
    %v3821 = vand.u32 2147483647, %v3797
    %v3822 = vand.u32 2147483647, %v3798
    %v3823 = vand.u32 2147483647, %v3799
    %v3824 = vand.u32 2147483647, %v3800
    %v3825 = vand.u32 2147483647, %v3801
    %v3826 = vand.u32 2147483647, %v3802
    %v3827 = vand.u32 2147483647, %v3803
    %v3828 = vand.u32 2147483647, %v3804
    %v3829 = vand.u32 2147483647, %v3805
    %v3830 = vand.u32 2147483647, %v3806
    %v3831 = vand.u32 2147483647, %v3807
    %v3832 = vand.u32 2147483647, %v3808
    %v3833 = vand.u32 2147483647, %v3809
    %v3834 = vand.u32 2147483647, %v3810
    %v3835 = vand.u32 2147483647, %v3811
    %v3836 = vand.u32 2147483647, %v3812
    %v3837 = vand.u32 2147483647, %v3813
    %v3838 = vand.u32 2147483647, %v3814
    %v3839 = vand.u32 2147483647, %v3815
    %v3840 = vand.u32 2147483647, %v3816
    %v3841 = vand.u32 2147483647, %v3817
    %v3842 = vmul.f32 %v3818, 0.3275911
    %v3843 = vmul.f32 %v3819, 0.3275911
    %v3844 = vmul.f32 %v3820, 0.3275911
    %v3845 = vmul.f32 %v3821, 0.3275911
    %v3846 = vmul.f32 %v3822, 0.3275911
    %v3847 = vmul.f32 %v3823, 0.3275911
    %v3848 = vmul.f32 %v3824, 0.3275911
    %v3849 = vmul.f32 %v3825, 0.3275911
    %v3850 = vmul.f32 %v3826, 0.3275911
    %v3851 = vmul.f32 %v3827, 0.3275911
    %v3852 = vmul.f32 %v3828, 0.3275911
    %v3853 = vmul.f32 %v3829, 0.3275911
    %v3854 = vmul.f32 %v3830, 0.3275911
    %v3855 = vmul.f32 %v3831, 0.3275911
    %v3856 = vmul.f32 %v3832, 0.3275911
    %v3857 = vmul.f32 %v3833, 0.3275911
    %v3858 = vmul.f32 %v3834, 0.3275911
    %v3859 = vmul.f32 %v3835, 0.3275911
    %v3860 = vmul.f32 %v3836, 0.3275911
    %v3861 = vmul.f32 %v3837, 0.3275911
    %v3862 = vmul.f32 %v3838, 0.3275911
    %v3863 = vmul.f32 %v3839, 0.3275911
    %v3864 = vmul.f32 %v3840, 0.3275911
    %v3865 = vmul.f32 %v3841, 0.3275911
    %v3866 = vadd.f32 %v3842, 1.0
    %v3867 = vadd.f32 %v3843, 1.0
    %v3868 = vadd.f32 %v3844, 1.0
    %v3869 = vadd.f32 %v3845, 1.0
    %v3870 = vadd.f32 %v3846, 1.0
    %v3871 = vadd.f32 %v3847, 1.0
    %v3872 = vadd.f32 %v3848, 1.0
    %v3873 = vadd.f32 %v3849, 1.0
    %v3874 = vadd.f32 %v3850, 1.0
    %v3875 = vadd.f32 %v3851, 1.0
    %v3876 = vadd.f32 %v3852, 1.0
    %v3877 = vadd.f32 %v3853, 1.0
    %v3878 = vadd.f32 %v3854, 1.0
    %v3879 = vadd.f32 %v3855, 1.0
    %v3880 = vadd.f32 %v3856, 1.0
    %v3881 = vadd.f32 %v3857, 1.0
    %v3882 = vadd.f32 %v3858, 1.0
    %v3883 = vadd.f32 %v3859, 1.0
    %v3884 = vadd.f32 %v3860, 1.0
    %v3885 = vadd.f32 %v3861, 1.0
    %v3886 = vadd.f32 %v3862, 1.0
    %v3887 = vadd.f32 %v3863, 1.0
    %v3888 = vadd.f32 %v3864, 1.0
    %v3889 = vadd.f32 %v3865, 1.0
    %v3890 = vrcp.pop %v3866
    %v3891 = vmul.f32 1.0, %v3890
    %v3892 = vrcp.pop %v3867
    %v3893 = vmul.f32 1.0, %v3892
    %v3894 = vrcp.pop %v3868
    %v3895 = vmul.f32 1.0, %v3894
    %v3896 = vrcp.pop %v3869
    %v3897 = vmul.f32 1.0, %v3896
    %v3898 = vrcp.pop %v3870
    %v3899 = vmul.f32 1.0, %v3898
    %v3900 = vrcp.pop %v3871
    %v3901 = vmul.f32 1.0, %v3900
    %v3902 = vrcp.pop %v3872
    %v3903 = vmul.f32 1.0, %v3902
    %v3904 = vrcp.pop %v3873
    %v3905 = vmul.f32 1.0, %v3904
    %v3906 = vrcp.pop %v3874
    %v3907 = vmul.f32 1.0, %v3906
    %v3908 = vrcp.pop %v3875
    %v3909 = vmul.f32 1.0, %v3908
    %v3910 = vrcp.pop %v3876
    %v3911 = vmul.f32 1.0, %v3910
    %v3912 = vrcp.pop %v3877
    %v3913 = vmul.f32 1.0, %v3912
    %v3914 = vrcp.pop %v3878
    %v3915 = vmul.f32 1.0, %v3914
    %v3916 = vrcp.pop %v3879
    %v3917 = vmul.f32 1.0, %v3916
    %v3918 = vrcp.pop %v3880
    %v3919 = vmul.f32 1.0, %v3918
    %v3920 = vrcp.pop %v3881
    %v3921 = vmul.f32 1.0, %v3920
    %v3922 = vrcp.pop %v3882
    %v3923 = vmul.f32 1.0, %v3922
    %v3924 = vrcp.pop %v3883
    %v3925 = vmul.f32 1.0, %v3924
    %v3926 = vrcp.pop %v3884
    %v3927 = vmul.f32 1.0, %v3926
    %v3928 = vrcp.pop %v3885
    %v3929 = vmul.f32 1.0, %v3928
    %v3930 = vrcp.pop %v3886
    %v3931 = vmul.f32 1.0, %v3930
    %v3932 = vrcp.pop %v3887
    %v3933 = vmul.f32 1.0, %v3932
    %v3934 = vrcp.pop %v3888
    %v3935 = vmul.f32 1.0, %v3934
    %v3936 = vrcp.pop %v3889
    %v3937 = vmul.f32 1.0, %v3936
    %v3938 = vmul.f32 %v3891, 1.0614054
    %v3939 = vmul.f32 %v3893, 1.0614054
    %v3940 = vmul.f32 %v3895, 1.0614054
    %v3941 = vmul.f32 %v3897, 1.0614054
    %v3942 = vmul.f32 %v3899, 1.0614054
    %v3943 = vmul.f32 %v3901, 1.0614054
    %v3944 = vmul.f32 %v3903, 1.0614054
    %v3945 = vmul.f32 %v3905, 1.0614054
    %v3946 = vmul.f32 %v3907, 1.0614054
    %v3947 = vmul.f32 %v3909, 1.0614054
    %v3948 = vmul.f32 %v3911, 1.0614054
    %v3949 = vmul.f32 %v3913, 1.0614054
    %v3950 = vmul.f32 %v3915, 1.0614054
    %v3951 = vmul.f32 %v3917, 1.0614054
    %v3952 = vmul.f32 %v3919, 1.0614054
    %v3953 = vmul.f32 %v3921, 1.0614054
    %v3954 = vmul.f32 %v3923, 1.0614054
    %v3955 = vmul.f32 %v3925, 1.0614054
    %v3956 = vmul.f32 %v3927, 1.0614054
    %v3957 = vmul.f32 %v3929, 1.0614054
    %v3958 = vmul.f32 %v3931, 1.0614054
    %v3959 = vmul.f32 %v3933, 1.0614054
    %v3960 = vmul.f32 %v3935, 1.0614054
    %v3961 = vmul.f32 %v3937, 1.0614054
    %v3962 = vadd.f32 %v3938, -1.4531521
    %v3963 = vadd.f32 %v3939, -1.4531521
    %v3964 = vadd.f32 %v3940, -1.4531521
    %v3965 = vadd.f32 %v3941, -1.4531521
    %v3966 = vadd.f32 %v3942, -1.4531521
    %v3967 = vadd.f32 %v3943, -1.4531521
    %v3968 = vadd.f32 %v3944, -1.4531521
    %v3969 = vadd.f32 %v3945, -1.4531521
    %v3970 = vadd.f32 %v3946, -1.4531521
    %v3971 = vadd.f32 %v3947, -1.4531521
    %v3972 = vadd.f32 %v3948, -1.4531521
    %v3973 = vadd.f32 %v3949, -1.4531521
    %v3974 = vadd.f32 %v3950, -1.4531521
    %v3975 = vadd.f32 %v3951, -1.4531521
    %v3976 = vadd.f32 %v3952, -1.4531521
    %v3977 = vadd.f32 %v3953, -1.4531521
    %v3978 = vadd.f32 %v3954, -1.4531521
    %v3979 = vadd.f32 %v3955, -1.4531521
    %v3980 = vadd.f32 %v3956, -1.4531521
    %v3981 = vadd.f32 %v3957, -1.4531521
    %v3982 = vadd.f32 %v3958, -1.4531521
    %v3983 = vadd.f32 %v3959, -1.4531521
    %v3984 = vadd.f32 %v3960, -1.4531521
    %v3985 = vadd.f32 %v3961, -1.4531521
    %v3986 = vmul.f32 %v3962, %v3891
    %v3987 = vmul.f32 %v3963, %v3893
    %v3988 = vmul.f32 %v3964, %v3895
    %v3989 = vmul.f32 %v3965, %v3897
    %v3990 = vmul.f32 %v3966, %v3899
    %v3991 = vmul.f32 %v3967, %v3901
    %v3992 = vmul.f32 %v3968, %v3903
    %v3993 = vmul.f32 %v3969, %v3905
    %v3994 = vmul.f32 %v3970, %v3907
    %v3995 = vmul.f32 %v3971, %v3909
    %v3996 = vmul.f32 %v3972, %v3911
    %v3997 = vmul.f32 %v3973, %v3913
    %v3998 = vmul.f32 %v3974, %v3915
    %v3999 = vmul.f32 %v3975, %v3917
    %v4000 = vmul.f32 %v3976, %v3919
    %v4001 = vmul.f32 %v3977, %v3921
    %v4002 = vmul.f32 %v3978, %v3923
    %v4003 = vmul.f32 %v3979, %v3925
    %v4004 = vmul.f32 %v3980, %v3927
    %v4005 = vmul.f32 %v3981, %v3929
    %v4006 = vmul.f32 %v3982, %v3931
    %v4007 = vmul.f32 %v3983, %v3933
    %v4008 = vmul.f32 %v3984, %v3935
    %v4009 = vmul.f32 %v3985, %v3937
    %v4010 = vadd.f32 %v3986, 1.4214138
    %v4011 = vadd.f32 %v3987, 1.4214138
    %v4012 = vadd.f32 %v3988, 1.4214138
    %v4013 = vadd.f32 %v3989, 1.4214138
    %v4014 = vadd.f32 %v3990, 1.4214138
    %v4015 = vadd.f32 %v3991, 1.4214138
    %v4016 = vadd.f32 %v3992, 1.4214138
    %v4017 = vadd.f32 %v3993, 1.4214138
    %v4018 = vadd.f32 %v3994, 1.4214138
    %v4019 = vadd.f32 %v3995, 1.4214138
    %v4020 = vadd.f32 %v3996, 1.4214138
    %v4021 = vadd.f32 %v3997, 1.4214138
    %v4022 = vadd.f32 %v3998, 1.4214138
    %v4023 = vadd.f32 %v3999, 1.4214138
    %v4024 = vadd.f32 %v4000, 1.4214138
    %v4025 = vadd.f32 %v4001, 1.4214138
    %v4026 = vadd.f32 %v4002, 1.4214138
    %v4027 = vadd.f32 %v4003, 1.4214138
    %v4028 = vadd.f32 %v4004, 1.4214138
    %v4029 = vadd.f32 %v4005, 1.4214138
    %v4030 = vadd.f32 %v4006, 1.4214138
    %v4031 = vadd.f32 %v4007, 1.4214138
    %v4032 = vadd.f32 %v4008, 1.4214138
    %v4033 = vadd.f32 %v4009, 1.4214138
    %v4034 = vmul.f32 %v4010, %v3891
    %v4035 = vmul.f32 %v4011, %v3893
    %v4036 = vmul.f32 %v4012, %v3895
    %v4037 = vmul.f32 %v4013, %v3897
    %v4038 = vmul.f32 %v4014, %v3899
    %v4039 = vmul.f32 %v4015, %v3901
    %v4040 = vmul.f32 %v4016, %v3903
    %v4041 = vmul.f32 %v4017, %v3905
    %v4042 = vmul.f32 %v4018, %v3907
    %v4043 = vmul.f32 %v4019, %v3909
    %v4044 = vmul.f32 %v4020, %v3911
    %v4045 = vmul.f32 %v4021, %v3913
    %v4046 = vmul.f32 %v4022, %v3915
    %v4047 = vmul.f32 %v4023, %v3917
    %v4048 = vmul.f32 %v4024, %v3919
    %v4049 = vmul.f32 %v4025, %v3921
    %v4050 = vmul.f32 %v4026, %v3923
    %v4051 = vmul.f32 %v4027, %v3925
    %v4052 = vmul.f32 %v4028, %v3927
    %v4053 = vmul.f32 %v4029, %v3929
    %v4054 = vmul.f32 %v4030, %v3931
    %v4055 = vmul.f32 %v4031, %v3933
    %v4056 = vmul.f32 %v4032, %v3935
    %v4057 = vmul.f32 %v4033, %v3937
    %v4058 = vadd.f32 %v4034, -0.28449672
    %v4059 = vadd.f32 %v4035, -0.28449672
    %v4060 = vadd.f32 %v4036, -0.28449672
    %v4061 = vadd.f32 %v4037, -0.28449672
    %v4062 = vadd.f32 %v4038, -0.28449672
    %v4063 = vadd.f32 %v4039, -0.28449672
    %v4064 = vadd.f32 %v4040, -0.28449672
    %v4065 = vadd.f32 %v4041, -0.28449672
    %v4066 = vadd.f32 %v4042, -0.28449672
    %v4067 = vadd.f32 %v4043, -0.28449672
    %v4068 = vadd.f32 %v4044, -0.28449672
    %v4069 = vadd.f32 %v4045, -0.28449672
    %v4070 = vadd.f32 %v4046, -0.28449672
    %v4071 = vadd.f32 %v4047, -0.28449672
    %v4072 = vadd.f32 %v4048, -0.28449672
    %v4073 = vadd.f32 %v4049, -0.28449672
    %v4074 = vadd.f32 %v4050, -0.28449672
    %v4075 = vadd.f32 %v4051, -0.28449672
    %v4076 = vadd.f32 %v4052, -0.28449672
    %v4077 = vadd.f32 %v4053, -0.28449672
    %v4078 = vadd.f32 %v4054, -0.28449672
    %v4079 = vadd.f32 %v4055, -0.28449672
    %v4080 = vadd.f32 %v4056, -0.28449672
    %v4081 = vadd.f32 %v4057, -0.28449672
    %v4082 = vmul.f32 %v4058, %v3891
    %v4083 = vmul.f32 %v4059, %v3893
    %v4084 = vmul.f32 %v4060, %v3895
    %v4085 = vmul.f32 %v4061, %v3897
    %v4086 = vmul.f32 %v4062, %v3899
    %v4087 = vmul.f32 %v4063, %v3901
    %v4088 = vmul.f32 %v4064, %v3903
    %v4089 = vmul.f32 %v4065, %v3905
    %v4090 = vmul.f32 %v4066, %v3907
    %v4091 = vmul.f32 %v4067, %v3909
    %v4092 = vmul.f32 %v4068, %v3911
    %v4093 = vmul.f32 %v4069, %v3913
    %v4094 = vmul.f32 %v4070, %v3915
    %v4095 = vmul.f32 %v4071, %v3917
    %v4096 = vmul.f32 %v4072, %v3919
    %v4097 = vmul.f32 %v4073, %v3921
    %v4098 = vmul.f32 %v4074, %v3923
    %v4099 = vmul.f32 %v4075, %v3925
    %v4100 = vmul.f32 %v4076, %v3927
    %v4101 = vmul.f32 %v4077, %v3929
    %v4102 = vmul.f32 %v4078, %v3931
    %v4103 = vmul.f32 %v4079, %v3933
    %v4104 = vmul.f32 %v4080, %v3935
    %v4105 = vmul.f32 %v4081, %v3937
    %v4106 = vadd.f32 %v4082, 0.2548296
    %v4107 = vadd.f32 %v4083, 0.2548296
    %v4108 = vadd.f32 %v4084, 0.2548296
    %v4109 = vadd.f32 %v4085, 0.2548296
    %v4110 = vadd.f32 %v4086, 0.2548296
    %v4111 = vadd.f32 %v4087, 0.2548296
    %v4112 = vadd.f32 %v4088, 0.2548296
    %v4113 = vadd.f32 %v4089, 0.2548296
    %v4114 = vadd.f32 %v4090, 0.2548296
    %v4115 = vadd.f32 %v4091, 0.2548296
    %v4116 = vadd.f32 %v4092, 0.2548296
    %v4117 = vadd.f32 %v4093, 0.2548296
    %v4118 = vadd.f32 %v4094, 0.2548296
    %v4119 = vadd.f32 %v4095, 0.2548296
    %v4120 = vadd.f32 %v4096, 0.2548296
    %v4121 = vadd.f32 %v4097, 0.2548296
    %v4122 = vadd.f32 %v4098, 0.2548296
    %v4123 = vadd.f32 %v4099, 0.2548296
    %v4124 = vadd.f32 %v4100, 0.2548296
    %v4125 = vadd.f32 %v4101, 0.2548296
    %v4126 = vadd.f32 %v4102, 0.2548296
    %v4127 = vadd.f32 %v4103, 0.2548296
    %v4128 = vadd.f32 %v4104, 0.2548296
    %v4129 = vadd.f32 %v4105, 0.2548296
    %v4130 = vmul.f32 %v4106, %v3891
    %v4131 = vmul.f32 %v4107, %v3893
    %v4132 = vmul.f32 %v4108, %v3895
    %v4133 = vmul.f32 %v4109, %v3897
    %v4134 = vmul.f32 %v4110, %v3899
    %v4135 = vmul.f32 %v4111, %v3901
    %v4136 = vmul.f32 %v4112, %v3903
    %v4137 = vmul.f32 %v4113, %v3905
    %v4138 = vmul.f32 %v4114, %v3907
    %v4139 = vmul.f32 %v4115, %v3909
    %v4140 = vmul.f32 %v4116, %v3911
    %v4141 = vmul.f32 %v4117, %v3913
    %v4142 = vmul.f32 %v4118, %v3915
    %v4143 = vmul.f32 %v4119, %v3917
    %v4144 = vmul.f32 %v4120, %v3919
    %v4145 = vmul.f32 %v4121, %v3921
    %v4146 = vmul.f32 %v4122, %v3923
    %v4147 = vmul.f32 %v4123, %v3925
    %v4148 = vmul.f32 %v4124, %v3927
    %v4149 = vmul.f32 %v4125, %v3929
    %v4150 = vmul.f32 %v4126, %v3931
    %v4151 = vmul.f32 %v4127, %v3933
    %v4152 = vmul.f32 %v4128, %v3935
    %v4153 = vmul.f32 %v4129, %v3937
    %v4154 = vsub.f32 0.0, %v3818
    %v4155 = vsub.f32 0.0, %v3819
    %v4156 = vsub.f32 0.0, %v3820
    %v4157 = vsub.f32 0.0, %v3821
    %v4158 = vsub.f32 0.0, %v3822
    %v4159 = vsub.f32 0.0, %v3823
    %v4160 = vsub.f32 0.0, %v3824
    %v4161 = vsub.f32 0.0, %v3825
    %v4162 = vsub.f32 0.0, %v3826
    %v4163 = vsub.f32 0.0, %v3827
    %v4164 = vsub.f32 0.0, %v3828
    %v4165 = vsub.f32 0.0, %v3829
    %v4166 = vsub.f32 0.0, %v3830
    %v4167 = vsub.f32 0.0, %v3831
    %v4168 = vsub.f32 0.0, %v3832
    %v4169 = vsub.f32 0.0, %v3833
    %v4170 = vsub.f32 0.0, %v3834
    %v4171 = vsub.f32 0.0, %v3835
    %v4172 = vsub.f32 0.0, %v3836
    %v4173 = vsub.f32 0.0, %v3837
    %v4174 = vsub.f32 0.0, %v3838
    %v4175 = vsub.f32 0.0, %v3839
    %v4176 = vsub.f32 0.0, %v3840
    %v4177 = vsub.f32 0.0, %v3841
    %v4178 = vmul.f32 %v4154, %v3818
    %v4179 = vmul.f32 %v4155, %v3819
    %v4180 = vmul.f32 %v4156, %v3820
    %v4181 = vmul.f32 %v4157, %v3821
    %v4182 = vmul.f32 %v4158, %v3822
    %v4183 = vmul.f32 %v4159, %v3823
    %v4184 = vmul.f32 %v4160, %v3824
    %v4185 = vmul.f32 %v4161, %v3825
    %v4186 = vmul.f32 %v4162, %v3826
    %v4187 = vmul.f32 %v4163, %v3827
    %v4188 = vmul.f32 %v4164, %v3828
    %v4189 = vmul.f32 %v4165, %v3829
    %v4190 = vmul.f32 %v4166, %v3830
    %v4191 = vmul.f32 %v4167, %v3831
    %v4192 = vmul.f32 %v4168, %v3832
    %v4193 = vmul.f32 %v4169, %v3833
    %v4194 = vmul.f32 %v4170, %v3834
    %v4195 = vmul.f32 %v4171, %v3835
    %v4196 = vmul.f32 %v4172, %v3836
    %v4197 = vmul.f32 %v4173, %v3837
    %v4198 = vmul.f32 %v4174, %v3838
    %v4199 = vmul.f32 %v4175, %v3839
    %v4200 = vmul.f32 %v4176, %v3840
    %v4201 = vmul.f32 %v4177, %v3841
    %v4202 = vmul.f32 %v4178, 1.442695
    %v4203 = vpow.pop %v4202
    %v4204 = vmul.f32 %v4179, 1.442695
    %v4205 = vpow.pop %v4204
    %v4206 = vmul.f32 %v4180, 1.442695
    %v4207 = vpow.pop %v4206
    %v4208 = vmul.f32 %v4181, 1.442695
    %v4209 = vpow.pop %v4208
    %v4210 = vmul.f32 %v4182, 1.442695
    %v4211 = vpow.pop %v4210
    %v4212 = vmul.f32 %v4183, 1.442695
    %v4213 = vpow.pop %v4212
    %v4214 = vmul.f32 %v4184, 1.442695
    %v4215 = vpow.pop %v4214
    %v4216 = vmul.f32 %v4185, 1.442695
    %v4217 = vpow.pop %v4216
    %v4218 = vmul.f32 %v4186, 1.442695
    %v4219 = vpow.pop %v4218
    %v4220 = vmul.f32 %v4187, 1.442695
    %v4221 = vpow.pop %v4220
    %v4222 = vmul.f32 %v4188, 1.442695
    %v4223 = vpow.pop %v4222
    %v4224 = vmul.f32 %v4189, 1.442695
    %v4225 = vpow.pop %v4224
    %v4226 = vmul.f32 %v4190, 1.442695
    %v4227 = vpow.pop %v4226
    %v4228 = vmul.f32 %v4191, 1.442695
    %v4229 = vpow.pop %v4228
    %v4230 = vmul.f32 %v4192, 1.442695
    %v4231 = vpow.pop %v4230
    %v4232 = vmul.f32 %v4193, 1.442695
    %v4233 = vpow.pop %v4232
    %v4234 = vmul.f32 %v4194, 1.442695
    %v4235 = vpow.pop %v4234
    %v4236 = vmul.f32 %v4195, 1.442695
    %v4237 = vpow.pop %v4236
    %v4238 = vmul.f32 %v4196, 1.442695
    %v4239 = vpow.pop %v4238
    %v4240 = vmul.f32 %v4197, 1.442695
    %v4241 = vpow.pop %v4240
    %v4242 = vmul.f32 %v4198, 1.442695
    %v4243 = vpow.pop %v4242
    %v4244 = vmul.f32 %v4199, 1.442695
    %v4245 = vpow.pop %v4244
    %v4246 = vmul.f32 %v4200, 1.442695
    %v4247 = vpow.pop %v4246
    %v4248 = vmul.f32 %v4201, 1.442695
    %v4249 = vpow.pop %v4248
    %v4250 = vmul.f32 %v4130, %v4203
    %v4251 = vmul.f32 %v4131, %v4205
    %v4252 = vmul.f32 %v4132, %v4207
    %v4253 = vmul.f32 %v4133, %v4209
    %v4254 = vmul.f32 %v4134, %v4211
    %v4255 = vmul.f32 %v4135, %v4213
    %v4256 = vmul.f32 %v4136, %v4215
    %v4257 = vmul.f32 %v4137, %v4217
    %v4258 = vmul.f32 %v4138, %v4219
    %v4259 = vmul.f32 %v4139, %v4221
    %v4260 = vmul.f32 %v4140, %v4223
    %v4261 = vmul.f32 %v4141, %v4225
    %v4262 = vmul.f32 %v4142, %v4227
    %v4263 = vmul.f32 %v4143, %v4229
    %v4264 = vmul.f32 %v4144, %v4231
    %v4265 = vmul.f32 %v4145, %v4233
    %v4266 = vmul.f32 %v4146, %v4235
    %v4267 = vmul.f32 %v4147, %v4237
    %v4268 = vmul.f32 %v4148, %v4239
    %v4269 = vmul.f32 %v4149, %v4241
    %v4270 = vmul.f32 %v4150, %v4243
    %v4271 = vmul.f32 %v4151, %v4245
    %v4272 = vmul.f32 %v4152, %v4247
    %v4273 = vmul.f32 %v4153, %v4249
    %v4274 = vsub.f32 1.0, %v4250
    %v4275 = vsub.f32 1.0, %v4251
    %v4276 = vsub.f32 1.0, %v4252
    %v4277 = vsub.f32 1.0, %v4253
    %v4278 = vsub.f32 1.0, %v4254
    %v4279 = vsub.f32 1.0, %v4255
    %v4280 = vsub.f32 1.0, %v4256
    %v4281 = vsub.f32 1.0, %v4257
    %v4282 = vsub.f32 1.0, %v4258
    %v4283 = vsub.f32 1.0, %v4259
    %v4284 = vsub.f32 1.0, %v4260
    %v4285 = vsub.f32 1.0, %v4261
    %v4286 = vsub.f32 1.0, %v4262
    %v4287 = vsub.f32 1.0, %v4263
    %v4288 = vsub.f32 1.0, %v4264
    %v4289 = vsub.f32 1.0, %v4265
    %v4290 = vsub.f32 1.0, %v4266
    %v4291 = vsub.f32 1.0, %v4267
    %v4292 = vsub.f32 1.0, %v4268
    %v4293 = vsub.f32 1.0, %v4269
    %v4294 = vsub.f32 1.0, %v4270
    %v4295 = vsub.f32 1.0, %v4271
    %v4296 = vsub.f32 1.0, %v4272
    %v4297 = vsub.f32 1.0, %v4273
    %vm4298 = vcmp.ge.f32.partialorder %v3794, 0.0
    %vm4299 = vcmp.ge.f32.partialorder %v3795, 0.0
    %vm4300 = vcmp.ge.f32.partialorder %v3796, 0.0
    %vm4301 = vcmp.ge.f32.partialorder %v3797, 0.0
    %vm4302 = vcmp.ge.f32.partialorder %v3798, 0.0
    %vm4303 = vcmp.ge.f32.partialorder %v3799, 0.0
    %vm4304 = vcmp.ge.f32.partialorder %v3800, 0.0
    %vm4305 = vcmp.ge.f32.partialorder %v3801, 0.0
    %vm4306 = vcmp.ge.f32.partialorder %v3802, 0.0
    %vm4307 = vcmp.ge.f32.partialorder %v3803, 0.0
    %vm4308 = vcmp.ge.f32.partialorder %v3804, 0.0
    %vm4309 = vcmp.ge.f32.partialorder %v3805, 0.0
    %vm4310 = vcmp.ge.f32.partialorder %v3806, 0.0
    %vm4311 = vcmp.ge.f32.partialorder %v3807, 0.0
    %vm4312 = vcmp.ge.f32.partialorder %v3808, 0.0
    %vm4313 = vcmp.ge.f32.partialorder %v3809, 0.0
    %vm4314 = vcmp.ge.f32.partialorder %v3810, 0.0
    %vm4315 = vcmp.ge.f32.partialorder %v3811, 0.0
    %vm4316 = vcmp.ge.f32.partialorder %v3812, 0.0
    %vm4317 = vcmp.ge.f32.partialorder %v3813, 0.0
    %vm4318 = vcmp.ge.f32.partialorder %v3814, 0.0
    %vm4319 = vcmp.ge.f32.partialorder %v3815, 0.0
    %vm4320 = vcmp.ge.f32.partialorder %v3816, 0.0
    %vm4321 = vcmp.ge.f32.partialorder %v3817, 0.0
    %v4322 = vsub.f32 0.0, %v4274
    %v4323 = vsub.f32 0.0, %v4275
    %v4324 = vsub.f32 0.0, %v4276
    %v4325 = vsub.f32 0.0, %v4277
    %v4326 = vsub.f32 0.0, %v4278
    %v4327 = vsub.f32 0.0, %v4279
    %v4328 = vsub.f32 0.0, %v4280
    %v4329 = vsub.f32 0.0, %v4281
    %v4330 = vsub.f32 0.0, %v4282
    %v4331 = vsub.f32 0.0, %v4283
    %v4332 = vsub.f32 0.0, %v4284
    %v4333 = vsub.f32 0.0, %v4285
    %v4334 = vsub.f32 0.0, %v4286
    %v4335 = vsub.f32 0.0, %v4287
    %v4336 = vsub.f32 0.0, %v4288
    %v4337 = vsub.f32 0.0, %v4289
    %v4338 = vsub.f32 0.0, %v4290
    %v4339 = vsub.f32 0.0, %v4291
    %v4340 = vsub.f32 0.0, %v4292
    %v4341 = vsub.f32 0.0, %v4293
    %v4342 = vsub.f32 0.0, %v4294
    %v4343 = vsub.f32 0.0, %v4295
    %v4344 = vsub.f32 0.0, %v4296
    %v4345 = vsub.f32 0.0, %v4297
    %v4346 = vsel %vm4298, %v4274, %v4322
    %v4347 = vsel %vm4299, %v4275, %v4323
    %v4348 = vsel %vm4300, %v4276, %v4324
    %v4349 = vsel %vm4301, %v4277, %v4325
    %v4350 = vsel %vm4302, %v4278, %v4326
    %v4351 = vsel %vm4303, %v4279, %v4327
    %v4352 = vsel %vm4304, %v4280, %v4328
    %v4353 = vsel %vm4305, %v4281, %v4329
    %v4354 = vsel %vm4306, %v4282, %v4330
    %v4355 = vsel %vm4307, %v4283, %v4331
    %v4356 = vsel %vm4308, %v4284, %v4332
    %v4357 = vsel %vm4309, %v4285, %v4333
    %v4358 = vsel %vm4310, %v4286, %v4334
    %v4359 = vsel %vm4311, %v4287, %v4335
    %v4360 = vsel %vm4312, %v4288, %v4336
    %v4361 = vsel %vm4313, %v4289, %v4337
    %v4362 = vsel %vm4314, %v4290, %v4338
    %v4363 = vsel %vm4315, %v4291, %v4339
    %v4364 = vsel %vm4316, %v4292, %v4340
    %v4365 = vsel %vm4317, %v4293, %v4341
    %v4366 = vsel %vm4318, %v4294, %v4342
    %v4367 = vsel %vm4319, %v4295, %v4343
    %v4368 = vsel %vm4320, %v4296, %v4344
    %v4369 = vsel %vm4321, %v4297, %v4345
    %v4370 = vadd.f32 %v4346, 1.0
    %v4371 = vadd.f32 %v4347, 1.0
    %v4372 = vadd.f32 %v4348, 1.0
    %v4373 = vadd.f32 %v4349, 1.0
    %v4374 = vadd.f32 %v4350, 1.0
    %v4375 = vadd.f32 %v4351, 1.0
    %v4376 = vadd.f32 %v4352, 1.0
    %v4377 = vadd.f32 %v4353, 1.0
    %v4378 = vadd.f32 %v4354, 1.0
    %v4379 = vadd.f32 %v4355, 1.0
    %v4380 = vadd.f32 %v4356, 1.0
    %v4381 = vadd.f32 %v4357, 1.0
    %v4382 = vadd.f32 %v4358, 1.0
    %v4383 = vadd.f32 %v4359, 1.0
    %v4384 = vadd.f32 %v4360, 1.0
    %v4385 = vadd.f32 %v4361, 1.0
    %v4386 = vadd.f32 %v4362, 1.0
    %v4387 = vadd.f32 %v4363, 1.0
    %v4388 = vadd.f32 %v4364, 1.0
    %v4389 = vadd.f32 %v4365, 1.0
    %v4390 = vadd.f32 %v4366, 1.0
    %v4391 = vadd.f32 %v4367, 1.0
    %v4392 = vadd.f32 %v4368, 1.0
    %v4393 = vadd.f32 %v4369, 1.0
    %v4394 = vmul.f32 %v3770, %v4370
    %v4395 = vmul.f32 %v3771, %v4371
    %v4396 = vmul.f32 %v3772, %v4372
    %v4397 = vmul.f32 %v3773, %v4373
    %v4398 = vmul.f32 %v3774, %v4374
    %v4399 = vmul.f32 %v3775, %v4375
    %v4400 = vmul.f32 %v3776, %v4376
    %v4401 = vmul.f32 %v3777, %v4377
    %v4402 = vmul.f32 %v3778, %v4378
    %v4403 = vmul.f32 %v3779, %v4379
    %v4404 = vmul.f32 %v3780, %v4380
    %v4405 = vmul.f32 %v3781, %v4381
    %v4406 = vmul.f32 %v3782, %v4382
    %v4407 = vmul.f32 %v3783, %v4383
    %v4408 = vmul.f32 %v3784, %v4384
    %v4409 = vmul.f32 %v3785, %v4385
    %v4410 = vmul.f32 %v3786, %v4386
    %v4411 = vmul.f32 %v3787, %v4387
    %v4412 = vmul.f32 %v3788, %v4388
    %v4413 = vmul.f32 %v3789, %v4389
    %v4414 = vmul.f32 %v3790, %v4390
    %v4415 = vmul.f32 %v3791, %v4391
    %v4416 = vmul.f32 %v3792, %v4392
    %v4417 = vmul.f32 %v3793, %v4393
    %4418 = vmatprep.subr.mxu0 0.0
    %4419 = vmatpush1.msra.mxu0 %v498
    %4420 = vmatprep.subr.mxu0 0.0
    %4421 = vmatpush1.msra.mxu0 %v497
    %4422 = vmatprep.subr.mxu0 0.0
    %4423 = vmatpush1.msra.mxu0 %v496
    %4424 = vmatprep.subr.mxu0 0.0
    %4425 = vmatpush1.msra.mxu0 %v495
    %4426 = vmatprep.subr.mxu0 0.0
    %4427 = vmatpush1.msra.mxu0 %v494
    %4428 = vmatprep.subr.mxu0 0.0
    %4429 = vmatpush1.msra.mxu0 %v493
    %4430 = vmatprep.subr.mxu0 0.0
    %4431 = vmatpush1.msra.mxu0 %v492
    %4432 = vmatprep.subr.mxu0 0.0
    %4433 = vmatpush1.msra.mxu0 %v491
    %4434 = vmatprep.subr.mxu0 0.0
    %4435 = vmatpush1.msra.mxu0 %v490
    %4436 = vmatprep.subr.mxu0 0.0
    %4437 = vmatpush1.msra.mxu0 %v489
    %4438 = vmatprep.subr.mxu0 0.0
    %4439 = vmatpush1.msra.mxu0 %v488
    %4440 = vmatprep.subr.mxu0 0.0
    %4441 = vmatpush1.msra.mxu0 %v487
    %4442 = vmatprep.subr.mxu0 0.0
    %4443 = vmatpush1.msra.mxu0 %v486
    %4444 = vmatprep.subr.mxu0 0.0
    %4445 = vmatpush1.msra.mxu0 %v485
    %4446 = vmatprep.subr.mxu0 0.0
    %4447 = vmatpush1.msra.mxu0 %v484
    %4448 = vmatprep.subr.mxu0 0.0
    %4449 = vmatpush1.msra.mxu0 %v483
    %4450 = vmatprep.subr.mxu0 0.0
    %4451 = vmatpush2.msra.mxu0 %v514
    %4452 = vmatprep.subr.mxu0 0.0
    %4453 = vmatpush2.msra.mxu0 %v513
    %4454 = vmatprep.subr.mxu0 0.0
    %4455 = vmatpush2.msra.mxu0 %v512
    %4456 = vmatprep.subr.mxu0 0.0
    %4457 = vmatpush2.msra.mxu0 %v511
    %4458 = vmatprep.subr.mxu0 0.0
    %4459 = vmatpush2.msra.mxu0 %v510
    %4460 = vmatprep.subr.mxu0 0.0
    %4461 = vmatpush2.msra.mxu0 %v509
    %4462 = vmatprep.subr.mxu0 0.0
    %4463 = vmatpush2.msra.mxu0 %v508
    %4464 = vmatprep.subr.mxu0 0.0
    %4465 = vmatpush2.msra.mxu0 %v507
    %4466 = vmatprep.subr.mxu0 0.0
    %4467 = vmatpush2.msra.mxu0 %v506
    %4468 = vmatprep.subr.mxu0 0.0
    %4469 = vmatpush2.msra.mxu0 %v505
    %4470 = vmatprep.subr.mxu0 0.0
    %4471 = vmatpush2.msra.mxu0 %v504
    %4472 = vmatprep.subr.mxu0 0.0
    %4473 = vmatpush2.msra.mxu0 %v503
    %4474 = vmatprep.subr.mxu0 0.0
    %4475 = vmatpush2.msra.mxu0 %v502
    %4476 = vmatprep.subr.mxu0 0.0
    %4477 = vmatpush2.msra.mxu0 %v501
    %4478 = vmatprep.subr.mxu0 0.0
    %4479 = vmatpush2.msra.mxu0 %v500
    %4480 = vmatprep.subr.mxu0 0.0
    %4481 = vmatpush2.msra.mxu0 %v499
    %4482 = vmatprep.mubr.f32.mxu0 %v4395
    %4483 = vmatmul.mubr.f32.gmra.mxu0 %v4394
    %v4484 = vpop.f32.mrf.mxu0
    %v4485 = vadd.f32 0.0, %v4484
    %v4486 = vpop.f32.mrf.mxu0
    %4487 = vmatprep.mubr.f32.mxu0 %v4399
    %4488 = vmatmul.mubr.f32.gmra.mxu0 %v4398
    %v4489 = vpop.f32.mrf.mxu0
    %v4490 = vadd.f32 0.0, %v4489
    %v4491 = vpop.f32.mrf.mxu0
    %4492 = vmatprep.mubr.f32.mxu0 %v4403
    %4493 = vmatmul.mubr.f32.gmra.mxu0 %v4402
    %v4494 = vpop.f32.mrf.mxu0
    %v4495 = vadd.f32 0.0, %v4494
    %v4496 = vpop.f32.mrf.mxu0
    %4497 = vmatprep.mubr.f32.mxu0 %v4407
    %4498 = vmatmul.mubr.f32.gmra.mxu0 %v4406
    %v4499 = vpop.f32.mrf.mxu0
    %v4500 = vadd.f32 0.0, %v4499
    %v4501 = vpop.f32.mrf.mxu0
    %4502 = vmatprep.mubr.f32.mxu0 %v4411
    %4503 = vmatmul.mubr.f32.gmra.mxu0 %v4410
    %v4504 = vpop.f32.mrf.mxu0
    %v4505 = vadd.f32 0.0, %v4504
    %v4506 = vpop.f32.mrf.mxu0
    %4507 = vmatprep.mubr.f32.mxu0 %v4415
    %4508 = vmatmul.mubr.f32.gmra.mxu0 %v4414
    %v4509 = vpop.f32.mrf.mxu0
    %v4510 = vadd.f32 0.0, %v4509
    %v4511 = vpop.f32.mrf.mxu0
    %4512 = vdwg.mxu0
    %4513 = vmatprep.subr.mxu0 0.0
    %4514 = vmatpush1.msra.mxu0 %v530
    %4515 = vmatprep.subr.mxu0 0.0
    %4516 = vmatpush1.msra.mxu0 %v529
    %4517 = vmatprep.subr.mxu0 0.0
    %4518 = vmatpush1.msra.mxu0 %v528
    %4519 = vmatprep.subr.mxu0 0.0
    %4520 = vmatpush1.msra.mxu0 %v527
    %4521 = vmatprep.subr.mxu0 0.0
    %4522 = vmatpush1.msra.mxu0 %v526
    %4523 = vmatprep.subr.mxu0 0.0
    %4524 = vmatpush1.msra.mxu0 %v525
    %4525 = vmatprep.subr.mxu0 0.0
    %4526 = vmatpush1.msra.mxu0 %v524
    %4527 = vmatprep.subr.mxu0 0.0
    %4528 = vmatpush1.msra.mxu0 %v523
    %4529 = vmatprep.subr.mxu0 0.0
    %4530 = vmatpush1.msra.mxu0 %v522
    %4531 = vmatprep.subr.mxu0 0.0
    %4532 = vmatpush1.msra.mxu0 %v521
    %4533 = vmatprep.subr.mxu0 0.0
    %4534 = vmatpush1.msra.mxu0 %v520
    %4535 = vmatprep.subr.mxu0 0.0
    %4536 = vmatpush1.msra.mxu0 %v519
    %4537 = vmatprep.subr.mxu0 0.0
    %4538 = vmatpush1.msra.mxu0 %v518
    %4539 = vmatprep.subr.mxu0 0.0
    %4540 = vmatpush1.msra.mxu0 %v517
    %4541 = vmatprep.subr.mxu0 0.0
    %4542 = vmatpush1.msra.mxu0 %v516
    %4543 = vmatprep.subr.mxu0 0.0
    %4544 = vmatpush1.msra.mxu0 %v515
    %4545 = vmatprep.subr.mxu0 0.0
    %4546 = vmatpush2.msra.mxu0 %v546
    %4547 = vmatprep.subr.mxu0 0.0
    %4548 = vmatpush2.msra.mxu0 %v545
    %4549 = vmatprep.subr.mxu0 0.0
    %4550 = vmatpush2.msra.mxu0 %v544
    %4551 = vmatprep.subr.mxu0 0.0
    %4552 = vmatpush2.msra.mxu0 %v543
    %4553 = vmatprep.subr.mxu0 0.0
    %4554 = vmatpush2.msra.mxu0 %v542
    %4555 = vmatprep.subr.mxu0 0.0
    %4556 = vmatpush2.msra.mxu0 %v541
    %4557 = vmatprep.subr.mxu0 0.0
    %4558 = vmatpush2.msra.mxu0 %v540
    %4559 = vmatprep.subr.mxu0 0.0
    %4560 = vmatpush2.msra.mxu0 %v539
    %4561 = vmatprep.subr.mxu0 0.0
    %4562 = vmatpush2.msra.mxu0 %v538
    %4563 = vmatprep.subr.mxu0 0.0
    %4564 = vmatpush2.msra.mxu0 %v537
    %4565 = vmatprep.subr.mxu0 0.0
    %4566 = vmatpush2.msra.mxu0 %v536
    %4567 = vmatprep.subr.mxu0 0.0
    %4568 = vmatpush2.msra.mxu0 %v535
    %4569 = vmatprep.subr.mxu0 0.0
    %4570 = vmatpush2.msra.mxu0 %v534
    %4571 = vmatprep.subr.mxu0 0.0
    %4572 = vmatpush2.msra.mxu0 %v533
    %4573 = vmatprep.subr.mxu0 0.0
    %4574 = vmatpush2.msra.mxu0 %v532
    %4575 = vmatprep.subr.mxu0 0.0
    %4576 = vmatpush2.msra.mxu0 %v531
    %4577 = vmatprep.mubr.f32.mxu0 %v4397
    %4578 = vmatmul.mubr.f32.gmra.mxu0 %v4396
    %v4579 = vpop.f32.mrf.mxu0
    %v4580 = vadd.f32 %v4485, %v4579
    %v4581 = vpop.f32.mrf.mxu0
    %4582 = vmatprep.mubr.f32.mxu0 %v4401
    %4583 = vmatmul.mubr.f32.gmra.mxu0 %v4400
    %v4584 = vpop.f32.mrf.mxu0
    %v4585 = vadd.f32 %v4490, %v4584
    %v4586 = vpop.f32.mrf.mxu0
    %4587 = vmatprep.mubr.f32.mxu0 %v4405
    %4588 = vmatmul.mubr.f32.gmra.mxu0 %v4404
    %v4589 = vpop.f32.mrf.mxu0
    %v4590 = vadd.f32 %v4495, %v4589
    %v4591 = vpop.f32.mrf.mxu0
    %4592 = vmatprep.mubr.f32.mxu0 %v4409
    %4593 = vmatmul.mubr.f32.gmra.mxu0 %v4408
    %v4594 = vpop.f32.mrf.mxu0
    %v4595 = vadd.f32 %v4500, %v4594
    %v4596 = vpop.f32.mrf.mxu0
    %4597 = vmatprep.mubr.f32.mxu0 %v4413
    %4598 = vmatmul.mubr.f32.gmra.mxu0 %v4412
    %v4599 = vpop.f32.mrf.mxu0
    %v4600 = vadd.f32 %v4505, %v4599
    %v4601 = vpop.f32.mrf.mxu0
    %4602 = vmatprep.mubr.f32.mxu0 %v4417
    %4603 = vmatmul.mubr.f32.gmra.mxu0 %v4416
    %v4604 = vpop.f32.mrf.mxu0
    %v4605 = vadd.f32 %v4510, %v4604
    %v4606 = vpop.f32.mrf.mxu0
    %4607 = vdwg.mxu0
    %v4608 = vadd.f32 %v3451, %v4580
    %v4609 = vadd.f32 %v3452, %v4585
    %v4610 = vadd.f32 %v3453, %v4590
    %v4611 = vadd.f32 %v3454, %v4595
    %v4612 = vadd.f32 %v3455, %v4600
    %v4613 = vadd.f32 %v3456, %v4605
    %v4615 = vlaneseq
    %v4616 = vshrl.u32 %v4615, 7
    %v4617 = vsub.s32 0, %v4616
    %v4618 = vrot.slane %v547, %v4617
    %v4620 = vadd.f32 %v4608, %v4618
    %v4621 = vadd.f32 %v4609, %v4618
    %v4622 = vadd.f32 %v4610, %v4618
    %v4623 = vadd.f32 %v4611, %v4618
    %v4624 = vadd.f32 %v4612, %v4618
    %v4625 = vadd.f32 %v4613, %v4618
    %s4626 = scalar_lea.vmem %s3, 1
    %v4627 = vld [vmem:[%s4626] sm:$0x1]
    %s4628 = scalar_lea.vmem [#allocation8], 1
    %v4629 = vld [vmem:[%s4628] sm:$0x1]
    %s4630 = scalar_lea.vmem [#allocation10], 384
    %v4631 = vld [vmem:[%s4630] sm:$0xff]
    %v4632 = vld [vmem:[%s4630 + $0x8] sm:$0xff]
    %v4633 = vld [vmem:[%s4630 + $0x10] sm:$0xff]
    %v4634 = vld [vmem:[%s4630 + $0x18] sm:$0xff]
    %v4635 = vld [vmem:[%s4630 + $0x20] sm:$0xff]
    %v4636 = vld [vmem:[%s4630 + $0x28] sm:$0xff]
    %v4637 = vld [vmem:[%s4630 + $0x30] sm:$0xff]
    %v4638 = vld [vmem:[%s4630 + $0x38] sm:$0xff]
    %v4639 = vld [vmem:[%s4630 + $0x40] sm:$0xff]
    %v4640 = vld [vmem:[%s4630 + $0x48] sm:$0xff]
    %v4641 = vld [vmem:[%s4630 + $0x50] sm:$0xff]
    %v4642 = vld [vmem:[%s4630 + $0x58] sm:$0xff]
    %v4643 = vld [vmem:[%s4630 + $0x60] sm:$0xff]
    %v4644 = vld [vmem:[%s4630 + $0x68] sm:$0xff]
    %v4645 = vld [vmem:[%s4630 + $0x70] sm:$0xff]
    %v4646 = vld [vmem:[%s4630 + $0x78] sm:$0xff]
    %v4647 = vld [vmem:[%s4630 + $0x80] sm:$0xff]
    %v4648 = vld [vmem:[%s4630 + $0x88] sm:$0xff]
    %v4649 = vld [vmem:[%s4630 + $0x90] sm:$0xff]
    %v4650 = vld [vmem:[%s4630 + $0x98] sm:$0xff]
    %v4651 = vld [vmem:[%s4630 + $0xa0] sm:$0xff]
    %v4652 = vld [vmem:[%s4630 + $0xa8] sm:$0xff]
    %v4653 = vld [vmem:[%s4630 + $0xb0] sm:$0xff]
    %v4654 = vld [vmem:[%s4630 + $0xb8] sm:$0xff]
    %v4655 = vld [vmem:[%s4630 + $0xc0] sm:$0xff]
    %v4656 = vld [vmem:[%s4630 + $0xc8] sm:$0xff]
    %v4657 = vld [vmem:[%s4630 + $0xd0] sm:$0xff]
    %v4658 = vld [vmem:[%s4630 + $0xd8] sm:$0xff]
    %v4659 = vld [vmem:[%s4630 + $0xe0] sm:$0xff]
    %v4660 = vld [vmem:[%s4630 + $0xe8] sm:$0xff]
    %v4661 = vld [vmem:[%s4630 + $0xf0] sm:$0xff]
    %v4662 = vld [vmem:[%s4630 + $0xf8] sm:$0xff]
    %v4663 = vld [vmem:[%s4630 + $0x100] sm:$0xff]
    %v4664 = vld [vmem:[%s4630 + $0x108] sm:$0xff]
    %v4665 = vld [vmem:[%s4630 + $0x110] sm:$0xff]
    %v4666 = vld [vmem:[%s4630 + $0x118] sm:$0xff]
    %v4667 = vld [vmem:[%s4630 + $0x120] sm:$0xff]
    %v4668 = vld [vmem:[%s4630 + $0x128] sm:$0xff]
    %v4669 = vld [vmem:[%s4630 + $0x130] sm:$0xff]
    %v4670 = vld [vmem:[%s4630 + $0x138] sm:$0xff]
    %v4671 = vld [vmem:[%s4630 + $0x140] sm:$0xff]
    %v4672 = vld [vmem:[%s4630 + $0x148] sm:$0xff]
    %v4673 = vld [vmem:[%s4630 + $0x150] sm:$0xff]
    %v4674 = vld [vmem:[%s4630 + $0x158] sm:$0xff]
    %v4675 = vld [vmem:[%s4630 + $0x160] sm:$0xff]
    %v4676 = vld [vmem:[%s4630 + $0x168] sm:$0xff]
    %v4677 = vld [vmem:[%s4630 + $0x170] sm:$0xff]
    %v4678 = vld [vmem:[%s4630 + $0x178] sm:$0xff]
    %s4679 = scalar_lea.vmem %s6, 3
    %v4680 = vld [vmem:[%s4679] sm:$0x7]
    %s4681 = scalar_lea.vmem [#allocation11], 128
    %v4682 = vld [vmem:[%s4681] sm:$0xff]
    %v4683 = vld [vmem:[%s4681 + $0x8] sm:$0xff]
    %v4684 = vld [vmem:[%s4681 + $0x10] sm:$0xff]
    %v4685 = vld [vmem:[%s4681 + $0x18] sm:$0xff]
    %v4686 = vld [vmem:[%s4681 + $0x20] sm:$0xff]
    %v4687 = vld [vmem:[%s4681 + $0x28] sm:$0xff]
    %v4688 = vld [vmem:[%s4681 + $0x30] sm:$0xff]
    %v4689 = vld [vmem:[%s4681 + $0x38] sm:$0xff]
    %v4690 = vld [vmem:[%s4681 + $0x40] sm:$0xff]
    %v4691 = vld [vmem:[%s4681 + $0x48] sm:$0xff]
    %v4692 = vld [vmem:[%s4681 + $0x50] sm:$0xff]
    %v4693 = vld [vmem:[%s4681 + $0x58] sm:$0xff]
    %v4694 = vld [vmem:[%s4681 + $0x60] sm:$0xff]
    %v4695 = vld [vmem:[%s4681 + $0x68] sm:$0xff]
    %v4696 = vld [vmem:[%s4681 + $0x70] sm:$0xff]
    %v4697 = vld [vmem:[%s4681 + $0x78] sm:$0xff]
    %s4698 = scalar_lea.vmem [#allocation13], 1
    %v4699 = vld [vmem:[%s4698] sm:$0x1]
    %s4700 = scalar_lea.vmem [#allocation14], 1
    %v4701 = vld [vmem:[%s4700] sm:$0x1]
    %s4702 = scalar_lea.vmem %s10, 1
    %v4703 = vld [vmem:[%s4702] sm:$0x1]
    %s4704 = scalar_lea.vmem [#allocation16], 512
    %v4705 = vld [vmem:[%s4704] sm:$0xff]
    %v4706 = vld [vmem:[%s4704 + $0x8] sm:$0xff]
    %v4707 = vld [vmem:[%s4704 + $0x10] sm:$0xff]
    %v4708 = vld [vmem:[%s4704 + $0x18] sm:$0xff]
    %v4709 = vld [vmem:[%s4704 + $0x20] sm:$0xff]
    %v4710 = vld [vmem:[%s4704 + $0x28] sm:$0xff]
    %v4711 = vld [vmem:[%s4704 + $0x30] sm:$0xff]
    %v4712 = vld [vmem:[%s4704 + $0x38] sm:$0xff]
    %v4713 = vld [vmem:[%s4704 + $0x40] sm:$0xff]
    %v4714 = vld [vmem:[%s4704 + $0x48] sm:$0xff]
    %v4715 = vld [vmem:[%s4704 + $0x50] sm:$0xff]
    %v4716 = vld [vmem:[%s4704 + $0x58] sm:$0xff]
    %v4717 = vld [vmem:[%s4704 + $0x60] sm:$0xff]
    %v4718 = vld [vmem:[%s4704 + $0x68] sm:$0xff]
    %v4719 = vld [vmem:[%s4704 + $0x70] sm:$0xff]
    %v4720 = vld [vmem:[%s4704 + $0x78] sm:$0xff]
    %v4721 = vld [vmem:[%s4704 + $0x80] sm:$0xff]
    %v4722 = vld [vmem:[%s4704 + $0x88] sm:$0xff]
    %v4723 = vld [vmem:[%s4704 + $0x90] sm:$0xff]
    %v4724 = vld [vmem:[%s4704 + $0x98] sm:$0xff]
    %v4725 = vld [vmem:[%s4704 + $0xa0] sm:$0xff]
    %v4726 = vld [vmem:[%s4704 + $0xa8] sm:$0xff]
    %v4727 = vld [vmem:[%s4704 + $0xb0] sm:$0xff]
    %v4728 = vld [vmem:[%s4704 + $0xb8] sm:$0xff]
    %v4729 = vld [vmem:[%s4704 + $0xc0] sm:$0xff]
    %v4730 = vld [vmem:[%s4704 + $0xc8] sm:$0xff]
    %v4731 = vld [vmem:[%s4704 + $0xd0] sm:$0xff]
    %v4732 = vld [vmem:[%s4704 + $0xd8] sm:$0xff]
    %v4733 = vld [vmem:[%s4704 + $0xe0] sm:$0xff]
    %v4734 = vld [vmem:[%s4704 + $0xe8] sm:$0xff]
    %v4735 = vld [vmem:[%s4704 + $0xf0] sm:$0xff]
    %v4736 = vld [vmem:[%s4704 + $0xf8] sm:$0xff]
    %v4737 = vld [vmem:[%s4704 + $0x100] sm:$0xff]
    %v4738 = vld [vmem:[%s4704 + $0x108] sm:$0xff]
    %v4739 = vld [vmem:[%s4704 + $0x110] sm:$0xff]
    %v4740 = vld [vmem:[%s4704 + $0x118] sm:$0xff]
    %v4741 = vld [vmem:[%s4704 + $0x120] sm:$0xff]
    %v4742 = vld [vmem:[%s4704 + $0x128] sm:$0xff]
    %v4743 = vld [vmem:[%s4704 + $0x130] sm:$0xff]
    %v4744 = vld [vmem:[%s4704 + $0x138] sm:$0xff]
    %v4745 = vld [vmem:[%s4704 + $0x140] sm:$0xff]
    %v4746 = vld [vmem:[%s4704 + $0x148] sm:$0xff]
    %v4747 = vld [vmem:[%s4704 + $0x150] sm:$0xff]
    %v4748 = vld [vmem:[%s4704 + $0x158] sm:$0xff]
    %v4749 = vld [vmem:[%s4704 + $0x160] sm:$0xff]
    %v4750 = vld [vmem:[%s4704 + $0x168] sm:$0xff]
    %v4751 = vld [vmem:[%s4704 + $0x170] sm:$0xff]
    %v4752 = vld [vmem:[%s4704 + $0x178] sm:$0xff]
    %v4753 = vld [vmem:[%s4704 + $0x180] sm:$0xff]
    %v4754 = vld [vmem:[%s4704 + $0x188] sm:$0xff]
    %v4755 = vld [vmem:[%s4704 + $0x190] sm:$0xff]
    %v4756 = vld [vmem:[%s4704 + $0x198] sm:$0xff]
    %v4757 = vld [vmem:[%s4704 + $0x1a0] sm:$0xff]
    %v4758 = vld [vmem:[%s4704 + $0x1a8] sm:$0xff]
    %v4759 = vld [vmem:[%s4704 + $0x1b0] sm:$0xff]
    %v4760 = vld [vmem:[%s4704 + $0x1b8] sm:$0xff]
    %v4761 = vld [vmem:[%s4704 + $0x1c0] sm:$0xff]
    %v4762 = vld [vmem:[%s4704 + $0x1c8] sm:$0xff]
    %v4763 = vld [vmem:[%s4704 + $0x1d0] sm:$0xff]
    %v4764 = vld [vmem:[%s4704 + $0x1d8] sm:$0xff]
    %v4765 = vld [vmem:[%s4704 + $0x1e0] sm:$0xff]
    %v4766 = vld [vmem:[%s4704 + $0x1e8] sm:$0xff]
    %v4767 = vld [vmem:[%s4704 + $0x1f0] sm:$0xff]
    %v4768 = vld [vmem:[%s4704 + $0x1f8] sm:$0xff]
    %s4769 = scalar_lea.vmem %s12, 4
    %v4770 = vld [vmem:[%s4769] sm:$0xf]
    %s4771 = scalar_lea.vmem [#allocation17], 512
    %v4772 = vld [vmem:[%s4771] sm:$0xff]
    %v4773 = vld [vmem:[%s4771 + $0x8] sm:$0xff]
    %v4774 = vld [vmem:[%s4771 + $0x10] sm:$0xff]
    %v4775 = vld [vmem:[%s4771 + $0x18] sm:$0xff]
    %v4776 = vld [vmem:[%s4771 + $0x20] sm:$0xff]
    %v4777 = vld [vmem:[%s4771 + $0x28] sm:$0xff]
    %v4778 = vld [vmem:[%s4771 + $0x30] sm:$0xff]
    %v4779 = vld [vmem:[%s4771 + $0x38] sm:$0xff]
    %v4780 = vld [vmem:[%s4771 + $0x40] sm:$0xff]
    %v4781 = vld [vmem:[%s4771 + $0x48] sm:$0xff]
    %v4782 = vld [vmem:[%s4771 + $0x50] sm:$0xff]
    %v4783 = vld [vmem:[%s4771 + $0x58] sm:$0xff]
    %v4784 = vld [vmem:[%s4771 + $0x60] sm:$0xff]
    %v4785 = vld [vmem:[%s4771 + $0x68] sm:$0xff]
    %v4786 = vld [vmem:[%s4771 + $0x70] sm:$0xff]
    %v4787 = vld [vmem:[%s4771 + $0x78] sm:$0xff]
    %v4788 = vld [vmem:[%s4771 + $0x80] sm:$0xff]
    %v4789 = vld [vmem:[%s4771 + $0x88] sm:$0xff]
    %v4790 = vld [vmem:[%s4771 + $0x90] sm:$0xff]
    %v4791 = vld [vmem:[%s4771 + $0x98] sm:$0xff]
    %v4792 = vld [vmem:[%s4771 + $0xa0] sm:$0xff]
    %v4793 = vld [vmem:[%s4771 + $0xa8] sm:$0xff]
    %v4794 = vld [vmem:[%s4771 + $0xb0] sm:$0xff]
    %v4795 = vld [vmem:[%s4771 + $0xb8] sm:$0xff]
    %v4796 = vld [vmem:[%s4771 + $0xc0] sm:$0xff]
    %v4797 = vld [vmem:[%s4771 + $0xc8] sm:$0xff]
    %v4798 = vld [vmem:[%s4771 + $0xd0] sm:$0xff]
    %v4799 = vld [vmem:[%s4771 + $0xd8] sm:$0xff]
    %v4800 = vld [vmem:[%s4771 + $0xe0] sm:$0xff]
    %v4801 = vld [vmem:[%s4771 + $0xe8] sm:$0xff]
    %v4802 = vld [vmem:[%s4771 + $0xf0] sm:$0xff]
    %v4803 = vld [vmem:[%s4771 + $0xf8] sm:$0xff]
    %v4804 = vld [vmem:[%s4771 + $0x100] sm:$0xff]
    %v4805 = vld [vmem:[%s4771 + $0x108] sm:$0xff]
    %v4806 = vld [vmem:[%s4771 + $0x110] sm:$0xff]
    %v4807 = vld [vmem:[%s4771 + $0x118] sm:$0xff]
    %v4808 = vld [vmem:[%s4771 + $0x120] sm:$0xff]
    %v4809 = vld [vmem:[%s4771 + $0x128] sm:$0xff]
    %v4810 = vld [vmem:[%s4771 + $0x130] sm:$0xff]
    %v4811 = vld [vmem:[%s4771 + $0x138] sm:$0xff]
    %v4812 = vld [vmem:[%s4771 + $0x140] sm:$0xff]
    %v4813 = vld [vmem:[%s4771 + $0x148] sm:$0xff]
    %v4814 = vld [vmem:[%s4771 + $0x150] sm:$0xff]
    %v4815 = vld [vmem:[%s4771 + $0x158] sm:$0xff]
    %v4816 = vld [vmem:[%s4771 + $0x160] sm:$0xff]
    %v4817 = vld [vmem:[%s4771 + $0x168] sm:$0xff]
    %v4818 = vld [vmem:[%s4771 + $0x170] sm:$0xff]
    %v4819 = vld [vmem:[%s4771 + $0x178] sm:$0xff]
    %v4820 = vld [vmem:[%s4771 + $0x180] sm:$0xff]
    %v4821 = vld [vmem:[%s4771 + $0x188] sm:$0xff]
    %v4822 = vld [vmem:[%s4771 + $0x190] sm:$0xff]
    %v4823 = vld [vmem:[%s4771 + $0x198] sm:$0xff]
    %v4824 = vld [vmem:[%s4771 + $0x1a0] sm:$0xff]
    %v4825 = vld [vmem:[%s4771 + $0x1a8] sm:$0xff]
    %v4826 = vld [vmem:[%s4771 + $0x1b0] sm:$0xff]
    %v4827 = vld [vmem:[%s4771 + $0x1b8] sm:$0xff]
    %v4828 = vld [vmem:[%s4771 + $0x1c0] sm:$0xff]
    %v4829 = vld [vmem:[%s4771 + $0x1c8] sm:$0xff]
    %v4830 = vld [vmem:[%s4771 + $0x1d0] sm:$0xff]
    %v4831 = vld [vmem:[%s4771 + $0x1d8] sm:$0xff]
    %v4832 = vld [vmem:[%s4771 + $0x1e0] sm:$0xff]
    %v4833 = vld [vmem:[%s4771 + $0x1e8] sm:$0xff]
    %v4834 = vld [vmem:[%s4771 + $0x1f0] sm:$0xff]
    %v4835 = vld [vmem:[%s4771 + $0x1f8] sm:$0xff]
    %s4836 = scalar_lea.vmem %s14, 1
    %v4837 = vld [vmem:[%s4836] sm:$0x1]
    %4838 = vadd.xlane.f32.xlu0 %v4620
    %v4839 = vpop.xlane.xlu0 %4838
    %4840 = vadd.xlane.f32.xlu0 %v4621
    %v4841 = vpop.xlane.xlu0 %4840
    %4842 = vadd.xlane.f32.xlu0 %v4622
    %v4843 = vpop.xlane.xlu0 %4842
    %4844 = vadd.xlane.f32.xlu0 %v4623
    %v4845 = vpop.xlane.xlu0 %4844
    %4846 = vadd.xlane.f32.xlu0 %v4624
    %v4847 = vpop.xlane.xlu0 %4846
    %4848 = vadd.xlane.f32.xlu0 %v4625
    %v4849 = vpop.xlane.xlu0 %4848
    %v4850 = vmul.f32 %v4839, %v560
    %v4851 = vmul.f32 %v4841, %v560
    %v4852 = vmul.f32 %v4843, %v560
    %v4853 = vmul.f32 %v4845, %v560
    %v4854 = vmul.f32 %v4847, %v560
    %v4855 = vmul.f32 %v4849, %v560
    %v4856 = vsub.f32 %v4620, %v4850
    %v4857 = vsub.f32 %v4621, %v4851
    %v4858 = vsub.f32 %v4622, %v4852
    %v4859 = vsub.f32 %v4623, %v4853
    %v4860 = vsub.f32 %v4624, %v4854
    %v4861 = vsub.f32 %v4625, %v4855
    %v4862 = vmul.f32 %v4856, %v4856
    %v4863 = vmul.f32 %v4857, %v4857
    %v4864 = vmul.f32 %v4858, %v4858
    %v4865 = vmul.f32 %v4859, %v4859
    %v4866 = vmul.f32 %v4860, %v4860
    %v4867 = vmul.f32 %v4861, %v4861
    %4868 = vadd.xlane.f32.xlu0 %v4862
    %v4869 = vpop.xlane.xlu0 %4868
    %4870 = vadd.xlane.f32.xlu0 %v4863
    %v4871 = vpop.xlane.xlu0 %4870
    %4872 = vadd.xlane.f32.xlu0 %v4864
    %v4873 = vpop.xlane.xlu0 %4872
    %4874 = vadd.xlane.f32.xlu0 %v4865
    %v4875 = vpop.xlane.xlu0 %4874
    %4876 = vadd.xlane.f32.xlu0 %v4866
    %v4877 = vpop.xlane.xlu0 %4876
    %4878 = vadd.xlane.f32.xlu0 %v4867
    %v4879 = vpop.xlane.xlu0 %4878
    %v4880 = vmul.f32 %v4869, %v560
    %v4881 = vmul.f32 %v4871, %v560
    %v4882 = vmul.f32 %v4873, %v560
    %v4883 = vmul.f32 %v4875, %v560
    %v4884 = vmul.f32 %v4877, %v560
    %v4885 = vmul.f32 %v4879, %v560
    %v4886 = vadd.f32 %v4880, 1e-05
    %v4887 = vadd.f32 %v4881, 1e-05
    %v4888 = vadd.f32 %v4882, 1e-05
    %v4889 = vadd.f32 %v4883, 1e-05
    %v4890 = vadd.f32 %v4884, 1e-05
    %v4891 = vadd.f32 %v4885, 1e-05
    %v4892 = vrsqrt.pop %v4886
    %v4893 = vrsqrt.pop %v4887
    %v4894 = vrsqrt.pop %v4888
    %v4895 = vrsqrt.pop %v4889
    %v4896 = vrsqrt.pop %v4890
    %v4897 = vrsqrt.pop %v4891
    %v4898 = vmul.f32 %v4856, %v4892
    %v4899 = vmul.f32 %v4857, %v4893
    %v4900 = vmul.f32 %v4858, %v4894
    %v4901 = vmul.f32 %v4859, %v4895
    %v4902 = vmul.f32 %v4860, %v4896
    %v4903 = vmul.f32 %v4861, %v4897
    %v4905 = vlaneseq
    %v4906 = vshrl.u32 %v4905, 7
    %v4907 = vsub.s32 0, %v4906
    %v4908 = vrot.slane %v4627, %v4907
    %v4910 = vmul.f32 %v4898, %v4908
    %v4911 = vmul.f32 %v4899, %v4908
    %v4912 = vmul.f32 %v4900, %v4908
    %v4913 = vmul.f32 %v4901, %v4908
    %v4914 = vmul.f32 %v4902, %v4908
    %v4915 = vmul.f32 %v4903, %v4908
    %v4917 = vlaneseq
    %v4918 = vshrl.u32 %v4917, 7
    %v4919 = vsub.s32 0, %v4918
    %v4920 = vrot.slane %v4629, %v4919
    %v4922 = vadd.f32 %v4910, %v4920
    %v4923 = vadd.f32 %v4911, %v4920
    %v4924 = vadd.f32 %v4912, %v4920
    %v4925 = vadd.f32 %v4913, %v4920
    %v4926 = vadd.f32 %v4914, %v4920
    %v4927 = vadd.f32 %v4915, %v4920
    %v4929 = vlaneseq
    %v4930 = vshrl.u32 %v4929, 7
    %v4931 = vsub.s32 0, %v4930
    %v4932 = vrot.slane %v4680, %v4931
    %v4933 = vlaneseq
    %v4934 = vshrl.u32 %v4933, 7
    %v4935 = vsub.s32 1, %v4934
    %v4936 = vrot.slane %v4680, %v4935
    %v4937 = vlaneseq
    %v4938 = vshrl.u32 %v4937, 7
    %v4939 = vsub.s32 2, %v4938
    %v4940 = vrot.slane %v4680, %v4939
    %4944 = vmatprep.subr.mxu0 %v4677
    %4945 = vmatpush1.msra.mxu0 %v4676
    %4946 = vmatprep.subr.mxu0 %v4674
    %4947 = vmatpush1.msra.mxu0 %v4673
    %4948 = vmatprep.subr.mxu0 %v4671
    %4949 = vmatpush1.msra.mxu0 %v4670
    %4950 = vmatprep.subr.mxu0 %v4668
    %4951 = vmatpush1.msra.mxu0 %v4667
    %4952 = vmatprep.subr.mxu0 %v4665
    %4953 = vmatpush1.msra.mxu0 %v4664
    %4954 = vmatprep.subr.mxu0 %v4662
    %4955 = vmatpush1.msra.mxu0 %v4661
    %4956 = vmatprep.subr.mxu0 %v4659
    %4957 = vmatpush1.msra.mxu0 %v4658
    %4958 = vmatprep.subr.mxu0 %v4656
    %4959 = vmatpush1.msra.mxu0 %v4655
    %4960 = vmatprep.subr.mxu0 %v4653
    %4961 = vmatpush1.msra.mxu0 %v4652
    %4962 = vmatprep.subr.mxu0 %v4650
    %4963 = vmatpush1.msra.mxu0 %v4649
    %4964 = vmatprep.subr.mxu0 %v4647
    %4965 = vmatpush1.msra.mxu0 %v4646
    %4966 = vmatprep.subr.mxu0 %v4644
    %4967 = vmatpush1.msra.mxu0 %v4643
    %4968 = vmatprep.subr.mxu0 %v4641
    %4969 = vmatpush1.msra.mxu0 %v4640
    %4970 = vmatprep.subr.mxu0 %v4638
    %4971 = vmatpush1.msra.mxu0 %v4637
    %4972 = vmatprep.subr.mxu0 %v4635
    %4973 = vmatpush1.msra.mxu0 %v4634
    %4974 = vmatprep.subr.mxu0 %v4632
    %4975 = vmatpush1.msra.mxu0 %v4631
    %4976 = vmatprep.subr.mxu0 0.0
    %4977 = vmatpush2.msra.mxu0 0.0
    %4978 = vmatprep.subr.mxu0 0.0
    %4979 = vmatpush2.msra.mxu0 0.0
    %4980 = vmatprep.subr.mxu0 0.0
    %4981 = vmatpush2.msra.mxu0 0.0
    %4982 = vmatprep.subr.mxu0 0.0
    %4983 = vmatpush2.msra.mxu0 0.0
    %4984 = vmatprep.subr.mxu0 0.0
    %4985 = vmatpush2.msra.mxu0 0.0
    %4986 = vmatprep.subr.mxu0 0.0
    %4987 = vmatpush2.msra.mxu0 0.0
    %4988 = vmatprep.subr.mxu0 0.0
    %4989 = vmatpush2.msra.mxu0 0.0
    %4990 = vmatprep.subr.mxu0 0.0
    %4991 = vmatpush2.msra.mxu0 0.0
    %4992 = vmatprep.subr.mxu0 0.0
    %4993 = vmatpush2.msra.mxu0 0.0
    %4994 = vmatprep.subr.mxu0 0.0
    %4995 = vmatpush2.msra.mxu0 0.0
    %4996 = vmatprep.subr.mxu0 0.0
    %4997 = vmatpush2.msra.mxu0 0.0
    %4998 = vmatprep.subr.mxu0 0.0
    %4999 = vmatpush2.msra.mxu0 0.0
    %5000 = vmatprep.subr.mxu0 0.0
    %5001 = vmatpush2.msra.mxu0 0.0
    %5002 = vmatprep.subr.mxu0 0.0
    %5003 = vmatpush2.msra.mxu0 0.0
    %5004 = vmatprep.subr.mxu0 0.0
    %5005 = vmatpush2.msra.mxu0 0.0
    %5006 = vmatprep.subr.mxu0 0.0
    %5007 = vmatpush2.msra.mxu0 0.0
    %5008 = vmatprep.mubr.f32.mxu0 0.0
    %5009 = vmatmul.mubr.f32.gmra.mxu0 %v4922
    %v5010 = vpop.f32.mrf.mxu0
    %v5011 = vadd.f32 %v4932, %v5010
    %v5012 = vpop.f32.mrf.mxu0
    %v5013 = vadd.f32 %v4936, %v5012
    %5014 = vmatprep.mubr.f32.mxu0 0.0
    %5015 = vmatmul.mubr.f32.gmra.mxu0 %v4923
    %v5016 = vpop.f32.mrf.mxu0
    %v5017 = vadd.f32 %v4932, %v5016
    %v5018 = vpop.f32.mrf.mxu0
    %v5019 = vadd.f32 %v4936, %v5018
    %5020 = vmatprep.mubr.f32.mxu0 0.0
    %5021 = vmatmul.mubr.f32.gmra.mxu0 %v4924
    %v5022 = vpop.f32.mrf.mxu0
    %v5023 = vadd.f32 %v4932, %v5022
    %v5024 = vpop.f32.mrf.mxu0
    %v5025 = vadd.f32 %v4936, %v5024
    %5026 = vmatprep.mubr.f32.mxu0 0.0
    %5027 = vmatmul.mubr.f32.gmra.mxu0 %v4925
    %v5028 = vpop.f32.mrf.mxu0
    %v5029 = vadd.f32 %v4932, %v5028
    %v5030 = vpop.f32.mrf.mxu0
    %v5031 = vadd.f32 %v4936, %v5030
    %5032 = vmatprep.mubr.f32.mxu0 0.0
    %5033 = vmatmul.mubr.f32.gmra.mxu0 %v4926
    %v5034 = vpop.f32.mrf.mxu0
    %v5035 = vadd.f32 %v4932, %v5034
    %v5036 = vpop.f32.mrf.mxu0
    %v5037 = vadd.f32 %v4936, %v5036
    %5038 = vmatprep.mubr.f32.mxu0 0.0
    %5039 = vmatmul.mubr.f32.gmra.mxu0 %v4927
    %v5040 = vpop.f32.mrf.mxu0
    %v5041 = vadd.f32 %v4932, %v5040
    %v5042 = vpop.f32.mrf.mxu0
    %v5043 = vadd.f32 %v4936, %v5042
    %5044 = vdwg.mxu0
    %5045 = vmatprep.subr.mxu0 0.0
    %5046 = vmatpush1.msra.mxu0 %v4678
    %5047 = vmatprep.subr.mxu0 0.0
    %5048 = vmatpush1.msra.mxu0 %v4675
    %5049 = vmatprep.subr.mxu0 0.0
    %5050 = vmatpush1.msra.mxu0 %v4672
    %5051 = vmatprep.subr.mxu0 0.0
    %5052 = vmatpush1.msra.mxu0 %v4669
    %5053 = vmatprep.subr.mxu0 0.0
    %5054 = vmatpush1.msra.mxu0 %v4666
    %5055 = vmatprep.subr.mxu0 0.0
    %5056 = vmatpush1.msra.mxu0 %v4663
    %5057 = vmatprep.subr.mxu0 0.0
    %5058 = vmatpush1.msra.mxu0 %v4660
    %5059 = vmatprep.subr.mxu0 0.0
    %5060 = vmatpush1.msra.mxu0 %v4657
    %5061 = vmatprep.subr.mxu0 0.0
    %5062 = vmatpush1.msra.mxu0 %v4654
    %5063 = vmatprep.subr.mxu0 0.0
    %5064 = vmatpush1.msra.mxu0 %v4651
    %5065 = vmatprep.subr.mxu0 0.0
    %5066 = vmatpush1.msra.mxu0 %v4648
    %5067 = vmatprep.subr.mxu0 0.0
    %5068 = vmatpush1.msra.mxu0 %v4645
    %5069 = vmatprep.subr.mxu0 0.0
    %5070 = vmatpush1.msra.mxu0 %v4642
    %5071 = vmatprep.subr.mxu0 0.0
    %5072 = vmatpush1.msra.mxu0 %v4639
    %5073 = vmatprep.subr.mxu0 0.0
    %5074 = vmatpush1.msra.mxu0 %v4636
    %5075 = vmatprep.subr.mxu0 0.0
    %5076 = vmatpush1.msra.mxu0 %v4633
    %5077 = vmatprep.subr.mxu0 0.0
    %5078 = vmatpush2.msra.mxu0 0.0
    %5079 = vmatprep.subr.mxu0 0.0
    %5080 = vmatpush2.msra.mxu0 0.0
    %5081 = vmatprep.subr.mxu0 0.0
    %5082 = vmatpush2.msra.mxu0 0.0
    %5083 = vmatprep.subr.mxu0 0.0
    %5084 = vmatpush2.msra.mxu0 0.0
    %5085 = vmatprep.subr.mxu0 0.0
    %5086 = vmatpush2.msra.mxu0 0.0
    %5087 = vmatprep.subr.mxu0 0.0
    %5088 = vmatpush2.msra.mxu0 0.0
    %5089 = vmatprep.subr.mxu0 0.0
    %5090 = vmatpush2.msra.mxu0 0.0
    %5091 = vmatprep.subr.mxu0 0.0
    %5092 = vmatpush2.msra.mxu0 0.0
    %5093 = vmatprep.subr.mxu0 0.0
    %5094 = vmatpush2.msra.mxu0 0.0
    %5095 = vmatprep.subr.mxu0 0.0
    %5096 = vmatpush2.msra.mxu0 0.0
    %5097 = vmatprep.subr.mxu0 0.0
    %5098 = vmatpush2.msra.mxu0 0.0
    %5099 = vmatprep.subr.mxu0 0.0
    %5100 = vmatpush2.msra.mxu0 0.0
    %5101 = vmatprep.subr.mxu0 0.0
    %5102 = vmatpush2.msra.mxu0 0.0
    %5103 = vmatprep.subr.mxu0 0.0
    %5104 = vmatpush2.msra.mxu0 0.0
    %5105 = vmatprep.subr.mxu0 0.0
    %5106 = vmatpush2.msra.mxu0 0.0
    %5107 = vmatprep.subr.mxu0 0.0
    %5108 = vmatpush2.msra.mxu0 0.0
    %5109 = vmatprep.mubr.f32.mxu0 0.0
    %5110 = vmatmul.mubr.f32.gmra.mxu0 %v4922
    %v5111 = vpop.f32.mrf.mxu0
    %v5112 = vadd.f32 %v4940, %v5111
    %v5113 = vpop.f32.mrf.mxu0
    %5114 = vmatprep.mubr.f32.mxu0 0.0
    %5115 = vmatmul.mubr.f32.gmra.mxu0 %v4923
    %v5116 = vpop.f32.mrf.mxu0
    %v5117 = vadd.f32 %v4940, %v5116
    %v5118 = vpop.f32.mrf.mxu0
    %5119 = vmatprep.mubr.f32.mxu0 0.0
    %5120 = vmatmul.mubr.f32.gmra.mxu0 %v4924
    %v5121 = vpop.f32.mrf.mxu0
    %v5122 = vadd.f32 %v4940, %v5121
    %v5123 = vpop.f32.mrf.mxu0
    %5124 = vmatprep.mubr.f32.mxu0 0.0
    %5125 = vmatmul.mubr.f32.gmra.mxu0 %v4925
    %v5126 = vpop.f32.mrf.mxu0
    %v5127 = vadd.f32 %v4940, %v5126
    %v5128 = vpop.f32.mrf.mxu0
    %5129 = vmatprep.mubr.f32.mxu0 0.0
    %5130 = vmatmul.mubr.f32.gmra.mxu0 %v4926
    %v5131 = vpop.f32.mrf.mxu0
    %v5132 = vadd.f32 %v4940, %v5131
    %v5133 = vpop.f32.mrf.mxu0
    %5134 = vmatprep.mubr.f32.mxu0 0.0
    %5135 = vmatmul.mubr.f32.gmra.mxu0 %v4927
    %v5136 = vpop.f32.mrf.mxu0
    %v5137 = vadd.f32 %v4940, %v5136
    %v5138 = vpop.f32.mrf.mxu0
    %5139 = vdwg.mxu0
    %v5140 = vmul.f32 %v5011, 0.17677669
    %v5141 = vmul.f32 %v5017, 0.17677669
    %v5142 = vmul.f32 %v5023, 0.17677669
    %v5144 = vsel %vm854, %v5140, 0
    %v5147 = vsel %vm854, %v5141, 0
    %v5150 = vsel %vm854, %v5142, 0
    %v5153 = vsel %vm854, %v5013, 0
    %v5156 = vsel %vm854, %v5019, 0
    %v5159 = vsel %vm854, %v5025, 0
    %5161 = vmatprep.subr.mxu0 0.0
    %5162 = vmatpush1.xpose.msra.mxu0 0.0
    %5163 = vmatprep.subr.mxu0 0.0
    %5164 = vmatpush1.xpose.msra.mxu0 0.0
    %5165 = vmatprep.subr.mxu0 0.0
    %5166 = vmatpush1.xpose.msra.mxu0 0.0
    %5167 = vmatprep.subr.mxu0 0.0
    %5168 = vmatpush1.xpose.msra.mxu0 0.0
    %5169 = vmatprep.subr.mxu0 0.0
    %5170 = vmatpush1.xpose.msra.mxu0 0.0
    %5171 = vmatprep.subr.mxu0 0.0
    %5172 = vmatpush1.xpose.msra.mxu0 0.0
    %5173 = vmatprep.subr.mxu0 0.0
    %5174 = vmatpush1.xpose.msra.mxu0 0.0
    %5175 = vmatprep.subr.mxu0 0.0
    %5176 = vmatpush1.xpose.msra.mxu0 0.0
    %5177 = vmatprep.subr.mxu0 0.0
    %5178 = vmatpush1.xpose.msra.mxu0 0.0
    %5179 = vmatprep.subr.mxu0 0.0
    %5180 = vmatpush1.xpose.msra.mxu0 0.0
    %5181 = vmatprep.subr.mxu0 0.0
    %5182 = vmatpush1.xpose.msra.mxu0 0.0
    %5183 = vmatprep.subr.mxu0 0.0
    %5184 = vmatpush1.xpose.msra.mxu0 0.0
    %5185 = vmatprep.subr.mxu0 0.0
    %5186 = vmatpush1.xpose.msra.mxu0 0.0
    %5187 = vmatprep.subr.mxu0 0.0
    %5188 = vmatpush1.xpose.msra.mxu0 %v5159
    %5189 = vmatprep.subr.mxu0 0.0
    %5190 = vmatpush1.xpose.msra.mxu0 %v5156
    %5191 = vmatprep.subr.mxu0 0.0
    %5192 = vmatpush1.xpose.msra.mxu0 %v5153
    %5193 = vmatprep.subr.mxu0 0.0
    %5194 = vmatpush2.xpose.msra.mxu0 0.0
    %5195 = vmatprep.subr.mxu0 0.0
    %5196 = vmatpush2.xpose.msra.mxu0 0.0
    %5197 = vmatprep.subr.mxu0 0.0
    %5198 = vmatpush2.xpose.msra.mxu0 0.0
    %5199 = vmatprep.subr.mxu0 0.0
    %5200 = vmatpush2.xpose.msra.mxu0 0.0
    %5201 = vmatprep.subr.mxu0 0.0
    %5202 = vmatpush2.xpose.msra.mxu0 0.0
    %5203 = vmatprep.subr.mxu0 0.0
    %5204 = vmatpush2.xpose.msra.mxu0 0.0
    %5205 = vmatprep.subr.mxu0 0.0
    %5206 = vmatpush2.xpose.msra.mxu0 0.0
    %5207 = vmatprep.subr.mxu0 0.0
    %5208 = vmatpush2.xpose.msra.mxu0 0.0
    %5209 = vmatprep.subr.mxu0 0.0
    %5210 = vmatpush2.xpose.msra.mxu0 0.0
    %5211 = vmatprep.subr.mxu0 0.0
    %5212 = vmatpush2.xpose.msra.mxu0 0.0
    %5213 = vmatprep.subr.mxu0 0.0
    %5214 = vmatpush2.xpose.msra.mxu0 0.0
    %5215 = vmatprep.subr.mxu0 0.0
    %5216 = vmatpush2.xpose.msra.mxu0 0.0
    %5217 = vmatprep.subr.mxu0 0.0
    %5218 = vmatpush2.xpose.msra.mxu0 0.0
    %5219 = vmatprep.subr.mxu0 0.0
    %5220 = vmatpush2.xpose.msra.mxu0 0.0
    %5221 = vmatprep.subr.mxu0 0.0
    %5222 = vmatpush2.xpose.msra.mxu0 0.0
    %5223 = vmatprep.subr.mxu0 0.0
    %5224 = vmatpush2.xpose.msra.mxu0 0.0
    %5225 = vmatprep.mubr.f32.mxu0 0.0
    %5226 = vmatmul.mubr.f32.gmra.mxu0 %v5144
    %v5227 = vpop.f32.mrf.mxu0
    %v5228 = vadd.f32 %v347, %v5227
    %v5229 = vpop.f32.mrf.mxu0
    %5230 = vmatprep.mubr.f32.mxu0 0.0
    %5231 = vmatmul.mubr.f32.gmra.mxu0 %v5147
    %v5232 = vpop.f32.mrf.mxu0
    %v5233 = vadd.f32 %v347, %v5232
    %v5234 = vpop.f32.mrf.mxu0
    %5235 = vmatprep.mubr.f32.mxu0 0.0
    %5236 = vmatmul.mubr.f32.gmra.mxu0 %v5150
    %v5237 = vpop.f32.mrf.mxu0
    %v5238 = vadd.f32 %v347, %v5237
    %v5239 = vpop.f32.mrf.mxu0
    %5240 = vdwg.mxu0
    %v5241 = vsel %vm953, %v5228, -inf
    %5242 = vmax.xlane.f32.xlu0 %v5241
    %v5243 = vpop.xlane.xlu0 %5242
    %v5244 = vsel %vm953, %v5233, -inf
    %5245 = vmax.xlane.f32.xlu0 %v5244
    %v5246 = vpop.xlane.xlu0 %5245
    %v5247 = vsel %vm953, %v5238, -inf
    %5248 = vmax.xlane.f32.xlu0 %v5247
    %v5249 = vpop.xlane.xlu0 %5248
    %v5250 = vsub.f32 %v5228, %v5243
    %v5251 = vsub.f32 %v5233, %v5246
    %v5252 = vsub.f32 %v5238, %v5249
    %v5253 = vmul.f32 %v5250, 1.442695
    %v5254 = vpow.pop %v5253
    %v5255 = vmul.f32 %v5251, 1.442695
    %v5256 = vpow.pop %v5255
    %v5257 = vmul.f32 %v5252, 1.442695
    %v5258 = vpow.pop %v5257
    %v5259 = vsel %vm953, %v5254, 0.0
    %5260 = vadd.xlane.f32.xlu0 %v5259
    %v5261 = vpop.xlane.xlu0 %5260
    %v5262 = vsel %vm953, %v5256, 0.0
    %5263 = vadd.xlane.f32.xlu0 %v5262
    %v5264 = vpop.xlane.xlu0 %5263
    %v5265 = vsel %vm953, %v5258, 0.0
    %5266 = vadd.xlane.f32.xlu0 %v5265
    %v5267 = vpop.xlane.xlu0 %5266
    %v5268 = vrcp.pop %v5261
    %v5269 = vrcp.pop %v5264
    %v5270 = vrcp.pop %v5267
    %v5271 = vmul.f32 %v5254, %v5268
    %v5272 = vmul.f32 %v5256, %v5269
    %v5273 = vmul.f32 %v5258, %v5270
    %v5275 = vsel %vm953, %v5271, 0
    %v5278 = vsel %vm953, %v5272, 0
    %v5281 = vsel %vm953, %v5273, 0
    %5283 = vmatprep.subr.mxu0 0.0
    %5284 = vmatpush1.msra.mxu0 0.0
    %5285 = vmatprep.subr.mxu0 0.0
    %5286 = vmatpush1.msra.mxu0 0.0
    %5287 = vmatprep.subr.mxu0 0.0
    %5288 = vmatpush1.msra.mxu0 0.0
    %5289 = vmatprep.subr.mxu0 0.0
    %5290 = vmatpush1.msra.mxu0 0.0
    %5291 = vmatprep.subr.mxu0 0.0
    %5292 = vmatpush1.msra.mxu0 0.0
    %5293 = vmatprep.subr.mxu0 0.0
    %5294 = vmatpush1.msra.mxu0 0.0
    %5295 = vmatprep.subr.mxu0 0.0
    %5296 = vmatpush1.msra.mxu0 0.0
    %5297 = vmatprep.subr.mxu0 0.0
    %5298 = vmatpush1.msra.mxu0 0.0
    %5299 = vmatprep.subr.mxu0 0.0
    %5300 = vmatpush1.msra.mxu0 0.0
    %5301 = vmatprep.subr.mxu0 0.0
    %5302 = vmatpush1.msra.mxu0 0.0
    %5303 = vmatprep.subr.mxu0 0.0
    %5304 = vmatpush1.msra.mxu0 0.0
    %5305 = vmatprep.subr.mxu0 0.0
    %5306 = vmatpush1.msra.mxu0 0.0
    %5307 = vmatprep.subr.mxu0 0.0
    %5308 = vmatpush1.msra.mxu0 0.0
    %5309 = vmatprep.subr.mxu0 0.0
    %5310 = vmatpush1.msra.mxu0 %v5122
    %5311 = vmatprep.subr.mxu0 0.0
    %5312 = vmatpush1.msra.mxu0 %v5117
    %5313 = vmatprep.subr.mxu0 0.0
    %5314 = vmatpush1.msra.mxu0 %v5112
    %5315 = vmatprep.subr.mxu0 0.0
    %5316 = vmatpush2.msra.mxu0 0.0
    %5317 = vmatprep.subr.mxu0 0.0
    %5318 = vmatpush2.msra.mxu0 0.0
    %5319 = vmatprep.subr.mxu0 0.0
    %5320 = vmatpush2.msra.mxu0 0.0
    %5321 = vmatprep.subr.mxu0 0.0
    %5322 = vmatpush2.msra.mxu0 0.0
    %5323 = vmatprep.subr.mxu0 0.0
    %5324 = vmatpush2.msra.mxu0 0.0
    %5325 = vmatprep.subr.mxu0 0.0
    %5326 = vmatpush2.msra.mxu0 0.0
    %5327 = vmatprep.subr.mxu0 0.0
    %5328 = vmatpush2.msra.mxu0 0.0
    %5329 = vmatprep.subr.mxu0 0.0
    %5330 = vmatpush2.msra.mxu0 0.0
    %5331 = vmatprep.subr.mxu0 0.0
    %5332 = vmatpush2.msra.mxu0 0.0
    %5333 = vmatprep.subr.mxu0 0.0
    %5334 = vmatpush2.msra.mxu0 0.0
    %5335 = vmatprep.subr.mxu0 0.0
    %5336 = vmatpush2.msra.mxu0 0.0
    %5337 = vmatprep.subr.mxu0 0.0
    %5338 = vmatpush2.msra.mxu0 0.0
    %5339 = vmatprep.subr.mxu0 0.0
    %5340 = vmatpush2.msra.mxu0 0.0
    %5341 = vmatprep.subr.mxu0 0.0
    %5342 = vmatpush2.msra.mxu0 0.0
    %5343 = vmatprep.subr.mxu0 0.0
    %5344 = vmatpush2.msra.mxu0 0.0
    %5345 = vmatprep.subr.mxu0 0.0
    %5346 = vmatpush2.msra.mxu0 0.0
    %5347 = vmatprep.mubr.f32.mxu0 0.0
    %5348 = vmatmul.mubr.f32.gmra.mxu0 %v5275
    %v5349 = vpop.f32.mrf.mxu0
    %v5350 = vadd.f32 0.0, %v5349
    %v5351 = vpop.f32.mrf.mxu0
    %5352 = vmatprep.mubr.f32.mxu0 0.0
    %5353 = vmatmul.mubr.f32.gmra.mxu0 %v5278
    %v5354 = vpop.f32.mrf.mxu0
    %v5355 = vadd.f32 0.0, %v5354
    %v5356 = vpop.f32.mrf.mxu0
    %5357 = vmatprep.mubr.f32.mxu0 0.0
    %5358 = vmatmul.mubr.f32.gmra.mxu0 %v5281
    %v5359 = vpop.f32.mrf.mxu0
    %v5360 = vadd.f32 0.0, %v5359
    %v5361 = vpop.f32.mrf.mxu0
    %5362 = vdwg.mxu0
    %5363 = vrot.lane.b32.xlu0 %v5140, 96
    %v5364 = vpop.permute.xlu0 %5363
    %5365 = vrot.lane.b32.xlu0 %v5141, 96
    %v5366 = vpop.permute.xlu0 %5365
    %5367 = vrot.lane.b32.xlu0 %v5142, 96
    %v5368 = vpop.permute.xlu0 %5367
    %5369 = vrot.lane.b32.xlu0 %v5013, 96
    %v5370 = vpop.permute.xlu0 %5369
    %5371 = vrot.lane.b32.xlu0 %v5019, 96
    %v5372 = vpop.permute.xlu0 %5371
    %5373 = vrot.lane.b32.xlu0 %v5025, 96
    %v5374 = vpop.permute.xlu0 %5373
    %v5375 = vsel %vm854, %v5364, 0
    %v5377 = vsel %vm854, %v5366, 0
    %v5379 = vsel %vm854, %v5368, 0
    %v5381 = vsel %vm854, %v5370, 0
    %v5383 = vsel %vm854, %v5372, 0
    %v5385 = vsel %vm854, %v5374, 0
    %5387 = vmatprep.subr.mxu0 0.0
    %5388 = vmatpush1.xpose.msra.mxu0 0.0
    %5389 = vmatprep.subr.mxu0 0.0
    %5390 = vmatpush1.xpose.msra.mxu0 0.0
    %5391 = vmatprep.subr.mxu0 0.0
    %5392 = vmatpush1.xpose.msra.mxu0 0.0
    %5393 = vmatprep.subr.mxu0 0.0
    %5394 = vmatpush1.xpose.msra.mxu0 0.0
    %5395 = vmatprep.subr.mxu0 0.0
    %5396 = vmatpush1.xpose.msra.mxu0 0.0
    %5397 = vmatprep.subr.mxu0 0.0
    %5398 = vmatpush1.xpose.msra.mxu0 0.0
    %5399 = vmatprep.subr.mxu0 0.0
    %5400 = vmatpush1.xpose.msra.mxu0 0.0
    %5401 = vmatprep.subr.mxu0 0.0
    %5402 = vmatpush1.xpose.msra.mxu0 0.0
    %5403 = vmatprep.subr.mxu0 0.0
    %5404 = vmatpush1.xpose.msra.mxu0 0.0
    %5405 = vmatprep.subr.mxu0 0.0
    %5406 = vmatpush1.xpose.msra.mxu0 0.0
    %5407 = vmatprep.subr.mxu0 0.0
    %5408 = vmatpush1.xpose.msra.mxu0 0.0
    %5409 = vmatprep.subr.mxu0 0.0
    %5410 = vmatpush1.xpose.msra.mxu0 0.0
    %5411 = vmatprep.subr.mxu0 0.0
    %5412 = vmatpush1.xpose.msra.mxu0 0.0
    %5413 = vmatprep.subr.mxu0 0.0
    %5414 = vmatpush1.xpose.msra.mxu0 %v5385
    %5415 = vmatprep.subr.mxu0 0.0
    %5416 = vmatpush1.xpose.msra.mxu0 %v5383
    %5417 = vmatprep.subr.mxu0 0.0
    %5418 = vmatpush1.xpose.msra.mxu0 %v5381
    %5419 = vmatprep.subr.mxu0 0.0
    %5420 = vmatpush2.xpose.msra.mxu0 0.0
    %5421 = vmatprep.subr.mxu0 0.0
    %5422 = vmatpush2.xpose.msra.mxu0 0.0
    %5423 = vmatprep.subr.mxu0 0.0
    %5424 = vmatpush2.xpose.msra.mxu0 0.0
    %5425 = vmatprep.subr.mxu0 0.0
    %5426 = vmatpush2.xpose.msra.mxu0 0.0
    %5427 = vmatprep.subr.mxu0 0.0
    %5428 = vmatpush2.xpose.msra.mxu0 0.0
    %5429 = vmatprep.subr.mxu0 0.0
    %5430 = vmatpush2.xpose.msra.mxu0 0.0
    %5431 = vmatprep.subr.mxu0 0.0
    %5432 = vmatpush2.xpose.msra.mxu0 0.0
    %5433 = vmatprep.subr.mxu0 0.0
    %5434 = vmatpush2.xpose.msra.mxu0 0.0
    %5435 = vmatprep.subr.mxu0 0.0
    %5436 = vmatpush2.xpose.msra.mxu0 0.0
    %5437 = vmatprep.subr.mxu0 0.0
    %5438 = vmatpush2.xpose.msra.mxu0 0.0
    %5439 = vmatprep.subr.mxu0 0.0
    %5440 = vmatpush2.xpose.msra.mxu0 0.0
    %5441 = vmatprep.subr.mxu0 0.0
    %5442 = vmatpush2.xpose.msra.mxu0 0.0
    %5443 = vmatprep.subr.mxu0 0.0
    %5444 = vmatpush2.xpose.msra.mxu0 0.0
    %5445 = vmatprep.subr.mxu0 0.0
    %5446 = vmatpush2.xpose.msra.mxu0 0.0
    %5447 = vmatprep.subr.mxu0 0.0
    %5448 = vmatpush2.xpose.msra.mxu0 0.0
    %5449 = vmatprep.subr.mxu0 0.0
    %5450 = vmatpush2.xpose.msra.mxu0 0.0
    %5451 = vmatprep.mubr.f32.mxu0 0.0
    %5452 = vmatmul.mubr.f32.gmra.mxu0 %v5375
    %v5453 = vpop.f32.mrf.mxu0
    %v5454 = vadd.f32 %v347, %v5453
    %v5455 = vpop.f32.mrf.mxu0
    %5456 = vmatprep.mubr.f32.mxu0 0.0
    %5457 = vmatmul.mubr.f32.gmra.mxu0 %v5377
    %v5458 = vpop.f32.mrf.mxu0
    %v5459 = vadd.f32 %v347, %v5458
    %v5460 = vpop.f32.mrf.mxu0
    %5461 = vmatprep.mubr.f32.mxu0 0.0
    %5462 = vmatmul.mubr.f32.gmra.mxu0 %v5379
    %v5463 = vpop.f32.mrf.mxu0
    %v5464 = vadd.f32 %v347, %v5463
    %v5465 = vpop.f32.mrf.mxu0
    %5466 = vdwg.mxu0
    %v5467 = vsel %vm953, %v5454, -inf
    %5468 = vmax.xlane.f32.xlu0 %v5467
    %v5469 = vpop.xlane.xlu0 %5468
    %v5470 = vsel %vm953, %v5459, -inf
    %5471 = vmax.xlane.f32.xlu0 %v5470
    %v5472 = vpop.xlane.xlu0 %5471
    %v5473 = vsel %vm953, %v5464, -inf
    %5474 = vmax.xlane.f32.xlu0 %v5473
    %v5475 = vpop.xlane.xlu0 %5474
    %v5476 = vsub.f32 %v5454, %v5469
    %v5477 = vsub.f32 %v5459, %v5472
    %v5478 = vsub.f32 %v5464, %v5475
    %v5479 = vmul.f32 %v5476, 1.442695
    %v5480 = vpow.pop %v5479
    %v5481 = vmul.f32 %v5477, 1.442695
    %v5482 = vpow.pop %v5481
    %v5483 = vmul.f32 %v5478, 1.442695
    %v5484 = vpow.pop %v5483
    %v5485 = vsel %vm953, %v5480, 0.0
    %5486 = vadd.xlane.f32.xlu0 %v5485
    %v5487 = vpop.xlane.xlu0 %5486
    %v5488 = vsel %vm953, %v5482, 0.0
    %5489 = vadd.xlane.f32.xlu0 %v5488
    %v5490 = vpop.xlane.xlu0 %5489
    %v5491 = vsel %vm953, %v5484, 0.0
    %5492 = vadd.xlane.f32.xlu0 %v5491
    %v5493 = vpop.xlane.xlu0 %5492
    %v5494 = vrcp.pop %v5487
    %v5495 = vrcp.pop %v5490
    %v5496 = vrcp.pop %v5493
    %v5497 = vmul.f32 %v5480, %v5494
    %v5498 = vmul.f32 %v5482, %v5495
    %v5499 = vmul.f32 %v5484, %v5496
    %5503 = vrot.lane.b32.xlu0 %v5112, 96
    %v5504 = vpop.permute.xlu0 %5503
    %5505 = vrot.lane.b32.xlu0 %v5117, 96
    %v5506 = vpop.permute.xlu0 %5505
    %5507 = vrot.lane.b32.xlu0 %v5122, 96
    %v5508 = vpop.permute.xlu0 %5507
    %v5513 = vsel %vm953, %v5497, 0
    %v5516 = vsel %vm953, %v5498, 0
    %v5519 = vsel %vm953, %v5499, 0
    %5521 = vmatprep.subr.mxu0 0.0
    %5522 = vmatpush1.msra.mxu0 0.0
    %5523 = vmatprep.subr.mxu0 0.0
    %5524 = vmatpush1.msra.mxu0 0.0
    %5525 = vmatprep.subr.mxu0 0.0
    %5526 = vmatpush1.msra.mxu0 0.0
    %5527 = vmatprep.subr.mxu0 0.0
    %5528 = vmatpush1.msra.mxu0 0.0
    %5529 = vmatprep.subr.mxu0 0.0
    %5530 = vmatpush1.msra.mxu0 0.0
    %5531 = vmatprep.subr.mxu0 0.0
    %5532 = vmatpush1.msra.mxu0 0.0
    %5533 = vmatprep.subr.mxu0 0.0
    %5534 = vmatpush1.msra.mxu0 0.0
    %5535 = vmatprep.subr.mxu0 0.0
    %5536 = vmatpush1.msra.mxu0 0.0
    %5537 = vmatprep.subr.mxu0 0.0
    %5538 = vmatpush1.msra.mxu0 0.0
    %5539 = vmatprep.subr.mxu0 0.0
    %5540 = vmatpush1.msra.mxu0 0.0
    %5541 = vmatprep.subr.mxu0 0.0
    %5542 = vmatpush1.msra.mxu0 0.0
    %5543 = vmatprep.subr.mxu0 0.0
    %5544 = vmatpush1.msra.mxu0 0.0
    %5545 = vmatprep.subr.mxu0 0.0
    %5546 = vmatpush1.msra.mxu0 0.0
    %5547 = vmatprep.subr.mxu0 0.0
    %5548 = vmatpush1.msra.mxu0 %v5508
    %5549 = vmatprep.subr.mxu0 0.0
    %5550 = vmatpush1.msra.mxu0 %v5506
    %5551 = vmatprep.subr.mxu0 0.0
    %5552 = vmatpush1.msra.mxu0 %v5504
    %5553 = vmatprep.subr.mxu0 0.0
    %5554 = vmatpush2.msra.mxu0 0.0
    %5555 = vmatprep.subr.mxu0 0.0
    %5556 = vmatpush2.msra.mxu0 0.0
    %5557 = vmatprep.subr.mxu0 0.0
    %5558 = vmatpush2.msra.mxu0 0.0
    %5559 = vmatprep.subr.mxu0 0.0
    %5560 = vmatpush2.msra.mxu0 0.0
    %5561 = vmatprep.subr.mxu0 0.0
    %5562 = vmatpush2.msra.mxu0 0.0
    %5563 = vmatprep.subr.mxu0 0.0
    %5564 = vmatpush2.msra.mxu0 0.0
    %5565 = vmatprep.subr.mxu0 0.0
    %5566 = vmatpush2.msra.mxu0 0.0
    %5567 = vmatprep.subr.mxu0 0.0
    %5568 = vmatpush2.msra.mxu0 0.0
    %5569 = vmatprep.subr.mxu0 0.0
    %5570 = vmatpush2.msra.mxu0 0.0
    %5571 = vmatprep.subr.mxu0 0.0
    %5572 = vmatpush2.msra.mxu0 0.0
    %5573 = vmatprep.subr.mxu0 0.0
    %5574 = vmatpush2.msra.mxu0 0.0
    %5575 = vmatprep.subr.mxu0 0.0
    %5576 = vmatpush2.msra.mxu0 0.0
    %5577 = vmatprep.subr.mxu0 0.0
    %5578 = vmatpush2.msra.mxu0 0.0
    %5579 = vmatprep.subr.mxu0 0.0
    %5580 = vmatpush2.msra.mxu0 0.0
    %5581 = vmatprep.subr.mxu0 0.0
    %5582 = vmatpush2.msra.mxu0 0.0
    %5583 = vmatprep.subr.mxu0 0.0
    %5584 = vmatpush2.msra.mxu0 0.0
    %5585 = vmatprep.mubr.f32.mxu0 0.0
    %5586 = vmatmul.mubr.f32.gmra.mxu0 %v5513
    %v5587 = vpop.f32.mrf.mxu0
    %v5588 = vadd.f32 0.0, %v5587
    %v5589 = vpop.f32.mrf.mxu0
    %5590 = vmatprep.mubr.f32.mxu0 0.0
    %5591 = vmatmul.mubr.f32.gmra.mxu0 %v5516
    %v5592 = vpop.f32.mrf.mxu0
    %v5593 = vadd.f32 0.0, %v5592
    %v5594 = vpop.f32.mrf.mxu0
    %5595 = vmatprep.mubr.f32.mxu0 0.0
    %5596 = vmatmul.mubr.f32.gmra.mxu0 %v5519
    %v5597 = vpop.f32.mrf.mxu0
    %v5598 = vadd.f32 0.0, %v5597
    %v5599 = vpop.f32.mrf.mxu0
    %5600 = vdwg.mxu0
    %v5602 = vsel %vm854, %v5588, 0
    %v5605 = vsel %vm854, %v5593, 0
    %v5608 = vsel %vm854, %v5598, 0
    %5610 = vmatprep.subr.mxu0 0.0
    %5611 = vmatpush1.msra.mxu0 0.0
    %5612 = vmatprep.subr.mxu0 0.0
    %5613 = vmatpush1.msra.mxu0 0.0
    %5614 = vmatprep.subr.mxu0 0.0
    %5615 = vmatpush1.msra.mxu0 0.0
    %5616 = vmatprep.subr.mxu0 0.0
    %5617 = vmatpush1.msra.mxu0 0.0
    %5618 = vmatprep.subr.mxu0 0.0
    %5619 = vmatpush1.msra.mxu0 0.0
    %5620 = vmatprep.subr.mxu0 0.0
    %5621 = vmatpush1.msra.mxu0 0.0
    %5622 = vmatprep.subr.mxu0 0.0
    %5623 = vmatpush1.msra.mxu0 0.0
    %5624 = vmatprep.subr.mxu0 0.0
    %5625 = vmatpush1.msra.mxu0 0.0
    %5626 = vmatprep.subr.mxu0 0.0
    %5627 = vmatpush1.msra.mxu0 0.0
    %5628 = vmatprep.subr.mxu0 0.0
    %5629 = vmatpush1.msra.mxu0 0.0
    %5630 = vmatprep.subr.mxu0 0.0
    %5631 = vmatpush1.msra.mxu0 0.0
    %5632 = vmatprep.subr.mxu0 0.0
    %5633 = vmatpush1.msra.mxu0 0.0
    %5634 = vmatprep.subr.mxu0 0.0
    %5635 = vmatpush1.msra.mxu0 %v4689
    %5636 = vmatprep.subr.mxu0 0.0
    %5637 = vmatpush1.msra.mxu0 %v4688
    %5638 = vmatprep.subr.mxu0 0.0
    %5639 = vmatpush1.msra.mxu0 %v4687
    %5640 = vmatprep.subr.mxu0 0.0
    %5641 = vmatpush1.msra.mxu0 %v4686
    %5642 = vmatprep.subr.mxu0 0.0
    %5643 = vmatpush2.msra.mxu0 0.0
    %5644 = vmatprep.subr.mxu0 0.0
    %5645 = vmatpush2.msra.mxu0 0.0
    %5646 = vmatprep.subr.mxu0 0.0
    %5647 = vmatpush2.msra.mxu0 0.0
    %5648 = vmatprep.subr.mxu0 0.0
    %5649 = vmatpush2.msra.mxu0 0.0
    %5650 = vmatprep.subr.mxu0 0.0
    %5651 = vmatpush2.msra.mxu0 0.0
    %5652 = vmatprep.subr.mxu0 0.0
    %5653 = vmatpush2.msra.mxu0 0.0
    %5654 = vmatprep.subr.mxu0 0.0
    %5655 = vmatpush2.msra.mxu0 0.0
    %5656 = vmatprep.subr.mxu0 0.0
    %5657 = vmatpush2.msra.mxu0 0.0
    %5658 = vmatprep.subr.mxu0 0.0
    %5659 = vmatpush2.msra.mxu0 0.0
    %5660 = vmatprep.subr.mxu0 0.0
    %5661 = vmatpush2.msra.mxu0 0.0
    %5662 = vmatprep.subr.mxu0 0.0
    %5663 = vmatpush2.msra.mxu0 0.0
    %5664 = vmatprep.subr.mxu0 0.0
    %5665 = vmatpush2.msra.mxu0 0.0
    %5666 = vmatprep.subr.mxu0 0.0
    %5667 = vmatpush2.msra.mxu0 0.0
    %5668 = vmatprep.subr.mxu0 0.0
    %5669 = vmatpush2.msra.mxu0 0.0
    %5670 = vmatprep.subr.mxu0 0.0
    %5671 = vmatpush2.msra.mxu0 0.0
    %5672 = vmatprep.subr.mxu0 0.0
    %5673 = vmatpush2.msra.mxu0 0.0
    %5674 = vmatprep.mubr.f32.mxu0 0.0
    %5675 = vmatmul.mubr.f32.gmra.mxu0 %v5602
    %v5676 = vpop.f32.mrf.mxu0
    %v5677 = vadd.f32 0.0, %v5676
    %v5678 = vpop.f32.mrf.mxu0
    %5679 = vmatprep.mubr.f32.mxu0 0.0
    %5680 = vmatmul.mubr.f32.gmra.mxu0 %v5605
    %v5681 = vpop.f32.mrf.mxu0
    %v5682 = vadd.f32 0.0, %v5681
    %v5683 = vpop.f32.mrf.mxu0
    %5684 = vmatprep.mubr.f32.mxu0 0.0
    %5685 = vmatmul.mubr.f32.gmra.mxu0 %v5608
    %v5686 = vpop.f32.mrf.mxu0
    %v5687 = vadd.f32 0.0, %v5686
    %v5688 = vpop.f32.mrf.mxu0
    %5689 = vdwg.mxu0
    %v5691 = vsel %vm854, %v5350, 0
    %v5694 = vsel %vm854, %v5355, 0
    %v5697 = vsel %vm854, %v5360, 0
    %5699 = vmatprep.subr.mxu0 0.0
    %5700 = vmatpush1.msra.mxu0 0.0
    %5701 = vmatprep.subr.mxu0 0.0
    %5702 = vmatpush1.msra.mxu0 0.0
    %5703 = vmatprep.subr.mxu0 0.0
    %5704 = vmatpush1.msra.mxu0 0.0
    %5705 = vmatprep.subr.mxu0 0.0
    %5706 = vmatpush1.msra.mxu0 0.0
    %5707 = vmatprep.subr.mxu0 0.0
    %5708 = vmatpush1.msra.mxu0 0.0
    %5709 = vmatprep.subr.mxu0 0.0
    %5710 = vmatpush1.msra.mxu0 0.0
    %5711 = vmatprep.subr.mxu0 0.0
    %5712 = vmatpush1.msra.mxu0 0.0
    %5713 = vmatprep.subr.mxu0 0.0
    %5714 = vmatpush1.msra.mxu0 0.0
    %5715 = vmatprep.subr.mxu0 0.0
    %5716 = vmatpush1.msra.mxu0 0.0
    %5717 = vmatprep.subr.mxu0 0.0
    %5718 = vmatpush1.msra.mxu0 0.0
    %5719 = vmatprep.subr.mxu0 0.0
    %5720 = vmatpush1.msra.mxu0 0.0
    %5721 = vmatprep.subr.mxu0 0.0
    %5722 = vmatpush1.msra.mxu0 0.0
    %5723 = vmatprep.subr.mxu0 0.0
    %5724 = vmatpush1.msra.mxu0 %v4685
    %5725 = vmatprep.subr.mxu0 0.0
    %5726 = vmatpush1.msra.mxu0 %v4684
    %5727 = vmatprep.subr.mxu0 0.0
    %5728 = vmatpush1.msra.mxu0 %v4683
    %5729 = vmatprep.subr.mxu0 0.0
    %5730 = vmatpush1.msra.mxu0 %v4682
    %5731 = vmatprep.subr.mxu0 0.0
    %5732 = vmatpush2.msra.mxu0 0.0
    %5733 = vmatprep.subr.mxu0 0.0
    %5734 = vmatpush2.msra.mxu0 0.0
    %5735 = vmatprep.subr.mxu0 0.0
    %5736 = vmatpush2.msra.mxu0 0.0
    %5737 = vmatprep.subr.mxu0 0.0
    %5738 = vmatpush2.msra.mxu0 0.0
    %5739 = vmatprep.subr.mxu0 0.0
    %5740 = vmatpush2.msra.mxu0 0.0
    %5741 = vmatprep.subr.mxu0 0.0
    %5742 = vmatpush2.msra.mxu0 0.0
    %5743 = vmatprep.subr.mxu0 0.0
    %5744 = vmatpush2.msra.mxu0 0.0
    %5745 = vmatprep.subr.mxu0 0.0
    %5746 = vmatpush2.msra.mxu0 0.0
    %5747 = vmatprep.subr.mxu0 0.0
    %5748 = vmatpush2.msra.mxu0 0.0
    %5749 = vmatprep.subr.mxu0 0.0
    %5750 = vmatpush2.msra.mxu0 0.0
    %5751 = vmatprep.subr.mxu0 0.0
    %5752 = vmatpush2.msra.mxu0 0.0
    %5753 = vmatprep.subr.mxu0 0.0
    %5754 = vmatpush2.msra.mxu0 0.0
    %5755 = vmatprep.subr.mxu0 0.0
    %5756 = vmatpush2.msra.mxu0 0.0
    %5757 = vmatprep.subr.mxu0 0.0
    %5758 = vmatpush2.msra.mxu0 0.0
    %5759 = vmatprep.subr.mxu0 0.0
    %5760 = vmatpush2.msra.mxu0 0.0
    %5761 = vmatprep.subr.mxu0 0.0
    %5762 = vmatpush2.msra.mxu0 0.0
    %5763 = vmatprep.mubr.f32.mxu0 0.0
    %5764 = vmatmul.mubr.f32.gmra.mxu0 %v5691
    %v5765 = vpop.f32.mrf.mxu0
    %v5766 = vadd.f32 %v5677, %v5765
    %v5767 = vpop.f32.mrf.mxu0
    %5768 = vmatprep.mubr.f32.mxu0 0.0
    %5769 = vmatmul.mubr.f32.gmra.mxu0 %v5694
    %v5770 = vpop.f32.mrf.mxu0
    %v5771 = vadd.f32 %v5682, %v5770
    %v5772 = vpop.f32.mrf.mxu0
    %5773 = vmatprep.mubr.f32.mxu0 0.0
    %5774 = vmatmul.mubr.f32.gmra.mxu0 %v5697
    %v5775 = vpop.f32.mrf.mxu0
    %v5776 = vadd.f32 %v5687, %v5775
    %v5777 = vpop.f32.mrf.mxu0
    %5778 = vdwg.mxu0
    %5779 = vrot.lane.b32.xlu0 %v5140, 64
    %v5780 = vpop.permute.xlu0 %5779
    %5781 = vrot.lane.b32.xlu0 %v5141, 64
    %v5782 = vpop.permute.xlu0 %5781
    %5783 = vrot.lane.b32.xlu0 %v5142, 64
    %v5784 = vpop.permute.xlu0 %5783
    %5785 = vrot.lane.b32.xlu0 %v5013, 64
    %v5786 = vpop.permute.xlu0 %5785
    %5787 = vrot.lane.b32.xlu0 %v5019, 64
    %v5788 = vpop.permute.xlu0 %5787
    %5789 = vrot.lane.b32.xlu0 %v5025, 64
    %v5790 = vpop.permute.xlu0 %5789
    %v5791 = vsel %vm854, %v5780, 0
    %v5793 = vsel %vm854, %v5782, 0
    %v5795 = vsel %vm854, %v5784, 0
    %v5797 = vsel %vm854, %v5786, 0
    %v5799 = vsel %vm854, %v5788, 0
    %v5801 = vsel %vm854, %v5790, 0
    %5803 = vmatprep.subr.mxu0 0.0
    %5804 = vmatpush1.xpose.msra.mxu0 0.0
    %5805 = vmatprep.subr.mxu0 0.0
    %5806 = vmatpush1.xpose.msra.mxu0 0.0
    %5807 = vmatprep.subr.mxu0 0.0
    %5808 = vmatpush1.xpose.msra.mxu0 0.0
    %5809 = vmatprep.subr.mxu0 0.0
    %5810 = vmatpush1.xpose.msra.mxu0 0.0
    %5811 = vmatprep.subr.mxu0 0.0
    %5812 = vmatpush1.xpose.msra.mxu0 0.0
    %5813 = vmatprep.subr.mxu0 0.0
    %5814 = vmatpush1.xpose.msra.mxu0 0.0
    %5815 = vmatprep.subr.mxu0 0.0
    %5816 = vmatpush1.xpose.msra.mxu0 0.0
    %5817 = vmatprep.subr.mxu0 0.0
    %5818 = vmatpush1.xpose.msra.mxu0 0.0
    %5819 = vmatprep.subr.mxu0 0.0
    %5820 = vmatpush1.xpose.msra.mxu0 0.0
    %5821 = vmatprep.subr.mxu0 0.0
    %5822 = vmatpush1.xpose.msra.mxu0 0.0
    %5823 = vmatprep.subr.mxu0 0.0
    %5824 = vmatpush1.xpose.msra.mxu0 0.0
    %5825 = vmatprep.subr.mxu0 0.0
    %5826 = vmatpush1.xpose.msra.mxu0 0.0
    %5827 = vmatprep.subr.mxu0 0.0
    %5828 = vmatpush1.xpose.msra.mxu0 0.0
    %5829 = vmatprep.subr.mxu0 0.0
    %5830 = vmatpush1.xpose.msra.mxu0 %v5801
    %5831 = vmatprep.subr.mxu0 0.0
    %5832 = vmatpush1.xpose.msra.mxu0 %v5799
    %5833 = vmatprep.subr.mxu0 0.0
    %5834 = vmatpush1.xpose.msra.mxu0 %v5797
    %5835 = vmatprep.subr.mxu0 0.0
    %5836 = vmatpush2.xpose.msra.mxu0 0.0
    %5837 = vmatprep.subr.mxu0 0.0
    %5838 = vmatpush2.xpose.msra.mxu0 0.0
    %5839 = vmatprep.subr.mxu0 0.0
    %5840 = vmatpush2.xpose.msra.mxu0 0.0
    %5841 = vmatprep.subr.mxu0 0.0
    %5842 = vmatpush2.xpose.msra.mxu0 0.0
    %5843 = vmatprep.subr.mxu0 0.0
    %5844 = vmatpush2.xpose.msra.mxu0 0.0
    %5845 = vmatprep.subr.mxu0 0.0
    %5846 = vmatpush2.xpose.msra.mxu0 0.0
    %5847 = vmatprep.subr.mxu0 0.0
    %5848 = vmatpush2.xpose.msra.mxu0 0.0
    %5849 = vmatprep.subr.mxu0 0.0
    %5850 = vmatpush2.xpose.msra.mxu0 0.0
    %5851 = vmatprep.subr.mxu0 0.0
    %5852 = vmatpush2.xpose.msra.mxu0 0.0
    %5853 = vmatprep.subr.mxu0 0.0
    %5854 = vmatpush2.xpose.msra.mxu0 0.0
    %5855 = vmatprep.subr.mxu0 0.0
    %5856 = vmatpush2.xpose.msra.mxu0 0.0
    %5857 = vmatprep.subr.mxu0 0.0
    %5858 = vmatpush2.xpose.msra.mxu0 0.0
    %5859 = vmatprep.subr.mxu0 0.0
    %5860 = vmatpush2.xpose.msra.mxu0 0.0
    %5861 = vmatprep.subr.mxu0 0.0
    %5862 = vmatpush2.xpose.msra.mxu0 0.0
    %5863 = vmatprep.subr.mxu0 0.0
    %5864 = vmatpush2.xpose.msra.mxu0 0.0
    %5865 = vmatprep.subr.mxu0 0.0
    %5866 = vmatpush2.xpose.msra.mxu0 0.0
    %5867 = vmatprep.mubr.f32.mxu0 0.0
    %5868 = vmatmul.mubr.f32.gmra.mxu0 %v5791
    %v5869 = vpop.f32.mrf.mxu0
    %v5870 = vadd.f32 %v347, %v5869
    %v5871 = vpop.f32.mrf.mxu0
    %5872 = vmatprep.mubr.f32.mxu0 0.0
    %5873 = vmatmul.mubr.f32.gmra.mxu0 %v5793
    %v5874 = vpop.f32.mrf.mxu0
    %v5875 = vadd.f32 %v347, %v5874
    %v5876 = vpop.f32.mrf.mxu0
    %5877 = vmatprep.mubr.f32.mxu0 0.0
    %5878 = vmatmul.mubr.f32.gmra.mxu0 %v5795
    %v5879 = vpop.f32.mrf.mxu0
    %v5880 = vadd.f32 %v347, %v5879
    %v5881 = vpop.f32.mrf.mxu0
    %5882 = vdwg.mxu0
    %v5883 = vsel %vm953, %v5870, -inf
    %5884 = vmax.xlane.f32.xlu0 %v5883
    %v5885 = vpop.xlane.xlu0 %5884
    %v5886 = vsel %vm953, %v5875, -inf
    %5887 = vmax.xlane.f32.xlu0 %v5886
    %v5888 = vpop.xlane.xlu0 %5887
    %v5889 = vsel %vm953, %v5880, -inf
    %5890 = vmax.xlane.f32.xlu0 %v5889
    %v5891 = vpop.xlane.xlu0 %5890
    %v5892 = vsub.f32 %v5870, %v5885
    %v5893 = vsub.f32 %v5875, %v5888
    %v5894 = vsub.f32 %v5880, %v5891
    %v5895 = vmul.f32 %v5892, 1.442695
    %v5896 = vpow.pop %v5895
    %v5897 = vmul.f32 %v5893, 1.442695
    %v5898 = vpow.pop %v5897
    %v5899 = vmul.f32 %v5894, 1.442695
    %v5900 = vpow.pop %v5899
    %v5901 = vsel %vm953, %v5896, 0.0
    %5902 = vadd.xlane.f32.xlu0 %v5901
    %v5903 = vpop.xlane.xlu0 %5902
    %v5904 = vsel %vm953, %v5898, 0.0
    %5905 = vadd.xlane.f32.xlu0 %v5904
    %v5906 = vpop.xlane.xlu0 %5905
    %v5907 = vsel %vm953, %v5900, 0.0
    %5908 = vadd.xlane.f32.xlu0 %v5907
    %v5909 = vpop.xlane.xlu0 %5908
    %v5910 = vrcp.pop %v5903
    %v5911 = vrcp.pop %v5906
    %v5912 = vrcp.pop %v5909
    %v5913 = vmul.f32 %v5896, %v5910
    %v5914 = vmul.f32 %v5898, %v5911
    %v5915 = vmul.f32 %v5900, %v5912
    %5916 = vrot.lane.b32.xlu0 %v5112, 64
    %v5917 = vpop.permute.xlu0 %5916
    %5918 = vrot.lane.b32.xlu0 %v5117, 64
    %v5919 = vpop.permute.xlu0 %5918
    %5920 = vrot.lane.b32.xlu0 %v5122, 64
    %v5921 = vpop.permute.xlu0 %5920
    %v5926 = vsel %vm953, %v5913, 0
    %v5929 = vsel %vm953, %v5914, 0
    %v5932 = vsel %vm953, %v5915, 0
    %5934 = vmatprep.subr.mxu0 0.0
    %5935 = vmatpush1.msra.mxu0 0.0
    %5936 = vmatprep.subr.mxu0 0.0
    %5937 = vmatpush1.msra.mxu0 0.0
    %5938 = vmatprep.subr.mxu0 0.0
    %5939 = vmatpush1.msra.mxu0 0.0
    %5940 = vmatprep.subr.mxu0 0.0
    %5941 = vmatpush1.msra.mxu0 0.0
    %5942 = vmatprep.subr.mxu0 0.0
    %5943 = vmatpush1.msra.mxu0 0.0
    %5944 = vmatprep.subr.mxu0 0.0
    %5945 = vmatpush1.msra.mxu0 0.0
    %5946 = vmatprep.subr.mxu0 0.0
    %5947 = vmatpush1.msra.mxu0 0.0
    %5948 = vmatprep.subr.mxu0 0.0
    %5949 = vmatpush1.msra.mxu0 0.0
    %5950 = vmatprep.subr.mxu0 0.0
    %5951 = vmatpush1.msra.mxu0 0.0
    %5952 = vmatprep.subr.mxu0 0.0
    %5953 = vmatpush1.msra.mxu0 0.0
    %5954 = vmatprep.subr.mxu0 0.0
    %5955 = vmatpush1.msra.mxu0 0.0
    %5956 = vmatprep.subr.mxu0 0.0
    %5957 = vmatpush1.msra.mxu0 0.0
    %5958 = vmatprep.subr.mxu0 0.0
    %5959 = vmatpush1.msra.mxu0 0.0
    %5960 = vmatprep.subr.mxu0 0.0
    %5961 = vmatpush1.msra.mxu0 %v5921
    %5962 = vmatprep.subr.mxu0 0.0
    %5963 = vmatpush1.msra.mxu0 %v5919
    %5964 = vmatprep.subr.mxu0 0.0
    %5965 = vmatpush1.msra.mxu0 %v5917
    %5966 = vmatprep.subr.mxu0 0.0
    %5967 = vmatpush2.msra.mxu0 0.0
    %5968 = vmatprep.subr.mxu0 0.0
    %5969 = vmatpush2.msra.mxu0 0.0
    %5970 = vmatprep.subr.mxu0 0.0
    %5971 = vmatpush2.msra.mxu0 0.0
    %5972 = vmatprep.subr.mxu0 0.0
    %5973 = vmatpush2.msra.mxu0 0.0
    %5974 = vmatprep.subr.mxu0 0.0
    %5975 = vmatpush2.msra.mxu0 0.0
    %5976 = vmatprep.subr.mxu0 0.0
    %5977 = vmatpush2.msra.mxu0 0.0
    %5978 = vmatprep.subr.mxu0 0.0
    %5979 = vmatpush2.msra.mxu0 0.0
    %5980 = vmatprep.subr.mxu0 0.0
    %5981 = vmatpush2.msra.mxu0 0.0
    %5982 = vmatprep.subr.mxu0 0.0
    %5983 = vmatpush2.msra.mxu0 0.0
    %5984 = vmatprep.subr.mxu0 0.0
    %5985 = vmatpush2.msra.mxu0 0.0
    %5986 = vmatprep.subr.mxu0 0.0
    %5987 = vmatpush2.msra.mxu0 0.0
    %5988 = vmatprep.subr.mxu0 0.0
    %5989 = vmatpush2.msra.mxu0 0.0
    %5990 = vmatprep.subr.mxu0 0.0
    %5991 = vmatpush2.msra.mxu0 0.0
    %5992 = vmatprep.subr.mxu0 0.0
    %5993 = vmatpush2.msra.mxu0 0.0
    %5994 = vmatprep.subr.mxu0 0.0
    %5995 = vmatpush2.msra.mxu0 0.0
    %5996 = vmatprep.subr.mxu0 0.0
    %5997 = vmatpush2.msra.mxu0 0.0
    %5998 = vmatprep.mubr.f32.mxu0 0.0
    %5999 = vmatmul.mubr.f32.gmra.mxu0 %v5926
    %v6000 = vpop.f32.mrf.mxu0
    %v6001 = vadd.f32 0.0, %v6000
    %v6002 = vpop.f32.mrf.mxu0
    %6003 = vmatprep.mubr.f32.mxu0 0.0
    %6004 = vmatmul.mubr.f32.gmra.mxu0 %v5929
    %v6005 = vpop.f32.mrf.mxu0
    %v6006 = vadd.f32 0.0, %v6005
    %v6007 = vpop.f32.mrf.mxu0
    %6008 = vmatprep.mubr.f32.mxu0 0.0
    %6009 = vmatmul.mubr.f32.gmra.mxu0 %v5932
    %v6010 = vpop.f32.mrf.mxu0
    %v6011 = vadd.f32 0.0, %v6010
    %v6012 = vpop.f32.mrf.mxu0
    %6013 = vdwg.mxu0
    %v6015 = vsel %vm854, %v6001, 0
    %v6018 = vsel %vm854, %v6006, 0
    %v6021 = vsel %vm854, %v6011, 0
    %6023 = vmatprep.subr.mxu0 0.0
    %6024 = vmatpush1.msra.mxu0 0.0
    %6025 = vmatprep.subr.mxu0 0.0
    %6026 = vmatpush1.msra.mxu0 0.0
    %6027 = vmatprep.subr.mxu0 0.0
    %6028 = vmatpush1.msra.mxu0 0.0
    %6029 = vmatprep.subr.mxu0 0.0
    %6030 = vmatpush1.msra.mxu0 0.0
    %6031 = vmatprep.subr.mxu0 0.0
    %6032 = vmatpush1.msra.mxu0 0.0
    %6033 = vmatprep.subr.mxu0 0.0
    %6034 = vmatpush1.msra.mxu0 0.0
    %6035 = vmatprep.subr.mxu0 0.0
    %6036 = vmatpush1.msra.mxu0 0.0
    %6037 = vmatprep.subr.mxu0 0.0
    %6038 = vmatpush1.msra.mxu0 0.0
    %6039 = vmatprep.subr.mxu0 0.0
    %6040 = vmatpush1.msra.mxu0 0.0
    %6041 = vmatprep.subr.mxu0 0.0
    %6042 = vmatpush1.msra.mxu0 0.0
    %6043 = vmatprep.subr.mxu0 0.0
    %6044 = vmatpush1.msra.mxu0 0.0
    %6045 = vmatprep.subr.mxu0 0.0
    %6046 = vmatpush1.msra.mxu0 0.0
    %6047 = vmatprep.subr.mxu0 0.0
    %6048 = vmatpush1.msra.mxu0 %v4693
    %6049 = vmatprep.subr.mxu0 0.0
    %6050 = vmatpush1.msra.mxu0 %v4692
    %6051 = vmatprep.subr.mxu0 0.0
    %6052 = vmatpush1.msra.mxu0 %v4691
    %6053 = vmatprep.subr.mxu0 0.0
    %6054 = vmatpush1.msra.mxu0 %v4690
    %6055 = vmatprep.subr.mxu0 0.0
    %6056 = vmatpush2.msra.mxu0 0.0
    %6057 = vmatprep.subr.mxu0 0.0
    %6058 = vmatpush2.msra.mxu0 0.0
    %6059 = vmatprep.subr.mxu0 0.0
    %6060 = vmatpush2.msra.mxu0 0.0
    %6061 = vmatprep.subr.mxu0 0.0
    %6062 = vmatpush2.msra.mxu0 0.0
    %6063 = vmatprep.subr.mxu0 0.0
    %6064 = vmatpush2.msra.mxu0 0.0
    %6065 = vmatprep.subr.mxu0 0.0
    %6066 = vmatpush2.msra.mxu0 0.0
    %6067 = vmatprep.subr.mxu0 0.0
    %6068 = vmatpush2.msra.mxu0 0.0
    %6069 = vmatprep.subr.mxu0 0.0
    %6070 = vmatpush2.msra.mxu0 0.0
    %6071 = vmatprep.subr.mxu0 0.0
    %6072 = vmatpush2.msra.mxu0 0.0
    %6073 = vmatprep.subr.mxu0 0.0
    %6074 = vmatpush2.msra.mxu0 0.0
    %6075 = vmatprep.subr.mxu0 0.0
    %6076 = vmatpush2.msra.mxu0 0.0
    %6077 = vmatprep.subr.mxu0 0.0
    %6078 = vmatpush2.msra.mxu0 0.0
    %6079 = vmatprep.subr.mxu0 0.0
    %6080 = vmatpush2.msra.mxu0 0.0
    %6081 = vmatprep.subr.mxu0 0.0
    %6082 = vmatpush2.msra.mxu0 0.0
    %6083 = vmatprep.subr.mxu0 0.0
    %6084 = vmatpush2.msra.mxu0 0.0
    %6085 = vmatprep.subr.mxu0 0.0
    %6086 = vmatpush2.msra.mxu0 0.0
    %6087 = vmatprep.mubr.f32.mxu0 0.0
    %6088 = vmatmul.mubr.f32.gmra.mxu0 %v6015
    %v6089 = vpop.f32.mrf.mxu0
    %v6090 = vadd.f32 0.0, %v6089
    %v6091 = vpop.f32.mrf.mxu0
    %6092 = vmatprep.mubr.f32.mxu0 0.0
    %6093 = vmatmul.mubr.f32.gmra.mxu0 %v6018
    %v6094 = vpop.f32.mrf.mxu0
    %v6095 = vadd.f32 0.0, %v6094
    %v6096 = vpop.f32.mrf.mxu0
    %6097 = vmatprep.mubr.f32.mxu0 0.0
    %6098 = vmatmul.mubr.f32.gmra.mxu0 %v6021
    %v6099 = vpop.f32.mrf.mxu0
    %v6100 = vadd.f32 0.0, %v6099
    %v6101 = vpop.f32.mrf.mxu0
    %6102 = vdwg.mxu0
    %v6103 = vadd.f32 %v5766, %v6090
    %v6104 = vadd.f32 %v5771, %v6095
    %v6105 = vadd.f32 %v5776, %v6100
    %6106 = vrot.lane.b32.xlu0 %v5140, 32
    %v6107 = vpop.permute.xlu0 %6106
    %6108 = vrot.lane.b32.xlu0 %v5141, 32
    %v6109 = vpop.permute.xlu0 %6108
    %6110 = vrot.lane.b32.xlu0 %v5142, 32
    %v6111 = vpop.permute.xlu0 %6110
    %6112 = vrot.lane.b32.xlu0 %v5013, 32
    %v6113 = vpop.permute.xlu0 %6112
    %6114 = vrot.lane.b32.xlu0 %v5019, 32
    %v6115 = vpop.permute.xlu0 %6114
    %6116 = vrot.lane.b32.xlu0 %v5025, 32
    %v6117 = vpop.permute.xlu0 %6116
    %v6118 = vsel %vm854, %v6107, 0
    %v6120 = vsel %vm854, %v6109, 0
    %v6122 = vsel %vm854, %v6111, 0
    %v6124 = vsel %vm854, %v6113, 0
    %v6126 = vsel %vm854, %v6115, 0
    %v6128 = vsel %vm854, %v6117, 0
    %6130 = vmatprep.subr.mxu0 0.0
    %6131 = vmatpush1.xpose.msra.mxu0 0.0
    %6132 = vmatprep.subr.mxu0 0.0
    %6133 = vmatpush1.xpose.msra.mxu0 0.0
    %6134 = vmatprep.subr.mxu0 0.0
    %6135 = vmatpush1.xpose.msra.mxu0 0.0
    %6136 = vmatprep.subr.mxu0 0.0
    %6137 = vmatpush1.xpose.msra.mxu0 0.0
    %6138 = vmatprep.subr.mxu0 0.0
    %6139 = vmatpush1.xpose.msra.mxu0 0.0
    %6140 = vmatprep.subr.mxu0 0.0
    %6141 = vmatpush1.xpose.msra.mxu0 0.0
    %6142 = vmatprep.subr.mxu0 0.0
    %6143 = vmatpush1.xpose.msra.mxu0 0.0
    %6144 = vmatprep.subr.mxu0 0.0
    %6145 = vmatpush1.xpose.msra.mxu0 0.0
    %6146 = vmatprep.subr.mxu0 0.0
    %6147 = vmatpush1.xpose.msra.mxu0 0.0
    %6148 = vmatprep.subr.mxu0 0.0
    %6149 = vmatpush1.xpose.msra.mxu0 0.0
    %6150 = vmatprep.subr.mxu0 0.0
    %6151 = vmatpush1.xpose.msra.mxu0 0.0
    %6152 = vmatprep.subr.mxu0 0.0
    %6153 = vmatpush1.xpose.msra.mxu0 0.0
    %6154 = vmatprep.subr.mxu0 0.0
    %6155 = vmatpush1.xpose.msra.mxu0 0.0
    %6156 = vmatprep.subr.mxu0 0.0
    %6157 = vmatpush1.xpose.msra.mxu0 %v6128
    %6158 = vmatprep.subr.mxu0 0.0
    %6159 = vmatpush1.xpose.msra.mxu0 %v6126
    %6160 = vmatprep.subr.mxu0 0.0
    %6161 = vmatpush1.xpose.msra.mxu0 %v6124
    %6162 = vmatprep.subr.mxu0 0.0
    %6163 = vmatpush2.xpose.msra.mxu0 0.0
    %6164 = vmatprep.subr.mxu0 0.0
    %6165 = vmatpush2.xpose.msra.mxu0 0.0
    %6166 = vmatprep.subr.mxu0 0.0
    %6167 = vmatpush2.xpose.msra.mxu0 0.0
    %6168 = vmatprep.subr.mxu0 0.0
    %6169 = vmatpush2.xpose.msra.mxu0 0.0
    %6170 = vmatprep.subr.mxu0 0.0
    %6171 = vmatpush2.xpose.msra.mxu0 0.0
    %6172 = vmatprep.subr.mxu0 0.0
    %6173 = vmatpush2.xpose.msra.mxu0 0.0
    %6174 = vmatprep.subr.mxu0 0.0
    %6175 = vmatpush2.xpose.msra.mxu0 0.0
    %6176 = vmatprep.subr.mxu0 0.0
    %6177 = vmatpush2.xpose.msra.mxu0 0.0
    %6178 = vmatprep.subr.mxu0 0.0
    %6179 = vmatpush2.xpose.msra.mxu0 0.0
    %6180 = vmatprep.subr.mxu0 0.0
    %6181 = vmatpush2.xpose.msra.mxu0 0.0
    %6182 = vmatprep.subr.mxu0 0.0
    %6183 = vmatpush2.xpose.msra.mxu0 0.0
    %6184 = vmatprep.subr.mxu0 0.0
    %6185 = vmatpush2.xpose.msra.mxu0 0.0
    %6186 = vmatprep.subr.mxu0 0.0
    %6187 = vmatpush2.xpose.msra.mxu0 0.0
    %6188 = vmatprep.subr.mxu0 0.0
    %6189 = vmatpush2.xpose.msra.mxu0 0.0
    %6190 = vmatprep.subr.mxu0 0.0
    %6191 = vmatpush2.xpose.msra.mxu0 0.0
    %6192 = vmatprep.subr.mxu0 0.0
    %6193 = vmatpush2.xpose.msra.mxu0 0.0
    %6194 = vmatprep.mubr.f32.mxu0 0.0
    %6195 = vmatmul.mubr.f32.gmra.mxu0 %v6118
    %v6196 = vpop.f32.mrf.mxu0
    %v6197 = vadd.f32 %v347, %v6196
    %v6198 = vpop.f32.mrf.mxu0
    %6199 = vmatprep.mubr.f32.mxu0 0.0
    %6200 = vmatmul.mubr.f32.gmra.mxu0 %v6120
    %v6201 = vpop.f32.mrf.mxu0
    %v6202 = vadd.f32 %v347, %v6201
    %v6203 = vpop.f32.mrf.mxu0
    %6204 = vmatprep.mubr.f32.mxu0 0.0
    %6205 = vmatmul.mubr.f32.gmra.mxu0 %v6122
    %v6206 = vpop.f32.mrf.mxu0
    %v6207 = vadd.f32 %v347, %v6206
    %v6208 = vpop.f32.mrf.mxu0
    %6209 = vdwg.mxu0
    %v6210 = vsel %vm953, %v6197, -inf
    %6211 = vmax.xlane.f32.xlu0 %v6210
    %v6212 = vpop.xlane.xlu0 %6211
    %v6213 = vsel %vm953, %v6202, -inf
    %6214 = vmax.xlane.f32.xlu0 %v6213
    %v6215 = vpop.xlane.xlu0 %6214
    %v6216 = vsel %vm953, %v6207, -inf
    %6217 = vmax.xlane.f32.xlu0 %v6216
    %v6218 = vpop.xlane.xlu0 %6217
    %v6219 = vsub.f32 %v6197, %v6212
    %v6220 = vsub.f32 %v6202, %v6215
    %v6221 = vsub.f32 %v6207, %v6218
    %v6222 = vmul.f32 %v6219, 1.442695
    %v6223 = vpow.pop %v6222
    %v6224 = vmul.f32 %v6220, 1.442695
    %v6225 = vpow.pop %v6224
    %v6226 = vmul.f32 %v6221, 1.442695
    %v6227 = vpow.pop %v6226
    %v6228 = vsel %vm953, %v6223, 0.0
    %6229 = vadd.xlane.f32.xlu0 %v6228
    %v6230 = vpop.xlane.xlu0 %6229
    %v6231 = vsel %vm953, %v6225, 0.0
    %6232 = vadd.xlane.f32.xlu0 %v6231
    %v6233 = vpop.xlane.xlu0 %6232
    %v6234 = vsel %vm953, %v6227, 0.0
    %6235 = vadd.xlane.f32.xlu0 %v6234
    %v6236 = vpop.xlane.xlu0 %6235
    %v6237 = vrcp.pop %v6230
    %v6238 = vrcp.pop %v6233
    %v6239 = vrcp.pop %v6236
    %v6240 = vmul.f32 %v6223, %v6237
    %v6241 = vmul.f32 %v6225, %v6238
    %v6242 = vmul.f32 %v6227, %v6239
    %6243 = vrot.lane.b32.xlu0 %v5112, 32
    %v6244 = vpop.permute.xlu0 %6243
    %6245 = vrot.lane.b32.xlu0 %v5117, 32
    %v6246 = vpop.permute.xlu0 %6245
    %6247 = vrot.lane.b32.xlu0 %v5122, 32
    %v6248 = vpop.permute.xlu0 %6247
    %v6253 = vsel %vm953, %v6240, 0
    %v6256 = vsel %vm953, %v6241, 0
    %v6259 = vsel %vm953, %v6242, 0
    %6261 = vmatprep.subr.mxu0 0.0
    %6262 = vmatpush1.msra.mxu0 0.0
    %6263 = vmatprep.subr.mxu0 0.0
    %6264 = vmatpush1.msra.mxu0 0.0
    %6265 = vmatprep.subr.mxu0 0.0
    %6266 = vmatpush1.msra.mxu0 0.0
    %6267 = vmatprep.subr.mxu0 0.0
    %6268 = vmatpush1.msra.mxu0 0.0
    %6269 = vmatprep.subr.mxu0 0.0
    %6270 = vmatpush1.msra.mxu0 0.0
    %6271 = vmatprep.subr.mxu0 0.0
    %6272 = vmatpush1.msra.mxu0 0.0
    %6273 = vmatprep.subr.mxu0 0.0
    %6274 = vmatpush1.msra.mxu0 0.0
    %6275 = vmatprep.subr.mxu0 0.0
    %6276 = vmatpush1.msra.mxu0 0.0
    %6277 = vmatprep.subr.mxu0 0.0
    %6278 = vmatpush1.msra.mxu0 0.0
    %6279 = vmatprep.subr.mxu0 0.0
    %6280 = vmatpush1.msra.mxu0 0.0
    %6281 = vmatprep.subr.mxu0 0.0
    %6282 = vmatpush1.msra.mxu0 0.0
    %6283 = vmatprep.subr.mxu0 0.0
    %6284 = vmatpush1.msra.mxu0 0.0
    %6285 = vmatprep.subr.mxu0 0.0
    %6286 = vmatpush1.msra.mxu0 0.0
    %6287 = vmatprep.subr.mxu0 0.0
    %6288 = vmatpush1.msra.mxu0 %v6248
    %6289 = vmatprep.subr.mxu0 0.0
    %6290 = vmatpush1.msra.mxu0 %v6246
    %6291 = vmatprep.subr.mxu0 0.0
    %6292 = vmatpush1.msra.mxu0 %v6244
    %6293 = vmatprep.subr.mxu0 0.0
    %6294 = vmatpush2.msra.mxu0 0.0
    %6295 = vmatprep.subr.mxu0 0.0
    %6296 = vmatpush2.msra.mxu0 0.0
    %6297 = vmatprep.subr.mxu0 0.0
    %6298 = vmatpush2.msra.mxu0 0.0
    %6299 = vmatprep.subr.mxu0 0.0
    %6300 = vmatpush2.msra.mxu0 0.0
    %6301 = vmatprep.subr.mxu0 0.0
    %6302 = vmatpush2.msra.mxu0 0.0
    %6303 = vmatprep.subr.mxu0 0.0
    %6304 = vmatpush2.msra.mxu0 0.0
    %6305 = vmatprep.subr.mxu0 0.0
    %6306 = vmatpush2.msra.mxu0 0.0
    %6307 = vmatprep.subr.mxu0 0.0
    %6308 = vmatpush2.msra.mxu0 0.0
    %6309 = vmatprep.subr.mxu0 0.0
    %6310 = vmatpush2.msra.mxu0 0.0
    %6311 = vmatprep.subr.mxu0 0.0
    %6312 = vmatpush2.msra.mxu0 0.0
    %6313 = vmatprep.subr.mxu0 0.0
    %6314 = vmatpush2.msra.mxu0 0.0
    %6315 = vmatprep.subr.mxu0 0.0
    %6316 = vmatpush2.msra.mxu0 0.0
    %6317 = vmatprep.subr.mxu0 0.0
    %6318 = vmatpush2.msra.mxu0 0.0
    %6319 = vmatprep.subr.mxu0 0.0
    %6320 = vmatpush2.msra.mxu0 0.0
    %6321 = vmatprep.subr.mxu0 0.0
    %6322 = vmatpush2.msra.mxu0 0.0
    %6323 = vmatprep.subr.mxu0 0.0
    %6324 = vmatpush2.msra.mxu0 0.0
    %6325 = vmatprep.mubr.f32.mxu0 0.0
    %6326 = vmatmul.mubr.f32.gmra.mxu0 %v6253
    %v6327 = vpop.f32.mrf.mxu0
    %v6328 = vadd.f32 0.0, %v6327
    %v6329 = vpop.f32.mrf.mxu0
    %6330 = vmatprep.mubr.f32.mxu0 0.0
    %6331 = vmatmul.mubr.f32.gmra.mxu0 %v6256
    %v6332 = vpop.f32.mrf.mxu0
    %v6333 = vadd.f32 0.0, %v6332
    %v6334 = vpop.f32.mrf.mxu0
    %6335 = vmatprep.mubr.f32.mxu0 0.0
    %6336 = vmatmul.mubr.f32.gmra.mxu0 %v6259
    %v6337 = vpop.f32.mrf.mxu0
    %v6338 = vadd.f32 0.0, %v6337
    %v6339 = vpop.f32.mrf.mxu0
    %6340 = vdwg.mxu0
    %v6342 = vsel %vm854, %v6328, 0
    %v6345 = vsel %vm854, %v6333, 0
    %v6348 = vsel %vm854, %v6338, 0
    %6350 = vmatprep.subr.mxu0 0.0
    %6351 = vmatpush1.msra.mxu0 0.0
    %6352 = vmatprep.subr.mxu0 0.0
    %6353 = vmatpush1.msra.mxu0 0.0
    %6354 = vmatprep.subr.mxu0 0.0
    %6355 = vmatpush1.msra.mxu0 0.0
    %6356 = vmatprep.subr.mxu0 0.0
    %6357 = vmatpush1.msra.mxu0 0.0
    %6358 = vmatprep.subr.mxu0 0.0
    %6359 = vmatpush1.msra.mxu0 0.0
    %6360 = vmatprep.subr.mxu0 0.0
    %6361 = vmatpush1.msra.mxu0 0.0
    %6362 = vmatprep.subr.mxu0 0.0
    %6363 = vmatpush1.msra.mxu0 0.0
    %6364 = vmatprep.subr.mxu0 0.0
    %6365 = vmatpush1.msra.mxu0 0.0
    %6366 = vmatprep.subr.mxu0 0.0
    %6367 = vmatpush1.msra.mxu0 0.0
    %6368 = vmatprep.subr.mxu0 0.0
    %6369 = vmatpush1.msra.mxu0 0.0
    %6370 = vmatprep.subr.mxu0 0.0
    %6371 = vmatpush1.msra.mxu0 0.0
    %6372 = vmatprep.subr.mxu0 0.0
    %6373 = vmatpush1.msra.mxu0 0.0
    %6374 = vmatprep.subr.mxu0 0.0
    %6375 = vmatpush1.msra.mxu0 %v4697
    %6376 = vmatprep.subr.mxu0 0.0
    %6377 = vmatpush1.msra.mxu0 %v4696
    %6378 = vmatprep.subr.mxu0 0.0
    %6379 = vmatpush1.msra.mxu0 %v4695
    %6380 = vmatprep.subr.mxu0 0.0
    %6381 = vmatpush1.msra.mxu0 %v4694
    %6382 = vmatprep.subr.mxu0 0.0
    %6383 = vmatpush2.msra.mxu0 0.0
    %6384 = vmatprep.subr.mxu0 0.0
    %6385 = vmatpush2.msra.mxu0 0.0
    %6386 = vmatprep.subr.mxu0 0.0
    %6387 = vmatpush2.msra.mxu0 0.0
    %6388 = vmatprep.subr.mxu0 0.0
    %6389 = vmatpush2.msra.mxu0 0.0
    %6390 = vmatprep.subr.mxu0 0.0
    %6391 = vmatpush2.msra.mxu0 0.0
    %6392 = vmatprep.subr.mxu0 0.0
    %6393 = vmatpush2.msra.mxu0 0.0
    %6394 = vmatprep.subr.mxu0 0.0
    %6395 = vmatpush2.msra.mxu0 0.0
    %6396 = vmatprep.subr.mxu0 0.0
    %6397 = vmatpush2.msra.mxu0 0.0
    %6398 = vmatprep.subr.mxu0 0.0
    %6399 = vmatpush2.msra.mxu0 0.0
    %6400 = vmatprep.subr.mxu0 0.0
    %6401 = vmatpush2.msra.mxu0 0.0
    %6402 = vmatprep.subr.mxu0 0.0
    %6403 = vmatpush2.msra.mxu0 0.0
    %6404 = vmatprep.subr.mxu0 0.0
    %6405 = vmatpush2.msra.mxu0 0.0
    %6406 = vmatprep.subr.mxu0 0.0
    %6407 = vmatpush2.msra.mxu0 0.0
    %6408 = vmatprep.subr.mxu0 0.0
    %6409 = vmatpush2.msra.mxu0 0.0
    %6410 = vmatprep.subr.mxu0 0.0
    %6411 = vmatpush2.msra.mxu0 0.0
    %6412 = vmatprep.subr.mxu0 0.0
    %6413 = vmatpush2.msra.mxu0 0.0
    %6414 = vmatprep.mubr.f32.mxu0 0.0
    %6415 = vmatmul.mubr.f32.gmra.mxu0 %v6342
    %v6416 = vpop.f32.mrf.mxu0
    %v6417 = vadd.f32 0.0, %v6416
    %v6418 = vpop.f32.mrf.mxu0
    %6419 = vmatprep.mubr.f32.mxu0 0.0
    %6420 = vmatmul.mubr.f32.gmra.mxu0 %v6345
    %v6421 = vpop.f32.mrf.mxu0
    %v6422 = vadd.f32 0.0, %v6421
    %v6423 = vpop.f32.mrf.mxu0
    %6424 = vmatprep.mubr.f32.mxu0 0.0
    %6425 = vmatmul.mubr.f32.gmra.mxu0 %v6348
    %v6426 = vpop.f32.mrf.mxu0
    %v6427 = vadd.f32 0.0, %v6426
    %v6428 = vpop.f32.mrf.mxu0
    %6429 = vdwg.mxu0
    %v6430 = vadd.f32 %v6103, %v6417
    %v6431 = vadd.f32 %v6104, %v6422
    %v6432 = vadd.f32 %v6105, %v6427
    %v6433 = vmul.f32 %v5029, 0.17677669
    %v6434 = vmul.f32 %v5035, 0.17677669
    %v6435 = vmul.f32 %v5041, 0.17677669
    %v6437 = vsel %vm854, %v6433, 0
    %v6440 = vsel %vm854, %v6434, 0
    %v6443 = vsel %vm854, %v6435, 0
    %v6446 = vsel %vm854, %v5031, 0
    %v6449 = vsel %vm854, %v5037, 0
    %v6452 = vsel %vm854, %v5043, 0
    %6454 = vmatprep.subr.mxu0 0.0
    %6455 = vmatpush1.xpose.msra.mxu0 0.0
    %6456 = vmatprep.subr.mxu0 0.0
    %6457 = vmatpush1.xpose.msra.mxu0 0.0
    %6458 = vmatprep.subr.mxu0 0.0
    %6459 = vmatpush1.xpose.msra.mxu0 0.0
    %6460 = vmatprep.subr.mxu0 0.0
    %6461 = vmatpush1.xpose.msra.mxu0 0.0
    %6462 = vmatprep.subr.mxu0 0.0
    %6463 = vmatpush1.xpose.msra.mxu0 0.0
    %6464 = vmatprep.subr.mxu0 0.0
    %6465 = vmatpush1.xpose.msra.mxu0 0.0
    %6466 = vmatprep.subr.mxu0 0.0
    %6467 = vmatpush1.xpose.msra.mxu0 0.0
    %6468 = vmatprep.subr.mxu0 0.0
    %6469 = vmatpush1.xpose.msra.mxu0 0.0
    %6470 = vmatprep.subr.mxu0 0.0
    %6471 = vmatpush1.xpose.msra.mxu0 0.0
    %6472 = vmatprep.subr.mxu0 0.0
    %6473 = vmatpush1.xpose.msra.mxu0 0.0
    %6474 = vmatprep.subr.mxu0 0.0
    %6475 = vmatpush1.xpose.msra.mxu0 0.0
    %6476 = vmatprep.subr.mxu0 0.0
    %6477 = vmatpush1.xpose.msra.mxu0 0.0
    %6478 = vmatprep.subr.mxu0 0.0
    %6479 = vmatpush1.xpose.msra.mxu0 0.0
    %6480 = vmatprep.subr.mxu0 0.0
    %6481 = vmatpush1.xpose.msra.mxu0 %v6452
    %6482 = vmatprep.subr.mxu0 0.0
    %6483 = vmatpush1.xpose.msra.mxu0 %v6449
    %6484 = vmatprep.subr.mxu0 0.0
    %6485 = vmatpush1.xpose.msra.mxu0 %v6446
    %6486 = vmatprep.subr.mxu0 0.0
    %6487 = vmatpush2.xpose.msra.mxu0 0.0
    %6488 = vmatprep.subr.mxu0 0.0
    %6489 = vmatpush2.xpose.msra.mxu0 0.0
    %6490 = vmatprep.subr.mxu0 0.0
    %6491 = vmatpush2.xpose.msra.mxu0 0.0
    %6492 = vmatprep.subr.mxu0 0.0
    %6493 = vmatpush2.xpose.msra.mxu0 0.0
    %6494 = vmatprep.subr.mxu0 0.0
    %6495 = vmatpush2.xpose.msra.mxu0 0.0
    %6496 = vmatprep.subr.mxu0 0.0
    %6497 = vmatpush2.xpose.msra.mxu0 0.0
    %6498 = vmatprep.subr.mxu0 0.0
    %6499 = vmatpush2.xpose.msra.mxu0 0.0
    %6500 = vmatprep.subr.mxu0 0.0
    %6501 = vmatpush2.xpose.msra.mxu0 0.0
    %6502 = vmatprep.subr.mxu0 0.0
    %6503 = vmatpush2.xpose.msra.mxu0 0.0
    %6504 = vmatprep.subr.mxu0 0.0
    %6505 = vmatpush2.xpose.msra.mxu0 0.0
    %6506 = vmatprep.subr.mxu0 0.0
    %6507 = vmatpush2.xpose.msra.mxu0 0.0
    %6508 = vmatprep.subr.mxu0 0.0
    %6509 = vmatpush2.xpose.msra.mxu0 0.0
    %6510 = vmatprep.subr.mxu0 0.0
    %6511 = vmatpush2.xpose.msra.mxu0 0.0
    %6512 = vmatprep.subr.mxu0 0.0
    %6513 = vmatpush2.xpose.msra.mxu0 0.0
    %6514 = vmatprep.subr.mxu0 0.0
    %6515 = vmatpush2.xpose.msra.mxu0 0.0
    %6516 = vmatprep.subr.mxu0 0.0
    %6517 = vmatpush2.xpose.msra.mxu0 0.0
    %6518 = vmatprep.mubr.f32.mxu0 0.0
    %6519 = vmatmul.mubr.f32.gmra.mxu0 %v6437
    %v6520 = vpop.f32.mrf.mxu0
    %v6521 = vadd.f32 %v347, %v6520
    %v6522 = vpop.f32.mrf.mxu0
    %6523 = vmatprep.mubr.f32.mxu0 0.0
    %6524 = vmatmul.mubr.f32.gmra.mxu0 %v6440
    %v6525 = vpop.f32.mrf.mxu0
    %v6526 = vadd.f32 %v347, %v6525
    %v6527 = vpop.f32.mrf.mxu0
    %6528 = vmatprep.mubr.f32.mxu0 0.0
    %6529 = vmatmul.mubr.f32.gmra.mxu0 %v6443
    %v6530 = vpop.f32.mrf.mxu0
    %v6531 = vadd.f32 %v347, %v6530
    %v6532 = vpop.f32.mrf.mxu0
    %6533 = vdwg.mxu0
    %v6534 = vsel %vm953, %v6521, -inf
    %6535 = vmax.xlane.f32.xlu0 %v6534
    %v6536 = vpop.xlane.xlu0 %6535
    %v6537 = vsel %vm953, %v6526, -inf
    %6538 = vmax.xlane.f32.xlu0 %v6537
    %v6539 = vpop.xlane.xlu0 %6538
    %v6540 = vsel %vm953, %v6531, -inf
    %6541 = vmax.xlane.f32.xlu0 %v6540
    %v6542 = vpop.xlane.xlu0 %6541
    %v6543 = vsub.f32 %v6521, %v6536
    %v6544 = vsub.f32 %v6526, %v6539
    %v6545 = vsub.f32 %v6531, %v6542
    %v6546 = vmul.f32 %v6543, 1.442695
    %v6547 = vpow.pop %v6546
    %v6548 = vmul.f32 %v6544, 1.442695
    %v6549 = vpow.pop %v6548
    %v6550 = vmul.f32 %v6545, 1.442695
    %v6551 = vpow.pop %v6550
    %v6552 = vsel %vm953, %v6547, 0.0
    %6553 = vadd.xlane.f32.xlu0 %v6552
    %v6554 = vpop.xlane.xlu0 %6553
    %v6555 = vsel %vm953, %v6549, 0.0
    %6556 = vadd.xlane.f32.xlu0 %v6555
    %v6557 = vpop.xlane.xlu0 %6556
    %v6558 = vsel %vm953, %v6551, 0.0
    %6559 = vadd.xlane.f32.xlu0 %v6558
    %v6560 = vpop.xlane.xlu0 %6559
    %v6561 = vrcp.pop %v6554
    %v6562 = vrcp.pop %v6557
    %v6563 = vrcp.pop %v6560
    %v6564 = vmul.f32 %v6547, %v6561
    %v6565 = vmul.f32 %v6549, %v6562
    %v6566 = vmul.f32 %v6551, %v6563
    %v6568 = vsel %vm953, %v6564, 0
    %v6571 = vsel %vm953, %v6565, 0
    %v6574 = vsel %vm953, %v6566, 0
    %6576 = vmatprep.subr.mxu0 0.0
    %6577 = vmatpush1.msra.mxu0 0.0
    %6578 = vmatprep.subr.mxu0 0.0
    %6579 = vmatpush1.msra.mxu0 0.0
    %6580 = vmatprep.subr.mxu0 0.0
    %6581 = vmatpush1.msra.mxu0 0.0
    %6582 = vmatprep.subr.mxu0 0.0
    %6583 = vmatpush1.msra.mxu0 0.0
    %6584 = vmatprep.subr.mxu0 0.0
    %6585 = vmatpush1.msra.mxu0 0.0
    %6586 = vmatprep.subr.mxu0 0.0
    %6587 = vmatpush1.msra.mxu0 0.0
    %6588 = vmatprep.subr.mxu0 0.0
    %6589 = vmatpush1.msra.mxu0 0.0
    %6590 = vmatprep.subr.mxu0 0.0
    %6591 = vmatpush1.msra.mxu0 0.0
    %6592 = vmatprep.subr.mxu0 0.0
    %6593 = vmatpush1.msra.mxu0 0.0
    %6594 = vmatprep.subr.mxu0 0.0
    %6595 = vmatpush1.msra.mxu0 0.0
    %6596 = vmatprep.subr.mxu0 0.0
    %6597 = vmatpush1.msra.mxu0 0.0
    %6598 = vmatprep.subr.mxu0 0.0
    %6599 = vmatpush1.msra.mxu0 0.0
    %6600 = vmatprep.subr.mxu0 0.0
    %6601 = vmatpush1.msra.mxu0 0.0
    %6602 = vmatprep.subr.mxu0 0.0
    %6603 = vmatpush1.msra.mxu0 %v5137
    %6604 = vmatprep.subr.mxu0 0.0
    %6605 = vmatpush1.msra.mxu0 %v5132
    %6606 = vmatprep.subr.mxu0 0.0
    %6607 = vmatpush1.msra.mxu0 %v5127
    %6608 = vmatprep.subr.mxu0 0.0
    %6609 = vmatpush2.msra.mxu0 0.0
    %6610 = vmatprep.subr.mxu0 0.0
    %6611 = vmatpush2.msra.mxu0 0.0
    %6612 = vmatprep.subr.mxu0 0.0
    %6613 = vmatpush2.msra.mxu0 0.0
    %6614 = vmatprep.subr.mxu0 0.0
    %6615 = vmatpush2.msra.mxu0 0.0
    %6616 = vmatprep.subr.mxu0 0.0
    %6617 = vmatpush2.msra.mxu0 0.0
    %6618 = vmatprep.subr.mxu0 0.0
    %6619 = vmatpush2.msra.mxu0 0.0
    %6620 = vmatprep.subr.mxu0 0.0
    %6621 = vmatpush2.msra.mxu0 0.0
    %6622 = vmatprep.subr.mxu0 0.0
    %6623 = vmatpush2.msra.mxu0 0.0
    %6624 = vmatprep.subr.mxu0 0.0
    %6625 = vmatpush2.msra.mxu0 0.0
    %6626 = vmatprep.subr.mxu0 0.0
    %6627 = vmatpush2.msra.mxu0 0.0
    %6628 = vmatprep.subr.mxu0 0.0
    %6629 = vmatpush2.msra.mxu0 0.0
    %6630 = vmatprep.subr.mxu0 0.0
    %6631 = vmatpush2.msra.mxu0 0.0
    %6632 = vmatprep.subr.mxu0 0.0
    %6633 = vmatpush2.msra.mxu0 0.0
    %6634 = vmatprep.subr.mxu0 0.0
    %6635 = vmatpush2.msra.mxu0 0.0
    %6636 = vmatprep.subr.mxu0 0.0
    %6637 = vmatpush2.msra.mxu0 0.0
    %6638 = vmatprep.subr.mxu0 0.0
    %6639 = vmatpush2.msra.mxu0 0.0
    %6640 = vmatprep.mubr.f32.mxu0 0.0
    %6641 = vmatmul.mubr.f32.gmra.mxu0 %v6568
    %v6642 = vpop.f32.mrf.mxu0
    %v6643 = vadd.f32 0.0, %v6642
    %v6644 = vpop.f32.mrf.mxu0
    %6645 = vmatprep.mubr.f32.mxu0 0.0
    %6646 = vmatmul.mubr.f32.gmra.mxu0 %v6571
    %v6647 = vpop.f32.mrf.mxu0
    %v6648 = vadd.f32 0.0, %v6647
    %v6649 = vpop.f32.mrf.mxu0
    %6650 = vmatprep.mubr.f32.mxu0 0.0
    %6651 = vmatmul.mubr.f32.gmra.mxu0 %v6574
    %v6652 = vpop.f32.mrf.mxu0
    %v6653 = vadd.f32 0.0, %v6652
    %v6654 = vpop.f32.mrf.mxu0
    %6655 = vdwg.mxu0
    %6656 = vrot.lane.b32.xlu0 %v6433, 96
    %v6657 = vpop.permute.xlu0 %6656
    %6658 = vrot.lane.b32.xlu0 %v6434, 96
    %v6659 = vpop.permute.xlu0 %6658
    %6660 = vrot.lane.b32.xlu0 %v6435, 96
    %v6661 = vpop.permute.xlu0 %6660
    %6662 = vrot.lane.b32.xlu0 %v5031, 96
    %v6663 = vpop.permute.xlu0 %6662
    %6664 = vrot.lane.b32.xlu0 %v5037, 96
    %v6665 = vpop.permute.xlu0 %6664
    %6666 = vrot.lane.b32.xlu0 %v5043, 96
    %v6667 = vpop.permute.xlu0 %6666
    %v6668 = vsel %vm854, %v6657, 0
    %v6670 = vsel %vm854, %v6659, 0
    %v6672 = vsel %vm854, %v6661, 0
    %v6674 = vsel %vm854, %v6663, 0
    %v6676 = vsel %vm854, %v6665, 0
    %v6678 = vsel %vm854, %v6667, 0
    %6680 = vmatprep.subr.mxu0 0.0
    %6681 = vmatpush1.xpose.msra.mxu0 0.0
    %6682 = vmatprep.subr.mxu0 0.0
    %6683 = vmatpush1.xpose.msra.mxu0 0.0
    %6684 = vmatprep.subr.mxu0 0.0
    %6685 = vmatpush1.xpose.msra.mxu0 0.0
    %6686 = vmatprep.subr.mxu0 0.0
    %6687 = vmatpush1.xpose.msra.mxu0 0.0
    %6688 = vmatprep.subr.mxu0 0.0
    %6689 = vmatpush1.xpose.msra.mxu0 0.0
    %6690 = vmatprep.subr.mxu0 0.0
    %6691 = vmatpush1.xpose.msra.mxu0 0.0
    %6692 = vmatprep.subr.mxu0 0.0
    %6693 = vmatpush1.xpose.msra.mxu0 0.0
    %6694 = vmatprep.subr.mxu0 0.0
    %6695 = vmatpush1.xpose.msra.mxu0 0.0
    %6696 = vmatprep.subr.mxu0 0.0
    %6697 = vmatpush1.xpose.msra.mxu0 0.0
    %6698 = vmatprep.subr.mxu0 0.0
    %6699 = vmatpush1.xpose.msra.mxu0 0.0
    %6700 = vmatprep.subr.mxu0 0.0
    %6701 = vmatpush1.xpose.msra.mxu0 0.0
    %6702 = vmatprep.subr.mxu0 0.0
    %6703 = vmatpush1.xpose.msra.mxu0 0.0
    %6704 = vmatprep.subr.mxu0 0.0
    %6705 = vmatpush1.xpose.msra.mxu0 0.0
    %6706 = vmatprep.subr.mxu0 0.0
    %6707 = vmatpush1.xpose.msra.mxu0 %v6678
    %6708 = vmatprep.subr.mxu0 0.0
    %6709 = vmatpush1.xpose.msra.mxu0 %v6676
    %6710 = vmatprep.subr.mxu0 0.0
    %6711 = vmatpush1.xpose.msra.mxu0 %v6674
    %6712 = vmatprep.subr.mxu0 0.0
    %6713 = vmatpush2.xpose.msra.mxu0 0.0
    %6714 = vmatprep.subr.mxu0 0.0
    %6715 = vmatpush2.xpose.msra.mxu0 0.0
    %6716 = vmatprep.subr.mxu0 0.0
    %6717 = vmatpush2.xpose.msra.mxu0 0.0
    %6718 = vmatprep.subr.mxu0 0.0
    %6719 = vmatpush2.xpose.msra.mxu0 0.0
    %6720 = vmatprep.subr.mxu0 0.0
    %6721 = vmatpush2.xpose.msra.mxu0 0.0
    %6722 = vmatprep.subr.mxu0 0.0
    %6723 = vmatpush2.xpose.msra.mxu0 0.0
    %6724 = vmatprep.subr.mxu0 0.0
    %6725 = vmatpush2.xpose.msra.mxu0 0.0
    %6726 = vmatprep.subr.mxu0 0.0
    %6727 = vmatpush2.xpose.msra.mxu0 0.0
    %6728 = vmatprep.subr.mxu0 0.0
    %6729 = vmatpush2.xpose.msra.mxu0 0.0
    %6730 = vmatprep.subr.mxu0 0.0
    %6731 = vmatpush2.xpose.msra.mxu0 0.0
    %6732 = vmatprep.subr.mxu0 0.0
    %6733 = vmatpush2.xpose.msra.mxu0 0.0
    %6734 = vmatprep.subr.mxu0 0.0
    %6735 = vmatpush2.xpose.msra.mxu0 0.0
    %6736 = vmatprep.subr.mxu0 0.0
    %6737 = vmatpush2.xpose.msra.mxu0 0.0
    %6738 = vmatprep.subr.mxu0 0.0
    %6739 = vmatpush2.xpose.msra.mxu0 0.0
    %6740 = vmatprep.subr.mxu0 0.0
    %6741 = vmatpush2.xpose.msra.mxu0 0.0
    %6742 = vmatprep.subr.mxu0 0.0
    %6743 = vmatpush2.xpose.msra.mxu0 0.0
    %6744 = vmatprep.mubr.f32.mxu0 0.0
    %6745 = vmatmul.mubr.f32.gmra.mxu0 %v6668
    %v6746 = vpop.f32.mrf.mxu0
    %v6747 = vadd.f32 %v347, %v6746
    %v6748 = vpop.f32.mrf.mxu0
    %6749 = vmatprep.mubr.f32.mxu0 0.0
    %6750 = vmatmul.mubr.f32.gmra.mxu0 %v6670
    %v6751 = vpop.f32.mrf.mxu0
    %v6752 = vadd.f32 %v347, %v6751
    %v6753 = vpop.f32.mrf.mxu0
    %6754 = vmatprep.mubr.f32.mxu0 0.0
    %6755 = vmatmul.mubr.f32.gmra.mxu0 %v6672
    %v6756 = vpop.f32.mrf.mxu0
    %v6757 = vadd.f32 %v347, %v6756
    %v6758 = vpop.f32.mrf.mxu0
    %6759 = vdwg.mxu0
    %v6760 = vsel %vm953, %v6747, -inf
    %6761 = vmax.xlane.f32.xlu0 %v6760
    %v6762 = vpop.xlane.xlu0 %6761
    %v6763 = vsel %vm953, %v6752, -inf
    %6764 = vmax.xlane.f32.xlu0 %v6763
    %v6765 = vpop.xlane.xlu0 %6764
    %v6766 = vsel %vm953, %v6757, -inf
    %6767 = vmax.xlane.f32.xlu0 %v6766
    %v6768 = vpop.xlane.xlu0 %6767
    %v6769 = vsub.f32 %v6747, %v6762
    %v6770 = vsub.f32 %v6752, %v6765
    %v6771 = vsub.f32 %v6757, %v6768
    %v6772 = vmul.f32 %v6769, 1.442695
    %v6773 = vpow.pop %v6772
    %v6774 = vmul.f32 %v6770, 1.442695
    %v6775 = vpow.pop %v6774
    %v6776 = vmul.f32 %v6771, 1.442695
    %v6777 = vpow.pop %v6776
    %v6778 = vsel %vm953, %v6773, 0.0
    %6779 = vadd.xlane.f32.xlu0 %v6778
    %v6780 = vpop.xlane.xlu0 %6779
    %v6781 = vsel %vm953, %v6775, 0.0
    %6782 = vadd.xlane.f32.xlu0 %v6781
    %v6783 = vpop.xlane.xlu0 %6782
    %v6784 = vsel %vm953, %v6777, 0.0
    %6785 = vadd.xlane.f32.xlu0 %v6784
    %v6786 = vpop.xlane.xlu0 %6785
    %v6787 = vrcp.pop %v6780
    %v6788 = vrcp.pop %v6783
    %v6789 = vrcp.pop %v6786
    %v6790 = vmul.f32 %v6773, %v6787
    %v6791 = vmul.f32 %v6775, %v6788
    %v6792 = vmul.f32 %v6777, %v6789
    %6796 = vrot.lane.b32.xlu0 %v5127, 96
    %v6797 = vpop.permute.xlu0 %6796
    %6798 = vrot.lane.b32.xlu0 %v5132, 96
    %v6799 = vpop.permute.xlu0 %6798
    %6800 = vrot.lane.b32.xlu0 %v5137, 96
    %v6801 = vpop.permute.xlu0 %6800
    %v6806 = vsel %vm953, %v6790, 0
    %v6809 = vsel %vm953, %v6791, 0
    %v6812 = vsel %vm953, %v6792, 0
    %6814 = vmatprep.subr.mxu0 0.0
    %6815 = vmatpush1.msra.mxu0 0.0
    %6816 = vmatprep.subr.mxu0 0.0
    %6817 = vmatpush1.msra.mxu0 0.0
    %6818 = vmatprep.subr.mxu0 0.0
    %6819 = vmatpush1.msra.mxu0 0.0
    %6820 = vmatprep.subr.mxu0 0.0
    %6821 = vmatpush1.msra.mxu0 0.0
    %6822 = vmatprep.subr.mxu0 0.0
    %6823 = vmatpush1.msra.mxu0 0.0
    %6824 = vmatprep.subr.mxu0 0.0
    %6825 = vmatpush1.msra.mxu0 0.0
    %6826 = vmatprep.subr.mxu0 0.0
    %6827 = vmatpush1.msra.mxu0 0.0
    %6828 = vmatprep.subr.mxu0 0.0
    %6829 = vmatpush1.msra.mxu0 0.0
    %6830 = vmatprep.subr.mxu0 0.0
    %6831 = vmatpush1.msra.mxu0 0.0
    %6832 = vmatprep.subr.mxu0 0.0
    %6833 = vmatpush1.msra.mxu0 0.0
    %6834 = vmatprep.subr.mxu0 0.0
    %6835 = vmatpush1.msra.mxu0 0.0
    %6836 = vmatprep.subr.mxu0 0.0
    %6837 = vmatpush1.msra.mxu0 0.0
    %6838 = vmatprep.subr.mxu0 0.0
    %6839 = vmatpush1.msra.mxu0 0.0
    %6840 = vmatprep.subr.mxu0 0.0
    %6841 = vmatpush1.msra.mxu0 %v6801
    %6842 = vmatprep.subr.mxu0 0.0
    %6843 = vmatpush1.msra.mxu0 %v6799
    %6844 = vmatprep.subr.mxu0 0.0
    %6845 = vmatpush1.msra.mxu0 %v6797
    %6846 = vmatprep.subr.mxu0 0.0
    %6847 = vmatpush2.msra.mxu0 0.0
    %6848 = vmatprep.subr.mxu0 0.0
    %6849 = vmatpush2.msra.mxu0 0.0
    %6850 = vmatprep.subr.mxu0 0.0
    %6851 = vmatpush2.msra.mxu0 0.0
    %6852 = vmatprep.subr.mxu0 0.0
    %6853 = vmatpush2.msra.mxu0 0.0
    %6854 = vmatprep.subr.mxu0 0.0
    %6855 = vmatpush2.msra.mxu0 0.0
    %6856 = vmatprep.subr.mxu0 0.0
    %6857 = vmatpush2.msra.mxu0 0.0
    %6858 = vmatprep.subr.mxu0 0.0
    %6859 = vmatpush2.msra.mxu0 0.0
    %6860 = vmatprep.subr.mxu0 0.0
    %6861 = vmatpush2.msra.mxu0 0.0
    %6862 = vmatprep.subr.mxu0 0.0
    %6863 = vmatpush2.msra.mxu0 0.0
    %6864 = vmatprep.subr.mxu0 0.0
    %6865 = vmatpush2.msra.mxu0 0.0
    %6866 = vmatprep.subr.mxu0 0.0
    %6867 = vmatpush2.msra.mxu0 0.0
    %6868 = vmatprep.subr.mxu0 0.0
    %6869 = vmatpush2.msra.mxu0 0.0
    %6870 = vmatprep.subr.mxu0 0.0
    %6871 = vmatpush2.msra.mxu0 0.0
    %6872 = vmatprep.subr.mxu0 0.0
    %6873 = vmatpush2.msra.mxu0 0.0
    %6874 = vmatprep.subr.mxu0 0.0
    %6875 = vmatpush2.msra.mxu0 0.0
    %6876 = vmatprep.subr.mxu0 0.0
    %6877 = vmatpush2.msra.mxu0 0.0
    %6878 = vmatprep.mubr.f32.mxu0 0.0
    %6879 = vmatmul.mubr.f32.gmra.mxu0 %v6806
    %v6880 = vpop.f32.mrf.mxu0
    %v6881 = vadd.f32 0.0, %v6880
    %v6882 = vpop.f32.mrf.mxu0
    %6883 = vmatprep.mubr.f32.mxu0 0.0
    %6884 = vmatmul.mubr.f32.gmra.mxu0 %v6809
    %v6885 = vpop.f32.mrf.mxu0
    %v6886 = vadd.f32 0.0, %v6885
    %v6887 = vpop.f32.mrf.mxu0
    %6888 = vmatprep.mubr.f32.mxu0 0.0
    %6889 = vmatmul.mubr.f32.gmra.mxu0 %v6812
    %v6890 = vpop.f32.mrf.mxu0
    %v6891 = vadd.f32 0.0, %v6890
    %v6892 = vpop.f32.mrf.mxu0
    %6893 = vdwg.mxu0
    %v6895 = vsel %vm854, %v6881, 0
    %v6898 = vsel %vm854, %v6886, 0
    %v6901 = vsel %vm854, %v6891, 0
    %6903 = vmatprep.subr.mxu0 0.0
    %6904 = vmatpush1.msra.mxu0 0.0
    %6905 = vmatprep.subr.mxu0 0.0
    %6906 = vmatpush1.msra.mxu0 0.0
    %6907 = vmatprep.subr.mxu0 0.0
    %6908 = vmatpush1.msra.mxu0 0.0
    %6909 = vmatprep.subr.mxu0 0.0
    %6910 = vmatpush1.msra.mxu0 0.0
    %6911 = vmatprep.subr.mxu0 0.0
    %6912 = vmatpush1.msra.mxu0 0.0
    %6913 = vmatprep.subr.mxu0 0.0
    %6914 = vmatpush1.msra.mxu0 0.0
    %6915 = vmatprep.subr.mxu0 0.0
    %6916 = vmatpush1.msra.mxu0 0.0
    %6917 = vmatprep.subr.mxu0 0.0
    %6918 = vmatpush1.msra.mxu0 0.0
    %6919 = vmatprep.subr.mxu0 0.0
    %6920 = vmatpush1.msra.mxu0 0.0
    %6921 = vmatprep.subr.mxu0 0.0
    %6922 = vmatpush1.msra.mxu0 0.0
    %6923 = vmatprep.subr.mxu0 0.0
    %6924 = vmatpush1.msra.mxu0 0.0
    %6925 = vmatprep.subr.mxu0 0.0
    %6926 = vmatpush1.msra.mxu0 0.0
    %6927 = vmatprep.subr.mxu0 0.0
    %6928 = vmatpush1.msra.mxu0 %v4689
    %6929 = vmatprep.subr.mxu0 0.0
    %6930 = vmatpush1.msra.mxu0 %v4688
    %6931 = vmatprep.subr.mxu0 0.0
    %6932 = vmatpush1.msra.mxu0 %v4687
    %6933 = vmatprep.subr.mxu0 0.0
    %6934 = vmatpush1.msra.mxu0 %v4686
    %6935 = vmatprep.subr.mxu0 0.0
    %6936 = vmatpush2.msra.mxu0 0.0
    %6937 = vmatprep.subr.mxu0 0.0
    %6938 = vmatpush2.msra.mxu0 0.0
    %6939 = vmatprep.subr.mxu0 0.0
    %6940 = vmatpush2.msra.mxu0 0.0
    %6941 = vmatprep.subr.mxu0 0.0
    %6942 = vmatpush2.msra.mxu0 0.0
    %6943 = vmatprep.subr.mxu0 0.0
    %6944 = vmatpush2.msra.mxu0 0.0
    %6945 = vmatprep.subr.mxu0 0.0
    %6946 = vmatpush2.msra.mxu0 0.0
    %6947 = vmatprep.subr.mxu0 0.0
    %6948 = vmatpush2.msra.mxu0 0.0
    %6949 = vmatprep.subr.mxu0 0.0
    %6950 = vmatpush2.msra.mxu0 0.0
    %6951 = vmatprep.subr.mxu0 0.0
    %6952 = vmatpush2.msra.mxu0 0.0
    %6953 = vmatprep.subr.mxu0 0.0
    %6954 = vmatpush2.msra.mxu0 0.0
    %6955 = vmatprep.subr.mxu0 0.0
    %6956 = vmatpush2.msra.mxu0 0.0
    %6957 = vmatprep.subr.mxu0 0.0
    %6958 = vmatpush2.msra.mxu0 0.0
    %6959 = vmatprep.subr.mxu0 0.0
    %6960 = vmatpush2.msra.mxu0 0.0
    %6961 = vmatprep.subr.mxu0 0.0
    %6962 = vmatpush2.msra.mxu0 0.0
    %6963 = vmatprep.subr.mxu0 0.0
    %6964 = vmatpush2.msra.mxu0 0.0
    %6965 = vmatprep.subr.mxu0 0.0
    %6966 = vmatpush2.msra.mxu0 0.0
    %6967 = vmatprep.mubr.f32.mxu0 0.0
    %6968 = vmatmul.mubr.f32.gmra.mxu0 %v6895
    %v6969 = vpop.f32.mrf.mxu0
    %v6970 = vadd.f32 0.0, %v6969
    %v6971 = vpop.f32.mrf.mxu0
    %6972 = vmatprep.mubr.f32.mxu0 0.0
    %6973 = vmatmul.mubr.f32.gmra.mxu0 %v6898
    %v6974 = vpop.f32.mrf.mxu0
    %v6975 = vadd.f32 0.0, %v6974
    %v6976 = vpop.f32.mrf.mxu0
    %6977 = vmatprep.mubr.f32.mxu0 0.0
    %6978 = vmatmul.mubr.f32.gmra.mxu0 %v6901
    %v6979 = vpop.f32.mrf.mxu0
    %v6980 = vadd.f32 0.0, %v6979
    %v6981 = vpop.f32.mrf.mxu0
    %6982 = vdwg.mxu0
    %v6984 = vsel %vm854, %v6643, 0
    %v6987 = vsel %vm854, %v6648, 0
    %v6990 = vsel %vm854, %v6653, 0
    %6992 = vmatprep.subr.mxu0 0.0
    %6993 = vmatpush1.msra.mxu0 0.0
    %6994 = vmatprep.subr.mxu0 0.0
    %6995 = vmatpush1.msra.mxu0 0.0
    %6996 = vmatprep.subr.mxu0 0.0
    %6997 = vmatpush1.msra.mxu0 0.0
    %6998 = vmatprep.subr.mxu0 0.0
    %6999 = vmatpush1.msra.mxu0 0.0
    %7000 = vmatprep.subr.mxu0 0.0
    %7001 = vmatpush1.msra.mxu0 0.0
    %7002 = vmatprep.subr.mxu0 0.0
    %7003 = vmatpush1.msra.mxu0 0.0
    %7004 = vmatprep.subr.mxu0 0.0
    %7005 = vmatpush1.msra.mxu0 0.0
    %7006 = vmatprep.subr.mxu0 0.0
    %7007 = vmatpush1.msra.mxu0 0.0
    %7008 = vmatprep.subr.mxu0 0.0
    %7009 = vmatpush1.msra.mxu0 0.0
    %7010 = vmatprep.subr.mxu0 0.0
    %7011 = vmatpush1.msra.mxu0 0.0
    %7012 = vmatprep.subr.mxu0 0.0
    %7013 = vmatpush1.msra.mxu0 0.0
    %7014 = vmatprep.subr.mxu0 0.0
    %7015 = vmatpush1.msra.mxu0 0.0
    %7016 = vmatprep.subr.mxu0 0.0
    %7017 = vmatpush1.msra.mxu0 %v4685
    %7018 = vmatprep.subr.mxu0 0.0
    %7019 = vmatpush1.msra.mxu0 %v4684
    %7020 = vmatprep.subr.mxu0 0.0
    %7021 = vmatpush1.msra.mxu0 %v4683
    %7022 = vmatprep.subr.mxu0 0.0
    %7023 = vmatpush1.msra.mxu0 %v4682
    %7024 = vmatprep.subr.mxu0 0.0
    %7025 = vmatpush2.msra.mxu0 0.0
    %7026 = vmatprep.subr.mxu0 0.0
    %7027 = vmatpush2.msra.mxu0 0.0
    %7028 = vmatprep.subr.mxu0 0.0
    %7029 = vmatpush2.msra.mxu0 0.0
    %7030 = vmatprep.subr.mxu0 0.0
    %7031 = vmatpush2.msra.mxu0 0.0
    %7032 = vmatprep.subr.mxu0 0.0
    %7033 = vmatpush2.msra.mxu0 0.0
    %7034 = vmatprep.subr.mxu0 0.0
    %7035 = vmatpush2.msra.mxu0 0.0
    %7036 = vmatprep.subr.mxu0 0.0
    %7037 = vmatpush2.msra.mxu0 0.0
    %7038 = vmatprep.subr.mxu0 0.0
    %7039 = vmatpush2.msra.mxu0 0.0
    %7040 = vmatprep.subr.mxu0 0.0
    %7041 = vmatpush2.msra.mxu0 0.0
    %7042 = vmatprep.subr.mxu0 0.0
    %7043 = vmatpush2.msra.mxu0 0.0
    %7044 = vmatprep.subr.mxu0 0.0
    %7045 = vmatpush2.msra.mxu0 0.0
    %7046 = vmatprep.subr.mxu0 0.0
    %7047 = vmatpush2.msra.mxu0 0.0
    %7048 = vmatprep.subr.mxu0 0.0
    %7049 = vmatpush2.msra.mxu0 0.0
    %7050 = vmatprep.subr.mxu0 0.0
    %7051 = vmatpush2.msra.mxu0 0.0
    %7052 = vmatprep.subr.mxu0 0.0
    %7053 = vmatpush2.msra.mxu0 0.0
    %7054 = vmatprep.subr.mxu0 0.0
    %7055 = vmatpush2.msra.mxu0 0.0
    %7056 = vmatprep.mubr.f32.mxu0 0.0
    %7057 = vmatmul.mubr.f32.gmra.mxu0 %v6984
    %v7058 = vpop.f32.mrf.mxu0
    %v7059 = vadd.f32 %v6970, %v7058
    %v7060 = vpop.f32.mrf.mxu0
    %7061 = vmatprep.mubr.f32.mxu0 0.0
    %7062 = vmatmul.mubr.f32.gmra.mxu0 %v6987
    %v7063 = vpop.f32.mrf.mxu0
    %v7064 = vadd.f32 %v6975, %v7063
    %v7065 = vpop.f32.mrf.mxu0
    %7066 = vmatprep.mubr.f32.mxu0 0.0
    %7067 = vmatmul.mubr.f32.gmra.mxu0 %v6990
    %v7068 = vpop.f32.mrf.mxu0
    %v7069 = vadd.f32 %v6980, %v7068
    %v7070 = vpop.f32.mrf.mxu0
    %7071 = vdwg.mxu0
    %7072 = vrot.lane.b32.xlu0 %v6433, 64
    %v7073 = vpop.permute.xlu0 %7072
    %7074 = vrot.lane.b32.xlu0 %v6434, 64
    %v7075 = vpop.permute.xlu0 %7074
    %7076 = vrot.lane.b32.xlu0 %v6435, 64
    %v7077 = vpop.permute.xlu0 %7076
    %7078 = vrot.lane.b32.xlu0 %v5031, 64
    %v7079 = vpop.permute.xlu0 %7078
    %7080 = vrot.lane.b32.xlu0 %v5037, 64
    %v7081 = vpop.permute.xlu0 %7080
    %7082 = vrot.lane.b32.xlu0 %v5043, 64
    %v7083 = vpop.permute.xlu0 %7082
    %v7084 = vsel %vm854, %v7073, 0
    %v7086 = vsel %vm854, %v7075, 0
    %v7088 = vsel %vm854, %v7077, 0
    %v7090 = vsel %vm854, %v7079, 0
    %v7092 = vsel %vm854, %v7081, 0
    %v7094 = vsel %vm854, %v7083, 0
    %7096 = vmatprep.subr.mxu0 0.0
    %7097 = vmatpush1.xpose.msra.mxu0 0.0
    %7098 = vmatprep.subr.mxu0 0.0
    %7099 = vmatpush1.xpose.msra.mxu0 0.0
    %7100 = vmatprep.subr.mxu0 0.0
    %7101 = vmatpush1.xpose.msra.mxu0 0.0
    %7102 = vmatprep.subr.mxu0 0.0
    %7103 = vmatpush1.xpose.msra.mxu0 0.0
    %7104 = vmatprep.subr.mxu0 0.0
    %7105 = vmatpush1.xpose.msra.mxu0 0.0
    %7106 = vmatprep.subr.mxu0 0.0
    %7107 = vmatpush1.xpose.msra.mxu0 0.0
    %7108 = vmatprep.subr.mxu0 0.0
    %7109 = vmatpush1.xpose.msra.mxu0 0.0
    %7110 = vmatprep.subr.mxu0 0.0
    %7111 = vmatpush1.xpose.msra.mxu0 0.0
    %7112 = vmatprep.subr.mxu0 0.0
    %7113 = vmatpush1.xpose.msra.mxu0 0.0
    %7114 = vmatprep.subr.mxu0 0.0
    %7115 = vmatpush1.xpose.msra.mxu0 0.0
    %7116 = vmatprep.subr.mxu0 0.0
    %7117 = vmatpush1.xpose.msra.mxu0 0.0
    %7118 = vmatprep.subr.mxu0 0.0
    %7119 = vmatpush1.xpose.msra.mxu0 0.0
    %7120 = vmatprep.subr.mxu0 0.0
    %7121 = vmatpush1.xpose.msra.mxu0 0.0
    %7122 = vmatprep.subr.mxu0 0.0
    %7123 = vmatpush1.xpose.msra.mxu0 %v7094
    %7124 = vmatprep.subr.mxu0 0.0
    %7125 = vmatpush1.xpose.msra.mxu0 %v7092
    %7126 = vmatprep.subr.mxu0 0.0
    %7127 = vmatpush1.xpose.msra.mxu0 %v7090
    %7128 = vmatprep.subr.mxu0 0.0
    %7129 = vmatpush2.xpose.msra.mxu0 0.0
    %7130 = vmatprep.subr.mxu0 0.0
    %7131 = vmatpush2.xpose.msra.mxu0 0.0
    %7132 = vmatprep.subr.mxu0 0.0
    %7133 = vmatpush2.xpose.msra.mxu0 0.0
    %7134 = vmatprep.subr.mxu0 0.0
    %7135 = vmatpush2.xpose.msra.mxu0 0.0
    %7136 = vmatprep.subr.mxu0 0.0
    %7137 = vmatpush2.xpose.msra.mxu0 0.0
    %7138 = vmatprep.subr.mxu0 0.0
    %7139 = vmatpush2.xpose.msra.mxu0 0.0
    %7140 = vmatprep.subr.mxu0 0.0
    %7141 = vmatpush2.xpose.msra.mxu0 0.0
    %7142 = vmatprep.subr.mxu0 0.0
    %7143 = vmatpush2.xpose.msra.mxu0 0.0
    %7144 = vmatprep.subr.mxu0 0.0
    %7145 = vmatpush2.xpose.msra.mxu0 0.0
    %7146 = vmatprep.subr.mxu0 0.0
    %7147 = vmatpush2.xpose.msra.mxu0 0.0
    %7148 = vmatprep.subr.mxu0 0.0
    %7149 = vmatpush2.xpose.msra.mxu0 0.0
    %7150 = vmatprep.subr.mxu0 0.0
    %7151 = vmatpush2.xpose.msra.mxu0 0.0
    %7152 = vmatprep.subr.mxu0 0.0
    %7153 = vmatpush2.xpose.msra.mxu0 0.0
    %7154 = vmatprep.subr.mxu0 0.0
    %7155 = vmatpush2.xpose.msra.mxu0 0.0
    %7156 = vmatprep.subr.mxu0 0.0
    %7157 = vmatpush2.xpose.msra.mxu0 0.0
    %7158 = vmatprep.subr.mxu0 0.0
    %7159 = vmatpush2.xpose.msra.mxu0 0.0
    %7160 = vmatprep.mubr.f32.mxu0 0.0
    %7161 = vmatmul.mubr.f32.gmra.mxu0 %v7084
    %v7162 = vpop.f32.mrf.mxu0
    %v7163 = vadd.f32 %v347, %v7162
    %v7164 = vpop.f32.mrf.mxu0
    %7165 = vmatprep.mubr.f32.mxu0 0.0
    %7166 = vmatmul.mubr.f32.gmra.mxu0 %v7086
    %v7167 = vpop.f32.mrf.mxu0
    %v7168 = vadd.f32 %v347, %v7167
    %v7169 = vpop.f32.mrf.mxu0
    %7170 = vmatprep.mubr.f32.mxu0 0.0
    %7171 = vmatmul.mubr.f32.gmra.mxu0 %v7088
    %v7172 = vpop.f32.mrf.mxu0
    %v7173 = vadd.f32 %v347, %v7172
    %v7174 = vpop.f32.mrf.mxu0
    %7175 = vdwg.mxu0
    %v7176 = vsel %vm953, %v7163, -inf
    %7177 = vmax.xlane.f32.xlu0 %v7176
    %v7178 = vpop.xlane.xlu0 %7177
    %v7179 = vsel %vm953, %v7168, -inf
    %7180 = vmax.xlane.f32.xlu0 %v7179
    %v7181 = vpop.xlane.xlu0 %7180
    %v7182 = vsel %vm953, %v7173, -inf
    %7183 = vmax.xlane.f32.xlu0 %v7182
    %v7184 = vpop.xlane.xlu0 %7183
    %v7185 = vsub.f32 %v7163, %v7178
    %v7186 = vsub.f32 %v7168, %v7181
    %v7187 = vsub.f32 %v7173, %v7184
    %v7188 = vmul.f32 %v7185, 1.442695
    %v7189 = vpow.pop %v7188
    %v7190 = vmul.f32 %v7186, 1.442695
    %v7191 = vpow.pop %v7190
    %v7192 = vmul.f32 %v7187, 1.442695
    %v7193 = vpow.pop %v7192
    %v7194 = vsel %vm953, %v7189, 0.0
    %7195 = vadd.xlane.f32.xlu0 %v7194
    %v7196 = vpop.xlane.xlu0 %7195
    %v7197 = vsel %vm953, %v7191, 0.0
    %7198 = vadd.xlane.f32.xlu0 %v7197
    %v7199 = vpop.xlane.xlu0 %7198
    %v7200 = vsel %vm953, %v7193, 0.0
    %7201 = vadd.xlane.f32.xlu0 %v7200
    %v7202 = vpop.xlane.xlu0 %7201
    %v7203 = vrcp.pop %v7196
    %v7204 = vrcp.pop %v7199
    %v7205 = vrcp.pop %v7202
    %v7206 = vmul.f32 %v7189, %v7203
    %v7207 = vmul.f32 %v7191, %v7204
    %v7208 = vmul.f32 %v7193, %v7205
    %7209 = vrot.lane.b32.xlu0 %v5127, 64
    %v7210 = vpop.permute.xlu0 %7209
    %7211 = vrot.lane.b32.xlu0 %v5132, 64
    %v7212 = vpop.permute.xlu0 %7211
    %7213 = vrot.lane.b32.xlu0 %v5137, 64
    %v7214 = vpop.permute.xlu0 %7213
    %v7219 = vsel %vm953, %v7206, 0
    %v7222 = vsel %vm953, %v7207, 0
    %v7225 = vsel %vm953, %v7208, 0
    %7227 = vmatprep.subr.mxu0 0.0
    %7228 = vmatpush1.msra.mxu0 0.0
    %7229 = vmatprep.subr.mxu0 0.0
    %7230 = vmatpush1.msra.mxu0 0.0
    %7231 = vmatprep.subr.mxu0 0.0
    %7232 = vmatpush1.msra.mxu0 0.0
    %7233 = vmatprep.subr.mxu0 0.0
    %7234 = vmatpush1.msra.mxu0 0.0
    %7235 = vmatprep.subr.mxu0 0.0
    %7236 = vmatpush1.msra.mxu0 0.0
    %7237 = vmatprep.subr.mxu0 0.0
    %7238 = vmatpush1.msra.mxu0 0.0
    %7239 = vmatprep.subr.mxu0 0.0
    %7240 = vmatpush1.msra.mxu0 0.0
    %7241 = vmatprep.subr.mxu0 0.0
    %7242 = vmatpush1.msra.mxu0 0.0
    %7243 = vmatprep.subr.mxu0 0.0
    %7244 = vmatpush1.msra.mxu0 0.0
    %7245 = vmatprep.subr.mxu0 0.0
    %7246 = vmatpush1.msra.mxu0 0.0
    %7247 = vmatprep.subr.mxu0 0.0
    %7248 = vmatpush1.msra.mxu0 0.0
    %7249 = vmatprep.subr.mxu0 0.0
    %7250 = vmatpush1.msra.mxu0 0.0
    %7251 = vmatprep.subr.mxu0 0.0
    %7252 = vmatpush1.msra.mxu0 0.0
    %7253 = vmatprep.subr.mxu0 0.0
    %7254 = vmatpush1.msra.mxu0 %v7214
    %7255 = vmatprep.subr.mxu0 0.0
    %7256 = vmatpush1.msra.mxu0 %v7212
    %7257 = vmatprep.subr.mxu0 0.0
    %7258 = vmatpush1.msra.mxu0 %v7210
    %7259 = vmatprep.subr.mxu0 0.0
    %7260 = vmatpush2.msra.mxu0 0.0
    %7261 = vmatprep.subr.mxu0 0.0
    %7262 = vmatpush2.msra.mxu0 0.0
    %7263 = vmatprep.subr.mxu0 0.0
    %7264 = vmatpush2.msra.mxu0 0.0
    %7265 = vmatprep.subr.mxu0 0.0
    %7266 = vmatpush2.msra.mxu0 0.0
    %7267 = vmatprep.subr.mxu0 0.0
    %7268 = vmatpush2.msra.mxu0 0.0
    %7269 = vmatprep.subr.mxu0 0.0
    %7270 = vmatpush2.msra.mxu0 0.0
    %7271 = vmatprep.subr.mxu0 0.0
    %7272 = vmatpush2.msra.mxu0 0.0
    %7273 = vmatprep.subr.mxu0 0.0
    %7274 = vmatpush2.msra.mxu0 0.0
    %7275 = vmatprep.subr.mxu0 0.0
    %7276 = vmatpush2.msra.mxu0 0.0
    %7277 = vmatprep.subr.mxu0 0.0
    %7278 = vmatpush2.msra.mxu0 0.0
    %7279 = vmatprep.subr.mxu0 0.0
    %7280 = vmatpush2.msra.mxu0 0.0
    %7281 = vmatprep.subr.mxu0 0.0
    %7282 = vmatpush2.msra.mxu0 0.0
    %7283 = vmatprep.subr.mxu0 0.0
    %7284 = vmatpush2.msra.mxu0 0.0
    %7285 = vmatprep.subr.mxu0 0.0
    %7286 = vmatpush2.msra.mxu0 0.0
    %7287 = vmatprep.subr.mxu0 0.0
    %7288 = vmatpush2.msra.mxu0 0.0
    %7289 = vmatprep.subr.mxu0 0.0
    %7290 = vmatpush2.msra.mxu0 0.0
    %7291 = vmatprep.mubr.f32.mxu0 0.0
    %7292 = vmatmul.mubr.f32.gmra.mxu0 %v7219
    %v7293 = vpop.f32.mrf.mxu0
    %v7294 = vadd.f32 0.0, %v7293
    %v7295 = vpop.f32.mrf.mxu0
    %7296 = vmatprep.mubr.f32.mxu0 0.0
    %7297 = vmatmul.mubr.f32.gmra.mxu0 %v7222
    %v7298 = vpop.f32.mrf.mxu0
    %v7299 = vadd.f32 0.0, %v7298
    %v7300 = vpop.f32.mrf.mxu0
    %7301 = vmatprep.mubr.f32.mxu0 0.0
    %7302 = vmatmul.mubr.f32.gmra.mxu0 %v7225
    %v7303 = vpop.f32.mrf.mxu0
    %v7304 = vadd.f32 0.0, %v7303
    %v7305 = vpop.f32.mrf.mxu0
    %7306 = vdwg.mxu0
    %v7308 = vsel %vm854, %v7294, 0
    %v7311 = vsel %vm854, %v7299, 0
    %v7314 = vsel %vm854, %v7304, 0
    %7316 = vmatprep.subr.mxu0 0.0
    %7317 = vmatpush1.msra.mxu0 0.0
    %7318 = vmatprep.subr.mxu0 0.0
    %7319 = vmatpush1.msra.mxu0 0.0
    %7320 = vmatprep.subr.mxu0 0.0
    %7321 = vmatpush1.msra.mxu0 0.0
    %7322 = vmatprep.subr.mxu0 0.0
    %7323 = vmatpush1.msra.mxu0 0.0
    %7324 = vmatprep.subr.mxu0 0.0
    %7325 = vmatpush1.msra.mxu0 0.0
    %7326 = vmatprep.subr.mxu0 0.0
    %7327 = vmatpush1.msra.mxu0 0.0
    %7328 = vmatprep.subr.mxu0 0.0
    %7329 = vmatpush1.msra.mxu0 0.0
    %7330 = vmatprep.subr.mxu0 0.0
    %7331 = vmatpush1.msra.mxu0 0.0
    %7332 = vmatprep.subr.mxu0 0.0
    %7333 = vmatpush1.msra.mxu0 0.0
    %7334 = vmatprep.subr.mxu0 0.0
    %7335 = vmatpush1.msra.mxu0 0.0
    %7336 = vmatprep.subr.mxu0 0.0
    %7337 = vmatpush1.msra.mxu0 0.0
    %7338 = vmatprep.subr.mxu0 0.0
    %7339 = vmatpush1.msra.mxu0 0.0
    %7340 = vmatprep.subr.mxu0 0.0
    %7341 = vmatpush1.msra.mxu0 %v4693
    %7342 = vmatprep.subr.mxu0 0.0
    %7343 = vmatpush1.msra.mxu0 %v4692
    %7344 = vmatprep.subr.mxu0 0.0
    %7345 = vmatpush1.msra.mxu0 %v4691
    %7346 = vmatprep.subr.mxu0 0.0
    %7347 = vmatpush1.msra.mxu0 %v4690
    %7348 = vmatprep.subr.mxu0 0.0
    %7349 = vmatpush2.msra.mxu0 0.0
    %7350 = vmatprep.subr.mxu0 0.0
    %7351 = vmatpush2.msra.mxu0 0.0
    %7352 = vmatprep.subr.mxu0 0.0
    %7353 = vmatpush2.msra.mxu0 0.0
    %7354 = vmatprep.subr.mxu0 0.0
    %7355 = vmatpush2.msra.mxu0 0.0
    %7356 = vmatprep.subr.mxu0 0.0
    %7357 = vmatpush2.msra.mxu0 0.0
    %7358 = vmatprep.subr.mxu0 0.0
    %7359 = vmatpush2.msra.mxu0 0.0
    %7360 = vmatprep.subr.mxu0 0.0
    %7361 = vmatpush2.msra.mxu0 0.0
    %7362 = vmatprep.subr.mxu0 0.0
    %7363 = vmatpush2.msra.mxu0 0.0
    %7364 = vmatprep.subr.mxu0 0.0
    %7365 = vmatpush2.msra.mxu0 0.0
    %7366 = vmatprep.subr.mxu0 0.0
    %7367 = vmatpush2.msra.mxu0 0.0
    %7368 = vmatprep.subr.mxu0 0.0
    %7369 = vmatpush2.msra.mxu0 0.0
    %7370 = vmatprep.subr.mxu0 0.0
    %7371 = vmatpush2.msra.mxu0 0.0
    %7372 = vmatprep.subr.mxu0 0.0
    %7373 = vmatpush2.msra.mxu0 0.0
    %7374 = vmatprep.subr.mxu0 0.0
    %7375 = vmatpush2.msra.mxu0 0.0
    %7376 = vmatprep.subr.mxu0 0.0
    %7377 = vmatpush2.msra.mxu0 0.0
    %7378 = vmatprep.subr.mxu0 0.0
    %7379 = vmatpush2.msra.mxu0 0.0
    %7380 = vmatprep.mubr.f32.mxu0 0.0
    %7381 = vmatmul.mubr.f32.gmra.mxu0 %v7308
    %v7382 = vpop.f32.mrf.mxu0
    %v7383 = vadd.f32 0.0, %v7382
    %v7384 = vpop.f32.mrf.mxu0
    %7385 = vmatprep.mubr.f32.mxu0 0.0
    %7386 = vmatmul.mubr.f32.gmra.mxu0 %v7311
    %v7387 = vpop.f32.mrf.mxu0
    %v7388 = vadd.f32 0.0, %v7387
    %v7389 = vpop.f32.mrf.mxu0
    %7390 = vmatprep.mubr.f32.mxu0 0.0
    %7391 = vmatmul.mubr.f32.gmra.mxu0 %v7314
    %v7392 = vpop.f32.mrf.mxu0
    %v7393 = vadd.f32 0.0, %v7392
    %v7394 = vpop.f32.mrf.mxu0
    %7395 = vdwg.mxu0
    %v7396 = vadd.f32 %v7059, %v7383
    %v7397 = vadd.f32 %v7064, %v7388
    %v7398 = vadd.f32 %v7069, %v7393
    %7399 = vrot.lane.b32.xlu0 %v6433, 32
    %v7400 = vpop.permute.xlu0 %7399
    %7401 = vrot.lane.b32.xlu0 %v6434, 32
    %v7402 = vpop.permute.xlu0 %7401
    %7403 = vrot.lane.b32.xlu0 %v6435, 32
    %v7404 = vpop.permute.xlu0 %7403
    %7405 = vrot.lane.b32.xlu0 %v5031, 32
    %v7406 = vpop.permute.xlu0 %7405
    %7407 = vrot.lane.b32.xlu0 %v5037, 32
    %v7408 = vpop.permute.xlu0 %7407
    %7409 = vrot.lane.b32.xlu0 %v5043, 32
    %v7410 = vpop.permute.xlu0 %7409
    %v7411 = vsel %vm854, %v7400, 0
    %v7413 = vsel %vm854, %v7402, 0
    %v7415 = vsel %vm854, %v7404, 0
    %v7417 = vsel %vm854, %v7406, 0
    %v7419 = vsel %vm854, %v7408, 0
    %v7421 = vsel %vm854, %v7410, 0
    %7423 = vmatprep.subr.mxu0 0.0
    %7424 = vmatpush1.xpose.msra.mxu0 0.0
    %7425 = vmatprep.subr.mxu0 0.0
    %7426 = vmatpush1.xpose.msra.mxu0 0.0
    %7427 = vmatprep.subr.mxu0 0.0
    %7428 = vmatpush1.xpose.msra.mxu0 0.0
    %7429 = vmatprep.subr.mxu0 0.0
    %7430 = vmatpush1.xpose.msra.mxu0 0.0
    %7431 = vmatprep.subr.mxu0 0.0
    %7432 = vmatpush1.xpose.msra.mxu0 0.0
    %7433 = vmatprep.subr.mxu0 0.0
    %7434 = vmatpush1.xpose.msra.mxu0 0.0
    %7435 = vmatprep.subr.mxu0 0.0
    %7436 = vmatpush1.xpose.msra.mxu0 0.0
    %7437 = vmatprep.subr.mxu0 0.0
    %7438 = vmatpush1.xpose.msra.mxu0 0.0
    %7439 = vmatprep.subr.mxu0 0.0
    %7440 = vmatpush1.xpose.msra.mxu0 0.0
    %7441 = vmatprep.subr.mxu0 0.0
    %7442 = vmatpush1.xpose.msra.mxu0 0.0
    %7443 = vmatprep.subr.mxu0 0.0
    %7444 = vmatpush1.xpose.msra.mxu0 0.0
    %7445 = vmatprep.subr.mxu0 0.0
    %7446 = vmatpush1.xpose.msra.mxu0 0.0
    %7447 = vmatprep.subr.mxu0 0.0
    %7448 = vmatpush1.xpose.msra.mxu0 0.0
    %7449 = vmatprep.subr.mxu0 0.0
    %7450 = vmatpush1.xpose.msra.mxu0 %v7421
    %7451 = vmatprep.subr.mxu0 0.0
    %7452 = vmatpush1.xpose.msra.mxu0 %v7419
    %7453 = vmatprep.subr.mxu0 0.0
    %7454 = vmatpush1.xpose.msra.mxu0 %v7417
    %7455 = vmatprep.subr.mxu0 0.0
    %7456 = vmatpush2.xpose.msra.mxu0 0.0
    %7457 = vmatprep.subr.mxu0 0.0
    %7458 = vmatpush2.xpose.msra.mxu0 0.0
    %7459 = vmatprep.subr.mxu0 0.0
    %7460 = vmatpush2.xpose.msra.mxu0 0.0
    %7461 = vmatprep.subr.mxu0 0.0
    %7462 = vmatpush2.xpose.msra.mxu0 0.0
    %7463 = vmatprep.subr.mxu0 0.0
    %7464 = vmatpush2.xpose.msra.mxu0 0.0
    %7465 = vmatprep.subr.mxu0 0.0
    %7466 = vmatpush2.xpose.msra.mxu0 0.0
    %7467 = vmatprep.subr.mxu0 0.0
    %7468 = vmatpush2.xpose.msra.mxu0 0.0
    %7469 = vmatprep.subr.mxu0 0.0
    %7470 = vmatpush2.xpose.msra.mxu0 0.0
    %7471 = vmatprep.subr.mxu0 0.0
    %7472 = vmatpush2.xpose.msra.mxu0 0.0
    %7473 = vmatprep.subr.mxu0 0.0
    %7474 = vmatpush2.xpose.msra.mxu0 0.0
    %7475 = vmatprep.subr.mxu0 0.0
    %7476 = vmatpush2.xpose.msra.mxu0 0.0
    %7477 = vmatprep.subr.mxu0 0.0
    %7478 = vmatpush2.xpose.msra.mxu0 0.0
    %7479 = vmatprep.subr.mxu0 0.0
    %7480 = vmatpush2.xpose.msra.mxu0 0.0
    %7481 = vmatprep.subr.mxu0 0.0
    %7482 = vmatpush2.xpose.msra.mxu0 0.0
    %7483 = vmatprep.subr.mxu0 0.0
    %7484 = vmatpush2.xpose.msra.mxu0 0.0
    %7485 = vmatprep.subr.mxu0 0.0
    %7486 = vmatpush2.xpose.msra.mxu0 0.0
    %7487 = vmatprep.mubr.f32.mxu0 0.0
    %7488 = vmatmul.mubr.f32.gmra.mxu0 %v7411
    %v7489 = vpop.f32.mrf.mxu0
    %v7490 = vadd.f32 %v347, %v7489
    %v7491 = vpop.f32.mrf.mxu0
    %7492 = vmatprep.mubr.f32.mxu0 0.0
    %7493 = vmatmul.mubr.f32.gmra.mxu0 %v7413
    %v7494 = vpop.f32.mrf.mxu0
    %v7495 = vadd.f32 %v347, %v7494
    %v7496 = vpop.f32.mrf.mxu0
    %7497 = vmatprep.mubr.f32.mxu0 0.0
    %7498 = vmatmul.mubr.f32.gmra.mxu0 %v7415
    %v7499 = vpop.f32.mrf.mxu0
    %v7500 = vadd.f32 %v347, %v7499
    %v7501 = vpop.f32.mrf.mxu0
    %7502 = vdwg.mxu0
    %v7503 = vsel %vm953, %v7490, -inf
    %7504 = vmax.xlane.f32.xlu0 %v7503
    %v7505 = vpop.xlane.xlu0 %7504
    %v7506 = vsel %vm953, %v7495, -inf
    %7507 = vmax.xlane.f32.xlu0 %v7506
    %v7508 = vpop.xlane.xlu0 %7507
    %v7509 = vsel %vm953, %v7500, -inf
    %7510 = vmax.xlane.f32.xlu0 %v7509
    %v7511 = vpop.xlane.xlu0 %7510
    %v7512 = vsub.f32 %v7490, %v7505
    %v7513 = vsub.f32 %v7495, %v7508
    %v7514 = vsub.f32 %v7500, %v7511
    %v7515 = vmul.f32 %v7512, 1.442695
    %v7516 = vpow.pop %v7515
    %v7517 = vmul.f32 %v7513, 1.442695
    %v7518 = vpow.pop %v7517
    %v7519 = vmul.f32 %v7514, 1.442695
    %v7520 = vpow.pop %v7519
    %v7521 = vsel %vm953, %v7516, 0.0
    %7522 = vadd.xlane.f32.xlu0 %v7521
    %v7523 = vpop.xlane.xlu0 %7522
    %v7524 = vsel %vm953, %v7518, 0.0
    %7525 = vadd.xlane.f32.xlu0 %v7524
    %v7526 = vpop.xlane.xlu0 %7525
    %v7527 = vsel %vm953, %v7520, 0.0
    %7528 = vadd.xlane.f32.xlu0 %v7527
    %v7529 = vpop.xlane.xlu0 %7528
    %v7530 = vrcp.pop %v7523
    %v7531 = vrcp.pop %v7526
    %v7532 = vrcp.pop %v7529
    %v7533 = vmul.f32 %v7516, %v7530
    %v7534 = vmul.f32 %v7518, %v7531
    %v7535 = vmul.f32 %v7520, %v7532
    %7536 = vrot.lane.b32.xlu0 %v5127, 32
    %v7537 = vpop.permute.xlu0 %7536
    %7538 = vrot.lane.b32.xlu0 %v5132, 32
    %v7539 = vpop.permute.xlu0 %7538
    %7540 = vrot.lane.b32.xlu0 %v5137, 32
    %v7541 = vpop.permute.xlu0 %7540
    %v7546 = vsel %vm953, %v7533, 0
    %v7549 = vsel %vm953, %v7534, 0
    %v7552 = vsel %vm953, %v7535, 0
    %7554 = vmatprep.subr.mxu0 0.0
    %7555 = vmatpush1.msra.mxu0 0.0
    %7556 = vmatprep.subr.mxu0 0.0
    %7557 = vmatpush1.msra.mxu0 0.0
    %7558 = vmatprep.subr.mxu0 0.0
    %7559 = vmatpush1.msra.mxu0 0.0
    %7560 = vmatprep.subr.mxu0 0.0
    %7561 = vmatpush1.msra.mxu0 0.0
    %7562 = vmatprep.subr.mxu0 0.0
    %7563 = vmatpush1.msra.mxu0 0.0
    %7564 = vmatprep.subr.mxu0 0.0
    %7565 = vmatpush1.msra.mxu0 0.0
    %7566 = vmatprep.subr.mxu0 0.0
    %7567 = vmatpush1.msra.mxu0 0.0
    %7568 = vmatprep.subr.mxu0 0.0
    %7569 = vmatpush1.msra.mxu0 0.0
    %7570 = vmatprep.subr.mxu0 0.0
    %7571 = vmatpush1.msra.mxu0 0.0
    %7572 = vmatprep.subr.mxu0 0.0
    %7573 = vmatpush1.msra.mxu0 0.0
    %7574 = vmatprep.subr.mxu0 0.0
    %7575 = vmatpush1.msra.mxu0 0.0
    %7576 = vmatprep.subr.mxu0 0.0
    %7577 = vmatpush1.msra.mxu0 0.0
    %7578 = vmatprep.subr.mxu0 0.0
    %7579 = vmatpush1.msra.mxu0 0.0
    %7580 = vmatprep.subr.mxu0 0.0
    %7581 = vmatpush1.msra.mxu0 %v7541
    %7582 = vmatprep.subr.mxu0 0.0
    %7583 = vmatpush1.msra.mxu0 %v7539
    %7584 = vmatprep.subr.mxu0 0.0
    %7585 = vmatpush1.msra.mxu0 %v7537
    %7586 = vmatprep.subr.mxu0 0.0
    %7587 = vmatpush2.msra.mxu0 0.0
    %7588 = vmatprep.subr.mxu0 0.0
    %7589 = vmatpush2.msra.mxu0 0.0
    %7590 = vmatprep.subr.mxu0 0.0
    %7591 = vmatpush2.msra.mxu0 0.0
    %7592 = vmatprep.subr.mxu0 0.0
    %7593 = vmatpush2.msra.mxu0 0.0
    %7594 = vmatprep.subr.mxu0 0.0
    %7595 = vmatpush2.msra.mxu0 0.0
    %7596 = vmatprep.subr.mxu0 0.0
    %7597 = vmatpush2.msra.mxu0 0.0
    %7598 = vmatprep.subr.mxu0 0.0
    %7599 = vmatpush2.msra.mxu0 0.0
    %7600 = vmatprep.subr.mxu0 0.0
    %7601 = vmatpush2.msra.mxu0 0.0
    %7602 = vmatprep.subr.mxu0 0.0
    %7603 = vmatpush2.msra.mxu0 0.0
    %7604 = vmatprep.subr.mxu0 0.0
    %7605 = vmatpush2.msra.mxu0 0.0
    %7606 = vmatprep.subr.mxu0 0.0
    %7607 = vmatpush2.msra.mxu0 0.0
    %7608 = vmatprep.subr.mxu0 0.0
    %7609 = vmatpush2.msra.mxu0 0.0
    %7610 = vmatprep.subr.mxu0 0.0
    %7611 = vmatpush2.msra.mxu0 0.0
    %7612 = vmatprep.subr.mxu0 0.0
    %7613 = vmatpush2.msra.mxu0 0.0
    %7614 = vmatprep.subr.mxu0 0.0
    %7615 = vmatpush2.msra.mxu0 0.0
    %7616 = vmatprep.subr.mxu0 0.0
    %7617 = vmatpush2.msra.mxu0 0.0
    %7618 = vmatprep.mubr.f32.mxu0 0.0
    %7619 = vmatmul.mubr.f32.gmra.mxu0 %v7546
    %v7620 = vpop.f32.mrf.mxu0
    %v7621 = vadd.f32 0.0, %v7620
    %v7622 = vpop.f32.mrf.mxu0
    %7623 = vmatprep.mubr.f32.mxu0 0.0
    %7624 = vmatmul.mubr.f32.gmra.mxu0 %v7549
    %v7625 = vpop.f32.mrf.mxu0
    %v7626 = vadd.f32 0.0, %v7625
    %v7627 = vpop.f32.mrf.mxu0
    %7628 = vmatprep.mubr.f32.mxu0 0.0
    %7629 = vmatmul.mubr.f32.gmra.mxu0 %v7552
    %v7630 = vpop.f32.mrf.mxu0
    %v7631 = vadd.f32 0.0, %v7630
    %v7632 = vpop.f32.mrf.mxu0
    %7633 = vdwg.mxu0
    %v7635 = vsel %vm854, %v7621, 0
    %v7638 = vsel %vm854, %v7626, 0
    %v7641 = vsel %vm854, %v7631, 0
    %7643 = vmatprep.subr.mxu0 0.0
    %7644 = vmatpush1.msra.mxu0 0.0
    %7645 = vmatprep.subr.mxu0 0.0
    %7646 = vmatpush1.msra.mxu0 0.0
    %7647 = vmatprep.subr.mxu0 0.0
    %7648 = vmatpush1.msra.mxu0 0.0
    %7649 = vmatprep.subr.mxu0 0.0
    %7650 = vmatpush1.msra.mxu0 0.0
    %7651 = vmatprep.subr.mxu0 0.0
    %7652 = vmatpush1.msra.mxu0 0.0
    %7653 = vmatprep.subr.mxu0 0.0
    %7654 = vmatpush1.msra.mxu0 0.0
    %7655 = vmatprep.subr.mxu0 0.0
    %7656 = vmatpush1.msra.mxu0 0.0
    %7657 = vmatprep.subr.mxu0 0.0
    %7658 = vmatpush1.msra.mxu0 0.0
    %7659 = vmatprep.subr.mxu0 0.0
    %7660 = vmatpush1.msra.mxu0 0.0
    %7661 = vmatprep.subr.mxu0 0.0
    %7662 = vmatpush1.msra.mxu0 0.0
    %7663 = vmatprep.subr.mxu0 0.0
    %7664 = vmatpush1.msra.mxu0 0.0
    %7665 = vmatprep.subr.mxu0 0.0
    %7666 = vmatpush1.msra.mxu0 0.0
    %7667 = vmatprep.subr.mxu0 0.0
    %7668 = vmatpush1.msra.mxu0 %v4697
    %7669 = vmatprep.subr.mxu0 0.0
    %7670 = vmatpush1.msra.mxu0 %v4696
    %7671 = vmatprep.subr.mxu0 0.0
    %7672 = vmatpush1.msra.mxu0 %v4695
    %7673 = vmatprep.subr.mxu0 0.0
    %7674 = vmatpush1.msra.mxu0 %v4694
    %7675 = vmatprep.subr.mxu0 0.0
    %7676 = vmatpush2.msra.mxu0 0.0
    %7677 = vmatprep.subr.mxu0 0.0
    %7678 = vmatpush2.msra.mxu0 0.0
    %7679 = vmatprep.subr.mxu0 0.0
    %7680 = vmatpush2.msra.mxu0 0.0
    %7681 = vmatprep.subr.mxu0 0.0
    %7682 = vmatpush2.msra.mxu0 0.0
    %7683 = vmatprep.subr.mxu0 0.0
    %7684 = vmatpush2.msra.mxu0 0.0
    %7685 = vmatprep.subr.mxu0 0.0
    %7686 = vmatpush2.msra.mxu0 0.0
    %7687 = vmatprep.subr.mxu0 0.0
    %7688 = vmatpush2.msra.mxu0 0.0
    %7689 = vmatprep.subr.mxu0 0.0
    %7690 = vmatpush2.msra.mxu0 0.0
    %7691 = vmatprep.subr.mxu0 0.0
    %7692 = vmatpush2.msra.mxu0 0.0
    %7693 = vmatprep.subr.mxu0 0.0
    %7694 = vmatpush2.msra.mxu0 0.0
    %7695 = vmatprep.subr.mxu0 0.0
    %7696 = vmatpush2.msra.mxu0 0.0
    %7697 = vmatprep.subr.mxu0 0.0
    %7698 = vmatpush2.msra.mxu0 0.0
    %7699 = vmatprep.subr.mxu0 0.0
    %7700 = vmatpush2.msra.mxu0 0.0
    %7701 = vmatprep.subr.mxu0 0.0
    %7702 = vmatpush2.msra.mxu0 0.0
    %7703 = vmatprep.subr.mxu0 0.0
    %7704 = vmatpush2.msra.mxu0 0.0
    %7705 = vmatprep.subr.mxu0 0.0
    %7706 = vmatpush2.msra.mxu0 0.0
    %7707 = vmatprep.mubr.f32.mxu0 0.0
    %7708 = vmatmul.mubr.f32.gmra.mxu0 %v7635
    %v7709 = vpop.f32.mrf.mxu0
    %v7710 = vadd.f32 0.0, %v7709
    %v7711 = vpop.f32.mrf.mxu0
    %7712 = vmatprep.mubr.f32.mxu0 0.0
    %7713 = vmatmul.mubr.f32.gmra.mxu0 %v7638
    %v7714 = vpop.f32.mrf.mxu0
    %v7715 = vadd.f32 0.0, %v7714
    %v7716 = vpop.f32.mrf.mxu0
    %7717 = vmatprep.mubr.f32.mxu0 0.0
    %7718 = vmatmul.mubr.f32.gmra.mxu0 %v7641
    %v7719 = vpop.f32.mrf.mxu0
    %v7720 = vadd.f32 0.0, %v7719
    %v7721 = vpop.f32.mrf.mxu0
    %7722 = vdwg.mxu0
    %v7723 = vadd.f32 %v7396, %v7710
    %v7724 = vadd.f32 %v7397, %v7715
    %v7725 = vadd.f32 %v7398, %v7720
    %v7727 = vlaneseq
    %v7728 = vshrl.u32 %v7727, 7
    %v7729 = vsub.s32 0, %v7728
    %v7730 = vrot.slane %v4699, %v7729
    %v7732 = vadd.f32 %v6430, %v7730
    %v7733 = vadd.f32 %v6431, %v7730
    %v7734 = vadd.f32 %v6432, %v7730
    %v7735 = vadd.f32 %v7723, %v7730
    %v7736 = vadd.f32 %v7724, %v7730
    %v7737 = vadd.f32 %v7725, %v7730
    %v7738 = vadd.f32 %v4620, %v7732
    %v7739 = vadd.f32 %v4621, %v7733
    %v7740 = vadd.f32 %v4622, %v7734
    %v7741 = vadd.f32 %v4623, %v7735
    %v7742 = vadd.f32 %v4624, %v7736
    %v7743 = vadd.f32 %v4625, %v7737
    %7744 = vadd.xlane.f32.xlu0 %v7738
    %v7745 = vpop.xlane.xlu0 %7744
    %7746 = vadd.xlane.f32.xlu0 %v7739
    %v7747 = vpop.xlane.xlu0 %7746
    %7748 = vadd.xlane.f32.xlu0 %v7740
    %v7749 = vpop.xlane.xlu0 %7748
    %7750 = vadd.xlane.f32.xlu0 %v7741
    %v7751 = vpop.xlane.xlu0 %7750
    %7752 = vadd.xlane.f32.xlu0 %v7742
    %v7753 = vpop.xlane.xlu0 %7752
    %7754 = vadd.xlane.f32.xlu0 %v7743
    %v7755 = vpop.xlane.xlu0 %7754
    %v7756 = vmul.f32 %v7745, %v560
    %v7757 = vmul.f32 %v7747, %v560
    %v7758 = vmul.f32 %v7749, %v560
    %v7759 = vmul.f32 %v7751, %v560
    %v7760 = vmul.f32 %v7753, %v560
    %v7761 = vmul.f32 %v7755, %v560
    %v7762 = vsub.f32 %v7738, %v7756
    %v7763 = vsub.f32 %v7739, %v7757
    %v7764 = vsub.f32 %v7740, %v7758
    %v7765 = vsub.f32 %v7741, %v7759
    %v7766 = vsub.f32 %v7742, %v7760
    %v7767 = vsub.f32 %v7743, %v7761
    %v7768 = vmul.f32 %v7762, %v7762
    %v7769 = vmul.f32 %v7763, %v7763
    %v7770 = vmul.f32 %v7764, %v7764
    %v7771 = vmul.f32 %v7765, %v7765
    %v7772 = vmul.f32 %v7766, %v7766
    %v7773 = vmul.f32 %v7767, %v7767
    %7774 = vadd.xlane.f32.xlu0 %v7768
    %v7775 = vpop.xlane.xlu0 %7774
    %7776 = vadd.xlane.f32.xlu0 %v7769
    %v7777 = vpop.xlane.xlu0 %7776
    %7778 = vadd.xlane.f32.xlu0 %v7770
    %v7779 = vpop.xlane.xlu0 %7778
    %7780 = vadd.xlane.f32.xlu0 %v7771
    %v7781 = vpop.xlane.xlu0 %7780
    %7782 = vadd.xlane.f32.xlu0 %v7772
    %v7783 = vpop.xlane.xlu0 %7782
    %7784 = vadd.xlane.f32.xlu0 %v7773
    %v7785 = vpop.xlane.xlu0 %7784
    %v7786 = vmul.f32 %v7775, %v560
    %v7787 = vmul.f32 %v7777, %v560
    %v7788 = vmul.f32 %v7779, %v560
    %v7789 = vmul.f32 %v7781, %v560
    %v7790 = vmul.f32 %v7783, %v560
    %v7791 = vmul.f32 %v7785, %v560
    %v7792 = vadd.f32 %v7786, 1e-05
    %v7793 = vadd.f32 %v7787, 1e-05
    %v7794 = vadd.f32 %v7788, 1e-05
    %v7795 = vadd.f32 %v7789, 1e-05
    %v7796 = vadd.f32 %v7790, 1e-05
    %v7797 = vadd.f32 %v7791, 1e-05
    %v7798 = vrsqrt.pop %v7792
    %v7799 = vrsqrt.pop %v7793
    %v7800 = vrsqrt.pop %v7794
    %v7801 = vrsqrt.pop %v7795
    %v7802 = vrsqrt.pop %v7796
    %v7803 = vrsqrt.pop %v7797
    %v7804 = vmul.f32 %v7762, %v7798
    %v7805 = vmul.f32 %v7763, %v7799
    %v7806 = vmul.f32 %v7764, %v7800
    %v7807 = vmul.f32 %v7765, %v7801
    %v7808 = vmul.f32 %v7766, %v7802
    %v7809 = vmul.f32 %v7767, %v7803
    %v7811 = vlaneseq
    %v7812 = vshrl.u32 %v7811, 7
    %v7813 = vsub.s32 0, %v7812
    %v7814 = vrot.slane %v4701, %v7813
    %v7816 = vmul.f32 %v7804, %v7814
    %v7817 = vmul.f32 %v7805, %v7814
    %v7818 = vmul.f32 %v7806, %v7814
    %v7819 = vmul.f32 %v7807, %v7814
    %v7820 = vmul.f32 %v7808, %v7814
    %v7821 = vmul.f32 %v7809, %v7814
    %v7823 = vlaneseq
    %v7824 = vshrl.u32 %v7823, 7
    %v7825 = vsub.s32 0, %v7824
    %v7826 = vrot.slane %v4703, %v7825
    %v7828 = vadd.f32 %v7816, %v7826
    %v7829 = vadd.f32 %v7817, %v7826
    %v7830 = vadd.f32 %v7818, %v7826
    %v7831 = vadd.f32 %v7819, %v7826
    %v7832 = vadd.f32 %v7820, %v7826
    %v7833 = vadd.f32 %v7821, %v7826
    %v7835 = vlaneseq
    %v7836 = vshrl.u32 %v7835, 7
    %v7837 = vsub.s32 0, %v7836
    %v7838 = vrot.slane %v4770, %v7837
    %v7839 = vlaneseq
    %v7840 = vshrl.u32 %v7839, 7
    %v7841 = vsub.s32 1, %v7840
    %v7842 = vrot.slane %v4770, %v7841
    %v7843 = vlaneseq
    %v7844 = vshrl.u32 %v7843, 7
    %v7845 = vsub.s32 2, %v7844
    %v7846 = vrot.slane %v4770, %v7845
    %v7847 = vlaneseq
    %v7848 = vshrl.u32 %v7847, 7
    %v7849 = vsub.s32 3, %v7848
    %v7850 = vrot.slane %v4770, %v7849
    %7855 = vmatprep.subr.mxu0 %v4766
    %7856 = vmatpush1.msra.mxu0 %v4765
    %7857 = vmatprep.subr.mxu0 %v4762
    %7858 = vmatpush1.msra.mxu0 %v4761
    %7859 = vmatprep.subr.mxu0 %v4758
    %7860 = vmatpush1.msra.mxu0 %v4757
    %7861 = vmatprep.subr.mxu0 %v4754
    %7862 = vmatpush1.msra.mxu0 %v4753
    %7863 = vmatprep.subr.mxu0 %v4750
    %7864 = vmatpush1.msra.mxu0 %v4749
    %7865 = vmatprep.subr.mxu0 %v4746
    %7866 = vmatpush1.msra.mxu0 %v4745
    %7867 = vmatprep.subr.mxu0 %v4742
    %7868 = vmatpush1.msra.mxu0 %v4741
    %7869 = vmatprep.subr.mxu0 %v4738
    %7870 = vmatpush1.msra.mxu0 %v4737
    %7871 = vmatprep.subr.mxu0 %v4734
    %7872 = vmatpush1.msra.mxu0 %v4733
    %7873 = vmatprep.subr.mxu0 %v4730
    %7874 = vmatpush1.msra.mxu0 %v4729
    %7875 = vmatprep.subr.mxu0 %v4726
    %7876 = vmatpush1.msra.mxu0 %v4725
    %7877 = vmatprep.subr.mxu0 %v4722
    %7878 = vmatpush1.msra.mxu0 %v4721
    %7879 = vmatprep.subr.mxu0 %v4718
    %7880 = vmatpush1.msra.mxu0 %v4717
    %7881 = vmatprep.subr.mxu0 %v4714
    %7882 = vmatpush1.msra.mxu0 %v4713
    %7883 = vmatprep.subr.mxu0 %v4710
    %7884 = vmatpush1.msra.mxu0 %v4709
    %7885 = vmatprep.subr.mxu0 %v4706
    %7886 = vmatpush1.msra.mxu0 %v4705
    %7887 = vmatprep.subr.mxu0 0.0
    %7888 = vmatpush2.msra.mxu0 0.0
    %7889 = vmatprep.subr.mxu0 0.0
    %7890 = vmatpush2.msra.mxu0 0.0
    %7891 = vmatprep.subr.mxu0 0.0
    %7892 = vmatpush2.msra.mxu0 0.0
    %7893 = vmatprep.subr.mxu0 0.0
    %7894 = vmatpush2.msra.mxu0 0.0
    %7895 = vmatprep.subr.mxu0 0.0
    %7896 = vmatpush2.msra.mxu0 0.0
    %7897 = vmatprep.subr.mxu0 0.0
    %7898 = vmatpush2.msra.mxu0 0.0
    %7899 = vmatprep.subr.mxu0 0.0
    %7900 = vmatpush2.msra.mxu0 0.0
    %7901 = vmatprep.subr.mxu0 0.0
    %7902 = vmatpush2.msra.mxu0 0.0
    %7903 = vmatprep.subr.mxu0 0.0
    %7904 = vmatpush2.msra.mxu0 0.0
    %7905 = vmatprep.subr.mxu0 0.0
    %7906 = vmatpush2.msra.mxu0 0.0
    %7907 = vmatprep.subr.mxu0 0.0
    %7908 = vmatpush2.msra.mxu0 0.0
    %7909 = vmatprep.subr.mxu0 0.0
    %7910 = vmatpush2.msra.mxu0 0.0
    %7911 = vmatprep.subr.mxu0 0.0
    %7912 = vmatpush2.msra.mxu0 0.0
    %7913 = vmatprep.subr.mxu0 0.0
    %7914 = vmatpush2.msra.mxu0 0.0
    %7915 = vmatprep.subr.mxu0 0.0
    %7916 = vmatpush2.msra.mxu0 0.0
    %7917 = vmatprep.subr.mxu0 0.0
    %7918 = vmatpush2.msra.mxu0 0.0
    %7919 = vmatprep.mubr.f32.mxu0 0.0
    %7920 = vmatmul.mubr.f32.gmra.mxu0 %v7828
    %v7921 = vpop.f32.mrf.mxu0
    %v7922 = vadd.f32 %v7838, %v7921
    %v7923 = vpop.f32.mrf.mxu0
    %v7924 = vadd.f32 %v7842, %v7923
    %7925 = vmatprep.mubr.f32.mxu0 0.0
    %7926 = vmatmul.mubr.f32.gmra.mxu0 %v7829
    %v7927 = vpop.f32.mrf.mxu0
    %v7928 = vadd.f32 %v7838, %v7927
    %v7929 = vpop.f32.mrf.mxu0
    %v7930 = vadd.f32 %v7842, %v7929
    %7931 = vmatprep.mubr.f32.mxu0 0.0
    %7932 = vmatmul.mubr.f32.gmra.mxu0 %v7830
    %v7933 = vpop.f32.mrf.mxu0
    %v7934 = vadd.f32 %v7838, %v7933
    %v7935 = vpop.f32.mrf.mxu0
    %v7936 = vadd.f32 %v7842, %v7935
    %7937 = vmatprep.mubr.f32.mxu0 0.0
    %7938 = vmatmul.mubr.f32.gmra.mxu0 %v7831
    %v7939 = vpop.f32.mrf.mxu0
    %v7940 = vadd.f32 %v7838, %v7939
    %v7941 = vpop.f32.mrf.mxu0
    %v7942 = vadd.f32 %v7842, %v7941
    %7943 = vmatprep.mubr.f32.mxu0 0.0
    %7944 = vmatmul.mubr.f32.gmra.mxu0 %v7832
    %v7945 = vpop.f32.mrf.mxu0
    %v7946 = vadd.f32 %v7838, %v7945
    %v7947 = vpop.f32.mrf.mxu0
    %v7948 = vadd.f32 %v7842, %v7947
    %7949 = vmatprep.mubr.f32.mxu0 0.0
    %7950 = vmatmul.mubr.f32.gmra.mxu0 %v7833
    %v7951 = vpop.f32.mrf.mxu0
    %v7952 = vadd.f32 %v7838, %v7951
    %v7953 = vpop.f32.mrf.mxu0
    %v7954 = vadd.f32 %v7842, %v7953
    %7955 = vdwg.mxu0
    %7956 = vmatprep.subr.mxu0 %v4768
    %7957 = vmatpush1.msra.mxu0 %v4767
    %7958 = vmatprep.subr.mxu0 %v4764
    %7959 = vmatpush1.msra.mxu0 %v4763
    %7960 = vmatprep.subr.mxu0 %v4760
    %7961 = vmatpush1.msra.mxu0 %v4759
    %7962 = vmatprep.subr.mxu0 %v4756
    %7963 = vmatpush1.msra.mxu0 %v4755
    %7964 = vmatprep.subr.mxu0 %v4752
    %7965 = vmatpush1.msra.mxu0 %v4751
    %7966 = vmatprep.subr.mxu0 %v4748
    %7967 = vmatpush1.msra.mxu0 %v4747
    %7968 = vmatprep.subr.mxu0 %v4744
    %7969 = vmatpush1.msra.mxu0 %v4743
    %7970 = vmatprep.subr.mxu0 %v4740
    %7971 = vmatpush1.msra.mxu0 %v4739
    %7972 = vmatprep.subr.mxu0 %v4736
    %7973 = vmatpush1.msra.mxu0 %v4735
    %7974 = vmatprep.subr.mxu0 %v4732
    %7975 = vmatpush1.msra.mxu0 %v4731
    %7976 = vmatprep.subr.mxu0 %v4728
    %7977 = vmatpush1.msra.mxu0 %v4727
    %7978 = vmatprep.subr.mxu0 %v4724
    %7979 = vmatpush1.msra.mxu0 %v4723
    %7980 = vmatprep.subr.mxu0 %v4720
    %7981 = vmatpush1.msra.mxu0 %v4719
    %7982 = vmatprep.subr.mxu0 %v4716
    %7983 = vmatpush1.msra.mxu0 %v4715
    %7984 = vmatprep.subr.mxu0 %v4712
    %7985 = vmatpush1.msra.mxu0 %v4711
    %7986 = vmatprep.subr.mxu0 %v4708
    %7987 = vmatpush1.msra.mxu0 %v4707
    %7988 = vmatprep.subr.mxu0 0.0
    %7989 = vmatpush2.msra.mxu0 0.0
    %7990 = vmatprep.subr.mxu0 0.0
    %7991 = vmatpush2.msra.mxu0 0.0
    %7992 = vmatprep.subr.mxu0 0.0
    %7993 = vmatpush2.msra.mxu0 0.0
    %7994 = vmatprep.subr.mxu0 0.0
    %7995 = vmatpush2.msra.mxu0 0.0
    %7996 = vmatprep.subr.mxu0 0.0
    %7997 = vmatpush2.msra.mxu0 0.0
    %7998 = vmatprep.subr.mxu0 0.0
    %7999 = vmatpush2.msra.mxu0 0.0
    %8000 = vmatprep.subr.mxu0 0.0
    %8001 = vmatpush2.msra.mxu0 0.0
    %8002 = vmatprep.subr.mxu0 0.0
    %8003 = vmatpush2.msra.mxu0 0.0
    %8004 = vmatprep.subr.mxu0 0.0
    %8005 = vmatpush2.msra.mxu0 0.0
    %8006 = vmatprep.subr.mxu0 0.0
    %8007 = vmatpush2.msra.mxu0 0.0
    %8008 = vmatprep.subr.mxu0 0.0
    %8009 = vmatpush2.msra.mxu0 0.0
    %8010 = vmatprep.subr.mxu0 0.0
    %8011 = vmatpush2.msra.mxu0 0.0
    %8012 = vmatprep.subr.mxu0 0.0
    %8013 = vmatpush2.msra.mxu0 0.0
    %8014 = vmatprep.subr.mxu0 0.0
    %8015 = vmatpush2.msra.mxu0 0.0
    %8016 = vmatprep.subr.mxu0 0.0
    %8017 = vmatpush2.msra.mxu0 0.0
    %8018 = vmatprep.subr.mxu0 0.0
    %8019 = vmatpush2.msra.mxu0 0.0
    %8020 = vmatprep.mubr.f32.mxu0 0.0
    %8021 = vmatmul.mubr.f32.gmra.mxu0 %v7828
    %v8022 = vpop.f32.mrf.mxu0
    %v8023 = vadd.f32 %v7846, %v8022
    %v8024 = vpop.f32.mrf.mxu0
    %v8025 = vadd.f32 %v7850, %v8024
    %8026 = vmatprep.mubr.f32.mxu0 0.0
    %8027 = vmatmul.mubr.f32.gmra.mxu0 %v7829
    %v8028 = vpop.f32.mrf.mxu0
    %v8029 = vadd.f32 %v7846, %v8028
    %v8030 = vpop.f32.mrf.mxu0
    %v8031 = vadd.f32 %v7850, %v8030
    %8032 = vmatprep.mubr.f32.mxu0 0.0
    %8033 = vmatmul.mubr.f32.gmra.mxu0 %v7830
    %v8034 = vpop.f32.mrf.mxu0
    %v8035 = vadd.f32 %v7846, %v8034
    %v8036 = vpop.f32.mrf.mxu0
    %v8037 = vadd.f32 %v7850, %v8036
    %8038 = vmatprep.mubr.f32.mxu0 0.0
    %8039 = vmatmul.mubr.f32.gmra.mxu0 %v7831
    %v8040 = vpop.f32.mrf.mxu0
    %v8041 = vadd.f32 %v7846, %v8040
    %v8042 = vpop.f32.mrf.mxu0
    %v8043 = vadd.f32 %v7850, %v8042
    %8044 = vmatprep.mubr.f32.mxu0 0.0
    %8045 = vmatmul.mubr.f32.gmra.mxu0 %v7832
    %v8046 = vpop.f32.mrf.mxu0
    %v8047 = vadd.f32 %v7846, %v8046
    %v8048 = vpop.f32.mrf.mxu0
    %v8049 = vadd.f32 %v7850, %v8048
    %8050 = vmatprep.mubr.f32.mxu0 0.0
    %8051 = vmatmul.mubr.f32.gmra.mxu0 %v7833
    %v8052 = vpop.f32.mrf.mxu0
    %v8053 = vadd.f32 %v7846, %v8052
    %v8054 = vpop.f32.mrf.mxu0
    %v8055 = vadd.f32 %v7850, %v8054
    %8056 = vdwg.mxu0
    %v8057 = vmul.f32 %v7922, 0.5
    %v8058 = vmul.f32 %v7924, 0.5
    %v8059 = vmul.f32 %v8023, 0.5
    %v8060 = vmul.f32 %v8025, 0.5
    %v8061 = vmul.f32 %v7928, 0.5
    %v8062 = vmul.f32 %v7930, 0.5
    %v8063 = vmul.f32 %v8029, 0.5
    %v8064 = vmul.f32 %v8031, 0.5
    %v8065 = vmul.f32 %v7934, 0.5
    %v8066 = vmul.f32 %v7936, 0.5
    %v8067 = vmul.f32 %v8035, 0.5
    %v8068 = vmul.f32 %v8037, 0.5
    %v8069 = vmul.f32 %v7940, 0.5
    %v8070 = vmul.f32 %v7942, 0.5
    %v8071 = vmul.f32 %v8041, 0.5
    %v8072 = vmul.f32 %v8043, 0.5
    %v8073 = vmul.f32 %v7946, 0.5
    %v8074 = vmul.f32 %v7948, 0.5
    %v8075 = vmul.f32 %v8047, 0.5
    %v8076 = vmul.f32 %v8049, 0.5
    %v8077 = vmul.f32 %v7952, 0.5
    %v8078 = vmul.f32 %v7954, 0.5
    %v8079 = vmul.f32 %v8053, 0.5
    %v8080 = vmul.f32 %v8055, 0.5
    %v8081 = vmul.f32 %v7922, 0.70710677
    %v8082 = vmul.f32 %v7924, 0.70710677
    %v8083 = vmul.f32 %v8023, 0.70710677
    %v8084 = vmul.f32 %v8025, 0.70710677
    %v8085 = vmul.f32 %v7928, 0.70710677
    %v8086 = vmul.f32 %v7930, 0.70710677
    %v8087 = vmul.f32 %v8029, 0.70710677
    %v8088 = vmul.f32 %v8031, 0.70710677
    %v8089 = vmul.f32 %v7934, 0.70710677
    %v8090 = vmul.f32 %v7936, 0.70710677
    %v8091 = vmul.f32 %v8035, 0.70710677
    %v8092 = vmul.f32 %v8037, 0.70710677
    %v8093 = vmul.f32 %v7940, 0.70710677
    %v8094 = vmul.f32 %v7942, 0.70710677
    %v8095 = vmul.f32 %v8041, 0.70710677
    %v8096 = vmul.f32 %v8043, 0.70710677
    %v8097 = vmul.f32 %v7946, 0.70710677
    %v8098 = vmul.f32 %v7948, 0.70710677
    %v8099 = vmul.f32 %v8047, 0.70710677
    %v8100 = vmul.f32 %v8049, 0.70710677
    %v8101 = vmul.f32 %v7952, 0.70710677
    %v8102 = vmul.f32 %v7954, 0.70710677
    %v8103 = vmul.f32 %v8053, 0.70710677
    %v8104 = vmul.f32 %v8055, 0.70710677
    %v8105 = vand.u32 2147483647, %v8081
    %v8106 = vand.u32 2147483647, %v8082
    %v8107 = vand.u32 2147483647, %v8083
    %v8108 = vand.u32 2147483647, %v8084
    %v8109 = vand.u32 2147483647, %v8085
    %v8110 = vand.u32 2147483647, %v8086
    %v8111 = vand.u32 2147483647, %v8087
    %v8112 = vand.u32 2147483647, %v8088
    %v8113 = vand.u32 2147483647, %v8089
    %v8114 = vand.u32 2147483647, %v8090
    %v8115 = vand.u32 2147483647, %v8091
    %v8116 = vand.u32 2147483647, %v8092
    %v8117 = vand.u32 2147483647, %v8093
    %v8118 = vand.u32 2147483647, %v8094
    %v8119 = vand.u32 2147483647, %v8095
    %v8120 = vand.u32 2147483647, %v8096
    %v8121 = vand.u32 2147483647, %v8097
    %v8122 = vand.u32 2147483647, %v8098
    %v8123 = vand.u32 2147483647, %v8099
    %v8124 = vand.u32 2147483647, %v8100
    %v8125 = vand.u32 2147483647, %v8101
    %v8126 = vand.u32 2147483647, %v8102
    %v8127 = vand.u32 2147483647, %v8103
    %v8128 = vand.u32 2147483647, %v8104
    %v8129 = vmul.f32 %v8105, 0.3275911
    %v8130 = vmul.f32 %v8106, 0.3275911
    %v8131 = vmul.f32 %v8107, 0.3275911
    %v8132 = vmul.f32 %v8108, 0.3275911
    %v8133 = vmul.f32 %v8109, 0.3275911
    %v8134 = vmul.f32 %v8110, 0.3275911
    %v8135 = vmul.f32 %v8111, 0.3275911
    %v8136 = vmul.f32 %v8112, 0.3275911
    %v8137 = vmul.f32 %v8113, 0.3275911
    %v8138 = vmul.f32 %v8114, 0.3275911
    %v8139 = vmul.f32 %v8115, 0.3275911
    %v8140 = vmul.f32 %v8116, 0.3275911
    %v8141 = vmul.f32 %v8117, 0.3275911
    %v8142 = vmul.f32 %v8118, 0.3275911
    %v8143 = vmul.f32 %v8119, 0.3275911
    %v8144 = vmul.f32 %v8120, 0.3275911
    %v8145 = vmul.f32 %v8121, 0.3275911
    %v8146 = vmul.f32 %v8122, 0.3275911
    %v8147 = vmul.f32 %v8123, 0.3275911
    %v8148 = vmul.f32 %v8124, 0.3275911
    %v8149 = vmul.f32 %v8125, 0.3275911
    %v8150 = vmul.f32 %v8126, 0.3275911
    %v8151 = vmul.f32 %v8127, 0.3275911
    %v8152 = vmul.f32 %v8128, 0.3275911
    %v8153 = vadd.f32 %v8129, 1.0
    %v8154 = vadd.f32 %v8130, 1.0
    %v8155 = vadd.f32 %v8131, 1.0
    %v8156 = vadd.f32 %v8132, 1.0
    %v8157 = vadd.f32 %v8133, 1.0
    %v8158 = vadd.f32 %v8134, 1.0
    %v8159 = vadd.f32 %v8135, 1.0
    %v8160 = vadd.f32 %v8136, 1.0
    %v8161 = vadd.f32 %v8137, 1.0
    %v8162 = vadd.f32 %v8138, 1.0
    %v8163 = vadd.f32 %v8139, 1.0
    %v8164 = vadd.f32 %v8140, 1.0
    %v8165 = vadd.f32 %v8141, 1.0
    %v8166 = vadd.f32 %v8142, 1.0
    %v8167 = vadd.f32 %v8143, 1.0
    %v8168 = vadd.f32 %v8144, 1.0
    %v8169 = vadd.f32 %v8145, 1.0
    %v8170 = vadd.f32 %v8146, 1.0
    %v8171 = vadd.f32 %v8147, 1.0
    %v8172 = vadd.f32 %v8148, 1.0
    %v8173 = vadd.f32 %v8149, 1.0
    %v8174 = vadd.f32 %v8150, 1.0
    %v8175 = vadd.f32 %v8151, 1.0
    %v8176 = vadd.f32 %v8152, 1.0
    %v8177 = vrcp.pop %v8153
    %v8178 = vmul.f32 1.0, %v8177
    %v8179 = vrcp.pop %v8154
    %v8180 = vmul.f32 1.0, %v8179
    %v8181 = vrcp.pop %v8155
    %v8182 = vmul.f32 1.0, %v8181
    %v8183 = vrcp.pop %v8156
    %v8184 = vmul.f32 1.0, %v8183
    %v8185 = vrcp.pop %v8157
    %v8186 = vmul.f32 1.0, %v8185
    %v8187 = vrcp.pop %v8158
    %v8188 = vmul.f32 1.0, %v8187
    %v8189 = vrcp.pop %v8159
    %v8190 = vmul.f32 1.0, %v8189
    %v8191 = vrcp.pop %v8160
    %v8192 = vmul.f32 1.0, %v8191
    %v8193 = vrcp.pop %v8161
    %v8194 = vmul.f32 1.0, %v8193
    %v8195 = vrcp.pop %v8162
    %v8196 = vmul.f32 1.0, %v8195
    %v8197 = vrcp.pop %v8163
    %v8198 = vmul.f32 1.0, %v8197
    %v8199 = vrcp.pop %v8164
    %v8200 = vmul.f32 1.0, %v8199
    %v8201 = vrcp.pop %v8165
    %v8202 = vmul.f32 1.0, %v8201
    %v8203 = vrcp.pop %v8166
    %v8204 = vmul.f32 1.0, %v8203
    %v8205 = vrcp.pop %v8167
    %v8206 = vmul.f32 1.0, %v8205
    %v8207 = vrcp.pop %v8168
    %v8208 = vmul.f32 1.0, %v8207
    %v8209 = vrcp.pop %v8169
    %v8210 = vmul.f32 1.0, %v8209
    %v8211 = vrcp.pop %v8170
    %v8212 = vmul.f32 1.0, %v8211
    %v8213 = vrcp.pop %v8171
    %v8214 = vmul.f32 1.0, %v8213
    %v8215 = vrcp.pop %v8172
    %v8216 = vmul.f32 1.0, %v8215
    %v8217 = vrcp.pop %v8173
    %v8218 = vmul.f32 1.0, %v8217
    %v8219 = vrcp.pop %v8174
    %v8220 = vmul.f32 1.0, %v8219
    %v8221 = vrcp.pop %v8175
    %v8222 = vmul.f32 1.0, %v8221
    %v8223 = vrcp.pop %v8176
    %v8224 = vmul.f32 1.0, %v8223
    %v8225 = vmul.f32 %v8178, 1.0614054
    %v8226 = vmul.f32 %v8180, 1.0614054
    %v8227 = vmul.f32 %v8182, 1.0614054
    %v8228 = vmul.f32 %v8184, 1.0614054
    %v8229 = vmul.f32 %v8186, 1.0614054
    %v8230 = vmul.f32 %v8188, 1.0614054
    %v8231 = vmul.f32 %v8190, 1.0614054
    %v8232 = vmul.f32 %v8192, 1.0614054
    %v8233 = vmul.f32 %v8194, 1.0614054
    %v8234 = vmul.f32 %v8196, 1.0614054
    %v8235 = vmul.f32 %v8198, 1.0614054
    %v8236 = vmul.f32 %v8200, 1.0614054
    %v8237 = vmul.f32 %v8202, 1.0614054
    %v8238 = vmul.f32 %v8204, 1.0614054
    %v8239 = vmul.f32 %v8206, 1.0614054
    %v8240 = vmul.f32 %v8208, 1.0614054
    %v8241 = vmul.f32 %v8210, 1.0614054
    %v8242 = vmul.f32 %v8212, 1.0614054
    %v8243 = vmul.f32 %v8214, 1.0614054
    %v8244 = vmul.f32 %v8216, 1.0614054
    %v8245 = vmul.f32 %v8218, 1.0614054
    %v8246 = vmul.f32 %v8220, 1.0614054
    %v8247 = vmul.f32 %v8222, 1.0614054
    %v8248 = vmul.f32 %v8224, 1.0614054
    %v8249 = vadd.f32 %v8225, -1.4531521
    %v8250 = vadd.f32 %v8226, -1.4531521
    %v8251 = vadd.f32 %v8227, -1.4531521
    %v8252 = vadd.f32 %v8228, -1.4531521
    %v8253 = vadd.f32 %v8229, -1.4531521
    %v8254 = vadd.f32 %v8230, -1.4531521
    %v8255 = vadd.f32 %v8231, -1.4531521
    %v8256 = vadd.f32 %v8232, -1.4531521
    %v8257 = vadd.f32 %v8233, -1.4531521
    %v8258 = vadd.f32 %v8234, -1.4531521
    %v8259 = vadd.f32 %v8235, -1.4531521
    %v8260 = vadd.f32 %v8236, -1.4531521
    %v8261 = vadd.f32 %v8237, -1.4531521
    %v8262 = vadd.f32 %v8238, -1.4531521
    %v8263 = vadd.f32 %v8239, -1.4531521
    %v8264 = vadd.f32 %v8240, -1.4531521
    %v8265 = vadd.f32 %v8241, -1.4531521
    %v8266 = vadd.f32 %v8242, -1.4531521
    %v8267 = vadd.f32 %v8243, -1.4531521
    %v8268 = vadd.f32 %v8244, -1.4531521
    %v8269 = vadd.f32 %v8245, -1.4531521
    %v8270 = vadd.f32 %v8246, -1.4531521
    %v8271 = vadd.f32 %v8247, -1.4531521
    %v8272 = vadd.f32 %v8248, -1.4531521
    %v8273 = vmul.f32 %v8249, %v8178
    %v8274 = vmul.f32 %v8250, %v8180
    %v8275 = vmul.f32 %v8251, %v8182
    %v8276 = vmul.f32 %v8252, %v8184
    %v8277 = vmul.f32 %v8253, %v8186
    %v8278 = vmul.f32 %v8254, %v8188
    %v8279 = vmul.f32 %v8255, %v8190
    %v8280 = vmul.f32 %v8256, %v8192
    %v8281 = vmul.f32 %v8257, %v8194
    %v8282 = vmul.f32 %v8258, %v8196
    %v8283 = vmul.f32 %v8259, %v8198
    %v8284 = vmul.f32 %v8260, %v8200
    %v8285 = vmul.f32 %v8261, %v8202
    %v8286 = vmul.f32 %v8262, %v8204
    %v8287 = vmul.f32 %v8263, %v8206
    %v8288 = vmul.f32 %v8264, %v8208
    %v8289 = vmul.f32 %v8265, %v8210
    %v8290 = vmul.f32 %v8266, %v8212
    %v8291 = vmul.f32 %v8267, %v8214
    %v8292 = vmul.f32 %v8268, %v8216
    %v8293 = vmul.f32 %v8269, %v8218
    %v8294 = vmul.f32 %v8270, %v8220
    %v8295 = vmul.f32 %v8271, %v8222
    %v8296 = vmul.f32 %v8272, %v8224
    %v8297 = vadd.f32 %v8273, 1.4214138
    %v8298 = vadd.f32 %v8274, 1.4214138
    %v8299 = vadd.f32 %v8275, 1.4214138
    %v8300 = vadd.f32 %v8276, 1.4214138
    %v8301 = vadd.f32 %v8277, 1.4214138
    %v8302 = vadd.f32 %v8278, 1.4214138
    %v8303 = vadd.f32 %v8279, 1.4214138
    %v8304 = vadd.f32 %v8280, 1.4214138
    %v8305 = vadd.f32 %v8281, 1.4214138
    %v8306 = vadd.f32 %v8282, 1.4214138
    %v8307 = vadd.f32 %v8283, 1.4214138
    %v8308 = vadd.f32 %v8284, 1.4214138
    %v8309 = vadd.f32 %v8285, 1.4214138
    %v8310 = vadd.f32 %v8286, 1.4214138
    %v8311 = vadd.f32 %v8287, 1.4214138
    %v8312 = vadd.f32 %v8288, 1.4214138
    %v8313 = vadd.f32 %v8289, 1.4214138
    %v8314 = vadd.f32 %v8290, 1.4214138
    %v8315 = vadd.f32 %v8291, 1.4214138
    %v8316 = vadd.f32 %v8292, 1.4214138
    %v8317 = vadd.f32 %v8293, 1.4214138
    %v8318 = vadd.f32 %v8294, 1.4214138
    %v8319 = vadd.f32 %v8295, 1.4214138
    %v8320 = vadd.f32 %v8296, 1.4214138
    %v8321 = vmul.f32 %v8297, %v8178
    %v8322 = vmul.f32 %v8298, %v8180
    %v8323 = vmul.f32 %v8299, %v8182
    %v8324 = vmul.f32 %v8300, %v8184
    %v8325 = vmul.f32 %v8301, %v8186
    %v8326 = vmul.f32 %v8302, %v8188
    %v8327 = vmul.f32 %v8303, %v8190
    %v8328 = vmul.f32 %v8304, %v8192
    %v8329 = vmul.f32 %v8305, %v8194
    %v8330 = vmul.f32 %v8306, %v8196
    %v8331 = vmul.f32 %v8307, %v8198
    %v8332 = vmul.f32 %v8308, %v8200
    %v8333 = vmul.f32 %v8309, %v8202
    %v8334 = vmul.f32 %v8310, %v8204
    %v8335 = vmul.f32 %v8311, %v8206
    %v8336 = vmul.f32 %v8312, %v8208
    %v8337 = vmul.f32 %v8313, %v8210
    %v8338 = vmul.f32 %v8314, %v8212
    %v8339 = vmul.f32 %v8315, %v8214
    %v8340 = vmul.f32 %v8316, %v8216
    %v8341 = vmul.f32 %v8317, %v8218
    %v8342 = vmul.f32 %v8318, %v8220
    %v8343 = vmul.f32 %v8319, %v8222
    %v8344 = vmul.f32 %v8320, %v8224
    %v8345 = vadd.f32 %v8321, -0.28449672
    %v8346 = vadd.f32 %v8322, -0.28449672
    %v8347 = vadd.f32 %v8323, -0.28449672
    %v8348 = vadd.f32 %v8324, -0.28449672
    %v8349 = vadd.f32 %v8325, -0.28449672
    %v8350 = vadd.f32 %v8326, -0.28449672
    %v8351 = vadd.f32 %v8327, -0.28449672
    %v8352 = vadd.f32 %v8328, -0.28449672
    %v8353 = vadd.f32 %v8329, -0.28449672
    %v8354 = vadd.f32 %v8330, -0.28449672
    %v8355 = vadd.f32 %v8331, -0.28449672
    %v8356 = vadd.f32 %v8332, -0.28449672
    %v8357 = vadd.f32 %v8333, -0.28449672
    %v8358 = vadd.f32 %v8334, -0.28449672
    %v8359 = vadd.f32 %v8335, -0.28449672
    %v8360 = vadd.f32 %v8336, -0.28449672
    %v8361 = vadd.f32 %v8337, -0.28449672
    %v8362 = vadd.f32 %v8338, -0.28449672
    %v8363 = vadd.f32 %v8339, -0.28449672
    %v8364 = vadd.f32 %v8340, -0.28449672
    %v8365 = vadd.f32 %v8341, -0.28449672
    %v8366 = vadd.f32 %v8342, -0.28449672
    %v8367 = vadd.f32 %v8343, -0.28449672
    %v8368 = vadd.f32 %v8344, -0.28449672
    %v8369 = vmul.f32 %v8345, %v8178
    %v8370 = vmul.f32 %v8346, %v8180
    %v8371 = vmul.f32 %v8347, %v8182
    %v8372 = vmul.f32 %v8348, %v8184
    %v8373 = vmul.f32 %v8349, %v8186
    %v8374 = vmul.f32 %v8350, %v8188
    %v8375 = vmul.f32 %v8351, %v8190
    %v8376 = vmul.f32 %v8352, %v8192
    %v8377 = vmul.f32 %v8353, %v8194
    %v8378 = vmul.f32 %v8354, %v8196
    %v8379 = vmul.f32 %v8355, %v8198
    %v8380 = vmul.f32 %v8356, %v8200
    %v8381 = vmul.f32 %v8357, %v8202
    %v8382 = vmul.f32 %v8358, %v8204
    %v8383 = vmul.f32 %v8359, %v8206
    %v8384 = vmul.f32 %v8360, %v8208
    %v8385 = vmul.f32 %v8361, %v8210
    %v8386 = vmul.f32 %v8362, %v8212
    %v8387 = vmul.f32 %v8363, %v8214
    %v8388 = vmul.f32 %v8364, %v8216
    %v8389 = vmul.f32 %v8365, %v8218
    %v8390 = vmul.f32 %v8366, %v8220
    %v8391 = vmul.f32 %v8367, %v8222
    %v8392 = vmul.f32 %v8368, %v8224
    %v8393 = vadd.f32 %v8369, 0.2548296
    %v8394 = vadd.f32 %v8370, 0.2548296
    %v8395 = vadd.f32 %v8371, 0.2548296
    %v8396 = vadd.f32 %v8372, 0.2548296
    %v8397 = vadd.f32 %v8373, 0.2548296
    %v8398 = vadd.f32 %v8374, 0.2548296
    %v8399 = vadd.f32 %v8375, 0.2548296
    %v8400 = vadd.f32 %v8376, 0.2548296
    %v8401 = vadd.f32 %v8377, 0.2548296
    %v8402 = vadd.f32 %v8378, 0.2548296
    %v8403 = vadd.f32 %v8379, 0.2548296
    %v8404 = vadd.f32 %v8380, 0.2548296
    %v8405 = vadd.f32 %v8381, 0.2548296
    %v8406 = vadd.f32 %v8382, 0.2548296
    %v8407 = vadd.f32 %v8383, 0.2548296
    %v8408 = vadd.f32 %v8384, 0.2548296
    %v8409 = vadd.f32 %v8385, 0.2548296
    %v8410 = vadd.f32 %v8386, 0.2548296
    %v8411 = vadd.f32 %v8387, 0.2548296
    %v8412 = vadd.f32 %v8388, 0.2548296
    %v8413 = vadd.f32 %v8389, 0.2548296
    %v8414 = vadd.f32 %v8390, 0.2548296
    %v8415 = vadd.f32 %v8391, 0.2548296
    %v8416 = vadd.f32 %v8392, 0.2548296
    %v8417 = vmul.f32 %v8393, %v8178
    %v8418 = vmul.f32 %v8394, %v8180
    %v8419 = vmul.f32 %v8395, %v8182
    %v8420 = vmul.f32 %v8396, %v8184
    %v8421 = vmul.f32 %v8397, %v8186
    %v8422 = vmul.f32 %v8398, %v8188
    %v8423 = vmul.f32 %v8399, %v8190
    %v8424 = vmul.f32 %v8400, %v8192
    %v8425 = vmul.f32 %v8401, %v8194
    %v8426 = vmul.f32 %v8402, %v8196
    %v8427 = vmul.f32 %v8403, %v8198
    %v8428 = vmul.f32 %v8404, %v8200
    %v8429 = vmul.f32 %v8405, %v8202
    %v8430 = vmul.f32 %v8406, %v8204
    %v8431 = vmul.f32 %v8407, %v8206
    %v8432 = vmul.f32 %v8408, %v8208
    %v8433 = vmul.f32 %v8409, %v8210
    %v8434 = vmul.f32 %v8410, %v8212
    %v8435 = vmul.f32 %v8411, %v8214
    %v8436 = vmul.f32 %v8412, %v8216
    %v8437 = vmul.f32 %v8413, %v8218
    %v8438 = vmul.f32 %v8414, %v8220
    %v8439 = vmul.f32 %v8415, %v8222
    %v8440 = vmul.f32 %v8416, %v8224
    %v8441 = vsub.f32 0.0, %v8105
    %v8442 = vsub.f32 0.0, %v8106
    %v8443 = vsub.f32 0.0, %v8107
    %v8444 = vsub.f32 0.0, %v8108
    %v8445 = vsub.f32 0.0, %v8109
    %v8446 = vsub.f32 0.0, %v8110
    %v8447 = vsub.f32 0.0, %v8111
    %v8448 = vsub.f32 0.0, %v8112
    %v8449 = vsub.f32 0.0, %v8113
    %v8450 = vsub.f32 0.0, %v8114
    %v8451 = vsub.f32 0.0, %v8115
    %v8452 = vsub.f32 0.0, %v8116
    %v8453 = vsub.f32 0.0, %v8117
    %v8454 = vsub.f32 0.0, %v8118
    %v8455 = vsub.f32 0.0, %v8119
    %v8456 = vsub.f32 0.0, %v8120
    %v8457 = vsub.f32 0.0, %v8121
    %v8458 = vsub.f32 0.0, %v8122
    %v8459 = vsub.f32 0.0, %v8123
    %v8460 = vsub.f32 0.0, %v8124
    %v8461 = vsub.f32 0.0, %v8125
    %v8462 = vsub.f32 0.0, %v8126
    %v8463 = vsub.f32 0.0, %v8127
    %v8464 = vsub.f32 0.0, %v8128
    %v8465 = vmul.f32 %v8441, %v8105
    %v8466 = vmul.f32 %v8442, %v8106
    %v8467 = vmul.f32 %v8443, %v8107
    %v8468 = vmul.f32 %v8444, %v8108
    %v8469 = vmul.f32 %v8445, %v8109
    %v8470 = vmul.f32 %v8446, %v8110
    %v8471 = vmul.f32 %v8447, %v8111
    %v8472 = vmul.f32 %v8448, %v8112
    %v8473 = vmul.f32 %v8449, %v8113
    %v8474 = vmul.f32 %v8450, %v8114
    %v8475 = vmul.f32 %v8451, %v8115
    %v8476 = vmul.f32 %v8452, %v8116
    %v8477 = vmul.f32 %v8453, %v8117
    %v8478 = vmul.f32 %v8454, %v8118
    %v8479 = vmul.f32 %v8455, %v8119
    %v8480 = vmul.f32 %v8456, %v8120
    %v8481 = vmul.f32 %v8457, %v8121
    %v8482 = vmul.f32 %v8458, %v8122
    %v8483 = vmul.f32 %v8459, %v8123
    %v8484 = vmul.f32 %v8460, %v8124
    %v8485 = vmul.f32 %v8461, %v8125
    %v8486 = vmul.f32 %v8462, %v8126
    %v8487 = vmul.f32 %v8463, %v8127
    %v8488 = vmul.f32 %v8464, %v8128
    %v8489 = vmul.f32 %v8465, 1.442695
    %v8490 = vpow.pop %v8489
    %v8491 = vmul.f32 %v8466, 1.442695
    %v8492 = vpow.pop %v8491
    %v8493 = vmul.f32 %v8467, 1.442695
    %v8494 = vpow.pop %v8493
    %v8495 = vmul.f32 %v8468, 1.442695
    %v8496 = vpow.pop %v8495
    %v8497 = vmul.f32 %v8469, 1.442695
    %v8498 = vpow.pop %v8497
    %v8499 = vmul.f32 %v8470, 1.442695
    %v8500 = vpow.pop %v8499
    %v8501 = vmul.f32 %v8471, 1.442695
    %v8502 = vpow.pop %v8501
    %v8503 = vmul.f32 %v8472, 1.442695
    %v8504 = vpow.pop %v8503
    %v8505 = vmul.f32 %v8473, 1.442695
    %v8506 = vpow.pop %v8505
    %v8507 = vmul.f32 %v8474, 1.442695
    %v8508 = vpow.pop %v8507
    %v8509 = vmul.f32 %v8475, 1.442695
    %v8510 = vpow.pop %v8509
    %v8511 = vmul.f32 %v8476, 1.442695
    %v8512 = vpow.pop %v8511
    %v8513 = vmul.f32 %v8477, 1.442695
    %v8514 = vpow.pop %v8513
    %v8515 = vmul.f32 %v8478, 1.442695
    %v8516 = vpow.pop %v8515
    %v8517 = vmul.f32 %v8479, 1.442695
    %v8518 = vpow.pop %v8517
    %v8519 = vmul.f32 %v8480, 1.442695
    %v8520 = vpow.pop %v8519
    %v8521 = vmul.f32 %v8481, 1.442695
    %v8522 = vpow.pop %v8521
    %v8523 = vmul.f32 %v8482, 1.442695
    %v8524 = vpow.pop %v8523
    %v8525 = vmul.f32 %v8483, 1.442695
    %v8526 = vpow.pop %v8525
    %v8527 = vmul.f32 %v8484, 1.442695
    %v8528 = vpow.pop %v8527
    %v8529 = vmul.f32 %v8485, 1.442695
    %v8530 = vpow.pop %v8529
    %v8531 = vmul.f32 %v8486, 1.442695
    %v8532 = vpow.pop %v8531
    %v8533 = vmul.f32 %v8487, 1.442695
    %v8534 = vpow.pop %v8533
    %v8535 = vmul.f32 %v8488, 1.442695
    %v8536 = vpow.pop %v8535
    %v8537 = vmul.f32 %v8417, %v8490
    %v8538 = vmul.f32 %v8418, %v8492
    %v8539 = vmul.f32 %v8419, %v8494
    %v8540 = vmul.f32 %v8420, %v8496
    %v8541 = vmul.f32 %v8421, %v8498
    %v8542 = vmul.f32 %v8422, %v8500
    %v8543 = vmul.f32 %v8423, %v8502
    %v8544 = vmul.f32 %v8424, %v8504
    %v8545 = vmul.f32 %v8425, %v8506
    %v8546 = vmul.f32 %v8426, %v8508
    %v8547 = vmul.f32 %v8427, %v8510
    %v8548 = vmul.f32 %v8428, %v8512
    %v8549 = vmul.f32 %v8429, %v8514
    %v8550 = vmul.f32 %v8430, %v8516
    %v8551 = vmul.f32 %v8431, %v8518
    %v8552 = vmul.f32 %v8432, %v8520
    %v8553 = vmul.f32 %v8433, %v8522
    %v8554 = vmul.f32 %v8434, %v8524
    %v8555 = vmul.f32 %v8435, %v8526
    %v8556 = vmul.f32 %v8436, %v8528
    %v8557 = vmul.f32 %v8437, %v8530
    %v8558 = vmul.f32 %v8438, %v8532
    %v8559 = vmul.f32 %v8439, %v8534
    %v8560 = vmul.f32 %v8440, %v8536
    %v8561 = vsub.f32 1.0, %v8537
    %v8562 = vsub.f32 1.0, %v8538
    %v8563 = vsub.f32 1.0, %v8539
    %v8564 = vsub.f32 1.0, %v8540
    %v8565 = vsub.f32 1.0, %v8541
    %v8566 = vsub.f32 1.0, %v8542
    %v8567 = vsub.f32 1.0, %v8543
    %v8568 = vsub.f32 1.0, %v8544
    %v8569 = vsub.f32 1.0, %v8545
    %v8570 = vsub.f32 1.0, %v8546
    %v8571 = vsub.f32 1.0, %v8547
    %v8572 = vsub.f32 1.0, %v8548
    %v8573 = vsub.f32 1.0, %v8549
    %v8574 = vsub.f32 1.0, %v8550
    %v8575 = vsub.f32 1.0, %v8551
    %v8576 = vsub.f32 1.0, %v8552
    %v8577 = vsub.f32 1.0, %v8553
    %v8578 = vsub.f32 1.0, %v8554
    %v8579 = vsub.f32 1.0, %v8555
    %v8580 = vsub.f32 1.0, %v8556
    %v8581 = vsub.f32 1.0, %v8557
    %v8582 = vsub.f32 1.0, %v8558
    %v8583 = vsub.f32 1.0, %v8559
    %v8584 = vsub.f32 1.0, %v8560
    %vm8585 = vcmp.ge.f32.partialorder %v8081, 0.0
    %vm8586 = vcmp.ge.f32.partialorder %v8082, 0.0
    %vm8587 = vcmp.ge.f32.partialorder %v8083, 0.0
    %vm8588 = vcmp.ge.f32.partialorder %v8084, 0.0
    %vm8589 = vcmp.ge.f32.partialorder %v8085, 0.0
    %vm8590 = vcmp.ge.f32.partialorder %v8086, 0.0
    %vm8591 = vcmp.ge.f32.partialorder %v8087, 0.0
    %vm8592 = vcmp.ge.f32.partialorder %v8088, 0.0
    %vm8593 = vcmp.ge.f32.partialorder %v8089, 0.0
    %vm8594 = vcmp.ge.f32.partialorder %v8090, 0.0
    %vm8595 = vcmp.ge.f32.partialorder %v8091, 0.0
    %vm8596 = vcmp.ge.f32.partialorder %v8092, 0.0
    %vm8597 = vcmp.ge.f32.partialorder %v8093, 0.0
    %vm8598 = vcmp.ge.f32.partialorder %v8094, 0.0
    %vm8599 = vcmp.ge.f32.partialorder %v8095, 0.0
    %vm8600 = vcmp.ge.f32.partialorder %v8096, 0.0
    %vm8601 = vcmp.ge.f32.partialorder %v8097, 0.0
    %vm8602 = vcmp.ge.f32.partialorder %v8098, 0.0
    %vm8603 = vcmp.ge.f32.partialorder %v8099, 0.0
    %vm8604 = vcmp.ge.f32.partialorder %v8100, 0.0
    %vm8605 = vcmp.ge.f32.partialorder %v8101, 0.0
    %vm8606 = vcmp.ge.f32.partialorder %v8102, 0.0
    %vm8607 = vcmp.ge.f32.partialorder %v8103, 0.0
    %vm8608 = vcmp.ge.f32.partialorder %v8104, 0.0
    %v8609 = vsub.f32 0.0, %v8561
    %v8610 = vsub.f32 0.0, %v8562
    %v8611 = vsub.f32 0.0, %v8563
    %v8612 = vsub.f32 0.0, %v8564
    %v8613 = vsub.f32 0.0, %v8565
    %v8614 = vsub.f32 0.0, %v8566
    %v8615 = vsub.f32 0.0, %v8567
    %v8616 = vsub.f32 0.0, %v8568
    %v8617 = vsub.f32 0.0, %v8569
    %v8618 = vsub.f32 0.0, %v8570
    %v8619 = vsub.f32 0.0, %v8571
    %v8620 = vsub.f32 0.0, %v8572
    %v8621 = vsub.f32 0.0, %v8573
    %v8622 = vsub.f32 0.0, %v8574
    %v8623 = vsub.f32 0.0, %v8575
    %v8624 = vsub.f32 0.0, %v8576
    %v8625 = vsub.f32 0.0, %v8577
    %v8626 = vsub.f32 0.0, %v8578
    %v8627 = vsub.f32 0.0, %v8579
    %v8628 = vsub.f32 0.0, %v8580
    %v8629 = vsub.f32 0.0, %v8581
    %v8630 = vsub.f32 0.0, %v8582
    %v8631 = vsub.f32 0.0, %v8583
    %v8632 = vsub.f32 0.0, %v8584
    %v8633 = vsel %vm8585, %v8561, %v8609
    %v8634 = vsel %vm8586, %v8562, %v8610
    %v8635 = vsel %vm8587, %v8563, %v8611
    %v8636 = vsel %vm8588, %v8564, %v8612
    %v8637 = vsel %vm8589, %v8565, %v8613
    %v8638 = vsel %vm8590, %v8566, %v8614
    %v8639 = vsel %vm8591, %v8567, %v8615
    %v8640 = vsel %vm8592, %v8568, %v8616
    %v8641 = vsel %vm8593, %v8569, %v8617
    %v8642 = vsel %vm8594, %v8570, %v8618
    %v8643 = vsel %vm8595, %v8571, %v8619
    %v8644 = vsel %vm8596, %v8572, %v8620
    %v8645 = vsel %vm8597, %v8573, %v8621
    %v8646 = vsel %vm8598, %v8574, %v8622
    %v8647 = vsel %vm8599, %v8575, %v8623
    %v8648 = vsel %vm8600, %v8576, %v8624
    %v8649 = vsel %vm8601, %v8577, %v8625
    %v8650 = vsel %vm8602, %v8578, %v8626
    %v8651 = vsel %vm8603, %v8579, %v8627
    %v8652 = vsel %vm8604, %v8580, %v8628
    %v8653 = vsel %vm8605, %v8581, %v8629
    %v8654 = vsel %vm8606, %v8582, %v8630
    %v8655 = vsel %vm8607, %v8583, %v8631
    %v8656 = vsel %vm8608, %v8584, %v8632
    %v8657 = vadd.f32 %v8633, 1.0
    %v8658 = vadd.f32 %v8634, 1.0
    %v8659 = vadd.f32 %v8635, 1.0
    %v8660 = vadd.f32 %v8636, 1.0
    %v8661 = vadd.f32 %v8637, 1.0
    %v8662 = vadd.f32 %v8638, 1.0
    %v8663 = vadd.f32 %v8639, 1.0
    %v8664 = vadd.f32 %v8640, 1.0
    %v8665 = vadd.f32 %v8641, 1.0
    %v8666 = vadd.f32 %v8642, 1.0
    %v8667 = vadd.f32 %v8643, 1.0
    %v8668 = vadd.f32 %v8644, 1.0
    %v8669 = vadd.f32 %v8645, 1.0
    %v8670 = vadd.f32 %v8646, 1.0
    %v8671 = vadd.f32 %v8647, 1.0
    %v8672 = vadd.f32 %v8648, 1.0
    %v8673 = vadd.f32 %v8649, 1.0
    %v8674 = vadd.f32 %v8650, 1.0
    %v8675 = vadd.f32 %v8651, 1.0
    %v8676 = vadd.f32 %v8652, 1.0
    %v8677 = vadd.f32 %v8653, 1.0
    %v8678 = vadd.f32 %v8654, 1.0
    %v8679 = vadd.f32 %v8655, 1.0
    %v8680 = vadd.f32 %v8656, 1.0
    %v8681 = vmul.f32 %v8057, %v8657
    %v8682 = vmul.f32 %v8058, %v8658
    %v8683 = vmul.f32 %v8059, %v8659
    %v8684 = vmul.f32 %v8060, %v8660
    %v8685 = vmul.f32 %v8061, %v8661
    %v8686 = vmul.f32 %v8062, %v8662
    %v8687 = vmul.f32 %v8063, %v8663
    %v8688 = vmul.f32 %v8064, %v8664
    %v8689 = vmul.f32 %v8065, %v8665
    %v8690 = vmul.f32 %v8066, %v8666
    %v8691 = vmul.f32 %v8067, %v8667
    %v8692 = vmul.f32 %v8068, %v8668
    %v8693 = vmul.f32 %v8069, %v8669
    %v8694 = vmul.f32 %v8070, %v8670
    %v8695 = vmul.f32 %v8071, %v8671
    %v8696 = vmul.f32 %v8072, %v8672
    %v8697 = vmul.f32 %v8073, %v8673
    %v8698 = vmul.f32 %v8074, %v8674
    %v8699 = vmul.f32 %v8075, %v8675
    %v8700 = vmul.f32 %v8076, %v8676
    %v8701 = vmul.f32 %v8077, %v8677
    %v8702 = vmul.f32 %v8078, %v8678
    %v8703 = vmul.f32 %v8079, %v8679
    %v8704 = vmul.f32 %v8080, %v8680
    %8705 = vmatprep.subr.mxu0 0.0
    %8706 = vmatpush1.msra.mxu0 %v4787
    %8707 = vmatprep.subr.mxu0 0.0
    %8708 = vmatpush1.msra.mxu0 %v4786
    %8709 = vmatprep.subr.mxu0 0.0
    %8710 = vmatpush1.msra.mxu0 %v4785
    %8711 = vmatprep.subr.mxu0 0.0
    %8712 = vmatpush1.msra.mxu0 %v4784
    %8713 = vmatprep.subr.mxu0 0.0
    %8714 = vmatpush1.msra.mxu0 %v4783
    %8715 = vmatprep.subr.mxu0 0.0
    %8716 = vmatpush1.msra.mxu0 %v4782
    %8717 = vmatprep.subr.mxu0 0.0
    %8718 = vmatpush1.msra.mxu0 %v4781
    %8719 = vmatprep.subr.mxu0 0.0
    %8720 = vmatpush1.msra.mxu0 %v4780
    %8721 = vmatprep.subr.mxu0 0.0
    %8722 = vmatpush1.msra.mxu0 %v4779
    %8723 = vmatprep.subr.mxu0 0.0
    %8724 = vmatpush1.msra.mxu0 %v4778
    %8725 = vmatprep.subr.mxu0 0.0
    %8726 = vmatpush1.msra.mxu0 %v4777
    %8727 = vmatprep.subr.mxu0 0.0
    %8728 = vmatpush1.msra.mxu0 %v4776
    %8729 = vmatprep.subr.mxu0 0.0
    %8730 = vmatpush1.msra.mxu0 %v4775
    %8731 = vmatprep.subr.mxu0 0.0
    %8732 = vmatpush1.msra.mxu0 %v4774
    %8733 = vmatprep.subr.mxu0 0.0
    %8734 = vmatpush1.msra.mxu0 %v4773
    %8735 = vmatprep.subr.mxu0 0.0
    %8736 = vmatpush1.msra.mxu0 %v4772
    %8737 = vmatprep.subr.mxu0 0.0
    %8738 = vmatpush2.msra.mxu0 %v4803
    %8739 = vmatprep.subr.mxu0 0.0
    %8740 = vmatpush2.msra.mxu0 %v4802
    %8741 = vmatprep.subr.mxu0 0.0
    %8742 = vmatpush2.msra.mxu0 %v4801
    %8743 = vmatprep.subr.mxu0 0.0
    %8744 = vmatpush2.msra.mxu0 %v4800
    %8745 = vmatprep.subr.mxu0 0.0
    %8746 = vmatpush2.msra.mxu0 %v4799
    %8747 = vmatprep.subr.mxu0 0.0
    %8748 = vmatpush2.msra.mxu0 %v4798
    %8749 = vmatprep.subr.mxu0 0.0
    %8750 = vmatpush2.msra.mxu0 %v4797
    %8751 = vmatprep.subr.mxu0 0.0
    %8752 = vmatpush2.msra.mxu0 %v4796
    %8753 = vmatprep.subr.mxu0 0.0
    %8754 = vmatpush2.msra.mxu0 %v4795
    %8755 = vmatprep.subr.mxu0 0.0
    %8756 = vmatpush2.msra.mxu0 %v4794
    %8757 = vmatprep.subr.mxu0 0.0
    %8758 = vmatpush2.msra.mxu0 %v4793
    %8759 = vmatprep.subr.mxu0 0.0
    %8760 = vmatpush2.msra.mxu0 %v4792
    %8761 = vmatprep.subr.mxu0 0.0
    %8762 = vmatpush2.msra.mxu0 %v4791
    %8763 = vmatprep.subr.mxu0 0.0
    %8764 = vmatpush2.msra.mxu0 %v4790
    %8765 = vmatprep.subr.mxu0 0.0
    %8766 = vmatpush2.msra.mxu0 %v4789
    %8767 = vmatprep.subr.mxu0 0.0
    %8768 = vmatpush2.msra.mxu0 %v4788
    %8769 = vmatprep.mubr.f32.mxu0 %v8682
    %8770 = vmatmul.mubr.f32.gmra.mxu0 %v8681
    %v8771 = vpop.f32.mrf.mxu0
    %v8772 = vadd.f32 0.0, %v8771
    %v8773 = vpop.f32.mrf.mxu0
    %8774 = vmatprep.mubr.f32.mxu0 %v8686
    %8775 = vmatmul.mubr.f32.gmra.mxu0 %v8685
    %v8776 = vpop.f32.mrf.mxu0
    %v8777 = vadd.f32 0.0, %v8776
    %v8778 = vpop.f32.mrf.mxu0
    %8779 = vmatprep.mubr.f32.mxu0 %v8690
    %8780 = vmatmul.mubr.f32.gmra.mxu0 %v8689
    %v8781 = vpop.f32.mrf.mxu0
    %v8782 = vadd.f32 0.0, %v8781
    %v8783 = vpop.f32.mrf.mxu0
    %8784 = vmatprep.mubr.f32.mxu0 %v8694
    %8785 = vmatmul.mubr.f32.gmra.mxu0 %v8693
    %v8786 = vpop.f32.mrf.mxu0
    %v8787 = vadd.f32 0.0, %v8786
    %v8788 = vpop.f32.mrf.mxu0
    %8789 = vmatprep.mubr.f32.mxu0 %v8698
    %8790 = vmatmul.mubr.f32.gmra.mxu0 %v8697
    %v8791 = vpop.f32.mrf.mxu0
    %v8792 = vadd.f32 0.0, %v8791
    %v8793 = vpop.f32.mrf.mxu0
    %8794 = vmatprep.mubr.f32.mxu0 %v8702
    %8795 = vmatmul.mubr.f32.gmra.mxu0 %v8701
    %v8796 = vpop.f32.mrf.mxu0
    %v8797 = vadd.f32 0.0, %v8796
    %v8798 = vpop.f32.mrf.mxu0
    %8799 = vdwg.mxu0
    %8800 = vmatprep.subr.mxu0 0.0
    %8801 = vmatpush1.msra.mxu0 %v4819
    %8802 = vmatprep.subr.mxu0 0.0
    %8803 = vmatpush1.msra.mxu0 %v4818
    %8804 = vmatprep.subr.mxu0 0.0
    %8805 = vmatpush1.msra.mxu0 %v4817
    %8806 = vmatprep.subr.mxu0 0.0
    %8807 = vmatpush1.msra.mxu0 %v4816
    %8808 = vmatprep.subr.mxu0 0.0
    %8809 = vmatpush1.msra.mxu0 %v4815
    %8810 = vmatprep.subr.mxu0 0.0
    %8811 = vmatpush1.msra.mxu0 %v4814
    %8812 = vmatprep.subr.mxu0 0.0
    %8813 = vmatpush1.msra.mxu0 %v4813
    %8814 = vmatprep.subr.mxu0 0.0
    %8815 = vmatpush1.msra.mxu0 %v4812
    %8816 = vmatprep.subr.mxu0 0.0
    %8817 = vmatpush1.msra.mxu0 %v4811
    %8818 = vmatprep.subr.mxu0 0.0
    %8819 = vmatpush1.msra.mxu0 %v4810
    %8820 = vmatprep.subr.mxu0 0.0
    %8821 = vmatpush1.msra.mxu0 %v4809
    %8822 = vmatprep.subr.mxu0 0.0
    %8823 = vmatpush1.msra.mxu0 %v4808
    %8824 = vmatprep.subr.mxu0 0.0
    %8825 = vmatpush1.msra.mxu0 %v4807
    %8826 = vmatprep.subr.mxu0 0.0
    %8827 = vmatpush1.msra.mxu0 %v4806
    %8828 = vmatprep.subr.mxu0 0.0
    %8829 = vmatpush1.msra.mxu0 %v4805
    %8830 = vmatprep.subr.mxu0 0.0
    %8831 = vmatpush1.msra.mxu0 %v4804
    %8832 = vmatprep.subr.mxu0 0.0
    %8833 = vmatpush2.msra.mxu0 %v4835
    %8834 = vmatprep.subr.mxu0 0.0
    %8835 = vmatpush2.msra.mxu0 %v4834
    %8836 = vmatprep.subr.mxu0 0.0
    %8837 = vmatpush2.msra.mxu0 %v4833
    %8838 = vmatprep.subr.mxu0 0.0
    %8839 = vmatpush2.msra.mxu0 %v4832
    %8840 = vmatprep.subr.mxu0 0.0
    %8841 = vmatpush2.msra.mxu0 %v4831
    %8842 = vmatprep.subr.mxu0 0.0
    %8843 = vmatpush2.msra.mxu0 %v4830
    %8844 = vmatprep.subr.mxu0 0.0
    %8845 = vmatpush2.msra.mxu0 %v4829
    %8846 = vmatprep.subr.mxu0 0.0
    %8847 = vmatpush2.msra.mxu0 %v4828
    %8848 = vmatprep.subr.mxu0 0.0
    %8849 = vmatpush2.msra.mxu0 %v4827
    %8850 = vmatprep.subr.mxu0 0.0
    %8851 = vmatpush2.msra.mxu0 %v4826
    %8852 = vmatprep.subr.mxu0 0.0
    %8853 = vmatpush2.msra.mxu0 %v4825
    %8854 = vmatprep.subr.mxu0 0.0
    %8855 = vmatpush2.msra.mxu0 %v4824
    %8856 = vmatprep.subr.mxu0 0.0
    %8857 = vmatpush2.msra.mxu0 %v4823
    %8858 = vmatprep.subr.mxu0 0.0
    %8859 = vmatpush2.msra.mxu0 %v4822
    %8860 = vmatprep.subr.mxu0 0.0
    %8861 = vmatpush2.msra.mxu0 %v4821
    %8862 = vmatprep.subr.mxu0 0.0
    %8863 = vmatpush2.msra.mxu0 %v4820
    %8864 = vmatprep.mubr.f32.mxu0 %v8684
    %8865 = vmatmul.mubr.f32.gmra.mxu0 %v8683
    %v8866 = vpop.f32.mrf.mxu0
    %v8867 = vadd.f32 %v8772, %v8866
    %v8868 = vpop.f32.mrf.mxu0
    %8869 = vmatprep.mubr.f32.mxu0 %v8688
    %8870 = vmatmul.mubr.f32.gmra.mxu0 %v8687
    %v8871 = vpop.f32.mrf.mxu0
    %v8872 = vadd.f32 %v8777, %v8871
    %v8873 = vpop.f32.mrf.mxu0
    %8874 = vmatprep.mubr.f32.mxu0 %v8692
    %8875 = vmatmul.mubr.f32.gmra.mxu0 %v8691
    %v8876 = vpop.f32.mrf.mxu0
    %v8877 = vadd.f32 %v8782, %v8876
    %v8878 = vpop.f32.mrf.mxu0
    %8879 = vmatprep.mubr.f32.mxu0 %v8696
    %8880 = vmatmul.mubr.f32.gmra.mxu0 %v8695
    %v8881 = vpop.f32.mrf.mxu0
    %v8882 = vadd.f32 %v8787, %v8881
    %v8883 = vpop.f32.mrf.mxu0
    %8884 = vmatprep.mubr.f32.mxu0 %v8700
    %8885 = vmatmul.mubr.f32.gmra.mxu0 %v8699
    %v8886 = vpop.f32.mrf.mxu0
    %v8887 = vadd.f32 %v8792, %v8886
    %v8888 = vpop.f32.mrf.mxu0
    %8889 = vmatprep.mubr.f32.mxu0 %v8704
    %8890 = vmatmul.mubr.f32.gmra.mxu0 %v8703
    %v8891 = vpop.f32.mrf.mxu0
    %v8892 = vadd.f32 %v8797, %v8891
    %v8893 = vpop.f32.mrf.mxu0
    %8894 = vdwg.mxu0
    %v8895 = vadd.f32 %v7738, %v8867
    %v8896 = vadd.f32 %v7739, %v8872
    %v8897 = vadd.f32 %v7740, %v8877
    %v8898 = vadd.f32 %v7741, %v8882
    %v8899 = vadd.f32 %v7742, %v8887
    %v8900 = vadd.f32 %v7743, %v8892
    %v8902 = vlaneseq
    %v8903 = vshrl.u32 %v8902, 7
    %v8904 = vsub.s32 0, %v8903
    %v8905 = vrot.slane %v4837, %v8904
    %v8907 = vadd.f32 %v8895, %v8905
    %v8908 = vadd.f32 %v8896, %v8905
    %v8909 = vadd.f32 %v8897, %v8905
    %v8910 = vadd.f32 %v8898, %v8905
    %v8911 = vadd.f32 %v8899, %v8905
    %v8912 = vadd.f32 %v8900, %v8905
    %v8913 = vld [vmem:[%s15] sm:$0x1]
    %v8914 = vld [vmem:[%s16] sm:$0x1]
    %8915 = vadd.xlane.f32.xlu0 %v8907
    %v8916 = vpop.xlane.xlu0 %8915
    %8917 = vadd.xlane.f32.xlu0 %v8908
    %v8918 = vpop.xlane.xlu0 %8917
    %8919 = vadd.xlane.f32.xlu0 %v8909
    %v8920 = vpop.xlane.xlu0 %8919
    %8921 = vadd.xlane.f32.xlu0 %v8910
    %v8922 = vpop.xlane.xlu0 %8921
    %8923 = vadd.xlane.f32.xlu0 %v8911
    %v8924 = vpop.xlane.xlu0 %8923
    %8925 = vadd.xlane.f32.xlu0 %v8912
    %v8926 = vpop.xlane.xlu0 %8925
    %v8927 = vmul.f32 %v8916, %v560
    %v8928 = vmul.f32 %v8918, %v560
    %v8929 = vmul.f32 %v8920, %v560
    %v8930 = vmul.f32 %v8922, %v560
    %v8931 = vmul.f32 %v8924, %v560
    %v8932 = vmul.f32 %v8926, %v560
    %v8933 = vsub.f32 %v8907, %v8927
    %v8934 = vsub.f32 %v8908, %v8928
    %v8935 = vsub.f32 %v8909, %v8929
    %v8936 = vsub.f32 %v8910, %v8930
    %v8937 = vsub.f32 %v8911, %v8931
    %v8938 = vsub.f32 %v8912, %v8932
    %v8939 = vmul.f32 %v8933, %v8933
    %v8940 = vmul.f32 %v8934, %v8934
    %v8941 = vmul.f32 %v8935, %v8935
    %v8942 = vmul.f32 %v8936, %v8936
    %v8943 = vmul.f32 %v8937, %v8937
    %v8944 = vmul.f32 %v8938, %v8938
    %8945 = vadd.xlane.f32.xlu0 %v8939
    %v8946 = vpop.xlane.xlu0 %8945
    %8947 = vadd.xlane.f32.xlu0 %v8940
    %v8948 = vpop.xlane.xlu0 %8947
    %8949 = vadd.xlane.f32.xlu0 %v8941
    %v8950 = vpop.xlane.xlu0 %8949
    %8951 = vadd.xlane.f32.xlu0 %v8942
    %v8952 = vpop.xlane.xlu0 %8951
    %8953 = vadd.xlane.f32.xlu0 %v8943
    %v8954 = vpop.xlane.xlu0 %8953
    %8955 = vadd.xlane.f32.xlu0 %v8944
    %v8956 = vpop.xlane.xlu0 %8955
    %v8957 = vmul.f32 %v8946, %v560
    %v8958 = vmul.f32 %v8948, %v560
    %v8959 = vmul.f32 %v8950, %v560
    %v8960 = vmul.f32 %v8952, %v560
    %v8961 = vmul.f32 %v8954, %v560
    %v8962 = vmul.f32 %v8956, %v560
    %v8963 = vadd.f32 %v8957, 1e-05
    %v8964 = vadd.f32 %v8958, 1e-05
    %v8965 = vadd.f32 %v8959, 1e-05
    %v8966 = vadd.f32 %v8960, 1e-05
    %v8967 = vadd.f32 %v8961, 1e-05
    %v8968 = vadd.f32 %v8962, 1e-05
    %v8969 = vrsqrt.pop %v8963
    %v8970 = vrsqrt.pop %v8964
    %v8971 = vrsqrt.pop %v8965
    %v8972 = vrsqrt.pop %v8966
    %v8973 = vrsqrt.pop %v8967
    %v8974 = vrsqrt.pop %v8968
    %v8975 = vmul.f32 %v8933, %v8969
    %v8976 = vmul.f32 %v8934, %v8970
    %v8977 = vmul.f32 %v8935, %v8971
    %v8978 = vmul.f32 %v8936, %v8972
    %v8979 = vmul.f32 %v8937, %v8973
    %v8980 = vmul.f32 %v8938, %v8974
    %v8982 = vlaneseq
    %v8983 = vshrl.u32 %v8982, 7
    %v8984 = vsub.s32 0, %v8983
    %v8985 = vrot.slane %v8913, %v8984
    %v8987 = vmul.f32 %v8975, %v8985
    %v8988 = vmul.f32 %v8976, %v8985
    %v8989 = vmul.f32 %v8977, %v8985
    %v8990 = vmul.f32 %v8978, %v8985
    %v8991 = vmul.f32 %v8979, %v8985
    %v8992 = vmul.f32 %v8980, %v8985
    %v8994 = vlaneseq
    %v8995 = vshrl.u32 %v8994, 7
    %v8996 = vsub.s32 0, %v8995
    %v8997 = vrot.slane %v8914, %v8996
    %v8999 = vadd.f32 %v8987, %v8997
    %v9000 = vadd.f32 %v8988, %v8997
    %v9001 = vadd.f32 %v8989, %v8997
    %v9002 = vadd.f32 %v8990, %v8997
    %v9003 = vadd.f32 %v8991, %v8997
    %v9004 = vadd.f32 %v8992, %v8997
    %v9005 = vld [vmem:[#allocation19] sm:$0xff]
    %v9006 = vld [vmem:[#allocation19 + $0x8] sm:$0xff]
    %v9007 = vld [vmem:[#allocation19 + $0x10] sm:$0xff]
    %v9008 = vld [vmem:[#allocation19 + $0x18] sm:$0xff]
    %v9009 = vld [vmem:[#allocation19 + $0x20] sm:$0xff]
    %v9010 = vld [vmem:[#allocation19 + $0x28] sm:$0xff]
    %v9011 = vld [vmem:[#allocation19 + $0x30] sm:$0xff]
    %v9012 = vld [vmem:[#allocation19 + $0x38] sm:$0xff]
    %v9013 = vld [vmem:[#allocation19 + $0x40] sm:$0xff]
    %v9014 = vld [vmem:[#allocation19 + $0x48] sm:$0xff]
    %v9015 = vld [vmem:[#allocation19 + $0x50] sm:$0xff]
    %v9016 = vld [vmem:[#allocation19 + $0x58] sm:$0xff]
    %v9017 = vld [vmem:[#allocation19 + $0x60] sm:$0xff]
    %v9018 = vld [vmem:[#allocation19 + $0x68] sm:$0xff]
    %v9019 = vld [vmem:[#allocation19 + $0x70] sm:$0xff]
    %v9020 = vld [vmem:[#allocation19 + $0x78] sm:$0xff]
    %v9021 = vld [vmem:[%s18] sm:$0x1]
    %v9023 = vlaneseq
    %v9024 = vshrl.u32 %v9023, 7
    %v9025 = vsub.s32 0, %v9024
    %v9026 = vrot.slane %v9021, %v9025
    %9028 = vmatprep.subr.mxu0 0.0
    %9029 = vmatpush1.msra.mxu0 %v9020
    %9030 = vmatprep.subr.mxu0 0.0
    %9031 = vmatpush1.msra.mxu0 %v9019
    %9032 = vmatprep.subr.mxu0 0.0
    %9033 = vmatpush1.msra.mxu0 %v9018
    %9034 = vmatprep.subr.mxu0 0.0
    %9035 = vmatpush1.msra.mxu0 %v9017
    %9036 = vmatprep.subr.mxu0 0.0
    %9037 = vmatpush1.msra.mxu0 %v9016
    %9038 = vmatprep.subr.mxu0 0.0
    %9039 = vmatpush1.msra.mxu0 %v9015
    %9040 = vmatprep.subr.mxu0 0.0
    %9041 = vmatpush1.msra.mxu0 %v9014
    %9042 = vmatprep.subr.mxu0 0.0
    %9043 = vmatpush1.msra.mxu0 %v9013
    %9044 = vmatprep.subr.mxu0 0.0
    %9045 = vmatpush1.msra.mxu0 %v9012
    %9046 = vmatprep.subr.mxu0 0.0
    %9047 = vmatpush1.msra.mxu0 %v9011
    %9048 = vmatprep.subr.mxu0 0.0
    %9049 = vmatpush1.msra.mxu0 %v9010
    %9050 = vmatprep.subr.mxu0 0.0
    %9051 = vmatpush1.msra.mxu0 %v9009
    %9052 = vmatprep.subr.mxu0 0.0
    %9053 = vmatpush1.msra.mxu0 %v9008
    %9054 = vmatprep.subr.mxu0 0.0
    %9055 = vmatpush1.msra.mxu0 %v9007
    %9056 = vmatprep.subr.mxu0 0.0
    %9057 = vmatpush1.msra.mxu0 %v9006
    %9058 = vmatprep.subr.mxu0 0.0
    %9059 = vmatpush1.msra.mxu0 %v9005
    %9060 = vmatprep.subr.mxu0 0.0
    %9061 = vmatpush2.msra.mxu0 0.0
    %9062 = vmatprep.subr.mxu0 0.0
    %9063 = vmatpush2.msra.mxu0 0.0
    %9064 = vmatprep.subr.mxu0 0.0
    %9065 = vmatpush2.msra.mxu0 0.0
    %9066 = vmatprep.subr.mxu0 0.0
    %9067 = vmatpush2.msra.mxu0 0.0
    %9068 = vmatprep.subr.mxu0 0.0
    %9069 = vmatpush2.msra.mxu0 0.0
    %9070 = vmatprep.subr.mxu0 0.0
    %9071 = vmatpush2.msra.mxu0 0.0
    %9072 = vmatprep.subr.mxu0 0.0
    %9073 = vmatpush2.msra.mxu0 0.0
    %9074 = vmatprep.subr.mxu0 0.0
    %9075 = vmatpush2.msra.mxu0 0.0
    %9076 = vmatprep.subr.mxu0 0.0
    %9077 = vmatpush2.msra.mxu0 0.0
    %9078 = vmatprep.subr.mxu0 0.0
    %9079 = vmatpush2.msra.mxu0 0.0
    %9080 = vmatprep.subr.mxu0 0.0
    %9081 = vmatpush2.msra.mxu0 0.0
    %9082 = vmatprep.subr.mxu0 0.0
    %9083 = vmatpush2.msra.mxu0 0.0
    %9084 = vmatprep.subr.mxu0 0.0
    %9085 = vmatpush2.msra.mxu0 0.0
    %9086 = vmatprep.subr.mxu0 0.0
    %9087 = vmatpush2.msra.mxu0 0.0
    %9088 = vmatprep.subr.mxu0 0.0
    %9089 = vmatpush2.msra.mxu0 0.0
    %9090 = vmatprep.subr.mxu0 0.0
    %9091 = vmatpush2.msra.mxu0 0.0
    %9092 = vmatprep.mubr.f32.mxu0 0.0
    %9093 = vmatmul.mubr.f32.gmra.mxu0 %v8999
    %v9094 = vpop.f32.mrf.mxu0
    %v9095 = vadd.f32 %v9026, %v9094
    %v9096 = vpop.f32.mrf.mxu0
    %9097 = vmatprep.mubr.f32.mxu0 0.0
    %9098 = vmatmul.mubr.f32.gmra.mxu0 %v9000
    %v9099 = vpop.f32.mrf.mxu0
    %v9100 = vadd.f32 %v9026, %v9099
    %v9101 = vpop.f32.mrf.mxu0
    %9102 = vmatprep.mubr.f32.mxu0 0.0
    %9103 = vmatmul.mubr.f32.gmra.mxu0 %v9001
    %v9104 = vpop.f32.mrf.mxu0
    %v9105 = vadd.f32 %v9026, %v9104
    %v9106 = vpop.f32.mrf.mxu0
    %9107 = vmatprep.mubr.f32.mxu0 0.0
    %9108 = vmatmul.mubr.f32.gmra.mxu0 %v9002
    %v9109 = vpop.f32.mrf.mxu0
    %v9110 = vadd.f32 %v9026, %v9109
    %v9111 = vpop.f32.mrf.mxu0
    %9112 = vmatprep.mubr.f32.mxu0 0.0
    %9113 = vmatmul.mubr.f32.gmra.mxu0 %v9003
    %v9114 = vpop.f32.mrf.mxu0
    %v9115 = vadd.f32 %v9026, %v9114
    %v9116 = vpop.f32.mrf.mxu0
    %9117 = vmatprep.mubr.f32.mxu0 0.0
    %9118 = vmatmul.mubr.f32.gmra.mxu0 %v9004
    %v9119 = vpop.f32.mrf.mxu0
    %v9120 = vadd.f32 %v9026, %v9119
    %v9121 = vpop.f32.mrf.mxu0
    %9122 = vdwg.mxu0
    %9123 = vst [vmem:[#allocation20] sm:$0xff] %v9095
    %9124 = vst [vmem:[#allocation20 + $0x8] sm:$0xff] %v9100
    %9125 = vst [vmem:[#allocation20 + $0x10] sm:$0xff] %v9105
    %9126 = vst [vmem:[#allocation20 + $0x18] sm:$0xff] %v9110
    %9127 = vst [vmem:[#allocation20 + $0x20] sm:$0xff] %v9115
    %9128 = vst [vmem:[#allocation20 + $0x28] sm:$0xff] %v9120
    // Predicated region
    $region122: #{tpu_custom_call.1} parent=1 // pred_check
      _
    $region123: #{tpu_custom_call.1} parent=1 // pred_check_branch
      %9130 = sbr.rel (0) target = $region125
    $region124: #{tpu_custom_call.1} parent=1 // pred_region
      %s9132 = ssub.s32 768, 768
      %9133 = vsyncadd [#allocation4], %s9132
      %s9134 = sshll.u32 [#allocation20], 4
      %s9135 = int_to_ptr.vmem [resolvable:$true] %s9134
      %9140 = dma.vmem_to_hbm [thread:$0]  %s9135, 768, %s19, [#allocation4], 128, 128, 8
    $region125: #{tpu_custom_call.1} parent=1 // pred_fallthru
      _
    // Predicated region
    $region126: #{tpu_custom_call.1} parent=1 // pred_check
      _
    $region127: #{tpu_custom_call.1} parent=1 // pred_check_branch
      %9142 = sbr.rel (0) target = $region129
    $region128: #{tpu_custom_call.1} parent=1 // pred_region
      %9143 = dma.done [#allocation4], 768
    $region129: #{tpu_custom_call.1} parent=1 // pred_fallthru
      _
    %9144 = vsyncpa [#allocation3], 1
    %9145 = vsyncpa [#allocation6], 1
    %9146 = vsyncpa [#allocation9], 1
    %9147 = vsyncpa [#allocation12], 1
    %9148 = vsyncpa [#allocation15], 1
    %9149 = vsyncpa [#allocation18], 1
    %9150 = vsyncpa [#allocation4], 1

</llo_original>
